<compile_context>
chip_gen: v6e
topology: v6e:2x2x1
jax: 0.10.0
libtpu: 0.0.40
codegen_flags: <defaults>
</compile_context>

<pallas_src>
import functools

import jax
import jax.numpy as jnp
from jax import lax
from jax.experimental import pallas as pl
from jax.experimental.pallas import tpu as pltpu


def _dot_hi(a, b):
    # Multi-pass full-f32 MXU matmul: convs / input projections / final linear
    # (few matmuls, mostly off the serial critical path) -> tight numerics.
    return jnp.dot(a, b, precision=lax.Precision.HIGHEST,
                   preferred_element_type=jnp.float32)


def _dot_fast(a, b):
    # Single-pass MXU matmul (bf16 operands, f32 accumulate): the per-timestep
    # h @ W_hh on the latency-bound recurrence chain.
    return jnp.dot(a, b, precision=lax.Precision.DEFAULT,
                   preferred_element_type=jnp.float32)


# ------------------------------ fused kernel --------------------------------

def _fused_forward_kernel(mel_ref, *refs, K, num_convs, num_layers, fins, pads, H):
    conv_refs = refs[:num_convs]                               # packed [W_slab; bias]
    lstm_refs = refs[num_convs:num_convs + num_layers]         # packed [W_ih; pad; W_hh; bias]
    lin_ref = refs[num_convs + num_layers]                     # packed [W_lin; bias]
    out_ref = refs[num_convs + num_layers + 1]
    seq_ref = refs[num_convs + num_layers + 2]                 # (seq*B, max(F,H)) scratch

    B = mel_ref.shape[0]

    # ---------------- Encoder: num_convs x (Conv1d + ReLU) ------------------
    # Batched over B: one im2col slab (B*Lout, K*Cin) and ONE matmul per conv
    # layer.  Weights/biases are read at the use site only.
    xs = [mel_ref[b] for b in range(B)]                        # each (L, Cin)
    for li in range(num_convs):
        L, cin = xs[0].shape
        Lout = L - K + 1
        cw = conv_refs[li]
        w = cw[0:K * cin, :]                                   # (K*Cin, Cout)
        bias = cw[K * cin:K * cin + 1, :]                      # (1, Cout)
        slab = jnp.concatenate(
            [jnp.concatenate([xb[k:k + Lout, :] for k in range(K)], axis=1)
             for xb in xs], axis=0)                            # (B*Lout, K*Cin)
        y = jnp.maximum(_dot_hi(slab, w) + bias, 0.0)          # (B*Lout, Cout)
        xs = [y[b * Lout:(b + 1) * Lout, :] for b in range(B)]

    F = xs[0].shape[0]        # LSTM feature size   (= positions after convs)
    seq = xs[0].shape[1]      # LSTM sequence length (= channels of last conv)

    # ------------- NCW -> batch_first handoff (one-time interleave) ---------
    # The batch_first LSTM reads the encoder output as (seq=channels,
    # features=positions).  Lay it out t-major in the scratch:
    # row t*B + b = xs[b][:, t], so every per-step access is contiguous rows.
    for b in range(B):
        sb = xs[b].T                                           # (seq, F)
        for t in range(seq):
            r = t * B + b
            seq_ref[r:r + 1, 0:F] = sb[t:t + 1, :]

    # ---------------- LSTM stack ---------------------------------------------
    h = None
    for l in range(num_layers):
        fin = fins[l]
        a0 = pads[l]                                           # 8-aligned W_hh row offset
        lref = lstm_refs[l]
        wih = lref[0:fin, :]                                   # (Fin, 4H)
        whh = lref[a0:a0 + H, :]                               # (H, 4H)  lane-dense
        bias = lref[a0 + H:a0 + H + 1, :]                      # (1, 4H)  (b_ih + b_hh)
        last = l == num_layers - 1

        x_in = seq_ref[0:seq * B, 0:fin]                       # t-major layer input
        gx = _dot_hi(x_in, wih) + bias                         # hoisted projection (seq*B, 4H)

        h = jnp.zeros((B, H), jnp.float32)
        c = jnp.zeros((B, H), jnp.float32)
        for t in range(seq):                                   # static unroll (seq is small)
            g = gx[t * B:(t + 1) * B, :] + _dot_fast(h, whh)   # (B, 4H): one matmul/step
            i = jax.nn.sigmoid(g[:, 0:H])
            f = jax.nn.sigmoid(g[:, H:2 * H])
            gg = jnp.tanh(g[:, 2 * H:3 * H])
            o = jax.nn.sigmoid(g[:, 3 * H:4 * H])
            c = f * c + i * gg
            h = o * jnp.tanh(c)
            if not last:                                       # last layer only needs h_T
                seq_ref[t * B:(t + 1) * B, 0:H] = h            # feeds next layer, t-major

    # ---------------- final Linear + ReLU ------------------------------------
    wl = lin_ref[0:H, :]
    bl = lin_ref[H:H + 1, :]
    out_ref[...] = jnp.maximum(_dot_hi(h, wl) + bl, 0.0)


# ------------------------------ wrapper --------------------------------------

def convolution_lstm_cos_forward(mel, kparams):
    """mel: (B, T, encoder_dim) f32 -> (B, embedding_size) f32, one fused kernel."""
    B, T, _ = mel.shape
    K = kparams["kernel"]
    H = kparams["H"]
    seq = kparams["seq"]
    E = kparams["linear"].shape[1]
    num_convs = len(kparams["convs"])
    num_layers = len(kparams["lstm"])
    F = kparams["fins"][0]
    # im2col path assumes stride=1, no padding, valid windows (nn.Conv1d defaults).
    assert T - num_convs * (K - 1) == F, (T, K, num_convs, F)

    inputs = [mel] + list(kparams["convs"]) + list(kparams["lstm"]) + [kparams["linear"]]
    kernel = functools.partial(
        _fused_forward_kernel, K=K, num_convs=num_convs, num_layers=num_layers,
        fins=tuple(kparams["fins"]), pads=tuple(kparams["pads"]), H=H)

    vmem = pl.BlockSpec(memory_space=pltpu.MemorySpace.VMEM)
    return pl.pallas_call(
        kernel,
        out_shape=jax.ShapeDtypeStruct((B, E), jnp.float32),
        in_specs=[vmem] * len(inputs),
        out_specs=vmem,
        scratch_shapes=[pltpu.VMEM((seq * B, max(F, H)), jnp.float32)],
    )(*inputs)


def pack_params(tparams, kernel):
    """Repack PyTorch-layout parameters into consolidated, lane-dense arrays."""
    K = kernel
    convs = []
    for (w, b) in tparams["convs"]:                  # w: (Cout, Cin, K), b: (Cout,)
        Cout, Cin, _ = w.shape
        # wflat[k*Cin + c, o] = w[o, c, k]  (matches im2col slab column order)
        wflat = jnp.transpose(w, (2, 1, 0)).reshape(K * Cin, Cout)
        convs.append(jnp.concatenate([wflat, b[None, :]], axis=0).astype(jnp.float32))

    lstm, fins, pads = [], [], []
    H = tparams["lstm"][0][1].shape[1]
    for (Wih, Whh, bih, bhh) in tparams["lstm"]:     # torch: (4H,Fin),(4H,H),(4H,),(4H,)
        fin = Wih.shape[1]
        a0 = ((fin + 7) // 8) * 8                    # 8-align the W_hh row offset
        padrows = jnp.zeros((a0 - fin, 4 * H), jnp.float32)
        packed = jnp.concatenate(
            [Wih.T, padrows, Whh.T, (bih + bhh)[None, :]], axis=0)
        lstm.append(packed.astype(jnp.float32))      # (a0 + H + 1, 4H), gates i,f,g,o
        fins.append(fin)
        pads.append(a0)

    Wl, bl = tparams["linear"]
    linear = jnp.concatenate([Wl.T, bl[None, :]], axis=0).astype(jnp.float32)  # (H+1, E)
    seq = tparams["convs"][-1][0].shape[0]           # last conv Cout = LSTM seq length
    return {"kernel": K, "convs": convs, "lstm": lstm, "linear": linear,
            "fins": fins, "pads": pads, "H": H, "seq": seq}


# --------------------------- pure-JAX reference ------------------------------

def reference_forward(mel, tparams):
    x = mel                                          # (B, T, C) channels-last
    for (w, b) in tparams["convs"]:                  # w: (Cout, Cin, K) torch layout
        Bsz, L, _ = x.shape
        Cout, _, Kk = w.shape
        Lout = L - Kk + 1
        out = jnp.zeros((Bsz, Lout, Cout), jnp.float32)
        for k in range(Kk):
            out = out + jnp.einsum("blc,oc->blo", x[:, k:k + Lout, :], w[:, :, k],
                                   precision=lax.Precision.HIGHEST)
        x = jnp.maximum(out + b[None, None, :], 0.0)
    h_all = jnp.transpose(x, (0, 2, 1))              # (B, seq, F)
    for (Wih, Whh, bih, bhh) in tparams["lstm"]:
        Hh = Whh.shape[1]

        def step(carry, xt, Wih=Wih, Whh=Whh, bih=bih, bhh=bhh, Hh=Hh):
            h, c = carry
            gates = (jnp.dot(xt, Wih.T, precision=lax.Precision.HIGHEST)
                     + jnp.dot(h, Whh.T, precision=lax.Precision.HIGHEST)
                     + bih + bhh)
            i = jax.nn.sigmoid(gates[:, :Hh])
            f = jax.nn.sigmoid(gates[:, Hh:2 * Hh])
            g = jnp.tanh(gates[:, 2 * Hh:3 * Hh])
            o = jax.nn.sigmoid(gates[:, 3 * Hh:])
            c = f * c + i * g
            h = o * jnp.tanh(c)
            return (h, c), h

        Bsz = h_all.shape[0]
        init = (jnp.zeros((Bsz, Hh), jnp.float32),
                jnp.zeros((Bsz, Hh), jnp.float32))
        _, hs = lax.scan(step, init, jnp.transpose(h_all, (1, 0, 2)))
        h_all = jnp.transpose(hs, (1, 0, 2))
    last = h_all[:, -1]
    Wl, bl = tparams["linear"]
    return jnp.maximum(jnp.dot(last, Wl.T, precision=lax.Precision.HIGHEST) + bl, 0.0)


# ---------------------------------- main -------------------------------------

if __name__ == "__main__":
    # Small shapes consistent with the module's constraints:
    #   LSTM input_size = T - 3*(kernel-1);  LSTM seq length = hidden_dim3.
    B, T, ENC = 2, 16, 24
    H1, H2, H3 = 32, 16, 8            # H3 = LSTM sequence length
    K = 3
    LH, NL, EMB = 32, 2, 16           # LSTM hidden (4*LH = 128 lanes), layers, embedding
    F = T - 3 * (K - 1)               # = 10 (LSTM input_size)

    key = jax.random.PRNGKey(0)
    keys = iter(jax.random.split(key, 64))

    def rnd(shape, scale=0.1):
        return (scale * jax.random.normal(next(keys), shape)).astype(jnp.float32)

    # --- PyTorch-layout parameters (deterministic, synthetic) ---
    conv_shapes = [(H1, ENC), (H2, H1), (H3, H2)]
    convs_t = [(rnd((co, ci, K)), rnd((co,), 0.01)) for co, ci in conv_shapes]
    lstm_t = []
    for l in range(NL):
        fin = F if l == 0 else LH
        lstm_t.append((rnd((4 * LH, fin)), rnd((4 * LH, LH)),
                       rnd((4 * LH,), 0.01), rnd((4 * LH,), 0.01)))
    Wl, bl = rnd((EMB, LH)), rnd((EMB,), 0.01)
    tparams = {"convs": convs_t, "lstm": lstm_t, "linear": (Wl, bl)}

    # --- repack for the fused Pallas kernel ---
    kparams = pack_params(tparams, K)

    mel = jax.random.normal(next(keys), (B, T, ENC)).astype(jnp.float32)

    out = jax.block_until_ready(convolution_lstm_cos_forward(mel, kparams))
    ref = jax.block_until_ready(reference_forward(mel, tparams))

    assert out.shape == (B, EMB), out.shape
    # Only the per-step h @ W_hh runs at DEFAULT (single-pass) precision; the
    # rest is full f32, so the error stays ~1e-3.
    err = float(jnp.max(jnp.abs(out - ref)))
    assert jnp.allclose(out, ref, rtol=1e-2, atol=1e-2), err
    print("KERNEL_OK")
</pallas_src>

<mosaic_0001>
module attributes {stable_mosaic.version = 11 : i64} {
  func.func @_fused_forward_kernel(%arg0: memref<2x16x24xf32, #tpu.memory_space<vmem>>, %arg1: memref<73x32xf32, #tpu.memory_space<vmem>>, %arg2: memref<97x16xf32, #tpu.memory_space<vmem>>, %arg3: memref<49x8xf32, #tpu.memory_space<vmem>>, %arg4: memref<49x128xf32, #tpu.memory_space<vmem>>, %arg5: memref<65x128xf32, #tpu.memory_space<vmem>>, %arg6: memref<33x16xf32, #tpu.memory_space<vmem>>, %arg7: memref<2x16xf32, #tpu.memory_space<vmem>>, %arg8: memref<16x32xf32, #tpu.memory_space<vmem>>) attributes {dimension_semantics = [], scalar_prefetch = 0 : i64, scratch_operands = 1 : i64, tpu.core_type = #tpu.core_type<tc>} {
    %c0 = arith.constant 0 : index
    %c0_0 = arith.constant 0 : index
    %c0_1 = arith.constant 0 : index
    %0 = vector.load %arg0[%c0, %c0_0, %c0_1] : memref<2x16x24xf32, #tpu.memory_space<vmem>>, vector<1x16x24xf32>
    %1 = vector.shape_cast %0 : vector<1x16x24xf32> to vector<16x24xf32>
    %c1 = arith.constant 1 : index
    %c0_2 = arith.constant 0 : index
    %c0_3 = arith.constant 0 : index
    %2 = vector.load %arg0[%c1, %c0_2, %c0_3] : memref<2x16x24xf32, #tpu.memory_space<vmem>>, vector<1x16x24xf32>
    %3 = vector.shape_cast %2 : vector<1x16x24xf32> to vector<16x24xf32>
    %c0_4 = arith.constant 0 : index
    %c0_5 = arith.constant 0 : index
    %4 = vector.load %arg1[%c0_4, %c0_5] : memref<73x32xf32, #tpu.memory_space<vmem>>, vector<72x32xf32>
    %c72 = arith.constant 72 : index
    %c0_6 = arith.constant 0 : index
    %5 = vector.load %arg1[%c72, %c0_6] : memref<73x32xf32, #tpu.memory_space<vmem>>, vector<1x32xf32>
    %6 = vector.extract_strided_slice %1 {offsets = [0, 0], sizes = [14, 24], strides = [1, 1]} : vector<16x24xf32> to vector<14x24xf32>
    %7 = vector.extract_strided_slice %1 {offsets = [1, 0], sizes = [14, 24], strides = [1, 1]} : vector<16x24xf32> to vector<14x24xf32>
    %8 = vector.extract_strided_slice %1 {offsets = [2, 0], sizes = [14, 24], strides = [1, 1]} : vector<16x24xf32> to vector<14x24xf32>
    %9 = tpu.concatenate %6, %7, %8 in 1 : vector<14x24xf32>, vector<14x24xf32>, vector<14x24xf32> -> vector<14x72xf32>
    %10 = vector.extract_strided_slice %3 {offsets = [0, 0], sizes = [14, 24], strides = [1, 1]} : vector<16x24xf32> to vector<14x24xf32>
    %11 = vector.extract_strided_slice %3 {offsets = [1, 0], sizes = [14, 24], strides = [1, 1]} : vector<16x24xf32> to vector<14x24xf32>
    %12 = vector.extract_strided_slice %3 {offsets = [2, 0], sizes = [14, 24], strides = [1, 1]} : vector<16x24xf32> to vector<14x24xf32>
    %13 = tpu.concatenate %10, %11, %12 in 1 : vector<14x24xf32>, vector<14x24xf32>, vector<14x24xf32> -> vector<14x72xf32>
    %14 = tpu.concatenate %9, %13 in 0 : vector<14x72xf32>, vector<14x72xf32> -> vector<28x72xf32>
    %cst = arith.constant dense<0.000000e+00> : vector<28x32xf32>
    %15 = tpu.matmul %14, %4, %cst {dimension_numbers = #tpu.dot_dimension_numbers<[1], [0], [0], [1], [0, 0, 1, 1], [], []>, precision = #tpu.contract_precision<fp32>} : vector<28x72xf32>, vector<72x32xf32>, vector<28x32xf32> -> vector<28x32xf32>
    %16 = vector.broadcast %5 : vector<1x32xf32> to vector<28x32xf32>
    %17 = arith.addf %15, %16 : vector<28x32xf32>
    %cst_7 = arith.constant 0.000000e+00 : f32
    %18 = vector.broadcast %cst_7 : f32 to vector<28x32xf32>
    %19 = arith.maximumf %17, %18 : vector<28x32xf32>
    %20 = vector.extract_strided_slice %19 {offsets = [0, 0], sizes = [14, 32], strides = [1, 1]} : vector<28x32xf32> to vector<14x32xf32>
    %21 = vector.extract_strided_slice %19 {offsets = [14, 0], sizes = [14, 32], strides = [1, 1]} : vector<28x32xf32> to vector<14x32xf32>
    %c0_8 = arith.constant 0 : index
    %c0_9 = arith.constant 0 : index
    %22 = vector.load %arg2[%c0_8, %c0_9] : memref<97x16xf32, #tpu.memory_space<vmem>>, vector<96x16xf32>
    %c96 = arith.constant 96 : index
    %c0_10 = arith.constant 0 : index
    %23 = vector.load %arg2[%c96, %c0_10] : memref<97x16xf32, #tpu.memory_space<vmem>>, vector<1x16xf32>
    %24 = vector.extract_strided_slice %20 {offsets = [0, 0], sizes = [12, 32], strides = [1, 1]} : vector<14x32xf32> to vector<12x32xf32>
    %25 = vector.extract_strided_slice %20 {offsets = [1, 0], sizes = [12, 32], strides = [1, 1]} : vector<14x32xf32> to vector<12x32xf32>
    %26 = vector.extract_strided_slice %20 {offsets = [2, 0], sizes = [12, 32], strides = [1, 1]} : vector<14x32xf32> to vector<12x32xf32>
    %27 = tpu.concatenate %24, %25, %26 in 1 : vector<12x32xf32>, vector<12x32xf32>, vector<12x32xf32> -> vector<12x96xf32>
    %28 = vector.extract_strided_slice %21 {offsets = [0, 0], sizes = [12, 32], strides = [1, 1]} : vector<14x32xf32> to vector<12x32xf32>
    %29 = vector.extract_strided_slice %21 {offsets = [1, 0], sizes = [12, 32], strides = [1, 1]} : vector<14x32xf32> to vector<12x32xf32>
    %30 = vector.extract_strided_slice %21 {offsets = [2, 0], sizes = [12, 32], strides = [1, 1]} : vector<14x32xf32> to vector<12x32xf32>
    %31 = tpu.concatenate %28, %29, %30 in 1 : vector<12x32xf32>, vector<12x32xf32>, vector<12x32xf32> -> vector<12x96xf32>
    %32 = tpu.concatenate %27, %31 in 0 : vector<12x96xf32>, vector<12x96xf32> -> vector<24x96xf32>
    %cst_11 = arith.constant dense<0.000000e+00> : vector<24x16xf32>
    %33 = tpu.matmul %32, %22, %cst_11 {dimension_numbers = #tpu.dot_dimension_numbers<[1], [0], [0], [1], [0, 0, 1, 1], [], []>, precision = #tpu.contract_precision<fp32>} : vector<24x96xf32>, vector<96x16xf32>, vector<24x16xf32> -> vector<24x16xf32>
    %34 = vector.broadcast %23 : vector<1x16xf32> to vector<24x16xf32>
    %35 = arith.addf %33, %34 : vector<24x16xf32>
    %cst_12 = arith.constant 0.000000e+00 : f32
    %36 = vector.broadcast %cst_12 : f32 to vector<24x16xf32>
    %37 = arith.maximumf %35, %36 : vector<24x16xf32>
    %38 = vector.extract_strided_slice %37 {offsets = [0, 0], sizes = [12, 16], strides = [1, 1]} : vector<24x16xf32> to vector<12x16xf32>
    %39 = vector.extract_strided_slice %37 {offsets = [12, 0], sizes = [12, 16], strides = [1, 1]} : vector<24x16xf32> to vector<12x16xf32>
    %c0_13 = arith.constant 0 : index
    %c0_14 = arith.constant 0 : index
    %40 = vector.load %arg3[%c0_13, %c0_14] : memref<49x8xf32, #tpu.memory_space<vmem>>, vector<48x8xf32>
    %c48 = arith.constant 48 : index
    %c0_15 = arith.constant 0 : index
    %41 = vector.load %arg3[%c48, %c0_15] : memref<49x8xf32, #tpu.memory_space<vmem>>, vector<1x8xf32>
    %42 = vector.extract_strided_slice %38 {offsets = [0, 0], sizes = [10, 16], strides = [1, 1]} : vector<12x16xf32> to vector<10x16xf32>
    %43 = vector.extract_strided_slice %38 {offsets = [1, 0], sizes = [10, 16], strides = [1, 1]} : vector<12x16xf32> to vector<10x16xf32>
    %44 = vector.extract_strided_slice %38 {offsets = [2, 0], sizes = [10, 16], strides = [1, 1]} : vector<12x16xf32> to vector<10x16xf32>
    %45 = tpu.concatenate %42, %43, %44 in 1 : vector<10x16xf32>, vector<10x16xf32>, vector<10x16xf32> -> vector<10x48xf32>
    %46 = vector.extract_strided_slice %39 {offsets = [0, 0], sizes = [10, 16], strides = [1, 1]} : vector<12x16xf32> to vector<10x16xf32>
    %47 = vector.extract_strided_slice %39 {offsets = [1, 0], sizes = [10, 16], strides = [1, 1]} : vector<12x16xf32> to vector<10x16xf32>
    %48 = vector.extract_strided_slice %39 {offsets = [2, 0], sizes = [10, 16], strides = [1, 1]} : vector<12x16xf32> to vector<10x16xf32>
    %49 = tpu.concatenate %46, %47, %48 in 1 : vector<10x16xf32>, vector<10x16xf32>, vector<10x16xf32> -> vector<10x48xf32>
    %50 = tpu.concatenate %45, %49 in 0 : vector<10x48xf32>, vector<10x48xf32> -> vector<20x48xf32>
    %cst_16 = arith.constant dense<0.000000e+00> : vector<20x8xf32>
    %51 = tpu.matmul %50, %40, %cst_16 {dimension_numbers = #tpu.dot_dimension_numbers<[1], [0], [0], [1], [0, 0, 1, 1], [], []>, precision = #tpu.contract_precision<fp32>} : vector<20x48xf32>, vector<48x8xf32>, vector<20x8xf32> -> vector<20x8xf32>
    %52 = vector.broadcast %41 : vector<1x8xf32> to vector<20x8xf32>
    %53 = arith.addf %51, %52 : vector<20x8xf32>
    %cst_17 = arith.constant 0.000000e+00 : f32
    %54 = vector.broadcast %cst_17 : f32 to vector<20x8xf32>
    %55 = arith.maximumf %53, %54 : vector<20x8xf32>
    %56 = vector.extract_strided_slice %55 {offsets = [0, 0], sizes = [10, 8], strides = [1, 1]} : vector<20x8xf32> to vector<10x8xf32>
    %57 = vector.extract_strided_slice %55 {offsets = [10, 0], sizes = [10, 8], strides = [1, 1]} : vector<20x8xf32> to vector<10x8xf32>
    %58 = tpu.transpose %56, [1, 0] : vector<10x8xf32> -> vector<8x10xf32>
    %59 = vector.extract_strided_slice %58 {offsets = [0, 0], sizes = [1, 10], strides = [1, 1]} : vector<8x10xf32> to vector<1x10xf32>
    %c0_18 = arith.constant 0 : index
    %c0_19 = arith.constant 0 : index
    %60 = vector.load %arg8[%c0_18, %c0_19] : memref<16x32xf32, #tpu.memory_space<vmem>>, vector<1x10xf32>
    tpu.vector_store %arg8[%c0_18, %c0_19], %59 {strides = array<i32>} : memref<16x32xf32, #tpu.memory_space<vmem>>, vector<1x10xf32>,
    %61 = vector.extract_strided_slice %58 {offsets = [1, 0], sizes = [1, 10], strides = [1, 1]} : vector<8x10xf32> to vector<1x10xf32>
    %c2 = arith.constant 2 : index
    %c0_20 = arith.constant 0 : index
    %62 = vector.load %arg8[%c2, %c0_20] : memref<16x32xf32, #tpu.memory_space<vmem>>, vector<1x10xf32>
    tpu.vector_store %arg8[%c2, %c0_20], %61 {strides = array<i32>} : memref<16x32xf32, #tpu.memory_space<vmem>>, vector<1x10xf32>,
    %63 = vector.extract_strided_slice %58 {offsets = [2, 0], sizes = [1, 10], strides = [1, 1]} : vector<8x10xf32> to vector<1x10xf32>
    %c4 = arith.constant 4 : index
    %c0_21 = arith.constant 0 : index
    %64 = vector.load %arg8[%c4, %c0_21] : memref<16x32xf32, #tpu.memory_space<vmem>>, vector<1x10xf32>
    tpu.vector_store %arg8[%c4, %c0_21], %63 {strides = array<i32>} : memref<16x32xf32, #tpu.memory_space<vmem>>, vector<1x10xf32>,
    %65 = vector.extract_strided_slice %58 {offsets = [3, 0], sizes = [1, 10], strides = [1, 1]} : vector<8x10xf32> to vector<1x10xf32>
    %c6 = arith.constant 6 : index
    %c0_22 = arith.constant 0 : index
    %66 = vector.load %arg8[%c6, %c0_22] : memref<16x32xf32, #tpu.memory_space<vmem>>, vector<1x10xf32>
    tpu.vector_store %arg8[%c6, %c0_22], %65 {strides = array<i32>} : memref<16x32xf32, #tpu.memory_space<vmem>>, vector<1x10xf32>,
    %67 = vector.extract_strided_slice %58 {offsets = [4, 0], sizes = [1, 10], strides = [1, 1]} : vector<8x10xf32> to vector<1x10xf32>
    %c8 = arith.constant 8 : index
    %c0_23 = arith.constant 0 : index
    %68 = vector.load %arg8[%c8, %c0_23] : memref<16x32xf32, #tpu.memory_space<vmem>>, vector<1x10xf32>
    tpu.vector_store %arg8[%c8, %c0_23], %67 {strides = array<i32>} : memref<16x32xf32, #tpu.memory_space<vmem>>, vector<1x10xf32>,
    %69 = vector.extract_strided_slice %58 {offsets = [5, 0], sizes = [1, 10], strides = [1, 1]} : vector<8x10xf32> to vector<1x10xf32>
    %c10 = arith.constant 10 : index
    %c0_24 = arith.constant 0 : index
    %70 = vector.load %arg8[%c10, %c0_24] : memref<16x32xf32, #tpu.memory_space<vmem>>, vector<1x10xf32>
    tpu.vector_store %arg8[%c10, %c0_24], %69 {strides = array<i32>} : memref<16x32xf32, #tpu.memory_space<vmem>>, vector<1x10xf32>,
    %71 = vector.extract_strided_slice %58 {offsets = [6, 0], sizes = [1, 10], strides = [1, 1]} : vector<8x10xf32> to vector<1x10xf32>
    %c12 = arith.constant 12 : index
    %c0_25 = arith.constant 0 : index
    %72 = vector.load %arg8[%c12, %c0_25] : memref<16x32xf32, #tpu.memory_space<vmem>>, vector<1x10xf32>
    tpu.vector_store %arg8[%c12, %c0_25], %71 {strides = array<i32>} : memref<16x32xf32, #tpu.memory_space<vmem>>, vector<1x10xf32>,
    %73 = vector.extract_strided_slice %58 {offsets = [7, 0], sizes = [1, 10], strides = [1, 1]} : vector<8x10xf32> to vector<1x10xf32>
    %c14 = arith.constant 14 : index
    %c0_26 = arith.constant 0 : index
    %74 = vector.load %arg8[%c14, %c0_26] : memref<16x32xf32, #tpu.memory_space<vmem>>, vector<1x10xf32>
    tpu.vector_store %arg8[%c14, %c0_26], %73 {strides = array<i32>} : memref<16x32xf32, #tpu.memory_space<vmem>>, vector<1x10xf32>,
    %75 = tpu.transpose %57, [1, 0] : vector<10x8xf32> -> vector<8x10xf32>
    %76 = vector.extract_strided_slice %75 {offsets = [0, 0], sizes = [1, 10], strides = [1, 1]} : vector<8x10xf32> to vector<1x10xf32>
    %c1_27 = arith.constant 1 : index
    %c0_28 = arith.constant 0 : index
    %77 = vector.load %arg8[%c1_27, %c0_28] : memref<16x32xf32, #tpu.memory_space<vmem>>, vector<1x10xf32>
    tpu.vector_store %arg8[%c1_27, %c0_28], %76 {strides = array<i32>} : memref<16x32xf32, #tpu.memory_space<vmem>>, vector<1x10xf32>,
    %78 = vector.extract_strided_slice %75 {offsets = [1, 0], sizes = [1, 10], strides = [1, 1]} : vector<8x10xf32> to vector<1x10xf32>
    %c3 = arith.constant 3 : index
    %c0_29 = arith.constant 0 : index
    %79 = vector.load %arg8[%c3, %c0_29] : memref<16x32xf32, #tpu.memory_space<vmem>>, vector<1x10xf32>
    tpu.vector_store %arg8[%c3, %c0_29], %78 {strides = array<i32>} : memref<16x32xf32, #tpu.memory_space<vmem>>, vector<1x10xf32>,
    %80 = vector.extract_strided_slice %75 {offsets = [2, 0], sizes = [1, 10], strides = [1, 1]} : vector<8x10xf32> to vector<1x10xf32>
    %c5 = arith.constant 5 : index
    %c0_30 = arith.constant 0 : index
    %81 = vector.load %arg8[%c5, %c0_30] : memref<16x32xf32, #tpu.memory_space<vmem>>, vector<1x10xf32>
    tpu.vector_store %arg8[%c5, %c0_30], %80 {strides = array<i32>} : memref<16x32xf32, #tpu.memory_space<vmem>>, vector<1x10xf32>,
    %82 = vector.extract_strided_slice %75 {offsets = [3, 0], sizes = [1, 10], strides = [1, 1]} : vector<8x10xf32> to vector<1x10xf32>
    %c7 = arith.constant 7 : index
    %c0_31 = arith.constant 0 : index
    %83 = vector.load %arg8[%c7, %c0_31] : memref<16x32xf32, #tpu.memory_space<vmem>>, vector<1x10xf32>
    tpu.vector_store %arg8[%c7, %c0_31], %82 {strides = array<i32>} : memref<16x32xf32, #tpu.memory_space<vmem>>, vector<1x10xf32>,
    %84 = vector.extract_strided_slice %75 {offsets = [4, 0], sizes = [1, 10], strides = [1, 1]} : vector<8x10xf32> to vector<1x10xf32>
    %c9 = arith.constant 9 : index
    %c0_32 = arith.constant 0 : index
    %85 = vector.load %arg8[%c9, %c0_32] : memref<16x32xf32, #tpu.memory_space<vmem>>, vector<1x10xf32>
    tpu.vector_store %arg8[%c9, %c0_32], %84 {strides = array<i32>} : memref<16x32xf32, #tpu.memory_space<vmem>>, vector<1x10xf32>,
    %86 = vector.extract_strided_slice %75 {offsets = [5, 0], sizes = [1, 10], strides = [1, 1]} : vector<8x10xf32> to vector<1x10xf32>
    %c11 = arith.constant 11 : index
    %c0_33 = arith.constant 0 : index
    %87 = vector.load %arg8[%c11, %c0_33] : memref<16x32xf32, #tpu.memory_space<vmem>>, vector<1x10xf32>
    tpu.vector_store %arg8[%c11, %c0_33], %86 {strides = array<i32>} : memref<16x32xf32, #tpu.memory_space<vmem>>, vector<1x10xf32>,
    %88 = vector.extract_strided_slice %75 {offsets = [6, 0], sizes = [1, 10], strides = [1, 1]} : vector<8x10xf32> to vector<1x10xf32>
    %c13 = arith.constant 13 : index
    %c0_34 = arith.constant 0 : index
    %89 = vector.load %arg8[%c13, %c0_34] : memref<16x32xf32, #tpu.memory_space<vmem>>, vector<1x10xf32>
    tpu.vector_store %arg8[%c13, %c0_34], %88 {strides = array<i32>} : memref<16x32xf32, #tpu.memory_space<vmem>>, vector<1x10xf32>,
    %90 = vector.extract_strided_slice %75 {offsets = [7, 0], sizes = [1, 10], strides = [1, 1]} : vector<8x10xf32> to vector<1x10xf32>
    %c15 = arith.constant 15 : index
    %c0_35 = arith.constant 0 : index
    %91 = vector.load %arg8[%c15, %c0_35] : memref<16x32xf32, #tpu.memory_space<vmem>>, vector<1x10xf32>
    tpu.vector_store %arg8[%c15, %c0_35], %90 {strides = array<i32>} : memref<16x32xf32, #tpu.memory_space<vmem>>, vector<1x10xf32>,
    %c0_36 = arith.constant 0 : index
    %c0_37 = arith.constant 0 : index
    %92 = vector.load %arg4[%c0_36, %c0_37] : memref<49x128xf32, #tpu.memory_space<vmem>>, vector<10x128xf32>
    %c16 = arith.constant 16 : index
    %c0_38 = arith.constant 0 : index
    %93 = vector.load %arg4[%c16, %c0_38] : memref<49x128xf32, #tpu.memory_space<vmem>>, vector<32x128xf32>
    %c48_39 = arith.constant 48 : index
    %c0_40 = arith.constant 0 : index
    %94 = vector.load %arg4[%c48_39, %c0_40] : memref<49x128xf32, #tpu.memory_space<vmem>>, vector<1x128xf32>
    %c0_41 = arith.constant 0 : index
    %c0_42 = arith.constant 0 : index
    %95 = vector.load %arg8[%c0_41, %c0_42] : memref<16x32xf32, #tpu.memory_space<vmem>>, vector<16x10xf32>
    %cst_43 = arith.constant dense<0.000000e+00> : vector<16x128xf32>
    %96 = tpu.matmul %95, %92, %cst_43 {dimension_numbers = #tpu.dot_dimension_numbers<[1], [0], [0], [1], [0, 0, 1, 1], [], []>, precision = #tpu.contract_precision<fp32>} : vector<16x10xf32>, vector<10x128xf32>, vector<16x128xf32> -> vector<16x128xf32>
    %97 = vector.broadcast %94 : vector<1x128xf32> to vector<16x128xf32>
    %98 = arith.addf %96, %97 : vector<16x128xf32>
    %cst_44 = arith.constant 0.000000e+00 : f32
    %99 = vector.broadcast %cst_44 : f32 to vector<2x32xf32>
    %cst_45 = arith.constant 0.000000e+00 : f32
    %100 = vector.broadcast %cst_45 : f32 to vector<2x32xf32>
    %101 = vector.extract_strided_slice %98 {offsets = [0, 0], sizes = [2, 128], strides = [1, 1]} : vector<16x128xf32> to vector<2x128xf32>
    %cst_46 = arith.constant dense<0.000000e+00> : vector<2x128xf32>
    %102 = tpu.matmul %99, %93, %cst_46 {dimension_numbers = #tpu.dot_dimension_numbers<[1], [0], [0], [1], [0, 0, 1, 1], [], []>} : vector<2x32xf32>, vector<32x128xf32>, vector<2x128xf32> -> vector<2x128xf32>
    %103 = arith.addf %101, %102 : vector<2x128xf32>
    %104 = vector.extract_strided_slice %103 {offsets = [0, 0], sizes = [2, 32], strides = [1, 1]} : vector<2x128xf32> to vector<2x32xf32>
    %105 = arith.negf %104 : vector<2x32xf32>
    %106 = math.exp %105 : vector<2x32xf32>
    %cst_47 = arith.constant 1.000000e+00 : f32
    %107 = vector.broadcast %cst_47 : f32 to vector<2x32xf32>
    %108 = arith.addf %107, %106 : vector<2x32xf32>
    %109 = arith.divf %107, %108 : vector<2x32xf32>
    %110 = vector.extract_strided_slice %103 {offsets = [0, 32], sizes = [2, 32], strides = [1, 1]} : vector<2x128xf32> to vector<2x32xf32>
    %111 = arith.negf %110 : vector<2x32xf32>
    %112 = math.exp %111 : vector<2x32xf32>
    %cst_48 = arith.constant 1.000000e+00 : f32
    %113 = vector.broadcast %cst_48 : f32 to vector<2x32xf32>
    %114 = arith.addf %113, %112 : vector<2x32xf32>
    %115 = arith.divf %113, %114 : vector<2x32xf32>
    %116 = vector.extract_strided_slice %103 {offsets = [0, 64], sizes = [2, 32], strides = [1, 1]} : vector<2x128xf32> to vector<2x32xf32>
    %117 = math.tanh %116 : vector<2x32xf32>
    %118 = vector.extract_strided_slice %103 {offsets = [0, 96], sizes = [2, 32], strides = [1, 1]} : vector<2x128xf32> to vector<2x32xf32>
    %119 = arith.negf %118 : vector<2x32xf32>
    %120 = math.exp %119 : vector<2x32xf32>
    %cst_49 = arith.constant 1.000000e+00 : f32
    %121 = vector.broadcast %cst_49 : f32 to vector<2x32xf32>
    %122 = arith.addf %121, %120 : vector<2x32xf32>
    %123 = arith.divf %121, %122 : vector<2x32xf32>
    %124 = arith.mulf %115, %100 : vector<2x32xf32>
    %125 = arith.mulf %109, %117 : vector<2x32xf32>
    %126 = arith.addf %124, %125 : vector<2x32xf32>
    %127 = math.tanh %126 : vector<2x32xf32>
    %128 = arith.mulf %123, %127 : vector<2x32xf32>
    %c0_50 = arith.constant 0 : index
    %c0_51 = arith.constant 0 : index
    %129 = vector.load %arg8[%c0_50, %c0_51] : memref<16x32xf32, #tpu.memory_space<vmem>>, vector<2x32xf32>
    tpu.vector_store %arg8[%c0_50, %c0_51], %128 {strides = array<i32>} : memref<16x32xf32, #tpu.memory_space<vmem>>, vector<2x32xf32>,
    %130 = vector.extract_strided_slice %98 {offsets = [2, 0], sizes = [2, 128], strides = [1, 1]} : vector<16x128xf32> to vector<2x128xf32>
    %cst_52 = arith.constant dense<0.000000e+00> : vector<2x128xf32>
    %131 = tpu.matmul %128, %93, %cst_52 {dimension_numbers = #tpu.dot_dimension_numbers<[1], [0], [0], [1], [0, 0, 1, 1], [], []>} : vector<2x32xf32>, vector<32x128xf32>, vector<2x128xf32> -> vector<2x128xf32>
    %132 = arith.addf %130, %131 : vector<2x128xf32>
    %133 = vector.extract_strided_slice %132 {offsets = [0, 0], sizes = [2, 32], strides = [1, 1]} : vector<2x128xf32> to vector<2x32xf32>
    %134 = arith.negf %133 : vector<2x32xf32>
    %135 = math.exp %134 : vector<2x32xf32>
    %cst_53 = arith.constant 1.000000e+00 : f32
    %136 = vector.broadcast %cst_53 : f32 to vector<2x32xf32>
    %137 = arith.addf %136, %135 : vector<2x32xf32>
    %138 = arith.divf %136, %137 : vector<2x32xf32>
    %139 = vector.extract_strided_slice %132 {offsets = [0, 32], sizes = [2, 32], strides = [1, 1]} : vector<2x128xf32> to vector<2x32xf32>
    %140 = arith.negf %139 : vector<2x32xf32>
    %141 = math.exp %140 : vector<2x32xf32>
    %cst_54 = arith.constant 1.000000e+00 : f32
    %142 = vector.broadcast %cst_54 : f32 to vector<2x32xf32>
    %143 = arith.addf %142, %141 : vector<2x32xf32>
    %144 = arith.divf %142, %143 : vector<2x32xf32>
    %145 = vector.extract_strided_slice %132 {offsets = [0, 64], sizes = [2, 32], strides = [1, 1]} : vector<2x128xf32> to vector<2x32xf32>
    %146 = math.tanh %145 : vector<2x32xf32>
    %147 = vector.extract_strided_slice %132 {offsets = [0, 96], sizes = [2, 32], strides = [1, 1]} : vector<2x128xf32> to vector<2x32xf32>
    %148 = arith.negf %147 : vector<2x32xf32>
    %149 = math.exp %148 : vector<2x32xf32>
    %cst_55 = arith.constant 1.000000e+00 : f32
    %150 = vector.broadcast %cst_55 : f32 to vector<2x32xf32>
    %151 = arith.addf %150, %149 : vector<2x32xf32>
    %152 = arith.divf %150, %151 : vector<2x32xf32>
    %153 = arith.mulf %144, %126 : vector<2x32xf32>
    %154 = arith.mulf %138, %146 : vector<2x32xf32>
    %155 = arith.addf %153, %154 : vector<2x32xf32>
    %156 = math.tanh %155 : vector<2x32xf32>
    %157 = arith.mulf %152, %156 : vector<2x32xf32>
    %c2_56 = arith.constant 2 : index
    %c0_57 = arith.constant 0 : index
    %158 = vector.load %arg8[%c2_56, %c0_57] : memref<16x32xf32, #tpu.memory_space<vmem>>, vector<2x32xf32>
    tpu.vector_store %arg8[%c2_56, %c0_57], %157 {strides = array<i32>} : memref<16x32xf32, #tpu.memory_space<vmem>>, vector<2x32xf32>,
    %159 = vector.extract_strided_slice %98 {offsets = [4, 0], sizes = [2, 128], strides = [1, 1]} : vector<16x128xf32> to vector<2x128xf32>
    %cst_58 = arith.constant dense<0.000000e+00> : vector<2x128xf32>
    %160 = tpu.matmul %157, %93, %cst_58 {dimension_numbers = #tpu.dot_dimension_numbers<[1], [0], [0], [1], [0, 0, 1, 1], [], []>} : vector<2x32xf32>, vector<32x128xf32>, vector<2x128xf32> -> vector<2x128xf32>
    %161 = arith.addf %159, %160 : vector<2x128xf32>
    %162 = vector.extract_strided_slice %161 {offsets = [0, 0], sizes = [2, 32], strides = [1, 1]} : vector<2x128xf32> to vector<2x32xf32>
    %163 = arith.negf %162 : vector<2x32xf32>
    %164 = math.exp %163 : vector<2x32xf32>
    %cst_59 = arith.constant 1.000000e+00 : f32
    %165 = vector.broadcast %cst_59 : f32 to vector<2x32xf32>
    %166 = arith.addf %165, %164 : vector<2x32xf32>
    %167 = arith.divf %165, %166 : vector<2x32xf32>
    %168 = vector.extract_strided_slice %161 {offsets = [0, 32], sizes = [2, 32], strides = [1, 1]} : vector<2x128xf32> to vector<2x32xf32>
    %169 = arith.negf %168 : vector<2x32xf32>
    %170 = math.exp %169 : vector<2x32xf32>
    %cst_60 = arith.constant 1.000000e+00 : f32
    %171 = vector.broadcast %cst_60 : f32 to vector<2x32xf32>
    %172 = arith.addf %171, %170 : vector<2x32xf32>
    %173 = arith.divf %171, %172 : vector<2x32xf32>
    %174 = vector.extract_strided_slice %161 {offsets = [0, 64], sizes = [2, 32], strides = [1, 1]} : vector<2x128xf32> to vector<2x32xf32>
    %175 = math.tanh %174 : vector<2x32xf32>
    %176 = vector.extract_strided_slice %161 {offsets = [0, 96], sizes = [2, 32], strides = [1, 1]} : vector<2x128xf32> to vector<2x32xf32>
    %177 = arith.negf %176 : vector<2x32xf32>
    %178 = math.exp %177 : vector<2x32xf32>
    %cst_61 = arith.constant 1.000000e+00 : f32
    %179 = vector.broadcast %cst_61 : f32 to vector<2x32xf32>
    %180 = arith.addf %179, %178 : vector<2x32xf32>
    %181 = arith.divf %179, %180 : vector<2x32xf32>
    %182 = arith.mulf %173, %155 : vector<2x32xf32>
    %183 = arith.mulf %167, %175 : vector<2x32xf32>
    %184 = arith.addf %182, %183 : vector<2x32xf32>
    %185 = math.tanh %184 : vector<2x32xf32>
    %186 = arith.mulf %181, %185 : vector<2x32xf32>
    %c4_62 = arith.constant 4 : index
    %c0_63 = arith.constant 0 : index
    %187 = vector.load %arg8[%c4_62, %c0_63] : memref<16x32xf32, #tpu.memory_space<vmem>>, vector<2x32xf32>
    tpu.vector_store %arg8[%c4_62, %c0_63], %186 {strides = array<i32>} : memref<16x32xf32, #tpu.memory_space<vmem>>, vector<2x32xf32>,
    %188 = vector.extract_strided_slice %98 {offsets = [6, 0], sizes = [2, 128], strides = [1, 1]} : vector<16x128xf32> to vector<2x128xf32>
    %cst_64 = arith.constant dense<0.000000e+00> : vector<2x128xf32>
    %189 = tpu.matmul %186, %93, %cst_64 {dimension_numbers = #tpu.dot_dimension_numbers<[1], [0], [0], [1], [0, 0, 1, 1], [], []>} : vector<2x32xf32>, vector<32x128xf32>, vector<2x128xf32> -> vector<2x128xf32>
    %190 = arith.addf %188, %189 : vector<2x128xf32>
    %191 = vector.extract_strided_slice %190 {offsets = [0, 0], sizes = [2, 32], strides = [1, 1]} : vector<2x128xf32> to vector<2x32xf32>
    %192 = arith.negf %191 : vector<2x32xf32>
    %193 = math.exp %192 : vector<2x32xf32>
    %cst_65 = arith.constant 1.000000e+00 : f32
    %194 = vector.broadcast %cst_65 : f32 to vector<2x32xf32>
    %195 = arith.addf %194, %193 : vector<2x32xf32>
    %196 = arith.divf %194, %195 : vector<2x32xf32>
    %197 = vector.extract_strided_slice %190 {offsets = [0, 32], sizes = [2, 32], strides = [1, 1]} : vector<2x128xf32> to vector<2x32xf32>
    %198 = arith.negf %197 : vector<2x32xf32>
    %199 = math.exp %198 : vector<2x32xf32>
    %cst_66 = arith.constant 1.000000e+00 : f32
    %200 = vector.broadcast %cst_66 : f32 to vector<2x32xf32>
    %201 = arith.addf %200, %199 : vector<2x32xf32>
    %202 = arith.divf %200, %201 : vector<2x32xf32>
    %203 = vector.extract_strided_slice %190 {offsets = [0, 64], sizes = [2, 32], strides = [1, 1]} : vector<2x128xf32> to vector<2x32xf32>
    %204 = math.tanh %203 : vector<2x32xf32>
    %205 = vector.extract_strided_slice %190 {offsets = [0, 96], sizes = [2, 32], strides = [1, 1]} : vector<2x128xf32> to vector<2x32xf32>
    %206 = arith.negf %205 : vector<2x32xf32>
    %207 = math.exp %206 : vector<2x32xf32>
    %cst_67 = arith.constant 1.000000e+00 : f32
    %208 = vector.broadcast %cst_67 : f32 to vector<2x32xf32>
    %209 = arith.addf %208, %207 : vector<2x32xf32>
    %210 = arith.divf %208, %209 : vector<2x32xf32>
    %211 = arith.mulf %202, %184 : vector<2x32xf32>
    %212 = arith.mulf %196, %204 : vector<2x32xf32>
    %213 = arith.addf %211, %212 : vector<2x32xf32>
    %214 = math.tanh %213 : vector<2x32xf32>
    %215 = arith.mulf %210, %214 : vector<2x32xf32>
    %c6_68 = arith.constant 6 : index
    %c0_69 = arith.constant 0 : index
    %216 = vector.load %arg8[%c6_68, %c0_69] : memref<16x32xf32, #tpu.memory_space<vmem>>, vector<2x32xf32>
    tpu.vector_store %arg8[%c6_68, %c0_69], %215 {strides = array<i32>} : memref<16x32xf32, #tpu.memory_space<vmem>>, vector<2x32xf32>,
    %217 = vector.extract_strided_slice %98 {offsets = [8, 0], sizes = [2, 128], strides = [1, 1]} : vector<16x128xf32> to vector<2x128xf32>
    %cst_70 = arith.constant dense<0.000000e+00> : vector<2x128xf32>
    %218 = tpu.matmul %215, %93, %cst_70 {dimension_numbers = #tpu.dot_dimension_numbers<[1], [0], [0], [1], [0, 0, 1, 1], [], []>} : vector<2x32xf32>, vector<32x128xf32>, vector<2x128xf32> -> vector<2x128xf32>
    %219 = arith.addf %217, %218 : vector<2x128xf32>
    %220 = vector.extract_strided_slice %219 {offsets = [0, 0], sizes = [2, 32], strides = [1, 1]} : vector<2x128xf32> to vector<2x32xf32>
    %221 = arith.negf %220 : vector<2x32xf32>
    %222 = math.exp %221 : vector<2x32xf32>
    %cst_71 = arith.constant 1.000000e+00 : f32
    %223 = vector.broadcast %cst_71 : f32 to vector<2x32xf32>
    %224 = arith.addf %223, %222 : vector<2x32xf32>
    %225 = arith.divf %223, %224 : vector<2x32xf32>
    %226 = vector.extract_strided_slice %219 {offsets = [0, 32], sizes = [2, 32], strides = [1, 1]} : vector<2x128xf32> to vector<2x32xf32>
    %227 = arith.negf %226 : vector<2x32xf32>
    %228 = math.exp %227 : vector<2x32xf32>
    %cst_72 = arith.constant 1.000000e+00 : f32
    %229 = vector.broadcast %cst_72 : f32 to vector<2x32xf32>
    %230 = arith.addf %229, %228 : vector<2x32xf32>
    %231 = arith.divf %229, %230 : vector<2x32xf32>
    %232 = vector.extract_strided_slice %219 {offsets = [0, 64], sizes = [2, 32], strides = [1, 1]} : vector<2x128xf32> to vector<2x32xf32>
    %233 = math.tanh %232 : vector<2x32xf32>
    %234 = vector.extract_strided_slice %219 {offsets = [0, 96], sizes = [2, 32], strides = [1, 1]} : vector<2x128xf32> to vector<2x32xf32>
    %235 = arith.negf %234 : vector<2x32xf32>
    %236 = math.exp %235 : vector<2x32xf32>
    %cst_73 = arith.constant 1.000000e+00 : f32
    %237 = vector.broadcast %cst_73 : f32 to vector<2x32xf32>
    %238 = arith.addf %237, %236 : vector<2x32xf32>
    %239 = arith.divf %237, %238 : vector<2x32xf32>
    %240 = arith.mulf %231, %213 : vector<2x32xf32>
    %241 = arith.mulf %225, %233 : vector<2x32xf32>
    %242 = arith.addf %240, %241 : vector<2x32xf32>
    %243 = math.tanh %242 : vector<2x32xf32>
    %244 = arith.mulf %239, %243 : vector<2x32xf32>
    %c8_74 = arith.constant 8 : index
    %c0_75 = arith.constant 0 : index
    %245 = vector.load %arg8[%c8_74, %c0_75] : memref<16x32xf32, #tpu.memory_space<vmem>>, vector<2x32xf32>
    tpu.vector_store %arg8[%c8_74, %c0_75], %244 {strides = array<i32>} : memref<16x32xf32, #tpu.memory_space<vmem>>, vector<2x32xf32>,
    %246 = vector.extract_strided_slice %98 {offsets = [10, 0], sizes = [2, 128], strides = [1, 1]} : vector<16x128xf32> to vector<2x128xf32>
    %cst_76 = arith.constant dense<0.000000e+00> : vector<2x128xf32>
    %247 = tpu.matmul %244, %93, %cst_76 {dimension_numbers = #tpu.dot_dimension_numbers<[1], [0], [0], [1], [0, 0, 1, 1], [], []>} : vector<2x32xf32>, vector<32x128xf32>, vector<2x128xf32> -> vector<2x128xf32>
    %248 = arith.addf %246, %247 : vector<2x128xf32>
    %249 = vector.extract_strided_slice %248 {offsets = [0, 0], sizes = [2, 32], strides = [1, 1]} : vector<2x128xf32> to vector<2x32xf32>
    %250 = arith.negf %249 : vector<2x32xf32>
    %251 = math.exp %250 : vector<2x32xf32>
    %cst_77 = arith.constant 1.000000e+00 : f32
    %252 = vector.broadcast %cst_77 : f32 to vector<2x32xf32>
    %253 = arith.addf %252, %251 : vector<2x32xf32>
    %254 = arith.divf %252, %253 : vector<2x32xf32>
    %255 = vector.extract_strided_slice %248 {offsets = [0, 32], sizes = [2, 32], strides = [1, 1]} : vector<2x128xf32> to vector<2x32xf32>
    %256 = arith.negf %255 : vector<2x32xf32>
    %257 = math.exp %256 : vector<2x32xf32>
    %cst_78 = arith.constant 1.000000e+00 : f32
    %258 = vector.broadcast %cst_78 : f32 to vector<2x32xf32>
    %259 = arith.addf %258, %257 : vector<2x32xf32>
    %260 = arith.divf %258, %259 : vector<2x32xf32>
    %261 = vector.extract_strided_slice %248 {offsets = [0, 64], sizes = [2, 32], strides = [1, 1]} : vector<2x128xf32> to vector<2x32xf32>
    %262 = math.tanh %261 : vector<2x32xf32>
    %263 = vector.extract_strided_slice %248 {offsets = [0, 96], sizes = [2, 32], strides = [1, 1]} : vector<2x128xf32> to vector<2x32xf32>
    %264 = arith.negf %263 : vector<2x32xf32>
    %265 = math.exp %264 : vector<2x32xf32>
    %cst_79 = arith.constant 1.000000e+00 : f32
    %266 = vector.broadcast %cst_79 : f32 to vector<2x32xf32>
    %267 = arith.addf %266, %265 : vector<2x32xf32>
    %268 = arith.divf %266, %267 : vector<2x32xf32>
    %269 = arith.mulf %260, %242 : vector<2x32xf32>
    %270 = arith.mulf %254, %262 : vector<2x32xf32>
    %271 = arith.addf %269, %270 : vector<2x32xf32>
    %272 = math.tanh %271 : vector<2x32xf32>
    %273 = arith.mulf %268, %272 : vector<2x32xf32>
    %c10_80 = arith.constant 10 : index
    %c0_81 = arith.constant 0 : index
    %274 = vector.load %arg8[%c10_80, %c0_81] : memref<16x32xf32, #tpu.memory_space<vmem>>, vector<2x32xf32>
    tpu.vector_store %arg8[%c10_80, %c0_81], %273 {strides = array<i32>} : memref<16x32xf32, #tpu.memory_space<vmem>>, vector<2x32xf32>,
    %275 = vector.extract_strided_slice %98 {offsets = [12, 0], sizes = [2, 128], strides = [1, 1]} : vector<16x128xf32> to vector<2x128xf32>
    %cst_82 = arith.constant dense<0.000000e+00> : vector<2x128xf32>
    %276 = tpu.matmul %273, %93, %cst_82 {dimension_numbers = #tpu.dot_dimension_numbers<[1], [0], [0], [1], [0, 0, 1, 1], [], []>} : vector<2x32xf32>, vector<32x128xf32>, vector<2x128xf32> -> vector<2x128xf32>
    %277 = arith.addf %275, %276 : vector<2x128xf32>
    %278 = vector.extract_strided_slice %277 {offsets = [0, 0], sizes = [2, 32], strides = [1, 1]} : vector<2x128xf32> to vector<2x32xf32>
    %279 = arith.negf %278 : vector<2x32xf32>
    %280 = math.exp %279 : vector<2x32xf32>
    %cst_83 = arith.constant 1.000000e+00 : f32
    %281 = vector.broadcast %cst_83 : f32 to vector<2x32xf32>
    %282 = arith.addf %281, %280 : vector<2x32xf32>
    %283 = arith.divf %281, %282 : vector<2x32xf32>
    %284 = vector.extract_strided_slice %277 {offsets = [0, 32], sizes = [2, 32], strides = [1, 1]} : vector<2x128xf32> to vector<2x32xf32>
    %285 = arith.negf %284 : vector<2x32xf32>
    %286 = math.exp %285 : vector<2x32xf32>
    %cst_84 = arith.constant 1.000000e+00 : f32
    %287 = vector.broadcast %cst_84 : f32 to vector<2x32xf32>
    %288 = arith.addf %287, %286 : vector<2x32xf32>
    %289 = arith.divf %287, %288 : vector<2x32xf32>
    %290 = vector.extract_strided_slice %277 {offsets = [0, 64], sizes = [2, 32], strides = [1, 1]} : vector<2x128xf32> to vector<2x32xf32>
    %291 = math.tanh %290 : vector<2x32xf32>
    %292 = vector.extract_strided_slice %277 {offsets = [0, 96], sizes = [2, 32], strides = [1, 1]} : vector<2x128xf32> to vector<2x32xf32>
    %293 = arith.negf %292 : vector<2x32xf32>
    %294 = math.exp %293 : vector<2x32xf32>
    %cst_85 = arith.constant 1.000000e+00 : f32
    %295 = vector.broadcast %cst_85 : f32 to vector<2x32xf32>
    %296 = arith.addf %295, %294 : vector<2x32xf32>
    %297 = arith.divf %295, %296 : vector<2x32xf32>
    %298 = arith.mulf %289, %271 : vector<2x32xf32>
    %299 = arith.mulf %283, %291 : vector<2x32xf32>
    %300 = arith.addf %298, %299 : vector<2x32xf32>
    %301 = math.tanh %300 : vector<2x32xf32>
    %302 = arith.mulf %297, %301 : vector<2x32xf32>
    %c12_86 = arith.constant 12 : index
    %c0_87 = arith.constant 0 : index
    %303 = vector.load %arg8[%c12_86, %c0_87] : memref<16x32xf32, #tpu.memory_space<vmem>>, vector<2x32xf32>
    tpu.vector_store %arg8[%c12_86, %c0_87], %302 {strides = array<i32>} : memref<16x32xf32, #tpu.memory_space<vmem>>, vector<2x32xf32>,
    %304 = vector.extract_strided_slice %98 {offsets = [14, 0], sizes = [2, 128], strides = [1, 1]} : vector<16x128xf32> to vector<2x128xf32>
    %cst_88 = arith.constant dense<0.000000e+00> : vector<2x128xf32>
    %305 = tpu.matmul %302, %93, %cst_88 {dimension_numbers = #tpu.dot_dimension_numbers<[1], [0], [0], [1], [0, 0, 1, 1], [], []>} : vector<2x32xf32>, vector<32x128xf32>, vector<2x128xf32> -> vector<2x128xf32>
    %306 = arith.addf %304, %305 : vector<2x128xf32>
    %307 = vector.extract_strided_slice %306 {offsets = [0, 0], sizes = [2, 32], strides = [1, 1]} : vector<2x128xf32> to vector<2x32xf32>
    %308 = arith.negf %307 : vector<2x32xf32>
    %309 = math.exp %308 : vector<2x32xf32>
    %cst_89 = arith.constant 1.000000e+00 : f32
    %310 = vector.broadcast %cst_89 : f32 to vector<2x32xf32>
    %311 = arith.addf %310, %309 : vector<2x32xf32>
    %312 = arith.divf %310, %311 : vector<2x32xf32>
    %313 = vector.extract_strided_slice %306 {offsets = [0, 32], sizes = [2, 32], strides = [1, 1]} : vector<2x128xf32> to vector<2x32xf32>
    %314 = arith.negf %313 : vector<2x32xf32>
    %315 = math.exp %314 : vector<2x32xf32>
    %cst_90 = arith.constant 1.000000e+00 : f32
    %316 = vector.broadcast %cst_90 : f32 to vector<2x32xf32>
    %317 = arith.addf %316, %315 : vector<2x32xf32>
    %318 = arith.divf %316, %317 : vector<2x32xf32>
    %319 = vector.extract_strided_slice %306 {offsets = [0, 64], sizes = [2, 32], strides = [1, 1]} : vector<2x128xf32> to vector<2x32xf32>
    %320 = math.tanh %319 : vector<2x32xf32>
    %321 = vector.extract_strided_slice %306 {offsets = [0, 96], sizes = [2, 32], strides = [1, 1]} : vector<2x128xf32> to vector<2x32xf32>
    %322 = arith.negf %321 : vector<2x32xf32>
    %323 = math.exp %322 : vector<2x32xf32>
    %cst_91 = arith.constant 1.000000e+00 : f32
    %324 = vector.broadcast %cst_91 : f32 to vector<2x32xf32>
    %325 = arith.addf %324, %323 : vector<2x32xf32>
    %326 = arith.divf %324, %325 : vector<2x32xf32>
    %327 = arith.mulf %318, %300 : vector<2x32xf32>
    %328 = arith.mulf %312, %320 : vector<2x32xf32>
    %329 = arith.addf %327, %328 : vector<2x32xf32>
    %330 = math.tanh %329 : vector<2x32xf32>
    %331 = arith.mulf %326, %330 : vector<2x32xf32>
    %c14_92 = arith.constant 14 : index
    %c0_93 = arith.constant 0 : index
    %332 = vector.load %arg8[%c14_92, %c0_93] : memref<16x32xf32, #tpu.memory_space<vmem>>, vector<2x32xf32>
    tpu.vector_store %arg8[%c14_92, %c0_93], %331 {strides = array<i32>} : memref<16x32xf32, #tpu.memory_space<vmem>>, vector<2x32xf32>,
    %c0_94 = arith.constant 0 : index
    %c0_95 = arith.constant 0 : index
    %333 = vector.load %arg5[%c0_94, %c0_95] : memref<65x128xf32, #tpu.memory_space<vmem>>, vector<32x128xf32>
    %c32 = arith.constant 32 : index
    %c0_96 = arith.constant 0 : index
    %334 = vector.load %arg5[%c32, %c0_96] : memref<65x128xf32, #tpu.memory_space<vmem>>, vector<32x128xf32>
    %c64 = arith.constant 64 : index
    %c0_97 = arith.constant 0 : index
    %335 = vector.load %arg5[%c64, %c0_97] : memref<65x128xf32, #tpu.memory_space<vmem>>, vector<1x128xf32>
    %c0_98 = arith.constant 0 : index
    %c0_99 = arith.constant 0 : index
    %336 = vector.load %arg8[%c0_98, %c0_99] : memref<16x32xf32, #tpu.memory_space<vmem>>, vector<16x32xf32>
    %cst_100 = arith.constant dense<0.000000e+00> : vector<16x128xf32>
    %337 = tpu.matmul %336, %333, %cst_100 {dimension_numbers = #tpu.dot_dimension_numbers<[1], [0], [0], [1], [0, 0, 1, 1], [], []>, precision = #tpu.contract_precision<fp32>} : vector<16x32xf32>, vector<32x128xf32>, vector<16x128xf32> -> vector<16x128xf32>
    %338 = vector.broadcast %335 : vector<1x128xf32> to vector<16x128xf32>
    %339 = arith.addf %337, %338 : vector<16x128xf32>
    %cst_101 = arith.constant 0.000000e+00 : f32
    %340 = vector.broadcast %cst_101 : f32 to vector<2x32xf32>
    %cst_102 = arith.constant 0.000000e+00 : f32
    %341 = vector.broadcast %cst_102 : f32 to vector<2x32xf32>
    %342 = vector.extract_strided_slice %339 {offsets = [0, 0], sizes = [2, 128], strides = [1, 1]} : vector<16x128xf32> to vector<2x128xf32>
    %cst_103 = arith.constant dense<0.000000e+00> : vector<2x128xf32>
    %343 = tpu.matmul %340, %334, %cst_103 {dimension_numbers = #tpu.dot_dimension_numbers<[1], [0], [0], [1], [0, 0, 1, 1], [], []>} : vector<2x32xf32>, vector<32x128xf32>, vector<2x128xf32> -> vector<2x128xf32>
    %344 = arith.addf %342, %343 : vector<2x128xf32>
    %345 = vector.extract_strided_slice %344 {offsets = [0, 0], sizes = [2, 32], strides = [1, 1]} : vector<2x128xf32> to vector<2x32xf32>
    %346 = arith.negf %345 : vector<2x32xf32>
    %347 = math.exp %346 : vector<2x32xf32>
    %cst_104 = arith.constant 1.000000e+00 : f32
    %348 = vector.broadcast %cst_104 : f32 to vector<2x32xf32>
    %349 = arith.addf %348, %347 : vector<2x32xf32>
    %350 = arith.divf %348, %349 : vector<2x32xf32>
    %351 = vector.extract_strided_slice %344 {offsets = [0, 32], sizes = [2, 32], strides = [1, 1]} : vector<2x128xf32> to vector<2x32xf32>
    %352 = arith.negf %351 : vector<2x32xf32>
    %353 = math.exp %352 : vector<2x32xf32>
    %cst_105 = arith.constant 1.000000e+00 : f32
    %354 = vector.broadcast %cst_105 : f32 to vector<2x32xf32>
    %355 = arith.addf %354, %353 : vector<2x32xf32>
    %356 = arith.divf %354, %355 : vector<2x32xf32>
    %357 = vector.extract_strided_slice %344 {offsets = [0, 64], sizes = [2, 32], strides = [1, 1]} : vector<2x128xf32> to vector<2x32xf32>
    %358 = math.tanh %357 : vector<2x32xf32>
    %359 = vector.extract_strided_slice %344 {offsets = [0, 96], sizes = [2, 32], strides = [1, 1]} : vector<2x128xf32> to vector<2x32xf32>
    %360 = arith.negf %359 : vector<2x32xf32>
    %361 = math.exp %360 : vector<2x32xf32>
    %cst_106 = arith.constant 1.000000e+00 : f32
    %362 = vector.broadcast %cst_106 : f32 to vector<2x32xf32>
    %363 = arith.addf %362, %361 : vector<2x32xf32>
    %364 = arith.divf %362, %363 : vector<2x32xf32>
    %365 = arith.mulf %356, %341 : vector<2x32xf32>
    %366 = arith.mulf %350, %358 : vector<2x32xf32>
    %367 = arith.addf %365, %366 : vector<2x32xf32>
    %368 = math.tanh %367 : vector<2x32xf32>
    %369 = arith.mulf %364, %368 : vector<2x32xf32>
    %370 = vector.extract_strided_slice %339 {offsets = [2, 0], sizes = [2, 128], strides = [1, 1]} : vector<16x128xf32> to vector<2x128xf32>
    %cst_107 = arith.constant dense<0.000000e+00> : vector<2x128xf32>
    %371 = tpu.matmul %369, %334, %cst_107 {dimension_numbers = #tpu.dot_dimension_numbers<[1], [0], [0], [1], [0, 0, 1, 1], [], []>} : vector<2x32xf32>, vector<32x128xf32>, vector<2x128xf32> -> vector<2x128xf32>
    %372 = arith.addf %370, %371 : vector<2x128xf32>
    %373 = vector.extract_strided_slice %372 {offsets = [0, 0], sizes = [2, 32], strides = [1, 1]} : vector<2x128xf32> to vector<2x32xf32>
    %374 = arith.negf %373 : vector<2x32xf32>
    %375 = math.exp %374 : vector<2x32xf32>
    %cst_108 = arith.constant 1.000000e+00 : f32
    %376 = vector.broadcast %cst_108 : f32 to vector<2x32xf32>
    %377 = arith.addf %376, %375 : vector<2x32xf32>
    %378 = arith.divf %376, %377 : vector<2x32xf32>
    %379 = vector.extract_strided_slice %372 {offsets = [0, 32], sizes = [2, 32], strides = [1, 1]} : vector<2x128xf32> to vector<2x32xf32>
    %380 = arith.negf %379 : vector<2x32xf32>
    %381 = math.exp %380 : vector<2x32xf32>
    %cst_109 = arith.constant 1.000000e+00 : f32
    %382 = vector.broadcast %cst_109 : f32 to vector<2x32xf32>
    %383 = arith.addf %382, %381 : vector<2x32xf32>
    %384 = arith.divf %382, %383 : vector<2x32xf32>
    %385 = vector.extract_strided_slice %372 {offsets = [0, 64], sizes = [2, 32], strides = [1, 1]} : vector<2x128xf32> to vector<2x32xf32>
    %386 = math.tanh %385 : vector<2x32xf32>
    %387 = vector.extract_strided_slice %372 {offsets = [0, 96], sizes = [2, 32], strides = [1, 1]} : vector<2x128xf32> to vector<2x32xf32>
    %388 = arith.negf %387 : vector<2x32xf32>
    %389 = math.exp %388 : vector<2x32xf32>
    %cst_110 = arith.constant 1.000000e+00 : f32
    %390 = vector.broadcast %cst_110 : f32 to vector<2x32xf32>
    %391 = arith.addf %390, %389 : vector<2x32xf32>
    %392 = arith.divf %390, %391 : vector<2x32xf32>
    %393 = arith.mulf %384, %367 : vector<2x32xf32>
    %394 = arith.mulf %378, %386 : vector<2x32xf32>
    %395 = arith.addf %393, %394 : vector<2x32xf32>
    %396 = math.tanh %395 : vector<2x32xf32>
    %397 = arith.mulf %392, %396 : vector<2x32xf32>
    %398 = vector.extract_strided_slice %339 {offsets = [4, 0], sizes = [2, 128], strides = [1, 1]} : vector<16x128xf32> to vector<2x128xf32>
    %cst_111 = arith.constant dense<0.000000e+00> : vector<2x128xf32>
    %399 = tpu.matmul %397, %334, %cst_111 {dimension_numbers = #tpu.dot_dimension_numbers<[1], [0], [0], [1], [0, 0, 1, 1], [], []>} : vector<2x32xf32>, vector<32x128xf32>, vector<2x128xf32> -> vector<2x128xf32>
    %400 = arith.addf %398, %399 : vector<2x128xf32>
    %401 = vector.extract_strided_slice %400 {offsets = [0, 0], sizes = [2, 32], strides = [1, 1]} : vector<2x128xf32> to vector<2x32xf32>
    %402 = arith.negf %401 : vector<2x32xf32>
    %403 = math.exp %402 : vector<2x32xf32>
    %cst_112 = arith.constant 1.000000e+00 : f32
    %404 = vector.broadcast %cst_112 : f32 to vector<2x32xf32>
    %405 = arith.addf %404, %403 : vector<2x32xf32>
    %406 = arith.divf %404, %405 : vector<2x32xf32>
    %407 = vector.extract_strided_slice %400 {offsets = [0, 32], sizes = [2, 32], strides = [1, 1]} : vector<2x128xf32> to vector<2x32xf32>
    %408 = arith.negf %407 : vector<2x32xf32>
    %409 = math.exp %408 : vector<2x32xf32>
    %cst_113 = arith.constant 1.000000e+00 : f32
    %410 = vector.broadcast %cst_113 : f32 to vector<2x32xf32>
    %411 = arith.addf %410, %409 : vector<2x32xf32>
    %412 = arith.divf %410, %411 : vector<2x32xf32>
    %413 = vector.extract_strided_slice %400 {offsets = [0, 64], sizes = [2, 32], strides = [1, 1]} : vector<2x128xf32> to vector<2x32xf32>
    %414 = math.tanh %413 : vector<2x32xf32>
    %415 = vector.extract_strided_slice %400 {offsets = [0, 96], sizes = [2, 32], strides = [1, 1]} : vector<2x128xf32> to vector<2x32xf32>
    %416 = arith.negf %415 : vector<2x32xf32>
    %417 = math.exp %416 : vector<2x32xf32>
    %cst_114 = arith.constant 1.000000e+00 : f32
    %418 = vector.broadcast %cst_114 : f32 to vector<2x32xf32>
    %419 = arith.addf %418, %417 : vector<2x32xf32>
    %420 = arith.divf %418, %419 : vector<2x32xf32>
    %421 = arith.mulf %412, %395 : vector<2x32xf32>
    %422 = arith.mulf %406, %414 : vector<2x32xf32>
    %423 = arith.addf %421, %422 : vector<2x32xf32>
    %424 = math.tanh %423 : vector<2x32xf32>
    %425 = arith.mulf %420, %424 : vector<2x32xf32>
    %426 = vector.extract_strided_slice %339 {offsets = [6, 0], sizes = [2, 128], strides = [1, 1]} : vector<16x128xf32> to vector<2x128xf32>
    %cst_115 = arith.constant dense<0.000000e+00> : vector<2x128xf32>
    %427 = tpu.matmul %425, %334, %cst_115 {dimension_numbers = #tpu.dot_dimension_numbers<[1], [0], [0], [1], [0, 0, 1, 1], [], []>} : vector<2x32xf32>, vector<32x128xf32>, vector<2x128xf32> -> vector<2x128xf32>
    %428 = arith.addf %426, %427 : vector<2x128xf32>
    %429 = vector.extract_strided_slice %428 {offsets = [0, 0], sizes = [2, 32], strides = [1, 1]} : vector<2x128xf32> to vector<2x32xf32>
    %430 = arith.negf %429 : vector<2x32xf32>
    %431 = math.exp %430 : vector<2x32xf32>
    %cst_116 = arith.constant 1.000000e+00 : f32
    %432 = vector.broadcast %cst_116 : f32 to vector<2x32xf32>
    %433 = arith.addf %432, %431 : vector<2x32xf32>
    %434 = arith.divf %432, %433 : vector<2x32xf32>
    %435 = vector.extract_strided_slice %428 {offsets = [0, 32], sizes = [2, 32], strides = [1, 1]} : vector<2x128xf32> to vector<2x32xf32>
    %436 = arith.negf %435 : vector<2x32xf32>
    %437 = math.exp %436 : vector<2x32xf32>
    %cst_117 = arith.constant 1.000000e+00 : f32
    %438 = vector.broadcast %cst_117 : f32 to vector<2x32xf32>
    %439 = arith.addf %438, %437 : vector<2x32xf32>
    %440 = arith.divf %438, %439 : vector<2x32xf32>
    %441 = vector.extract_strided_slice %428 {offsets = [0, 64], sizes = [2, 32], strides = [1, 1]} : vector<2x128xf32> to vector<2x32xf32>
    %442 = math.tanh %441 : vector<2x32xf32>
    %443 = vector.extract_strided_slice %428 {offsets = [0, 96], sizes = [2, 32], strides = [1, 1]} : vector<2x128xf32> to vector<2x32xf32>
    %444 = arith.negf %443 : vector<2x32xf32>
    %445 = math.exp %444 : vector<2x32xf32>
    %cst_118 = arith.constant 1.000000e+00 : f32
    %446 = vector.broadcast %cst_118 : f32 to vector<2x32xf32>
    %447 = arith.addf %446, %445 : vector<2x32xf32>
    %448 = arith.divf %446, %447 : vector<2x32xf32>
    %449 = arith.mulf %440, %423 : vector<2x32xf32>
    %450 = arith.mulf %434, %442 : vector<2x32xf32>
    %451 = arith.addf %449, %450 : vector<2x32xf32>
    %452 = math.tanh %451 : vector<2x32xf32>
    %453 = arith.mulf %448, %452 : vector<2x32xf32>
    %454 = vector.extract_strided_slice %339 {offsets = [8, 0], sizes = [2, 128], strides = [1, 1]} : vector<16x128xf32> to vector<2x128xf32>
    %cst_119 = arith.constant dense<0.000000e+00> : vector<2x128xf32>
    %455 = tpu.matmul %453, %334, %cst_119 {dimension_numbers = #tpu.dot_dimension_numbers<[1], [0], [0], [1], [0, 0, 1, 1], [], []>} : vector<2x32xf32>, vector<32x128xf32>, vector<2x128xf32> -> vector<2x128xf32>
    %456 = arith.addf %454, %455 : vector<2x128xf32>
    %457 = vector.extract_strided_slice %456 {offsets = [0, 0], sizes = [2, 32], strides = [1, 1]} : vector<2x128xf32> to vector<2x32xf32>
    %458 = arith.negf %457 : vector<2x32xf32>
    %459 = math.exp %458 : vector<2x32xf32>
    %cst_120 = arith.constant 1.000000e+00 : f32
    %460 = vector.broadcast %cst_120 : f32 to vector<2x32xf32>
    %461 = arith.addf %460, %459 : vector<2x32xf32>
    %462 = arith.divf %460, %461 : vector<2x32xf32>
    %463 = vector.extract_strided_slice %456 {offsets = [0, 32], sizes = [2, 32], strides = [1, 1]} : vector<2x128xf32> to vector<2x32xf32>
    %464 = arith.negf %463 : vector<2x32xf32>
    %465 = math.exp %464 : vector<2x32xf32>
    %cst_121 = arith.constant 1.000000e+00 : f32
    %466 = vector.broadcast %cst_121 : f32 to vector<2x32xf32>
    %467 = arith.addf %466, %465 : vector<2x32xf32>
    %468 = arith.divf %466, %467 : vector<2x32xf32>
    %469 = vector.extract_strided_slice %456 {offsets = [0, 64], sizes = [2, 32], strides = [1, 1]} : vector<2x128xf32> to vector<2x32xf32>
    %470 = math.tanh %469 : vector<2x32xf32>
    %471 = vector.extract_strided_slice %456 {offsets = [0, 96], sizes = [2, 32], strides = [1, 1]} : vector<2x128xf32> to vector<2x32xf32>
    %472 = arith.negf %471 : vector<2x32xf32>
    %473 = math.exp %472 : vector<2x32xf32>
    %cst_122 = arith.constant 1.000000e+00 : f32
    %474 = vector.broadcast %cst_122 : f32 to vector<2x32xf32>
    %475 = arith.addf %474, %473 : vector<2x32xf32>
    %476 = arith.divf %474, %475 : vector<2x32xf32>
    %477 = arith.mulf %468, %451 : vector<2x32xf32>
    %478 = arith.mulf %462, %470 : vector<2x32xf32>
    %479 = arith.addf %477, %478 : vector<2x32xf32>
    %480 = math.tanh %479 : vector<2x32xf32>
    %481 = arith.mulf %476, %480 : vector<2x32xf32>
    %482 = vector.extract_strided_slice %339 {offsets = [10, 0], sizes = [2, 128], strides = [1, 1]} : vector<16x128xf32> to vector<2x128xf32>
    %cst_123 = arith.constant dense<0.000000e+00> : vector<2x128xf32>
    %483 = tpu.matmul %481, %334, %cst_123 {dimension_numbers = #tpu.dot_dimension_numbers<[1], [0], [0], [1], [0, 0, 1, 1], [], []>} : vector<2x32xf32>, vector<32x128xf32>, vector<2x128xf32> -> vector<2x128xf32>
    %484 = arith.addf %482, %483 : vector<2x128xf32>
    %485 = vector.extract_strided_slice %484 {offsets = [0, 0], sizes = [2, 32], strides = [1, 1]} : vector<2x128xf32> to vector<2x32xf32>
    %486 = arith.negf %485 : vector<2x32xf32>
    %487 = math.exp %486 : vector<2x32xf32>
    %cst_124 = arith.constant 1.000000e+00 : f32
    %488 = vector.broadcast %cst_124 : f32 to vector<2x32xf32>
    %489 = arith.addf %488, %487 : vector<2x32xf32>
    %490 = arith.divf %488, %489 : vector<2x32xf32>
    %491 = vector.extract_strided_slice %484 {offsets = [0, 32], sizes = [2, 32], strides = [1, 1]} : vector<2x128xf32> to vector<2x32xf32>
    %492 = arith.negf %491 : vector<2x32xf32>
    %493 = math.exp %492 : vector<2x32xf32>
    %cst_125 = arith.constant 1.000000e+00 : f32
    %494 = vector.broadcast %cst_125 : f32 to vector<2x32xf32>
    %495 = arith.addf %494, %493 : vector<2x32xf32>
    %496 = arith.divf %494, %495 : vector<2x32xf32>
    %497 = vector.extract_strided_slice %484 {offsets = [0, 64], sizes = [2, 32], strides = [1, 1]} : vector<2x128xf32> to vector<2x32xf32>
    %498 = math.tanh %497 : vector<2x32xf32>
    %499 = vector.extract_strided_slice %484 {offsets = [0, 96], sizes = [2, 32], strides = [1, 1]} : vector<2x128xf32> to vector<2x32xf32>
    %500 = arith.negf %499 : vector<2x32xf32>
    %501 = math.exp %500 : vector<2x32xf32>
    %cst_126 = arith.constant 1.000000e+00 : f32
    %502 = vector.broadcast %cst_126 : f32 to vector<2x32xf32>
    %503 = arith.addf %502, %501 : vector<2x32xf32>
    %504 = arith.divf %502, %503 : vector<2x32xf32>
    %505 = arith.mulf %496, %479 : vector<2x32xf32>
    %506 = arith.mulf %490, %498 : vector<2x32xf32>
    %507 = arith.addf %505, %506 : vector<2x32xf32>
    %508 = math.tanh %507 : vector<2x32xf32>
    %509 = arith.mulf %504, %508 : vector<2x32xf32>
    %510 = vector.extract_strided_slice %339 {offsets = [12, 0], sizes = [2, 128], strides = [1, 1]} : vector<16x128xf32> to vector<2x128xf32>
    %cst_127 = arith.constant dense<0.000000e+00> : vector<2x128xf32>
    %511 = tpu.matmul %509, %334, %cst_127 {dimension_numbers = #tpu.dot_dimension_numbers<[1], [0], [0], [1], [0, 0, 1, 1], [], []>} : vector<2x32xf32>, vector<32x128xf32>, vector<2x128xf32> -> vector<2x128xf32>
    %512 = arith.addf %510, %511 : vector<2x128xf32>
    %513 = vector.extract_strided_slice %512 {offsets = [0, 0], sizes = [2, 32], strides = [1, 1]} : vector<2x128xf32> to vector<2x32xf32>
    %514 = arith.negf %513 : vector<2x32xf32>
    %515 = math.exp %514 : vector<2x32xf32>
    %cst_128 = arith.constant 1.000000e+00 : f32
    %516 = vector.broadcast %cst_128 : f32 to vector<2x32xf32>
    %517 = arith.addf %516, %515 : vector<2x32xf32>
    %518 = arith.divf %516, %517 : vector<2x32xf32>
    %519 = vector.extract_strided_slice %512 {offsets = [0, 32], sizes = [2, 32], strides = [1, 1]} : vector<2x128xf32> to vector<2x32xf32>
    %520 = arith.negf %519 : vector<2x32xf32>
    %521 = math.exp %520 : vector<2x32xf32>
    %cst_129 = arith.constant 1.000000e+00 : f32
    %522 = vector.broadcast %cst_129 : f32 to vector<2x32xf32>
    %523 = arith.addf %522, %521 : vector<2x32xf32>
    %524 = arith.divf %522, %523 : vector<2x32xf32>
    %525 = vector.extract_strided_slice %512 {offsets = [0, 64], sizes = [2, 32], strides = [1, 1]} : vector<2x128xf32> to vector<2x32xf32>
    %526 = math.tanh %525 : vector<2x32xf32>
    %527 = vector.extract_strided_slice %512 {offsets = [0, 96], sizes = [2, 32], strides = [1, 1]} : vector<2x128xf32> to vector<2x32xf32>
    %528 = arith.negf %527 : vector<2x32xf32>
    %529 = math.exp %528 : vector<2x32xf32>
    %cst_130 = arith.constant 1.000000e+00 : f32
    %530 = vector.broadcast %cst_130 : f32 to vector<2x32xf32>
    %531 = arith.addf %530, %529 : vector<2x32xf32>
    %532 = arith.divf %530, %531 : vector<2x32xf32>
    %533 = arith.mulf %524, %507 : vector<2x32xf32>
    %534 = arith.mulf %518, %526 : vector<2x32xf32>
    %535 = arith.addf %533, %534 : vector<2x32xf32>
    %536 = math.tanh %535 : vector<2x32xf32>
    %537 = arith.mulf %532, %536 : vector<2x32xf32>
    %538 = vector.extract_strided_slice %339 {offsets = [14, 0], sizes = [2, 128], strides = [1, 1]} : vector<16x128xf32> to vector<2x128xf32>
    %cst_131 = arith.constant dense<0.000000e+00> : vector<2x128xf32>
    %539 = tpu.matmul %537, %334, %cst_131 {dimension_numbers = #tpu.dot_dimension_numbers<[1], [0], [0], [1], [0, 0, 1, 1], [], []>} : vector<2x32xf32>, vector<32x128xf32>, vector<2x128xf32> -> vector<2x128xf32>
    %540 = arith.addf %538, %539 : vector<2x128xf32>
    %541 = vector.extract_strided_slice %540 {offsets = [0, 0], sizes = [2, 32], strides = [1, 1]} : vector<2x128xf32> to vector<2x32xf32>
    %542 = arith.negf %541 : vector<2x32xf32>
    %543 = math.exp %542 : vector<2x32xf32>
    %cst_132 = arith.constant 1.000000e+00 : f32
    %544 = vector.broadcast %cst_132 : f32 to vector<2x32xf32>
    %545 = arith.addf %544, %543 : vector<2x32xf32>
    %546 = arith.divf %544, %545 : vector<2x32xf32>
    %547 = vector.extract_strided_slice %540 {offsets = [0, 32], sizes = [2, 32], strides = [1, 1]} : vector<2x128xf32> to vector<2x32xf32>
    %548 = arith.negf %547 : vector<2x32xf32>
    %549 = math.exp %548 : vector<2x32xf32>
    %cst_133 = arith.constant 1.000000e+00 : f32
    %550 = vector.broadcast %cst_133 : f32 to vector<2x32xf32>
    %551 = arith.addf %550, %549 : vector<2x32xf32>
    %552 = arith.divf %550, %551 : vector<2x32xf32>
    %553 = vector.extract_strided_slice %540 {offsets = [0, 64], sizes = [2, 32], strides = [1, 1]} : vector<2x128xf32> to vector<2x32xf32>
    %554 = math.tanh %553 : vector<2x32xf32>
    %555 = vector.extract_strided_slice %540 {offsets = [0, 96], sizes = [2, 32], strides = [1, 1]} : vector<2x128xf32> to vector<2x32xf32>
    %556 = arith.negf %555 : vector<2x32xf32>
    %557 = math.exp %556 : vector<2x32xf32>
    %cst_134 = arith.constant 1.000000e+00 : f32
    %558 = vector.broadcast %cst_134 : f32 to vector<2x32xf32>
    %559 = arith.addf %558, %557 : vector<2x32xf32>
    %560 = arith.divf %558, %559 : vector<2x32xf32>
    %561 = arith.mulf %552, %535 : vector<2x32xf32>
    %562 = arith.mulf %546, %554 : vector<2x32xf32>
    %563 = arith.addf %561, %562 : vector<2x32xf32>
    %564 = math.tanh %563 : vector<2x32xf32>
    %565 = arith.mulf %560, %564 : vector<2x32xf32>
    %c0_135 = arith.constant 0 : index
    %c0_136 = arith.constant 0 : index
    %566 = vector.load %arg6[%c0_135, %c0_136] : memref<33x16xf32, #tpu.memory_space<vmem>>, vector<32x16xf32>
    %c32_137 = arith.constant 32 : index
    %c0_138 = arith.constant 0 : index
    %567 = vector.load %arg6[%c32_137, %c0_138] : memref<33x16xf32, #tpu.memory_space<vmem>>, vector<1x16xf32>
    %cst_139 = arith.constant dense<0.000000e+00> : vector<2x16xf32>
    %568 = tpu.matmul %565, %566, %cst_139 {dimension_numbers = #tpu.dot_dimension_numbers<[1], [0], [0], [1], [0, 0, 1, 1], [], []>, precision = #tpu.contract_precision<fp32>} : vector<2x32xf32>, vector<32x16xf32>, vector<2x16xf32> -> vector<2x16xf32>
    %569 = vector.broadcast %567 : vector<1x16xf32> to vector<2x16xf32>
    %570 = arith.addf %568, %569 : vector<2x16xf32>
    %cst_140 = arith.constant 0.000000e+00 : f32
    %571 = vector.broadcast %cst_140 : f32 to vector<2x16xf32>
    %572 = arith.maximumf %570, %571 : vector<2x16xf32>
    %c0_141 = arith.constant 0 : index
    %c0_142 = arith.constant 0 : index
    %573 = vector.load %arg7[%c0_141, %c0_142] : memref<2x16xf32, #tpu.memory_space<vmem>>, vector<2x16xf32>
    tpu.vector_store %arg7[%c0_141, %c0_142], %572 {strides = array<i32>} : memref<2x16xf32, #tpu.memory_space<vmem>>, vector<2x16xf32>,
    return
  }
}

</mosaic_0001>

<llo_original>
// kernel: tpu_custom_call.1
$region0: #{tpu_custom_call.1}
  #allocation0 [shape = 'u32[]', space=smem, size = 0x4, offset = 0x4, fixed_abs, tag = 'smem constant byte address 0x4 - core index']
  #allocation1 [shape = 'u32[144,128]{1,0:T(1,128)}', space=vmem, size = 0x12000, scoped, tag = 'internal scratch']
  #allocation2 [shape = 'f32[16,32]{1,0:T(8,128)}', space=vmem, size = 0x2000, scoped, tag = 'scratch operand']
  %s0 = inlined_call_operand.vmem [shape: f32[2,16,24], index: 0, kind: input, shape index: {}]
  %s1 = inlined_call_operand.vmem [shape: f32[73,32], index: 1, kind: input, shape index: {}]
  %s2 = inlined_call_operand.vmem [shape: f32[97,16], index: 2, kind: input, shape index: {}]
  %s3 = inlined_call_operand.vmem [shape: f32[49,8], index: 3, kind: input, shape index: {}]
  %s4 = inlined_call_operand.vmem [shape: f32[49,128], index: 4, kind: input, shape index: {}]
  %s5 = inlined_call_operand.vmem [shape: f32[65,128], index: 5, kind: input, shape index: {}]
  %s6 = inlined_call_operand.vmem [shape: f32[33,16], index: 6, kind: input, shape index: {}]
  %s7 = inlined_call_operand.hbm [shape: f32[2,16], index: 7, kind: output, shape index: {}]
  %s8 = sld [smem:[#allocation0]]
  $region38: #{tpu_custom_call.1} parent=0
    _
  %s10 = ssub.s32 1, %s8
  %s11 = scalar_select 0, %s10, %s8
  $region1: #{tpu_custom_call.1} parent=0
    #allocation3 [shape = 'u8[1024]{0}', space=vmem, size = 0x400, scoped, tag = 'output window, operand 0, single buffered']
    #allocation4 [shape = 's32[1]{0}', space=sflag, size = 0x4, scoped, tag = 'scoped memory for tpu_custom_call.1']
    %12 = vsyncpa [#allocation4], 0
    // Predicated region
    $region2: #{tpu_custom_call.1} parent=1 // pred_check
      _
    $region3: #{tpu_custom_call.1} parent=1 // pred_check_branch
      %14 = sbr.rel (0) target = $region5
    $region4: #{tpu_custom_call.1} parent=1 // pred_region
      _
    $region5: #{tpu_custom_call.1} parent=1 // pred_fallthru
      _
    // Predicated region
    $region6: #{tpu_custom_call.1} parent=1 // pred_check
      _
    $region7: #{tpu_custom_call.1} parent=1 // pred_check_branch
      %16 = sbr.rel (0) target = $region9
    $region8: #{tpu_custom_call.1} parent=1 // pred_region
      _
    $region9: #{tpu_custom_call.1} parent=1 // pred_fallthru
      _
    // Predicated region
    $region10: #{tpu_custom_call.1} parent=1 // pred_check
      _
    $region11: #{tpu_custom_call.1} parent=1 // pred_check_branch
      %18 = sbr.rel (0) target = $region13
    $region12: #{tpu_custom_call.1} parent=1 // pred_region
      _
    $region13: #{tpu_custom_call.1} parent=1 // pred_fallthru
      _
    // Predicated region
    $region14: #{tpu_custom_call.1} parent=1 // pred_check
      _
    $region15: #{tpu_custom_call.1} parent=1 // pred_check_branch
      %20 = sbr.rel (0) target = $region17
    $region16: #{tpu_custom_call.1} parent=1 // pred_region
      _
    $region17: #{tpu_custom_call.1} parent=1 // pred_fallthru
      _
    // Predicated region
    $region18: #{tpu_custom_call.1} parent=1 // pred_check
      _
    $region19: #{tpu_custom_call.1} parent=1 // pred_check_branch
      %22 = sbr.rel (0) target = $region21
    $region20: #{tpu_custom_call.1} parent=1 // pred_region
      _
    $region21: #{tpu_custom_call.1} parent=1 // pred_fallthru
      _
    // Predicated region
    $region22: #{tpu_custom_call.1} parent=1 // pred_check
      _
    $region23: #{tpu_custom_call.1} parent=1 // pred_check_branch
      %24 = sbr.rel (0) target = $region25
    $region24: #{tpu_custom_call.1} parent=1 // pred_region
      _
    $region25: #{tpu_custom_call.1} parent=1 // pred_fallthru
      _
    // Predicated region
    $region26: #{tpu_custom_call.1} parent=1 // pred_check
      _
    $region27: #{tpu_custom_call.1} parent=1 // pred_check_branch
      %26 = sbr.rel (0) target = $region29
    $region28: #{tpu_custom_call.1} parent=1 // pred_region
      _
    $region29: #{tpu_custom_call.1} parent=1 // pred_fallthru
      _
    %v27 = vld [vmem:[%s0] sm:$0xff]
    %v28 = vld [vmem:[%s0 + $0x8] sm:$0xff]
    %s29 = scalar_lea.vmem %s0, 16
    %v30 = vld [vmem:[%s29] sm:$0xff]
    %v31 = vld [vmem:[%s29 + $0x8] sm:$0xff]
    %v32 = vld [vmem:[%s1] sm:$0xff]
    %v33 = vld [vmem:[%s1 + $0x8] sm:$0xff]
    %v34 = vld [vmem:[%s1 + $0x10] sm:$0xff]
    %v35 = vld [vmem:[%s1 + $0x18] sm:$0xff]
    %v36 = vld [vmem:[%s1 + $0x20] sm:$0xff]
    %v37 = vld [vmem:[%s1 + $0x28] sm:$0xff]
    %v38 = vld [vmem:[%s1 + $0x30] sm:$0xff]
    %v39 = vld [vmem:[%s1 + $0x38] sm:$0xff]
    %v40 = vld [vmem:[%s1 + $0x40] sm:$0xff]
    %v41 = vld [vmem:[%s1 + $0x48] sm:$0x1]
    %vm44 = vcmask 1046528
    %v45 = vrot.slane %v27, 1
    %v46 = vrot.slane %v28, 1
    %v47 = vsel %vm44, %v45, %v46
    %48 = vrot.lane.b32.xlu0 %v47, 24
    %v49 = vpop.permute.xlu0 %48
    %50 = vrot.lane.b32.xlu0 %v46, 24
    %v51 = vpop.permute.xlu0 %50
    %vm54 = vcmask 1045504
    %v55 = vrot.slane %v27, 2
    %v56 = vrot.slane %v28, 2
    %v57 = vsel %vm54, %v55, %v56
    %58 = vrot.lane.b32.xlu0 %v57, 48
    %v59 = vpop.permute.xlu0 %58
    %60 = vrot.lane.b32.xlu0 %v56, 48
    %v61 = vpop.permute.xlu0 %60
    %vm64 = vcmask 195584
    %v65 = vsel %vm64, %v27, %v49
    %v66 = vsel %vm64, %v28, %v51
    %vm67 = vcmask 392192
    %v68 = vsel %vm67, %v65, %v59
    %v69 = vsel %vm67, %v66, %v61
    %v72 = vrot.slane %v30, 1
    %v73 = vrot.slane %v31, 1
    %v74 = vsel %vm44, %v72, %v73
    %75 = vrot.lane.b32.xlu0 %v74, 24
    %v76 = vpop.permute.xlu0 %75
    %77 = vrot.lane.b32.xlu0 %v73, 24
    %v78 = vpop.permute.xlu0 %77
    %v81 = vrot.slane %v30, 2
    %v82 = vrot.slane %v31, 2
    %v83 = vsel %vm54, %v81, %v82
    %84 = vrot.lane.b32.xlu0 %v83, 48
    %v85 = vpop.permute.xlu0 %84
    %86 = vrot.lane.b32.xlu0 %v82, 48
    %v87 = vpop.permute.xlu0 %86
    %v90 = vsel %vm64, %v30, %v76
    %v91 = vsel %vm64, %v31, %v78
    %v92 = vsel %vm67, %v90, %v85
    %v93 = vsel %vm67, %v91, %v87
    %v96 = vrot.slane %v92, 2
    %v97 = vrot.slane %v93, 2
    %v98 = vsel %vm54, %v96, %v97
    %v100 = vsel %vm54, %v69, %v96
    %v101 = vlaneseq
    %v102 = vshrl.u32 %v101, 7
    %v103 = vsub.s32 0, %v102
    %v104 = vrot.slane %v41, %v103
    %vm105 = vcmask 588800
    %v107 = vsel %vm105, %v68, 0
    %v110 = vsel %vm105, %v100, 0
    %v112 = vsel %vm105, %v98, 0
    %v114 = vsel %vm105, %v97, 0
    %116 = vmatprep.subr.mxu0 0.0
    %117 = vmatpush1.msra.mxu0 0.0
    %118 = vmatprep.subr.mxu0 0.0
    %119 = vmatpush1.msra.mxu0 0.0
    %120 = vmatprep.subr.mxu0 0.0
    %121 = vmatpush1.msra.mxu0 0.0
    %122 = vmatprep.subr.mxu0 0.0
    %123 = vmatpush1.msra.mxu0 0.0
    %124 = vmatprep.subr.mxu0 0.0
    %125 = vmatpush1.msra.mxu0 0.0
    %126 = vmatprep.subr.mxu0 0.0
    %127 = vmatpush1.msra.mxu0 0.0
    %128 = vmatprep.subr.mxu0 0.0
    %129 = vmatpush1.msra.mxu0 0.0
    %130 = vmatprep.subr.mxu0 0.0
    %v131 = vand.u32 %v40, 4294901760
    %132 = vmatpush1.msra.mxu0 %v131
    %133 = vmatprep.subr.mxu0 0.0
    %v134 = vand.u32 %v39, 4294901760
    %135 = vmatpush1.msra.mxu0 %v134
    %136 = vmatprep.subr.mxu0 0.0
    %v137 = vand.u32 %v38, 4294901760
    %138 = vmatpush1.msra.mxu0 %v137
    %139 = vmatprep.subr.mxu0 0.0
    %v140 = vand.u32 %v37, 4294901760
    %141 = vmatpush1.msra.mxu0 %v140
    %142 = vmatprep.subr.mxu0 0.0
    %v143 = vand.u32 %v36, 4294901760
    %144 = vmatpush1.msra.mxu0 %v143
    %145 = vmatprep.subr.mxu0 0.0
    %v146 = vand.u32 %v35, 4294901760
    %147 = vmatpush1.msra.mxu0 %v146
    %148 = vmatprep.subr.mxu0 0.0
    %v149 = vand.u32 %v34, 4294901760
    %150 = vmatpush1.msra.mxu0 %v149
    %151 = vmatprep.subr.mxu0 0.0
    %v152 = vand.u32 %v33, 4294901760
    %153 = vmatpush1.msra.mxu0 %v152
    %154 = vmatprep.subr.mxu0 0.0
    %v155 = vand.u32 %v32, 4294901760
    %156 = vmatpush1.msra.mxu0 %v155
    %157 = vmatprep.subr.mxu0 0.0
    %158 = vmatpush2.msra.mxu0 0.0
    %159 = vmatprep.subr.mxu0 0.0
    %160 = vmatpush2.msra.mxu0 0.0
    %161 = vmatprep.subr.mxu0 0.0
    %162 = vmatpush2.msra.mxu0 0.0
    %163 = vmatprep.subr.mxu0 0.0
    %164 = vmatpush2.msra.mxu0 0.0
    %165 = vmatprep.subr.mxu0 0.0
    %166 = vmatpush2.msra.mxu0 0.0
    %167 = vmatprep.subr.mxu0 0.0
    %168 = vmatpush2.msra.mxu0 0.0
    %169 = vmatprep.subr.mxu0 0.0
    %170 = vmatpush2.msra.mxu0 0.0
    %171 = vmatprep.subr.mxu0 0.0
    %172 = vmatpush2.msra.mxu0 0.0
    %173 = vmatprep.subr.mxu0 0.0
    %174 = vmatpush2.msra.mxu0 0.0
    %175 = vmatprep.subr.mxu0 0.0
    %176 = vmatpush2.msra.mxu0 0.0
    %177 = vmatprep.subr.mxu0 0.0
    %178 = vmatpush2.msra.mxu0 0.0
    %179 = vmatprep.subr.mxu0 0.0
    %180 = vmatpush2.msra.mxu0 0.0
    %181 = vmatprep.subr.mxu0 0.0
    %182 = vmatpush2.msra.mxu0 0.0
    %183 = vmatprep.subr.mxu0 0.0
    %184 = vmatpush2.msra.mxu0 0.0
    %185 = vmatprep.subr.mxu0 0.0
    %186 = vmatpush2.msra.mxu0 0.0
    %187 = vmatprep.subr.mxu0 0.0
    %188 = vmatpush2.msra.mxu0 0.0
    %189 = vmatprep.mubr.f32.mxu0 0.0
    %v190 = vand.u32 %v107, 4294901760
    %v191 = vsub.f32 %v107, %v190
    %v192 = vand.u32 %v191, 4294901760
    %v193 = vsub.f32 %v191, %v192
    %v194 = vand.u32 %v193, 4294901760
    %195 = vmatmul.mubr.f32.gmra.mxu0 %v194
    %v196 = vpop.f32.mrf.mxu0
    %v197 = vadd.f32 %v104, %v196
    %v198 = vpop.f32.mrf.mxu0
    %199 = vmatprep.mubr.f32.mxu0 0.0
    %v200 = vand.u32 %v110, 4294901760
    %v201 = vsub.f32 %v110, %v200
    %v202 = vand.u32 %v201, 4294901760
    %v203 = vsub.f32 %v201, %v202
    %v204 = vand.u32 %v203, 4294901760
    %205 = vmatmul.mubr.f32.gmra.mxu0 %v204
    %v206 = vpop.f32.mrf.mxu0
    %v207 = vadd.f32 %v104, %v206
    %v208 = vpop.f32.mrf.mxu0
    %209 = vmatprep.mubr.f32.mxu0 0.0
    %v210 = vand.u32 %v112, 4294901760
    %v211 = vsub.f32 %v112, %v210
    %v212 = vand.u32 %v211, 4294901760
    %v213 = vsub.f32 %v211, %v212
    %v214 = vand.u32 %v213, 4294901760
    %215 = vmatmul.mubr.f32.gmra.mxu0 %v214
    %v216 = vpop.f32.mrf.mxu0
    %v217 = vadd.f32 %v104, %v216
    %v218 = vpop.f32.mrf.mxu0
    %219 = vmatprep.mubr.f32.mxu0 0.0
    %v220 = vand.u32 %v114, 4294901760
    %v221 = vsub.f32 %v114, %v220
    %v222 = vand.u32 %v221, 4294901760
    %v223 = vsub.f32 %v221, %v222
    %v224 = vand.u32 %v223, 4294901760
    %225 = vmatmul.mubr.f32.gmra.mxu0 %v224
    %v226 = vpop.f32.mrf.mxu0
    %v227 = vadd.f32 %v104, %v226
    %v228 = vpop.f32.mrf.mxu0
    %229 = vdwg.mxu0
    %230 = vmatprep.subr.mxu0 0.0
    %231 = vmatpush1.msra.mxu0 0.0
    %232 = vmatprep.subr.mxu0 0.0
    %233 = vmatpush1.msra.mxu0 0.0
    %234 = vmatprep.subr.mxu0 0.0
    %235 = vmatpush1.msra.mxu0 0.0
    %236 = vmatprep.subr.mxu0 0.0
    %237 = vmatpush1.msra.mxu0 0.0
    %238 = vmatprep.subr.mxu0 0.0
    %239 = vmatpush1.msra.mxu0 0.0
    %240 = vmatprep.subr.mxu0 0.0
    %241 = vmatpush1.msra.mxu0 0.0
    %242 = vmatprep.subr.mxu0 0.0
    %243 = vmatpush1.msra.mxu0 0.0
    %244 = vmatprep.subr.mxu0 0.0
    %v245 = vand.u32 %v40, 4294901760
    %v246 = vsub.f32 %v40, %v245
    %v247 = vand.u32 %v246, 4294901760
    %v248 = vsub.f32 %v246, %v247
    %v249 = vand.u32 %v248, 4294901760
    %250 = vmatpush1.msra.mxu0 %v249
    %251 = vmatprep.subr.mxu0 0.0
    %v252 = vand.u32 %v39, 4294901760
    %v253 = vsub.f32 %v39, %v252
    %v254 = vand.u32 %v253, 4294901760
    %v255 = vsub.f32 %v253, %v254
    %v256 = vand.u32 %v255, 4294901760
    %257 = vmatpush1.msra.mxu0 %v256
    %258 = vmatprep.subr.mxu0 0.0
    %v259 = vand.u32 %v38, 4294901760
    %v260 = vsub.f32 %v38, %v259
    %v261 = vand.u32 %v260, 4294901760
    %v262 = vsub.f32 %v260, %v261
    %v263 = vand.u32 %v262, 4294901760
    %264 = vmatpush1.msra.mxu0 %v263
    %265 = vmatprep.subr.mxu0 0.0
    %v266 = vand.u32 %v37, 4294901760
    %v267 = vsub.f32 %v37, %v266
    %v268 = vand.u32 %v267, 4294901760
    %v269 = vsub.f32 %v267, %v268
    %v270 = vand.u32 %v269, 4294901760
    %271 = vmatpush1.msra.mxu0 %v270
    %272 = vmatprep.subr.mxu0 0.0
    %v273 = vand.u32 %v36, 4294901760
    %v274 = vsub.f32 %v36, %v273
    %v275 = vand.u32 %v274, 4294901760
    %v276 = vsub.f32 %v274, %v275
    %v277 = vand.u32 %v276, 4294901760
    %278 = vmatpush1.msra.mxu0 %v277
    %279 = vmatprep.subr.mxu0 0.0
    %v280 = vand.u32 %v35, 4294901760
    %v281 = vsub.f32 %v35, %v280
    %v282 = vand.u32 %v281, 4294901760
    %v283 = vsub.f32 %v281, %v282
    %v284 = vand.u32 %v283, 4294901760
    %285 = vmatpush1.msra.mxu0 %v284
    %286 = vmatprep.subr.mxu0 0.0
    %v287 = vand.u32 %v34, 4294901760
    %v288 = vsub.f32 %v34, %v287
    %v289 = vand.u32 %v288, 4294901760
    %v290 = vsub.f32 %v288, %v289
    %v291 = vand.u32 %v290, 4294901760
    %292 = vmatpush1.msra.mxu0 %v291
    %293 = vmatprep.subr.mxu0 0.0
    %v294 = vand.u32 %v33, 4294901760
    %v295 = vsub.f32 %v33, %v294
    %v296 = vand.u32 %v295, 4294901760
    %v297 = vsub.f32 %v295, %v296
    %v298 = vand.u32 %v297, 4294901760
    %299 = vmatpush1.msra.mxu0 %v298
    %300 = vmatprep.subr.mxu0 0.0
    %v301 = vand.u32 %v32, 4294901760
    %v302 = vsub.f32 %v32, %v301
    %v303 = vand.u32 %v302, 4294901760
    %v304 = vsub.f32 %v302, %v303
    %v305 = vand.u32 %v304, 4294901760
    %306 = vmatpush1.msra.mxu0 %v305
    %307 = vmatprep.subr.mxu0 0.0
    %308 = vmatpush2.msra.mxu0 0.0
    %309 = vmatprep.subr.mxu0 0.0
    %310 = vmatpush2.msra.mxu0 0.0
    %311 = vmatprep.subr.mxu0 0.0
    %312 = vmatpush2.msra.mxu0 0.0
    %313 = vmatprep.subr.mxu0 0.0
    %314 = vmatpush2.msra.mxu0 0.0
    %315 = vmatprep.subr.mxu0 0.0
    %316 = vmatpush2.msra.mxu0 0.0
    %317 = vmatprep.subr.mxu0 0.0
    %318 = vmatpush2.msra.mxu0 0.0
    %319 = vmatprep.subr.mxu0 0.0
    %320 = vmatpush2.msra.mxu0 0.0
    %321 = vmatprep.subr.mxu0 0.0
    %322 = vmatpush2.msra.mxu0 0.0
    %323 = vmatprep.subr.mxu0 0.0
    %324 = vmatpush2.msra.mxu0 0.0
    %325 = vmatprep.subr.mxu0 0.0
    %326 = vmatpush2.msra.mxu0 0.0
    %327 = vmatprep.subr.mxu0 0.0
    %328 = vmatpush2.msra.mxu0 0.0
    %329 = vmatprep.subr.mxu0 0.0
    %330 = vmatpush2.msra.mxu0 0.0
    %331 = vmatprep.subr.mxu0 0.0
    %332 = vmatpush2.msra.mxu0 0.0
    %333 = vmatprep.subr.mxu0 0.0
    %334 = vmatpush2.msra.mxu0 0.0
    %335 = vmatprep.subr.mxu0 0.0
    %336 = vmatpush2.msra.mxu0 0.0
    %337 = vmatprep.subr.mxu0 0.0
    %338 = vmatpush2.msra.mxu0 0.0
    %339 = vmatprep.mubr.f32.mxu0 0.0
    %v340 = vand.u32 %v107, 4294901760
    %341 = vmatmul.mubr.f32.gmra.mxu0 %v340
    %v342 = vpop.f32.mrf.mxu0
    %v343 = vadd.f32 %v197, %v342
    %v344 = vpop.f32.mrf.mxu0
    %345 = vmatprep.mubr.f32.mxu0 0.0
    %v346 = vand.u32 %v110, 4294901760
    %347 = vmatmul.mubr.f32.gmra.mxu0 %v346
    %v348 = vpop.f32.mrf.mxu0
    %v349 = vadd.f32 %v207, %v348
    %v350 = vpop.f32.mrf.mxu0
    %351 = vmatprep.mubr.f32.mxu0 0.0
    %v352 = vand.u32 %v112, 4294901760
    %353 = vmatmul.mubr.f32.gmra.mxu0 %v352
    %v354 = vpop.f32.mrf.mxu0
    %v355 = vadd.f32 %v217, %v354
    %v356 = vpop.f32.mrf.mxu0
    %357 = vmatprep.mubr.f32.mxu0 0.0
    %v358 = vand.u32 %v114, 4294901760
    %359 = vmatmul.mubr.f32.gmra.mxu0 %v358
    %v360 = vpop.f32.mrf.mxu0
    %v361 = vadd.f32 %v227, %v360
    %v362 = vpop.f32.mrf.mxu0
    %363 = vdwg.mxu0
    %364 = vmatprep.subr.mxu0 0.0
    %365 = vmatpush1.msra.mxu0 0.0
    %366 = vmatprep.subr.mxu0 0.0
    %367 = vmatpush1.msra.mxu0 0.0
    %368 = vmatprep.subr.mxu0 0.0
    %369 = vmatpush1.msra.mxu0 0.0
    %370 = vmatprep.subr.mxu0 0.0
    %371 = vmatpush1.msra.mxu0 0.0
    %372 = vmatprep.subr.mxu0 0.0
    %373 = vmatpush1.msra.mxu0 0.0
    %374 = vmatprep.subr.mxu0 0.0
    %375 = vmatpush1.msra.mxu0 0.0
    %376 = vmatprep.subr.mxu0 0.0
    %377 = vmatpush1.msra.mxu0 0.0
    %378 = vmatprep.subr.mxu0 0.0
    %v379 = vand.u32 %v40, 4294901760
    %v380 = vsub.f32 %v40, %v379
    %381 = vmatpush1.msra.mxu0 %v380
    %382 = vmatprep.subr.mxu0 0.0
    %v383 = vand.u32 %v39, 4294901760
    %v384 = vsub.f32 %v39, %v383
    %385 = vmatpush1.msra.mxu0 %v384
    %386 = vmatprep.subr.mxu0 0.0
    %v387 = vand.u32 %v38, 4294901760
    %v388 = vsub.f32 %v38, %v387
    %389 = vmatpush1.msra.mxu0 %v388
    %390 = vmatprep.subr.mxu0 0.0
    %v391 = vand.u32 %v37, 4294901760
    %v392 = vsub.f32 %v37, %v391
    %393 = vmatpush1.msra.mxu0 %v392
    %394 = vmatprep.subr.mxu0 0.0
    %v395 = vand.u32 %v36, 4294901760
    %v396 = vsub.f32 %v36, %v395
    %397 = vmatpush1.msra.mxu0 %v396
    %398 = vmatprep.subr.mxu0 0.0
    %v399 = vand.u32 %v35, 4294901760
    %v400 = vsub.f32 %v35, %v399
    %401 = vmatpush1.msra.mxu0 %v400
    %402 = vmatprep.subr.mxu0 0.0
    %v403 = vand.u32 %v34, 4294901760
    %v404 = vsub.f32 %v34, %v403
    %405 = vmatpush1.msra.mxu0 %v404
    %406 = vmatprep.subr.mxu0 0.0
    %v407 = vand.u32 %v33, 4294901760
    %v408 = vsub.f32 %v33, %v407
    %409 = vmatpush1.msra.mxu0 %v408
    %410 = vmatprep.subr.mxu0 0.0
    %v411 = vand.u32 %v32, 4294901760
    %v412 = vsub.f32 %v32, %v411
    %413 = vmatpush1.msra.mxu0 %v412
    %414 = vmatprep.subr.mxu0 0.0
    %415 = vmatpush2.msra.mxu0 0.0
    %416 = vmatprep.subr.mxu0 0.0
    %417 = vmatpush2.msra.mxu0 0.0
    %418 = vmatprep.subr.mxu0 0.0
    %419 = vmatpush2.msra.mxu0 0.0
    %420 = vmatprep.subr.mxu0 0.0
    %421 = vmatpush2.msra.mxu0 0.0
    %422 = vmatprep.subr.mxu0 0.0
    %423 = vmatpush2.msra.mxu0 0.0
    %424 = vmatprep.subr.mxu0 0.0
    %425 = vmatpush2.msra.mxu0 0.0
    %426 = vmatprep.subr.mxu0 0.0
    %427 = vmatpush2.msra.mxu0 0.0
    %428 = vmatprep.subr.mxu0 0.0
    %429 = vmatpush2.msra.mxu0 0.0
    %430 = vmatprep.subr.mxu0 0.0
    %431 = vmatpush2.msra.mxu0 0.0
    %432 = vmatprep.subr.mxu0 0.0
    %433 = vmatpush2.msra.mxu0 0.0
    %434 = vmatprep.subr.mxu0 0.0
    %435 = vmatpush2.msra.mxu0 0.0
    %436 = vmatprep.subr.mxu0 0.0
    %437 = vmatpush2.msra.mxu0 0.0
    %438 = vmatprep.subr.mxu0 0.0
    %439 = vmatpush2.msra.mxu0 0.0
    %440 = vmatprep.subr.mxu0 0.0
    %441 = vmatpush2.msra.mxu0 0.0
    %442 = vmatprep.subr.mxu0 0.0
    %443 = vmatpush2.msra.mxu0 0.0
    %444 = vmatprep.subr.mxu0 0.0
    %445 = vmatpush2.msra.mxu0 0.0
    %446 = vmatprep.mubr.f32.mxu0 0.0
    %v447 = vand.u32 %v107, 4294901760
    %v448 = vsub.f32 %v107, %v447
    %449 = vmatmul.mubr.f32.gmra.mxu0 %v448
    %v450 = vpop.f32.mrf.mxu0
    %v451 = vadd.f32 %v343, %v450
    %v452 = vpop.f32.mrf.mxu0
    %453 = vmatprep.mubr.f32.mxu0 0.0
    %v454 = vand.u32 %v110, 4294901760
    %v455 = vsub.f32 %v110, %v454
    %456 = vmatmul.mubr.f32.gmra.mxu0 %v455
    %v457 = vpop.f32.mrf.mxu0
    %v458 = vadd.f32 %v349, %v457
    %v459 = vpop.f32.mrf.mxu0
    %460 = vmatprep.mubr.f32.mxu0 0.0
    %v461 = vand.u32 %v112, 4294901760
    %v462 = vsub.f32 %v112, %v461
    %463 = vmatmul.mubr.f32.gmra.mxu0 %v462
    %v464 = vpop.f32.mrf.mxu0
    %v465 = vadd.f32 %v355, %v464
    %v466 = vpop.f32.mrf.mxu0
    %467 = vmatprep.mubr.f32.mxu0 0.0
    %v468 = vand.u32 %v114, 4294901760
    %v469 = vsub.f32 %v114, %v468
    %470 = vmatmul.mubr.f32.gmra.mxu0 %v469
    %v471 = vpop.f32.mrf.mxu0
    %v472 = vadd.f32 %v361, %v471
    %v473 = vpop.f32.mrf.mxu0
    %474 = vdwg.mxu0
    %475 = vmatprep.subr.mxu0 0.0
    %476 = vmatpush1.msra.mxu0 0.0
    %477 = vmatprep.subr.mxu0 0.0
    %478 = vmatpush1.msra.mxu0 0.0
    %479 = vmatprep.subr.mxu0 0.0
    %480 = vmatpush1.msra.mxu0 0.0
    %481 = vmatprep.subr.mxu0 0.0
    %482 = vmatpush1.msra.mxu0 0.0
    %483 = vmatprep.subr.mxu0 0.0
    %484 = vmatpush1.msra.mxu0 0.0
    %485 = vmatprep.subr.mxu0 0.0
    %486 = vmatpush1.msra.mxu0 0.0
    %487 = vmatprep.subr.mxu0 0.0
    %488 = vmatpush1.msra.mxu0 0.0
    %489 = vmatprep.subr.mxu0 0.0
    %v490 = vand.u32 %v40, 4294901760
    %491 = vmatpush1.msra.mxu0 %v490
    %492 = vmatprep.subr.mxu0 0.0
    %v493 = vand.u32 %v39, 4294901760
    %494 = vmatpush1.msra.mxu0 %v493
    %495 = vmatprep.subr.mxu0 0.0
    %v496 = vand.u32 %v38, 4294901760
    %497 = vmatpush1.msra.mxu0 %v496
    %498 = vmatprep.subr.mxu0 0.0
    %v499 = vand.u32 %v37, 4294901760
    %500 = vmatpush1.msra.mxu0 %v499
    %501 = vmatprep.subr.mxu0 0.0
    %v502 = vand.u32 %v36, 4294901760
    %503 = vmatpush1.msra.mxu0 %v502
    %504 = vmatprep.subr.mxu0 0.0
    %v505 = vand.u32 %v35, 4294901760
    %506 = vmatpush1.msra.mxu0 %v505
    %507 = vmatprep.subr.mxu0 0.0
    %v508 = vand.u32 %v34, 4294901760
    %509 = vmatpush1.msra.mxu0 %v508
    %510 = vmatprep.subr.mxu0 0.0
    %v511 = vand.u32 %v33, 4294901760
    %512 = vmatpush1.msra.mxu0 %v511
    %513 = vmatprep.subr.mxu0 0.0
    %v514 = vand.u32 %v32, 4294901760
    %515 = vmatpush1.msra.mxu0 %v514
    %516 = vmatprep.subr.mxu0 0.0
    %517 = vmatpush2.msra.mxu0 0.0
    %518 = vmatprep.subr.mxu0 0.0
    %519 = vmatpush2.msra.mxu0 0.0
    %520 = vmatprep.subr.mxu0 0.0
    %521 = vmatpush2.msra.mxu0 0.0
    %522 = vmatprep.subr.mxu0 0.0
    %523 = vmatpush2.msra.mxu0 0.0
    %524 = vmatprep.subr.mxu0 0.0
    %525 = vmatpush2.msra.mxu0 0.0
    %526 = vmatprep.subr.mxu0 0.0
    %527 = vmatpush2.msra.mxu0 0.0
    %528 = vmatprep.subr.mxu0 0.0
    %529 = vmatpush2.msra.mxu0 0.0
    %530 = vmatprep.subr.mxu0 0.0
    %531 = vmatpush2.msra.mxu0 0.0
    %532 = vmatprep.subr.mxu0 0.0
    %533 = vmatpush2.msra.mxu0 0.0
    %534 = vmatprep.subr.mxu0 0.0
    %535 = vmatpush2.msra.mxu0 0.0
    %536 = vmatprep.subr.mxu0 0.0
    %537 = vmatpush2.msra.mxu0 0.0
    %538 = vmatprep.subr.mxu0 0.0
    %539 = vmatpush2.msra.mxu0 0.0
    %540 = vmatprep.subr.mxu0 0.0
    %541 = vmatpush2.msra.mxu0 0.0
    %542 = vmatprep.subr.mxu0 0.0
    %543 = vmatpush2.msra.mxu0 0.0
    %544 = vmatprep.subr.mxu0 0.0
    %545 = vmatpush2.msra.mxu0 0.0
    %546 = vmatprep.subr.mxu0 0.0
    %547 = vmatpush2.msra.mxu0 0.0
    %548 = vmatprep.mubr.f32.mxu0 0.0
    %v549 = vand.u32 %v107, 4294901760
    %v550 = vsub.f32 %v107, %v549
    %v551 = vand.u32 %v550, 4294901760
    %552 = vmatmul.mubr.f32.gmra.mxu0 %v551
    %v553 = vpop.f32.mrf.mxu0
    %v554 = vadd.f32 %v451, %v553
    %v555 = vpop.f32.mrf.mxu0
    %556 = vmatprep.mubr.f32.mxu0 0.0
    %v557 = vand.u32 %v110, 4294901760
    %v558 = vsub.f32 %v110, %v557
    %v559 = vand.u32 %v558, 4294901760
    %560 = vmatmul.mubr.f32.gmra.mxu0 %v559
    %v561 = vpop.f32.mrf.mxu0
    %v562 = vadd.f32 %v458, %v561
    %v563 = vpop.f32.mrf.mxu0
    %564 = vmatprep.mubr.f32.mxu0 0.0
    %v565 = vand.u32 %v112, 4294901760
    %v566 = vsub.f32 %v112, %v565
    %v567 = vand.u32 %v566, 4294901760
    %568 = vmatmul.mubr.f32.gmra.mxu0 %v567
    %v569 = vpop.f32.mrf.mxu0
    %v570 = vadd.f32 %v465, %v569
    %v571 = vpop.f32.mrf.mxu0
    %572 = vmatprep.mubr.f32.mxu0 0.0
    %v573 = vand.u32 %v114, 4294901760
    %v574 = vsub.f32 %v114, %v573
    %v575 = vand.u32 %v574, 4294901760
    %576 = vmatmul.mubr.f32.gmra.mxu0 %v575
    %v577 = vpop.f32.mrf.mxu0
    %v578 = vadd.f32 %v472, %v577
    %v579 = vpop.f32.mrf.mxu0
    %580 = vdwg.mxu0
    %581 = vmatprep.subr.mxu0 0.0
    %582 = vmatpush1.msra.mxu0 0.0
    %583 = vmatprep.subr.mxu0 0.0
    %584 = vmatpush1.msra.mxu0 0.0
    %585 = vmatprep.subr.mxu0 0.0
    %586 = vmatpush1.msra.mxu0 0.0
    %587 = vmatprep.subr.mxu0 0.0
    %588 = vmatpush1.msra.mxu0 0.0
    %589 = vmatprep.subr.mxu0 0.0
    %590 = vmatpush1.msra.mxu0 0.0
    %591 = vmatprep.subr.mxu0 0.0
    %592 = vmatpush1.msra.mxu0 0.0
    %593 = vmatprep.subr.mxu0 0.0
    %594 = vmatpush1.msra.mxu0 0.0
    %595 = vmatprep.subr.mxu0 0.0
    %v596 = vand.u32 %v40, 4294901760
    %v597 = vsub.f32 %v40, %v596
    %v598 = vand.u32 %v597, 4294901760
    %599 = vmatpush1.msra.mxu0 %v598
    %600 = vmatprep.subr.mxu0 0.0
    %v601 = vand.u32 %v39, 4294901760
    %v602 = vsub.f32 %v39, %v601
    %v603 = vand.u32 %v602, 4294901760
    %604 = vmatpush1.msra.mxu0 %v603
    %605 = vmatprep.subr.mxu0 0.0
    %v606 = vand.u32 %v38, 4294901760
    %v607 = vsub.f32 %v38, %v606
    %v608 = vand.u32 %v607, 4294901760
    %609 = vmatpush1.msra.mxu0 %v608
    %610 = vmatprep.subr.mxu0 0.0
    %v611 = vand.u32 %v37, 4294901760
    %v612 = vsub.f32 %v37, %v611
    %v613 = vand.u32 %v612, 4294901760
    %614 = vmatpush1.msra.mxu0 %v613
    %615 = vmatprep.subr.mxu0 0.0
    %v616 = vand.u32 %v36, 4294901760
    %v617 = vsub.f32 %v36, %v616
    %v618 = vand.u32 %v617, 4294901760
    %619 = vmatpush1.msra.mxu0 %v618
    %620 = vmatprep.subr.mxu0 0.0
    %v621 = vand.u32 %v35, 4294901760
    %v622 = vsub.f32 %v35, %v621
    %v623 = vand.u32 %v622, 4294901760
    %624 = vmatpush1.msra.mxu0 %v623
    %625 = vmatprep.subr.mxu0 0.0
    %v626 = vand.u32 %v34, 4294901760
    %v627 = vsub.f32 %v34, %v626
    %v628 = vand.u32 %v627, 4294901760
    %629 = vmatpush1.msra.mxu0 %v628
    %630 = vmatprep.subr.mxu0 0.0
    %v631 = vand.u32 %v33, 4294901760
    %v632 = vsub.f32 %v33, %v631
    %v633 = vand.u32 %v632, 4294901760
    %634 = vmatpush1.msra.mxu0 %v633
    %635 = vmatprep.subr.mxu0 0.0
    %v636 = vand.u32 %v32, 4294901760
    %v637 = vsub.f32 %v32, %v636
    %v638 = vand.u32 %v637, 4294901760
    %639 = vmatpush1.msra.mxu0 %v638
    %640 = vmatprep.subr.mxu0 0.0
    %641 = vmatpush2.msra.mxu0 0.0
    %642 = vmatprep.subr.mxu0 0.0
    %643 = vmatpush2.msra.mxu0 0.0
    %644 = vmatprep.subr.mxu0 0.0
    %645 = vmatpush2.msra.mxu0 0.0
    %646 = vmatprep.subr.mxu0 0.0
    %647 = vmatpush2.msra.mxu0 0.0
    %648 = vmatprep.subr.mxu0 0.0
    %649 = vmatpush2.msra.mxu0 0.0
    %650 = vmatprep.subr.mxu0 0.0
    %651 = vmatpush2.msra.mxu0 0.0
    %652 = vmatprep.subr.mxu0 0.0
    %653 = vmatpush2.msra.mxu0 0.0
    %654 = vmatprep.subr.mxu0 0.0
    %655 = vmatpush2.msra.mxu0 0.0
    %656 = vmatprep.subr.mxu0 0.0
    %657 = vmatpush2.msra.mxu0 0.0
    %658 = vmatprep.subr.mxu0 0.0
    %659 = vmatpush2.msra.mxu0 0.0
    %660 = vmatprep.subr.mxu0 0.0
    %661 = vmatpush2.msra.mxu0 0.0
    %662 = vmatprep.subr.mxu0 0.0
    %663 = vmatpush2.msra.mxu0 0.0
    %664 = vmatprep.subr.mxu0 0.0
    %665 = vmatpush2.msra.mxu0 0.0
    %666 = vmatprep.subr.mxu0 0.0
    %667 = vmatpush2.msra.mxu0 0.0
    %668 = vmatprep.subr.mxu0 0.0
    %669 = vmatpush2.msra.mxu0 0.0
    %670 = vmatprep.subr.mxu0 0.0
    %671 = vmatpush2.msra.mxu0 0.0
    %672 = vmatprep.mubr.f32.mxu0 0.0
    %v673 = vand.u32 %v107, 4294901760
    %674 = vmatmul.mubr.f32.gmra.mxu0 %v673
    %v675 = vpop.f32.mrf.mxu0
    %v676 = vadd.f32 %v554, %v675
    %v677 = vpop.f32.mrf.mxu0
    %678 = vmatprep.mubr.f32.mxu0 0.0
    %v679 = vand.u32 %v110, 4294901760
    %680 = vmatmul.mubr.f32.gmra.mxu0 %v679
    %v681 = vpop.f32.mrf.mxu0
    %v682 = vadd.f32 %v562, %v681
    %v683 = vpop.f32.mrf.mxu0
    %684 = vmatprep.mubr.f32.mxu0 0.0
    %v685 = vand.u32 %v112, 4294901760
    %686 = vmatmul.mubr.f32.gmra.mxu0 %v685
    %v687 = vpop.f32.mrf.mxu0
    %v688 = vadd.f32 %v570, %v687
    %v689 = vpop.f32.mrf.mxu0
    %690 = vmatprep.mubr.f32.mxu0 0.0
    %v691 = vand.u32 %v114, 4294901760
    %692 = vmatmul.mubr.f32.gmra.mxu0 %v691
    %v693 = vpop.f32.mrf.mxu0
    %v694 = vadd.f32 %v578, %v693
    %v695 = vpop.f32.mrf.mxu0
    %696 = vdwg.mxu0
    %697 = vmatprep.subr.mxu0 0.0
    %698 = vmatpush1.msra.mxu0 0.0
    %699 = vmatprep.subr.mxu0 0.0
    %700 = vmatpush1.msra.mxu0 0.0
    %701 = vmatprep.subr.mxu0 0.0
    %702 = vmatpush1.msra.mxu0 0.0
    %703 = vmatprep.subr.mxu0 0.0
    %704 = vmatpush1.msra.mxu0 0.0
    %705 = vmatprep.subr.mxu0 0.0
    %706 = vmatpush1.msra.mxu0 0.0
    %707 = vmatprep.subr.mxu0 0.0
    %708 = vmatpush1.msra.mxu0 0.0
    %709 = vmatprep.subr.mxu0 0.0
    %710 = vmatpush1.msra.mxu0 0.0
    %711 = vmatprep.subr.mxu0 0.0
    %v712 = vand.u32 %v40, 4294901760
    %713 = vmatpush1.msra.mxu0 %v712
    %714 = vmatprep.subr.mxu0 0.0
    %v715 = vand.u32 %v39, 4294901760
    %716 = vmatpush1.msra.mxu0 %v715
    %717 = vmatprep.subr.mxu0 0.0
    %v718 = vand.u32 %v38, 4294901760
    %719 = vmatpush1.msra.mxu0 %v718
    %720 = vmatprep.subr.mxu0 0.0
    %v721 = vand.u32 %v37, 4294901760
    %722 = vmatpush1.msra.mxu0 %v721
    %723 = vmatprep.subr.mxu0 0.0
    %v724 = vand.u32 %v36, 4294901760
    %725 = vmatpush1.msra.mxu0 %v724
    %726 = vmatprep.subr.mxu0 0.0
    %v727 = vand.u32 %v35, 4294901760
    %728 = vmatpush1.msra.mxu0 %v727
    %729 = vmatprep.subr.mxu0 0.0
    %v730 = vand.u32 %v34, 4294901760
    %731 = vmatpush1.msra.mxu0 %v730
    %732 = vmatprep.subr.mxu0 0.0
    %v733 = vand.u32 %v33, 4294901760
    %734 = vmatpush1.msra.mxu0 %v733
    %735 = vmatprep.subr.mxu0 0.0
    %v736 = vand.u32 %v32, 4294901760
    %737 = vmatpush1.msra.mxu0 %v736
    %738 = vmatprep.subr.mxu0 0.0
    %739 = vmatpush2.msra.mxu0 0.0
    %740 = vmatprep.subr.mxu0 0.0
    %741 = vmatpush2.msra.mxu0 0.0
    %742 = vmatprep.subr.mxu0 0.0
    %743 = vmatpush2.msra.mxu0 0.0
    %744 = vmatprep.subr.mxu0 0.0
    %745 = vmatpush2.msra.mxu0 0.0
    %746 = vmatprep.subr.mxu0 0.0
    %747 = vmatpush2.msra.mxu0 0.0
    %748 = vmatprep.subr.mxu0 0.0
    %749 = vmatpush2.msra.mxu0 0.0
    %750 = vmatprep.subr.mxu0 0.0
    %751 = vmatpush2.msra.mxu0 0.0
    %752 = vmatprep.subr.mxu0 0.0
    %753 = vmatpush2.msra.mxu0 0.0
    %754 = vmatprep.subr.mxu0 0.0
    %755 = vmatpush2.msra.mxu0 0.0
    %756 = vmatprep.subr.mxu0 0.0
    %757 = vmatpush2.msra.mxu0 0.0
    %758 = vmatprep.subr.mxu0 0.0
    %759 = vmatpush2.msra.mxu0 0.0
    %760 = vmatprep.subr.mxu0 0.0
    %761 = vmatpush2.msra.mxu0 0.0
    %762 = vmatprep.subr.mxu0 0.0
    %763 = vmatpush2.msra.mxu0 0.0
    %764 = vmatprep.subr.mxu0 0.0
    %765 = vmatpush2.msra.mxu0 0.0
    %766 = vmatprep.subr.mxu0 0.0
    %767 = vmatpush2.msra.mxu0 0.0
    %768 = vmatprep.subr.mxu0 0.0
    %769 = vmatpush2.msra.mxu0 0.0
    %770 = vmatprep.mubr.f32.mxu0 0.0
    %v771 = vand.u32 %v107, 4294901760
    %772 = vmatmul.mubr.f32.gmra.mxu0 %v771
    %v773 = vpop.f32.mrf.mxu0
    %v774 = vadd.f32 %v676, %v773
    %v775 = vpop.f32.mrf.mxu0
    %776 = vmatprep.mubr.f32.mxu0 0.0
    %v777 = vand.u32 %v110, 4294901760
    %778 = vmatmul.mubr.f32.gmra.mxu0 %v777
    %v779 = vpop.f32.mrf.mxu0
    %v780 = vadd.f32 %v682, %v779
    %v781 = vpop.f32.mrf.mxu0
    %782 = vmatprep.mubr.f32.mxu0 0.0
    %v783 = vand.u32 %v112, 4294901760
    %784 = vmatmul.mubr.f32.gmra.mxu0 %v783
    %v785 = vpop.f32.mrf.mxu0
    %v786 = vadd.f32 %v688, %v785
    %v787 = vpop.f32.mrf.mxu0
    %788 = vmatprep.mubr.f32.mxu0 0.0
    %v789 = vand.u32 %v114, 4294901760
    %790 = vmatmul.mubr.f32.gmra.mxu0 %v789
    %v791 = vpop.f32.mrf.mxu0
    %v792 = vadd.f32 %v694, %v791
    %v793 = vpop.f32.mrf.mxu0
    %794 = vdwg.mxu0
    %v795 = vmax.f32 %v774, 0.0
    %v796 = vmax.f32 %v780, 0.0
    %v797 = vmax.f32 %v786, 0.0
    %v798 = vmax.f32 %v792, 0.0
    %v799 = vld [vmem:[%s2] sm:$0xff]
    %v800 = vld [vmem:[%s2 + $0x8] sm:$0xff]
    %v801 = vld [vmem:[%s2 + $0x10] sm:$0xff]
    %v802 = vld [vmem:[%s2 + $0x18] sm:$0xff]
    %v803 = vld [vmem:[%s2 + $0x20] sm:$0xff]
    %v804 = vld [vmem:[%s2 + $0x28] sm:$0xff]
    %v805 = vld [vmem:[%s2 + $0x30] sm:$0xff]
    %v806 = vld [vmem:[%s2 + $0x38] sm:$0xff]
    %v807 = vld [vmem:[%s2 + $0x40] sm:$0xff]
    %v808 = vld [vmem:[%s2 + $0x48] sm:$0xff]
    %v809 = vld [vmem:[%s2 + $0x50] sm:$0xff]
    %v810 = vld [vmem:[%s2 + $0x58] sm:$0xff]
    %v811 = vld [vmem:[%s2 + $0x60] sm:$0x1]
    %v814 = vrot.slane %v795, 1
    %v815 = vrot.slane %v796, 1
    %v816 = vsel %vm44, %v814, %v815
    %817 = vrot.lane.b32.xlu0 %v816, 32
    %v818 = vpop.permute.xlu0 %817
    %819 = vrot.lane.b32.xlu0 %v815, 32
    %v820 = vpop.permute.xlu0 %819
    %v823 = vrot.slane %v795, 2
    %v824 = vrot.slane %v796, 2
    %v825 = vsel %vm54, %v823, %v824
    %826 = vrot.lane.b32.xlu0 %v825, 64
    %v827 = vpop.permute.xlu0 %826
    %828 = vrot.lane.b32.xlu0 %v824, 64
    %v829 = vpop.permute.xlu0 %828
    %vm832 = vcmask 261120
    %v833 = vsel %vm832, %v795, %v818
    %v834 = vsel %vm832, %v796, %v820
    %vm835 = vcmask 523264
    %v836 = vsel %vm835, %v833, %v827
    %v837 = vsel %vm835, %v834, %v829
    %v840 = vrot.slane %v797, 1
    %v841 = vsel %vm44, %v815, %v840
    %v842 = vrot.slane %v798, 1
    %v843 = vsel %vm44, %v840, %v842
    %844 = vrot.lane.b32.xlu0 %v841, 32
    %v845 = vpop.permute.xlu0 %844
    %846 = vrot.lane.b32.xlu0 %v843, 32
    %v847 = vpop.permute.xlu0 %846
    %848 = vrot.lane.b32.xlu0 %v842, 32
    %v849 = vpop.permute.xlu0 %848
    %v853 = vrot.slane %v797, 2
    %v854 = vrot.slane %v798, 2
    %v855 = vsel %vm54, %v853, %v854
    %856 = vrot.lane.b32.xlu0 %v853, 64
    %v857 = vpop.permute.xlu0 %856
    %858 = vrot.lane.b32.xlu0 %v855, 64
    %v859 = vpop.permute.xlu0 %858
    %860 = vrot.lane.b32.xlu0 %v854, 64
    %v861 = vpop.permute.xlu0 %860
    %v865 = vsel %vm832, %v796, %v845
    %v866 = vsel %vm832, %v797, %v847
    %v867 = vsel %vm832, %v798, %v849
    %v868 = vsel %vm835, %v865, %v857
    %v869 = vsel %vm835, %v866, %v859
    %v870 = vsel %vm835, %v867, %v861
    %v874 = vrot.slane %v868, 2
    %v875 = vrot.slane %v869, 2
    %v876 = vsel %vm54, %v874, %v875
    %v877 = vrot.slane %v870, 2
    %v878 = vsel %vm54, %v875, %v877
    %vm880 = vcmask 1043456
    %v881 = vsel %vm880, %v837, %v876
    %v882 = vlaneseq
    %v883 = vshrl.u32 %v882, 7
    %v884 = vsub.s32 0, %v883
    %v885 = vrot.slane %v811, %v884
    %vm886 = vcmask 785408
    %v888 = vsel %vm886, %v836, 0
    %v891 = vsel %vm886, %v881, 0
    %v893 = vsel %vm886, %v878, 0
    %895 = vmatprep.subr.mxu0 0.0
    %896 = vmatpush1.msra.mxu0 0.0
    %897 = vmatprep.subr.mxu0 0.0
    %898 = vmatpush1.msra.mxu0 0.0
    %899 = vmatprep.subr.mxu0 0.0
    %900 = vmatpush1.msra.mxu0 0.0
    %901 = vmatprep.subr.mxu0 0.0
    %902 = vmatpush1.msra.mxu0 0.0
    %903 = vmatprep.subr.mxu0 0.0
    %v904 = vand.u32 %v810, 4294901760
    %905 = vmatpush1.msra.mxu0 %v904
    %906 = vmatprep.subr.mxu0 0.0
    %v907 = vand.u32 %v809, 4294901760
    %908 = vmatpush1.msra.mxu0 %v907
    %909 = vmatprep.subr.mxu0 0.0
    %v910 = vand.u32 %v808, 4294901760
    %911 = vmatpush1.msra.mxu0 %v910
    %912 = vmatprep.subr.mxu0 0.0
    %v913 = vand.u32 %v807, 4294901760
    %914 = vmatpush1.msra.mxu0 %v913
    %915 = vmatprep.subr.mxu0 0.0
    %v916 = vand.u32 %v806, 4294901760
    %917 = vmatpush1.msra.mxu0 %v916
    %918 = vmatprep.subr.mxu0 0.0
    %v919 = vand.u32 %v805, 4294901760
    %920 = vmatpush1.msra.mxu0 %v919
    %921 = vmatprep.subr.mxu0 0.0
    %v922 = vand.u32 %v804, 4294901760
    %923 = vmatpush1.msra.mxu0 %v922
    %924 = vmatprep.subr.mxu0 0.0
    %v925 = vand.u32 %v803, 4294901760
    %926 = vmatpush1.msra.mxu0 %v925
    %927 = vmatprep.subr.mxu0 0.0
    %v928 = vand.u32 %v802, 4294901760
    %929 = vmatpush1.msra.mxu0 %v928
    %930 = vmatprep.subr.mxu0 0.0
    %v931 = vand.u32 %v801, 4294901760
    %932 = vmatpush1.msra.mxu0 %v931
    %933 = vmatprep.subr.mxu0 0.0
    %v934 = vand.u32 %v800, 4294901760
    %935 = vmatpush1.msra.mxu0 %v934
    %936 = vmatprep.subr.mxu0 0.0
    %v937 = vand.u32 %v799, 4294901760
    %938 = vmatpush1.msra.mxu0 %v937
    %939 = vmatprep.subr.mxu0 0.0
    %940 = vmatpush2.msra.mxu0 0.0
    %941 = vmatprep.subr.mxu0 0.0
    %942 = vmatpush2.msra.mxu0 0.0
    %943 = vmatprep.subr.mxu0 0.0
    %944 = vmatpush2.msra.mxu0 0.0
    %945 = vmatprep.subr.mxu0 0.0
    %946 = vmatpush2.msra.mxu0 0.0
    %947 = vmatprep.subr.mxu0 0.0
    %948 = vmatpush2.msra.mxu0 0.0
    %949 = vmatprep.subr.mxu0 0.0
    %950 = vmatpush2.msra.mxu0 0.0
    %951 = vmatprep.subr.mxu0 0.0
    %952 = vmatpush2.msra.mxu0 0.0
    %953 = vmatprep.subr.mxu0 0.0
    %954 = vmatpush2.msra.mxu0 0.0
    %955 = vmatprep.subr.mxu0 0.0
    %956 = vmatpush2.msra.mxu0 0.0
    %957 = vmatprep.subr.mxu0 0.0
    %958 = vmatpush2.msra.mxu0 0.0
    %959 = vmatprep.subr.mxu0 0.0
    %960 = vmatpush2.msra.mxu0 0.0
    %961 = vmatprep.subr.mxu0 0.0
    %962 = vmatpush2.msra.mxu0 0.0
    %963 = vmatprep.subr.mxu0 0.0
    %964 = vmatpush2.msra.mxu0 0.0
    %965 = vmatprep.subr.mxu0 0.0
    %966 = vmatpush2.msra.mxu0 0.0
    %967 = vmatprep.subr.mxu0 0.0
    %968 = vmatpush2.msra.mxu0 0.0
    %969 = vmatprep.subr.mxu0 0.0
    %970 = vmatpush2.msra.mxu0 0.0
    %971 = vmatprep.mubr.f32.mxu0 0.0
    %v972 = vand.u32 %v888, 4294901760
    %v973 = vsub.f32 %v888, %v972
    %v974 = vand.u32 %v973, 4294901760
    %v975 = vsub.f32 %v973, %v974
    %v976 = vand.u32 %v975, 4294901760
    %977 = vmatmul.mubr.f32.gmra.mxu0 %v976
    %v978 = vpop.f32.mrf.mxu0
    %v979 = vadd.f32 %v885, %v978
    %v980 = vpop.f32.mrf.mxu0
    %981 = vmatprep.mubr.f32.mxu0 0.0
    %v982 = vand.u32 %v891, 4294901760
    %v983 = vsub.f32 %v891, %v982
    %v984 = vand.u32 %v983, 4294901760
    %v985 = vsub.f32 %v983, %v984
    %v986 = vand.u32 %v985, 4294901760
    %987 = vmatmul.mubr.f32.gmra.mxu0 %v986
    %v988 = vpop.f32.mrf.mxu0
    %v989 = vadd.f32 %v885, %v988
    %v990 = vpop.f32.mrf.mxu0
    %991 = vmatprep.mubr.f32.mxu0 0.0
    %v992 = vand.u32 %v893, 4294901760
    %v993 = vsub.f32 %v893, %v992
    %v994 = vand.u32 %v993, 4294901760
    %v995 = vsub.f32 %v993, %v994
    %v996 = vand.u32 %v995, 4294901760
    %997 = vmatmul.mubr.f32.gmra.mxu0 %v996
    %v998 = vpop.f32.mrf.mxu0
    %v999 = vadd.f32 %v885, %v998
    %v1000 = vpop.f32.mrf.mxu0
    %1001 = vdwg.mxu0
    %1002 = vmatprep.subr.mxu0 0.0
    %1003 = vmatpush1.msra.mxu0 0.0
    %1004 = vmatprep.subr.mxu0 0.0
    %1005 = vmatpush1.msra.mxu0 0.0
    %1006 = vmatprep.subr.mxu0 0.0
    %1007 = vmatpush1.msra.mxu0 0.0
    %1008 = vmatprep.subr.mxu0 0.0
    %1009 = vmatpush1.msra.mxu0 0.0
    %1010 = vmatprep.subr.mxu0 0.0
    %v1011 = vand.u32 %v810, 4294901760
    %v1012 = vsub.f32 %v810, %v1011
    %v1013 = vand.u32 %v1012, 4294901760
    %v1014 = vsub.f32 %v1012, %v1013
    %v1015 = vand.u32 %v1014, 4294901760
    %1016 = vmatpush1.msra.mxu0 %v1015
    %1017 = vmatprep.subr.mxu0 0.0
    %v1018 = vand.u32 %v809, 4294901760
    %v1019 = vsub.f32 %v809, %v1018
    %v1020 = vand.u32 %v1019, 4294901760
    %v1021 = vsub.f32 %v1019, %v1020
    %v1022 = vand.u32 %v1021, 4294901760
    %1023 = vmatpush1.msra.mxu0 %v1022
    %1024 = vmatprep.subr.mxu0 0.0
    %v1025 = vand.u32 %v808, 4294901760
    %v1026 = vsub.f32 %v808, %v1025
    %v1027 = vand.u32 %v1026, 4294901760
    %v1028 = vsub.f32 %v1026, %v1027
    %v1029 = vand.u32 %v1028, 4294901760
    %1030 = vmatpush1.msra.mxu0 %v1029
    %1031 = vmatprep.subr.mxu0 0.0
    %v1032 = vand.u32 %v807, 4294901760
    %v1033 = vsub.f32 %v807, %v1032
    %v1034 = vand.u32 %v1033, 4294901760
    %v1035 = vsub.f32 %v1033, %v1034
    %v1036 = vand.u32 %v1035, 4294901760
    %1037 = vmatpush1.msra.mxu0 %v1036
    %1038 = vmatprep.subr.mxu0 0.0
    %v1039 = vand.u32 %v806, 4294901760
    %v1040 = vsub.f32 %v806, %v1039
    %v1041 = vand.u32 %v1040, 4294901760
    %v1042 = vsub.f32 %v1040, %v1041
    %v1043 = vand.u32 %v1042, 4294901760
    %1044 = vmatpush1.msra.mxu0 %v1043
    %1045 = vmatprep.subr.mxu0 0.0
    %v1046 = vand.u32 %v805, 4294901760
    %v1047 = vsub.f32 %v805, %v1046
    %v1048 = vand.u32 %v1047, 4294901760
    %v1049 = vsub.f32 %v1047, %v1048
    %v1050 = vand.u32 %v1049, 4294901760
    %1051 = vmatpush1.msra.mxu0 %v1050
    %1052 = vmatprep.subr.mxu0 0.0
    %v1053 = vand.u32 %v804, 4294901760
    %v1054 = vsub.f32 %v804, %v1053
    %v1055 = vand.u32 %v1054, 4294901760
    %v1056 = vsub.f32 %v1054, %v1055
    %v1057 = vand.u32 %v1056, 4294901760
    %1058 = vmatpush1.msra.mxu0 %v1057
    %1059 = vmatprep.subr.mxu0 0.0
    %v1060 = vand.u32 %v803, 4294901760
    %v1061 = vsub.f32 %v803, %v1060
    %v1062 = vand.u32 %v1061, 4294901760
    %v1063 = vsub.f32 %v1061, %v1062
    %v1064 = vand.u32 %v1063, 4294901760
    %1065 = vmatpush1.msra.mxu0 %v1064
    %1066 = vmatprep.subr.mxu0 0.0
    %v1067 = vand.u32 %v802, 4294901760
    %v1068 = vsub.f32 %v802, %v1067
    %v1069 = vand.u32 %v1068, 4294901760
    %v1070 = vsub.f32 %v1068, %v1069
    %v1071 = vand.u32 %v1070, 4294901760
    %1072 = vmatpush1.msra.mxu0 %v1071
    %1073 = vmatprep.subr.mxu0 0.0
    %v1074 = vand.u32 %v801, 4294901760
    %v1075 = vsub.f32 %v801, %v1074
    %v1076 = vand.u32 %v1075, 4294901760
    %v1077 = vsub.f32 %v1075, %v1076
    %v1078 = vand.u32 %v1077, 4294901760
    %1079 = vmatpush1.msra.mxu0 %v1078
    %1080 = vmatprep.subr.mxu0 0.0
    %v1081 = vand.u32 %v800, 4294901760
    %v1082 = vsub.f32 %v800, %v1081
    %v1083 = vand.u32 %v1082, 4294901760
    %v1084 = vsub.f32 %v1082, %v1083
    %v1085 = vand.u32 %v1084, 4294901760
    %1086 = vmatpush1.msra.mxu0 %v1085
    %1087 = vmatprep.subr.mxu0 0.0
    %v1088 = vand.u32 %v799, 4294901760
    %v1089 = vsub.f32 %v799, %v1088
    %v1090 = vand.u32 %v1089, 4294901760
    %v1091 = vsub.f32 %v1089, %v1090
    %v1092 = vand.u32 %v1091, 4294901760
    %1093 = vmatpush1.msra.mxu0 %v1092
    %1094 = vmatprep.subr.mxu0 0.0
    %1095 = vmatpush2.msra.mxu0 0.0
    %1096 = vmatprep.subr.mxu0 0.0
    %1097 = vmatpush2.msra.mxu0 0.0
    %1098 = vmatprep.subr.mxu0 0.0
    %1099 = vmatpush2.msra.mxu0 0.0
    %1100 = vmatprep.subr.mxu0 0.0
    %1101 = vmatpush2.msra.mxu0 0.0
    %1102 = vmatprep.subr.mxu0 0.0
    %1103 = vmatpush2.msra.mxu0 0.0
    %1104 = vmatprep.subr.mxu0 0.0
    %1105 = vmatpush2.msra.mxu0 0.0
    %1106 = vmatprep.subr.mxu0 0.0
    %1107 = vmatpush2.msra.mxu0 0.0
    %1108 = vmatprep.subr.mxu0 0.0
    %1109 = vmatpush2.msra.mxu0 0.0
    %1110 = vmatprep.subr.mxu0 0.0
    %1111 = vmatpush2.msra.mxu0 0.0
    %1112 = vmatprep.subr.mxu0 0.0
    %1113 = vmatpush2.msra.mxu0 0.0
    %1114 = vmatprep.subr.mxu0 0.0
    %1115 = vmatpush2.msra.mxu0 0.0
    %1116 = vmatprep.subr.mxu0 0.0
    %1117 = vmatpush2.msra.mxu0 0.0
    %1118 = vmatprep.subr.mxu0 0.0
    %1119 = vmatpush2.msra.mxu0 0.0
    %1120 = vmatprep.subr.mxu0 0.0
    %1121 = vmatpush2.msra.mxu0 0.0
    %1122 = vmatprep.subr.mxu0 0.0
    %1123 = vmatpush2.msra.mxu0 0.0
    %1124 = vmatprep.subr.mxu0 0.0
    %1125 = vmatpush2.msra.mxu0 0.0
    %1126 = vmatprep.mubr.f32.mxu0 0.0
    %v1127 = vand.u32 %v888, 4294901760
    %1128 = vmatmul.mubr.f32.gmra.mxu0 %v1127
    %v1129 = vpop.f32.mrf.mxu0
    %v1130 = vadd.f32 %v979, %v1129
    %v1131 = vpop.f32.mrf.mxu0
    %1132 = vmatprep.mubr.f32.mxu0 0.0
    %v1133 = vand.u32 %v891, 4294901760
    %1134 = vmatmul.mubr.f32.gmra.mxu0 %v1133
    %v1135 = vpop.f32.mrf.mxu0
    %v1136 = vadd.f32 %v989, %v1135
    %v1137 = vpop.f32.mrf.mxu0
    %1138 = vmatprep.mubr.f32.mxu0 0.0
    %v1139 = vand.u32 %v893, 4294901760
    %1140 = vmatmul.mubr.f32.gmra.mxu0 %v1139
    %v1141 = vpop.f32.mrf.mxu0
    %v1142 = vadd.f32 %v999, %v1141
    %v1143 = vpop.f32.mrf.mxu0
    %1144 = vdwg.mxu0
    %1145 = vmatprep.subr.mxu0 0.0
    %1146 = vmatpush1.msra.mxu0 0.0
    %1147 = vmatprep.subr.mxu0 0.0
    %1148 = vmatpush1.msra.mxu0 0.0
    %1149 = vmatprep.subr.mxu0 0.0
    %1150 = vmatpush1.msra.mxu0 0.0
    %1151 = vmatprep.subr.mxu0 0.0
    %1152 = vmatpush1.msra.mxu0 0.0
    %1153 = vmatprep.subr.mxu0 0.0
    %v1154 = vand.u32 %v810, 4294901760
    %v1155 = vsub.f32 %v810, %v1154
    %1156 = vmatpush1.msra.mxu0 %v1155
    %1157 = vmatprep.subr.mxu0 0.0
    %v1158 = vand.u32 %v809, 4294901760
    %v1159 = vsub.f32 %v809, %v1158
    %1160 = vmatpush1.msra.mxu0 %v1159
    %1161 = vmatprep.subr.mxu0 0.0
    %v1162 = vand.u32 %v808, 4294901760
    %v1163 = vsub.f32 %v808, %v1162
    %1164 = vmatpush1.msra.mxu0 %v1163
    %1165 = vmatprep.subr.mxu0 0.0
    %v1166 = vand.u32 %v807, 4294901760
    %v1167 = vsub.f32 %v807, %v1166
    %1168 = vmatpush1.msra.mxu0 %v1167
    %1169 = vmatprep.subr.mxu0 0.0
    %v1170 = vand.u32 %v806, 4294901760
    %v1171 = vsub.f32 %v806, %v1170
    %1172 = vmatpush1.msra.mxu0 %v1171
    %1173 = vmatprep.subr.mxu0 0.0
    %v1174 = vand.u32 %v805, 4294901760
    %v1175 = vsub.f32 %v805, %v1174
    %1176 = vmatpush1.msra.mxu0 %v1175
    %1177 = vmatprep.subr.mxu0 0.0
    %v1178 = vand.u32 %v804, 4294901760
    %v1179 = vsub.f32 %v804, %v1178
    %1180 = vmatpush1.msra.mxu0 %v1179
    %1181 = vmatprep.subr.mxu0 0.0
    %v1182 = vand.u32 %v803, 4294901760
    %v1183 = vsub.f32 %v803, %v1182
    %1184 = vmatpush1.msra.mxu0 %v1183
    %1185 = vmatprep.subr.mxu0 0.0
    %v1186 = vand.u32 %v802, 4294901760
    %v1187 = vsub.f32 %v802, %v1186
    %1188 = vmatpush1.msra.mxu0 %v1187
    %1189 = vmatprep.subr.mxu0 0.0
    %v1190 = vand.u32 %v801, 4294901760
    %v1191 = vsub.f32 %v801, %v1190
    %1192 = vmatpush1.msra.mxu0 %v1191
    %1193 = vmatprep.subr.mxu0 0.0
    %v1194 = vand.u32 %v800, 4294901760
    %v1195 = vsub.f32 %v800, %v1194
    %1196 = vmatpush1.msra.mxu0 %v1195
    %1197 = vmatprep.subr.mxu0 0.0
    %v1198 = vand.u32 %v799, 4294901760
    %v1199 = vsub.f32 %v799, %v1198
    %1200 = vmatpush1.msra.mxu0 %v1199
    %1201 = vmatprep.subr.mxu0 0.0
    %1202 = vmatpush2.msra.mxu0 0.0
    %1203 = vmatprep.subr.mxu0 0.0
    %1204 = vmatpush2.msra.mxu0 0.0
    %1205 = vmatprep.subr.mxu0 0.0
    %1206 = vmatpush2.msra.mxu0 0.0
    %1207 = vmatprep.subr.mxu0 0.0
    %1208 = vmatpush2.msra.mxu0 0.0
    %1209 = vmatprep.subr.mxu0 0.0
    %1210 = vmatpush2.msra.mxu0 0.0
    %1211 = vmatprep.subr.mxu0 0.0
    %1212 = vmatpush2.msra.mxu0 0.0
    %1213 = vmatprep.subr.mxu0 0.0
    %1214 = vmatpush2.msra.mxu0 0.0
    %1215 = vmatprep.subr.mxu0 0.0
    %1216 = vmatpush2.msra.mxu0 0.0
    %1217 = vmatprep.subr.mxu0 0.0
    %1218 = vmatpush2.msra.mxu0 0.0
    %1219 = vmatprep.subr.mxu0 0.0
    %1220 = vmatpush2.msra.mxu0 0.0
    %1221 = vmatprep.subr.mxu0 0.0
    %1222 = vmatpush2.msra.mxu0 0.0
    %1223 = vmatprep.subr.mxu0 0.0
    %1224 = vmatpush2.msra.mxu0 0.0
    %1225 = vmatprep.subr.mxu0 0.0
    %1226 = vmatpush2.msra.mxu0 0.0
    %1227 = vmatprep.subr.mxu0 0.0
    %1228 = vmatpush2.msra.mxu0 0.0
    %1229 = vmatprep.subr.mxu0 0.0
    %1230 = vmatpush2.msra.mxu0 0.0
    %1231 = vmatprep.subr.mxu0 0.0
    %1232 = vmatpush2.msra.mxu0 0.0
    %1233 = vmatprep.mubr.f32.mxu0 0.0
    %v1234 = vand.u32 %v888, 4294901760
    %v1235 = vsub.f32 %v888, %v1234
    %1236 = vmatmul.mubr.f32.gmra.mxu0 %v1235
    %v1237 = vpop.f32.mrf.mxu0
    %v1238 = vadd.f32 %v1130, %v1237
    %v1239 = vpop.f32.mrf.mxu0
    %1240 = vmatprep.mubr.f32.mxu0 0.0
    %v1241 = vand.u32 %v891, 4294901760
    %v1242 = vsub.f32 %v891, %v1241
    %1243 = vmatmul.mubr.f32.gmra.mxu0 %v1242
    %v1244 = vpop.f32.mrf.mxu0
    %v1245 = vadd.f32 %v1136, %v1244
    %v1246 = vpop.f32.mrf.mxu0
    %1247 = vmatprep.mubr.f32.mxu0 0.0
    %v1248 = vand.u32 %v893, 4294901760
    %v1249 = vsub.f32 %v893, %v1248
    %1250 = vmatmul.mubr.f32.gmra.mxu0 %v1249
    %v1251 = vpop.f32.mrf.mxu0
    %v1252 = vadd.f32 %v1142, %v1251
    %v1253 = vpop.f32.mrf.mxu0
    %1254 = vdwg.mxu0
    %1255 = vmatprep.subr.mxu0 0.0
    %1256 = vmatpush1.msra.mxu0 0.0
    %1257 = vmatprep.subr.mxu0 0.0
    %1258 = vmatpush1.msra.mxu0 0.0
    %1259 = vmatprep.subr.mxu0 0.0
    %1260 = vmatpush1.msra.mxu0 0.0
    %1261 = vmatprep.subr.mxu0 0.0
    %1262 = vmatpush1.msra.mxu0 0.0
    %1263 = vmatprep.subr.mxu0 0.0
    %v1264 = vand.u32 %v810, 4294901760
    %1265 = vmatpush1.msra.mxu0 %v1264
    %1266 = vmatprep.subr.mxu0 0.0
    %v1267 = vand.u32 %v809, 4294901760
    %1268 = vmatpush1.msra.mxu0 %v1267
    %1269 = vmatprep.subr.mxu0 0.0
    %v1270 = vand.u32 %v808, 4294901760
    %1271 = vmatpush1.msra.mxu0 %v1270
    %1272 = vmatprep.subr.mxu0 0.0
    %v1273 = vand.u32 %v807, 4294901760
    %1274 = vmatpush1.msra.mxu0 %v1273
    %1275 = vmatprep.subr.mxu0 0.0
    %v1276 = vand.u32 %v806, 4294901760
    %1277 = vmatpush1.msra.mxu0 %v1276
    %1278 = vmatprep.subr.mxu0 0.0
    %v1279 = vand.u32 %v805, 4294901760
    %1280 = vmatpush1.msra.mxu0 %v1279
    %1281 = vmatprep.subr.mxu0 0.0
    %v1282 = vand.u32 %v804, 4294901760
    %1283 = vmatpush1.msra.mxu0 %v1282
    %1284 = vmatprep.subr.mxu0 0.0
    %v1285 = vand.u32 %v803, 4294901760
    %1286 = vmatpush1.msra.mxu0 %v1285
    %1287 = vmatprep.subr.mxu0 0.0
    %v1288 = vand.u32 %v802, 4294901760
    %1289 = vmatpush1.msra.mxu0 %v1288
    %1290 = vmatprep.subr.mxu0 0.0
    %v1291 = vand.u32 %v801, 4294901760
    %1292 = vmatpush1.msra.mxu0 %v1291
    %1293 = vmatprep.subr.mxu0 0.0
    %v1294 = vand.u32 %v800, 4294901760
    %1295 = vmatpush1.msra.mxu0 %v1294
    %1296 = vmatprep.subr.mxu0 0.0
    %v1297 = vand.u32 %v799, 4294901760
    %1298 = vmatpush1.msra.mxu0 %v1297
    %1299 = vmatprep.subr.mxu0 0.0
    %1300 = vmatpush2.msra.mxu0 0.0
    %1301 = vmatprep.subr.mxu0 0.0
    %1302 = vmatpush2.msra.mxu0 0.0
    %1303 = vmatprep.subr.mxu0 0.0
    %1304 = vmatpush2.msra.mxu0 0.0
    %1305 = vmatprep.subr.mxu0 0.0
    %1306 = vmatpush2.msra.mxu0 0.0
    %1307 = vmatprep.subr.mxu0 0.0
    %1308 = vmatpush2.msra.mxu0 0.0
    %1309 = vmatprep.subr.mxu0 0.0
    %1310 = vmatpush2.msra.mxu0 0.0
    %1311 = vmatprep.subr.mxu0 0.0
    %1312 = vmatpush2.msra.mxu0 0.0
    %1313 = vmatprep.subr.mxu0 0.0
    %1314 = vmatpush2.msra.mxu0 0.0
    %1315 = vmatprep.subr.mxu0 0.0
    %1316 = vmatpush2.msra.mxu0 0.0
    %1317 = vmatprep.subr.mxu0 0.0
    %1318 = vmatpush2.msra.mxu0 0.0
    %1319 = vmatprep.subr.mxu0 0.0
    %1320 = vmatpush2.msra.mxu0 0.0
    %1321 = vmatprep.subr.mxu0 0.0
    %1322 = vmatpush2.msra.mxu0 0.0
    %1323 = vmatprep.subr.mxu0 0.0
    %1324 = vmatpush2.msra.mxu0 0.0
    %1325 = vmatprep.subr.mxu0 0.0
    %1326 = vmatpush2.msra.mxu0 0.0
    %1327 = vmatprep.subr.mxu0 0.0
    %1328 = vmatpush2.msra.mxu0 0.0
    %1329 = vmatprep.subr.mxu0 0.0
    %1330 = vmatpush2.msra.mxu0 0.0
    %1331 = vmatprep.mubr.f32.mxu0 0.0
    %v1332 = vand.u32 %v888, 4294901760
    %v1333 = vsub.f32 %v888, %v1332
    %v1334 = vand.u32 %v1333, 4294901760
    %1335 = vmatmul.mubr.f32.gmra.mxu0 %v1334
    %v1336 = vpop.f32.mrf.mxu0
    %v1337 = vadd.f32 %v1238, %v1336
    %v1338 = vpop.f32.mrf.mxu0
    %1339 = vmatprep.mubr.f32.mxu0 0.0
    %v1340 = vand.u32 %v891, 4294901760
    %v1341 = vsub.f32 %v891, %v1340
    %v1342 = vand.u32 %v1341, 4294901760
    %1343 = vmatmul.mubr.f32.gmra.mxu0 %v1342
    %v1344 = vpop.f32.mrf.mxu0
    %v1345 = vadd.f32 %v1245, %v1344
    %v1346 = vpop.f32.mrf.mxu0
    %1347 = vmatprep.mubr.f32.mxu0 0.0
    %v1348 = vand.u32 %v893, 4294901760
    %v1349 = vsub.f32 %v893, %v1348
    %v1350 = vand.u32 %v1349, 4294901760
    %1351 = vmatmul.mubr.f32.gmra.mxu0 %v1350
    %v1352 = vpop.f32.mrf.mxu0
    %v1353 = vadd.f32 %v1252, %v1352
    %v1354 = vpop.f32.mrf.mxu0
    %1355 = vdwg.mxu0
    %1356 = vmatprep.subr.mxu0 0.0
    %1357 = vmatpush1.msra.mxu0 0.0
    %1358 = vmatprep.subr.mxu0 0.0
    %1359 = vmatpush1.msra.mxu0 0.0
    %1360 = vmatprep.subr.mxu0 0.0
    %1361 = vmatpush1.msra.mxu0 0.0
    %1362 = vmatprep.subr.mxu0 0.0
    %1363 = vmatpush1.msra.mxu0 0.0
    %1364 = vmatprep.subr.mxu0 0.0
    %v1365 = vand.u32 %v810, 4294901760
    %v1366 = vsub.f32 %v810, %v1365
    %v1367 = vand.u32 %v1366, 4294901760
    %1368 = vmatpush1.msra.mxu0 %v1367
    %1369 = vmatprep.subr.mxu0 0.0
    %v1370 = vand.u32 %v809, 4294901760
    %v1371 = vsub.f32 %v809, %v1370
    %v1372 = vand.u32 %v1371, 4294901760
    %1373 = vmatpush1.msra.mxu0 %v1372
    %1374 = vmatprep.subr.mxu0 0.0
    %v1375 = vand.u32 %v808, 4294901760
    %v1376 = vsub.f32 %v808, %v1375
    %v1377 = vand.u32 %v1376, 4294901760
    %1378 = vmatpush1.msra.mxu0 %v1377
    %1379 = vmatprep.subr.mxu0 0.0
    %v1380 = vand.u32 %v807, 4294901760
    %v1381 = vsub.f32 %v807, %v1380
    %v1382 = vand.u32 %v1381, 4294901760
    %1383 = vmatpush1.msra.mxu0 %v1382
    %1384 = vmatprep.subr.mxu0 0.0
    %v1385 = vand.u32 %v806, 4294901760
    %v1386 = vsub.f32 %v806, %v1385
    %v1387 = vand.u32 %v1386, 4294901760
    %1388 = vmatpush1.msra.mxu0 %v1387
    %1389 = vmatprep.subr.mxu0 0.0
    %v1390 = vand.u32 %v805, 4294901760
    %v1391 = vsub.f32 %v805, %v1390
    %v1392 = vand.u32 %v1391, 4294901760
    %1393 = vmatpush1.msra.mxu0 %v1392
    %1394 = vmatprep.subr.mxu0 0.0
    %v1395 = vand.u32 %v804, 4294901760
    %v1396 = vsub.f32 %v804, %v1395
    %v1397 = vand.u32 %v1396, 4294901760
    %1398 = vmatpush1.msra.mxu0 %v1397
    %1399 = vmatprep.subr.mxu0 0.0
    %v1400 = vand.u32 %v803, 4294901760
    %v1401 = vsub.f32 %v803, %v1400
    %v1402 = vand.u32 %v1401, 4294901760
    %1403 = vmatpush1.msra.mxu0 %v1402
    %1404 = vmatprep.subr.mxu0 0.0
    %v1405 = vand.u32 %v802, 4294901760
    %v1406 = vsub.f32 %v802, %v1405
    %v1407 = vand.u32 %v1406, 4294901760
    %1408 = vmatpush1.msra.mxu0 %v1407
    %1409 = vmatprep.subr.mxu0 0.0
    %v1410 = vand.u32 %v801, 4294901760
    %v1411 = vsub.f32 %v801, %v1410
    %v1412 = vand.u32 %v1411, 4294901760
    %1413 = vmatpush1.msra.mxu0 %v1412
    %1414 = vmatprep.subr.mxu0 0.0
    %v1415 = vand.u32 %v800, 4294901760
    %v1416 = vsub.f32 %v800, %v1415
    %v1417 = vand.u32 %v1416, 4294901760
    %1418 = vmatpush1.msra.mxu0 %v1417
    %1419 = vmatprep.subr.mxu0 0.0
    %v1420 = vand.u32 %v799, 4294901760
    %v1421 = vsub.f32 %v799, %v1420
    %v1422 = vand.u32 %v1421, 4294901760
    %1423 = vmatpush1.msra.mxu0 %v1422
    %1424 = vmatprep.subr.mxu0 0.0
    %1425 = vmatpush2.msra.mxu0 0.0
    %1426 = vmatprep.subr.mxu0 0.0
    %1427 = vmatpush2.msra.mxu0 0.0
    %1428 = vmatprep.subr.mxu0 0.0
    %1429 = vmatpush2.msra.mxu0 0.0
    %1430 = vmatprep.subr.mxu0 0.0
    %1431 = vmatpush2.msra.mxu0 0.0
    %1432 = vmatprep.subr.mxu0 0.0
    %1433 = vmatpush2.msra.mxu0 0.0
    %1434 = vmatprep.subr.mxu0 0.0
    %1435 = vmatpush2.msra.mxu0 0.0
    %1436 = vmatprep.subr.mxu0 0.0
    %1437 = vmatpush2.msra.mxu0 0.0
    %1438 = vmatprep.subr.mxu0 0.0
    %1439 = vmatpush2.msra.mxu0 0.0
    %1440 = vmatprep.subr.mxu0 0.0
    %1441 = vmatpush2.msra.mxu0 0.0
    %1442 = vmatprep.subr.mxu0 0.0
    %1443 = vmatpush2.msra.mxu0 0.0
    %1444 = vmatprep.subr.mxu0 0.0
    %1445 = vmatpush2.msra.mxu0 0.0
    %1446 = vmatprep.subr.mxu0 0.0
    %1447 = vmatpush2.msra.mxu0 0.0
    %1448 = vmatprep.subr.mxu0 0.0
    %1449 = vmatpush2.msra.mxu0 0.0
    %1450 = vmatprep.subr.mxu0 0.0
    %1451 = vmatpush2.msra.mxu0 0.0
    %1452 = vmatprep.subr.mxu0 0.0
    %1453 = vmatpush2.msra.mxu0 0.0
    %1454 = vmatprep.subr.mxu0 0.0
    %1455 = vmatpush2.msra.mxu0 0.0
    %1456 = vmatprep.mubr.f32.mxu0 0.0
    %v1457 = vand.u32 %v888, 4294901760
    %1458 = vmatmul.mubr.f32.gmra.mxu0 %v1457
    %v1459 = vpop.f32.mrf.mxu0
    %v1460 = vadd.f32 %v1337, %v1459
    %v1461 = vpop.f32.mrf.mxu0
    %1462 = vmatprep.mubr.f32.mxu0 0.0
    %v1463 = vand.u32 %v891, 4294901760
    %1464 = vmatmul.mubr.f32.gmra.mxu0 %v1463
    %v1465 = vpop.f32.mrf.mxu0
    %v1466 = vadd.f32 %v1345, %v1465
    %v1467 = vpop.f32.mrf.mxu0
    %1468 = vmatprep.mubr.f32.mxu0 0.0
    %v1469 = vand.u32 %v893, 4294901760
    %1470 = vmatmul.mubr.f32.gmra.mxu0 %v1469
    %v1471 = vpop.f32.mrf.mxu0
    %v1472 = vadd.f32 %v1353, %v1471
    %v1473 = vpop.f32.mrf.mxu0
    %1474 = vdwg.mxu0
    %1475 = vmatprep.subr.mxu0 0.0
    %1476 = vmatpush1.msra.mxu0 0.0
    %1477 = vmatprep.subr.mxu0 0.0
    %1478 = vmatpush1.msra.mxu0 0.0
    %1479 = vmatprep.subr.mxu0 0.0
    %1480 = vmatpush1.msra.mxu0 0.0
    %1481 = vmatprep.subr.mxu0 0.0
    %1482 = vmatpush1.msra.mxu0 0.0
    %1483 = vmatprep.subr.mxu0 0.0
    %v1484 = vand.u32 %v810, 4294901760
    %1485 = vmatpush1.msra.mxu0 %v1484
    %1486 = vmatprep.subr.mxu0 0.0
    %v1487 = vand.u32 %v809, 4294901760
    %1488 = vmatpush1.msra.mxu0 %v1487
    %1489 = vmatprep.subr.mxu0 0.0
    %v1490 = vand.u32 %v808, 4294901760
    %1491 = vmatpush1.msra.mxu0 %v1490
    %1492 = vmatprep.subr.mxu0 0.0
    %v1493 = vand.u32 %v807, 4294901760
    %1494 = vmatpush1.msra.mxu0 %v1493
    %1495 = vmatprep.subr.mxu0 0.0
    %v1496 = vand.u32 %v806, 4294901760
    %1497 = vmatpush1.msra.mxu0 %v1496
    %1498 = vmatprep.subr.mxu0 0.0
    %v1499 = vand.u32 %v805, 4294901760
    %1500 = vmatpush1.msra.mxu0 %v1499
    %1501 = vmatprep.subr.mxu0 0.0
    %v1502 = vand.u32 %v804, 4294901760
    %1503 = vmatpush1.msra.mxu0 %v1502
    %1504 = vmatprep.subr.mxu0 0.0
    %v1505 = vand.u32 %v803, 4294901760
    %1506 = vmatpush1.msra.mxu0 %v1505
    %1507 = vmatprep.subr.mxu0 0.0
    %v1508 = vand.u32 %v802, 4294901760
    %1509 = vmatpush1.msra.mxu0 %v1508
    %1510 = vmatprep.subr.mxu0 0.0
    %v1511 = vand.u32 %v801, 4294901760
    %1512 = vmatpush1.msra.mxu0 %v1511
    %1513 = vmatprep.subr.mxu0 0.0
    %v1514 = vand.u32 %v800, 4294901760
    %1515 = vmatpush1.msra.mxu0 %v1514
    %1516 = vmatprep.subr.mxu0 0.0
    %v1517 = vand.u32 %v799, 4294901760
    %1518 = vmatpush1.msra.mxu0 %v1517
    %1519 = vmatprep.subr.mxu0 0.0
    %1520 = vmatpush2.msra.mxu0 0.0
    %1521 = vmatprep.subr.mxu0 0.0
    %1522 = vmatpush2.msra.mxu0 0.0
    %1523 = vmatprep.subr.mxu0 0.0
    %1524 = vmatpush2.msra.mxu0 0.0
    %1525 = vmatprep.subr.mxu0 0.0
    %1526 = vmatpush2.msra.mxu0 0.0
    %1527 = vmatprep.subr.mxu0 0.0
    %1528 = vmatpush2.msra.mxu0 0.0
    %1529 = vmatprep.subr.mxu0 0.0
    %1530 = vmatpush2.msra.mxu0 0.0
    %1531 = vmatprep.subr.mxu0 0.0
    %1532 = vmatpush2.msra.mxu0 0.0
    %1533 = vmatprep.subr.mxu0 0.0
    %1534 = vmatpush2.msra.mxu0 0.0
    %1535 = vmatprep.subr.mxu0 0.0
    %1536 = vmatpush2.msra.mxu0 0.0
    %1537 = vmatprep.subr.mxu0 0.0
    %1538 = vmatpush2.msra.mxu0 0.0
    %1539 = vmatprep.subr.mxu0 0.0
    %1540 = vmatpush2.msra.mxu0 0.0
    %1541 = vmatprep.subr.mxu0 0.0
    %1542 = vmatpush2.msra.mxu0 0.0
    %1543 = vmatprep.subr.mxu0 0.0
    %1544 = vmatpush2.msra.mxu0 0.0
    %1545 = vmatprep.subr.mxu0 0.0
    %1546 = vmatpush2.msra.mxu0 0.0
    %1547 = vmatprep.subr.mxu0 0.0
    %1548 = vmatpush2.msra.mxu0 0.0
    %1549 = vmatprep.subr.mxu0 0.0
    %1550 = vmatpush2.msra.mxu0 0.0
    %1551 = vmatprep.mubr.f32.mxu0 0.0
    %v1552 = vand.u32 %v888, 4294901760
    %1553 = vmatmul.mubr.f32.gmra.mxu0 %v1552
    %v1554 = vpop.f32.mrf.mxu0
    %v1555 = vadd.f32 %v1460, %v1554
    %v1556 = vpop.f32.mrf.mxu0
    %1557 = vmatprep.mubr.f32.mxu0 0.0
    %v1558 = vand.u32 %v891, 4294901760
    %1559 = vmatmul.mubr.f32.gmra.mxu0 %v1558
    %v1560 = vpop.f32.mrf.mxu0
    %v1561 = vadd.f32 %v1466, %v1560
    %v1562 = vpop.f32.mrf.mxu0
    %1563 = vmatprep.mubr.f32.mxu0 0.0
    %v1564 = vand.u32 %v893, 4294901760
    %1565 = vmatmul.mubr.f32.gmra.mxu0 %v1564
    %v1566 = vpop.f32.mrf.mxu0
    %v1567 = vadd.f32 %v1472, %v1566
    %v1568 = vpop.f32.mrf.mxu0
    %1569 = vdwg.mxu0
    %v1570 = vmax.f32 %v1555, 0.0
    %v1571 = vmax.f32 %v1561, 0.0
    %v1572 = vmax.f32 %v1567, 0.0
    %v1573 = vld [vmem:[%s3] sm:$0xff]
    %v1574 = vld [vmem:[%s3 + $0x8] sm:$0xff]
    %v1575 = vld [vmem:[%s3 + $0x10] sm:$0xff]
    %v1576 = vld [vmem:[%s3 + $0x18] sm:$0xff]
    %v1577 = vld [vmem:[%s3 + $0x20] sm:$0xff]
    %v1578 = vld [vmem:[%s3 + $0x28] sm:$0xff]
    %v1579 = vld [vmem:[%s3 + $0x30] sm:$0x1]
    %v1582 = vrot.slane %v1570, 1
    %v1583 = vrot.slane %v1571, 1
    %v1584 = vsel %vm44, %v1582, %v1583
    %1585 = vrot.lane.b32.xlu0 %v1584, 16
    %v1586 = vpop.permute.xlu0 %1585
    %1587 = vrot.lane.b32.xlu0 %v1583, 16
    %v1588 = vpop.permute.xlu0 %1587
    %v1591 = vrot.slane %v1570, 2
    %v1592 = vrot.slane %v1571, 2
    %v1593 = vsel %vm54, %v1591, %v1592
    %1594 = vrot.lane.b32.xlu0 %v1593, 32
    %v1595 = vpop.permute.xlu0 %1594
    %1596 = vrot.lane.b32.xlu0 %v1592, 32
    %v1597 = vpop.permute.xlu0 %1596
    %vm1600 = vcmask 130048
    %v1601 = vsel %vm1600, %v1570, %v1586
    %v1602 = vsel %vm1600, %v1571, %v1588
    %v1603 = vsel %vm832, %v1601, %v1595
    %v1604 = vsel %vm832, %v1602, %v1597
    %v1606 = vrot.slane %v1572, 1
    %v1607 = vsel %vm44, %v1583, %v1606
    %1608 = vrot.lane.b32.xlu0 %v1607, 16
    %v1609 = vpop.permute.xlu0 %1608
    %1610 = vrot.lane.b32.xlu0 %v1606, 16
    %v1611 = vpop.permute.xlu0 %1610
    %v1614 = vrot.slane %v1572, 2
    %v1615 = vsel %vm54, %v1592, %v1614
    %1616 = vrot.lane.b32.xlu0 %v1615, 32
    %v1617 = vpop.permute.xlu0 %1616
    %1618 = vrot.lane.b32.xlu0 %v1614, 32
    %v1619 = vpop.permute.xlu0 %1618
    %v1622 = vsel %vm1600, %v1571, %v1609
    %v1623 = vsel %vm1600, %v1572, %v1611
    %v1624 = vsel %vm832, %v1622, %v1617
    %v1625 = vsel %vm832, %v1623, %v1619
    %v1628 = vrot.slane %v1624, 2
    %v1629 = vrot.slane %v1625, 2
    %v1630 = vsel %vm54, %v1628, %v1629
    %vm1632 = vcmask 1041408
    %v1633 = vsel %vm1632, %v1604, %v1630
    %v1634 = vlaneseq
    %v1635 = vshrl.u32 %v1634, 7
    %v1636 = vsub.s32 0, %v1635
    %v1637 = vrot.slane %v1579, %v1636
    %v1639 = vsel %vm67, %v1603, 0
    %v1642 = vsel %vm67, %v1633, 0
    %v1644 = vsel %vm67, %v1629, 0
    %1646 = vmatprep.subr.mxu0 0.0
    %1647 = vmatpush1.msra.mxu0 0.0
    %1648 = vmatprep.subr.mxu0 0.0
    %1649 = vmatpush1.msra.mxu0 0.0
    %1650 = vmatprep.subr.mxu0 0.0
    %1651 = vmatpush1.msra.mxu0 0.0
    %1652 = vmatprep.subr.mxu0 0.0
    %1653 = vmatpush1.msra.mxu0 0.0
    %1654 = vmatprep.subr.mxu0 0.0
    %1655 = vmatpush1.msra.mxu0 0.0
    %1656 = vmatprep.subr.mxu0 0.0
    %1657 = vmatpush1.msra.mxu0 0.0
    %1658 = vmatprep.subr.mxu0 0.0
    %1659 = vmatpush1.msra.mxu0 0.0
    %1660 = vmatprep.subr.mxu0 0.0
    %1661 = vmatpush1.msra.mxu0 0.0
    %1662 = vmatprep.subr.mxu0 0.0
    %1663 = vmatpush1.msra.mxu0 0.0
    %1664 = vmatprep.subr.mxu0 0.0
    %1665 = vmatpush1.msra.mxu0 0.0
    %1666 = vmatprep.subr.mxu0 0.0
    %v1667 = vand.u32 %v1578, 4294901760
    %1668 = vmatpush1.msra.mxu0 %v1667
    %1669 = vmatprep.subr.mxu0 0.0
    %v1670 = vand.u32 %v1577, 4294901760
    %1671 = vmatpush1.msra.mxu0 %v1670
    %1672 = vmatprep.subr.mxu0 0.0
    %v1673 = vand.u32 %v1576, 4294901760
    %1674 = vmatpush1.msra.mxu0 %v1673
    %1675 = vmatprep.subr.mxu0 0.0
    %v1676 = vand.u32 %v1575, 4294901760
    %1677 = vmatpush1.msra.mxu0 %v1676
    %1678 = vmatprep.subr.mxu0 0.0
    %v1679 = vand.u32 %v1574, 4294901760
    %1680 = vmatpush1.msra.mxu0 %v1679
    %1681 = vmatprep.subr.mxu0 0.0
    %v1682 = vand.u32 %v1573, 4294901760
    %1683 = vmatpush1.msra.mxu0 %v1682
    %1684 = vmatprep.subr.mxu0 0.0
    %1685 = vmatpush2.msra.mxu0 0.0
    %1686 = vmatprep.subr.mxu0 0.0
    %1687 = vmatpush2.msra.mxu0 0.0
    %1688 = vmatprep.subr.mxu0 0.0
    %1689 = vmatpush2.msra.mxu0 0.0
    %1690 = vmatprep.subr.mxu0 0.0
    %1691 = vmatpush2.msra.mxu0 0.0
    %1692 = vmatprep.subr.mxu0 0.0
    %1693 = vmatpush2.msra.mxu0 0.0
    %1694 = vmatprep.subr.mxu0 0.0
    %1695 = vmatpush2.msra.mxu0 0.0
    %1696 = vmatprep.subr.mxu0 0.0
    %1697 = vmatpush2.msra.mxu0 0.0
    %1698 = vmatprep.subr.mxu0 0.0
    %1699 = vmatpush2.msra.mxu0 0.0
    %1700 = vmatprep.subr.mxu0 0.0
    %1701 = vmatpush2.msra.mxu0 0.0
    %1702 = vmatprep.subr.mxu0 0.0
    %1703 = vmatpush2.msra.mxu0 0.0
    %1704 = vmatprep.subr.mxu0 0.0
    %1705 = vmatpush2.msra.mxu0 0.0
    %1706 = vmatprep.subr.mxu0 0.0
    %1707 = vmatpush2.msra.mxu0 0.0
    %1708 = vmatprep.subr.mxu0 0.0
    %1709 = vmatpush2.msra.mxu0 0.0
    %1710 = vmatprep.subr.mxu0 0.0
    %1711 = vmatpush2.msra.mxu0 0.0
    %1712 = vmatprep.subr.mxu0 0.0
    %1713 = vmatpush2.msra.mxu0 0.0
    %1714 = vmatprep.subr.mxu0 0.0
    %1715 = vmatpush2.msra.mxu0 0.0
    %1716 = vmatprep.mubr.f32.mxu0 0.0
    %v1717 = vand.u32 %v1639, 4294901760
    %v1718 = vsub.f32 %v1639, %v1717
    %v1719 = vand.u32 %v1718, 4294901760
    %v1720 = vsub.f32 %v1718, %v1719
    %v1721 = vand.u32 %v1720, 4294901760
    %1722 = vmatmul.mubr.f32.gmra.mxu0 %v1721
    %v1723 = vpop.f32.mrf.mxu0
    %v1724 = vadd.f32 %v1637, %v1723
    %v1725 = vpop.f32.mrf.mxu0
    %1726 = vmatprep.mubr.f32.mxu0 0.0
    %v1727 = vand.u32 %v1642, 4294901760
    %v1728 = vsub.f32 %v1642, %v1727
    %v1729 = vand.u32 %v1728, 4294901760
    %v1730 = vsub.f32 %v1728, %v1729
    %v1731 = vand.u32 %v1730, 4294901760
    %1732 = vmatmul.mubr.f32.gmra.mxu0 %v1731
    %v1733 = vpop.f32.mrf.mxu0
    %v1734 = vadd.f32 %v1637, %v1733
    %v1735 = vpop.f32.mrf.mxu0
    %1736 = vmatprep.mubr.f32.mxu0 0.0
    %v1737 = vand.u32 %v1644, 4294901760
    %v1738 = vsub.f32 %v1644, %v1737
    %v1739 = vand.u32 %v1738, 4294901760
    %v1740 = vsub.f32 %v1738, %v1739
    %v1741 = vand.u32 %v1740, 4294901760
    %1742 = vmatmul.mubr.f32.gmra.mxu0 %v1741
    %v1743 = vpop.f32.mrf.mxu0
    %v1744 = vadd.f32 %v1637, %v1743
    %v1745 = vpop.f32.mrf.mxu0
    %1746 = vdwg.mxu0
    %1747 = vmatprep.subr.mxu0 0.0
    %1748 = vmatpush1.msra.mxu0 0.0
    %1749 = vmatprep.subr.mxu0 0.0
    %1750 = vmatpush1.msra.mxu0 0.0
    %1751 = vmatprep.subr.mxu0 0.0
    %1752 = vmatpush1.msra.mxu0 0.0
    %1753 = vmatprep.subr.mxu0 0.0
    %1754 = vmatpush1.msra.mxu0 0.0
    %1755 = vmatprep.subr.mxu0 0.0
    %1756 = vmatpush1.msra.mxu0 0.0
    %1757 = vmatprep.subr.mxu0 0.0
    %1758 = vmatpush1.msra.mxu0 0.0
    %1759 = vmatprep.subr.mxu0 0.0
    %1760 = vmatpush1.msra.mxu0 0.0
    %1761 = vmatprep.subr.mxu0 0.0
    %1762 = vmatpush1.msra.mxu0 0.0
    %1763 = vmatprep.subr.mxu0 0.0
    %1764 = vmatpush1.msra.mxu0 0.0
    %1765 = vmatprep.subr.mxu0 0.0
    %1766 = vmatpush1.msra.mxu0 0.0
    %1767 = vmatprep.subr.mxu0 0.0
    %v1768 = vand.u32 %v1578, 4294901760
    %v1769 = vsub.f32 %v1578, %v1768
    %v1770 = vand.u32 %v1769, 4294901760
    %v1771 = vsub.f32 %v1769, %v1770
    %v1772 = vand.u32 %v1771, 4294901760
    %1773 = vmatpush1.msra.mxu0 %v1772
    %1774 = vmatprep.subr.mxu0 0.0
    %v1775 = vand.u32 %v1577, 4294901760
    %v1776 = vsub.f32 %v1577, %v1775
    %v1777 = vand.u32 %v1776, 4294901760
    %v1778 = vsub.f32 %v1776, %v1777
    %v1779 = vand.u32 %v1778, 4294901760
    %1780 = vmatpush1.msra.mxu0 %v1779
    %1781 = vmatprep.subr.mxu0 0.0
    %v1782 = vand.u32 %v1576, 4294901760
    %v1783 = vsub.f32 %v1576, %v1782
    %v1784 = vand.u32 %v1783, 4294901760
    %v1785 = vsub.f32 %v1783, %v1784
    %v1786 = vand.u32 %v1785, 4294901760
    %1787 = vmatpush1.msra.mxu0 %v1786
    %1788 = vmatprep.subr.mxu0 0.0
    %v1789 = vand.u32 %v1575, 4294901760
    %v1790 = vsub.f32 %v1575, %v1789
    %v1791 = vand.u32 %v1790, 4294901760
    %v1792 = vsub.f32 %v1790, %v1791
    %v1793 = vand.u32 %v1792, 4294901760
    %1794 = vmatpush1.msra.mxu0 %v1793
    %1795 = vmatprep.subr.mxu0 0.0
    %v1796 = vand.u32 %v1574, 4294901760
    %v1797 = vsub.f32 %v1574, %v1796
    %v1798 = vand.u32 %v1797, 4294901760
    %v1799 = vsub.f32 %v1797, %v1798
    %v1800 = vand.u32 %v1799, 4294901760
    %1801 = vmatpush1.msra.mxu0 %v1800
    %1802 = vmatprep.subr.mxu0 0.0
    %v1803 = vand.u32 %v1573, 4294901760
    %v1804 = vsub.f32 %v1573, %v1803
    %v1805 = vand.u32 %v1804, 4294901760
    %v1806 = vsub.f32 %v1804, %v1805
    %v1807 = vand.u32 %v1806, 4294901760
    %1808 = vmatpush1.msra.mxu0 %v1807
    %1809 = vmatprep.subr.mxu0 0.0
    %1810 = vmatpush2.msra.mxu0 0.0
    %1811 = vmatprep.subr.mxu0 0.0
    %1812 = vmatpush2.msra.mxu0 0.0
    %1813 = vmatprep.subr.mxu0 0.0
    %1814 = vmatpush2.msra.mxu0 0.0
    %1815 = vmatprep.subr.mxu0 0.0
    %1816 = vmatpush2.msra.mxu0 0.0
    %1817 = vmatprep.subr.mxu0 0.0
    %1818 = vmatpush2.msra.mxu0 0.0
    %1819 = vmatprep.subr.mxu0 0.0
    %1820 = vmatpush2.msra.mxu0 0.0
    %1821 = vmatprep.subr.mxu0 0.0
    %1822 = vmatpush2.msra.mxu0 0.0
    %1823 = vmatprep.subr.mxu0 0.0
    %1824 = vmatpush2.msra.mxu0 0.0
    %1825 = vmatprep.subr.mxu0 0.0
    %1826 = vmatpush2.msra.mxu0 0.0
    %1827 = vmatprep.subr.mxu0 0.0
    %1828 = vmatpush2.msra.mxu0 0.0
    %1829 = vmatprep.subr.mxu0 0.0
    %1830 = vmatpush2.msra.mxu0 0.0
    %1831 = vmatprep.subr.mxu0 0.0
    %1832 = vmatpush2.msra.mxu0 0.0
    %1833 = vmatprep.subr.mxu0 0.0
    %1834 = vmatpush2.msra.mxu0 0.0
    %1835 = vmatprep.subr.mxu0 0.0
    %1836 = vmatpush2.msra.mxu0 0.0
    %1837 = vmatprep.subr.mxu0 0.0
    %1838 = vmatpush2.msra.mxu0 0.0
    %1839 = vmatprep.subr.mxu0 0.0
    %1840 = vmatpush2.msra.mxu0 0.0
    %1841 = vmatprep.mubr.f32.mxu0 0.0
    %v1842 = vand.u32 %v1639, 4294901760
    %1843 = vmatmul.mubr.f32.gmra.mxu0 %v1842
    %v1844 = vpop.f32.mrf.mxu0
    %v1845 = vadd.f32 %v1724, %v1844
    %v1846 = vpop.f32.mrf.mxu0
    %1847 = vmatprep.mubr.f32.mxu0 0.0
    %v1848 = vand.u32 %v1642, 4294901760
    %1849 = vmatmul.mubr.f32.gmra.mxu0 %v1848
    %v1850 = vpop.f32.mrf.mxu0
    %v1851 = vadd.f32 %v1734, %v1850
    %v1852 = vpop.f32.mrf.mxu0
    %1853 = vmatprep.mubr.f32.mxu0 0.0
    %v1854 = vand.u32 %v1644, 4294901760
    %1855 = vmatmul.mubr.f32.gmra.mxu0 %v1854
    %v1856 = vpop.f32.mrf.mxu0
    %v1857 = vadd.f32 %v1744, %v1856
    %v1858 = vpop.f32.mrf.mxu0
    %1859 = vdwg.mxu0
    %1860 = vmatprep.subr.mxu0 0.0
    %1861 = vmatpush1.msra.mxu0 0.0
    %1862 = vmatprep.subr.mxu0 0.0
    %1863 = vmatpush1.msra.mxu0 0.0
    %1864 = vmatprep.subr.mxu0 0.0
    %1865 = vmatpush1.msra.mxu0 0.0
    %1866 = vmatprep.subr.mxu0 0.0
    %1867 = vmatpush1.msra.mxu0 0.0
    %1868 = vmatprep.subr.mxu0 0.0
    %1869 = vmatpush1.msra.mxu0 0.0
    %1870 = vmatprep.subr.mxu0 0.0
    %1871 = vmatpush1.msra.mxu0 0.0
    %1872 = vmatprep.subr.mxu0 0.0
    %1873 = vmatpush1.msra.mxu0 0.0
    %1874 = vmatprep.subr.mxu0 0.0
    %1875 = vmatpush1.msra.mxu0 0.0
    %1876 = vmatprep.subr.mxu0 0.0
    %1877 = vmatpush1.msra.mxu0 0.0
    %1878 = vmatprep.subr.mxu0 0.0
    %1879 = vmatpush1.msra.mxu0 0.0
    %1880 = vmatprep.subr.mxu0 0.0
    %v1881 = vand.u32 %v1578, 4294901760
    %v1882 = vsub.f32 %v1578, %v1881
    %1883 = vmatpush1.msra.mxu0 %v1882
    %1884 = vmatprep.subr.mxu0 0.0
    %v1885 = vand.u32 %v1577, 4294901760
    %v1886 = vsub.f32 %v1577, %v1885
    %1887 = vmatpush1.msra.mxu0 %v1886
    %1888 = vmatprep.subr.mxu0 0.0
    %v1889 = vand.u32 %v1576, 4294901760
    %v1890 = vsub.f32 %v1576, %v1889
    %1891 = vmatpush1.msra.mxu0 %v1890
    %1892 = vmatprep.subr.mxu0 0.0
    %v1893 = vand.u32 %v1575, 4294901760
    %v1894 = vsub.f32 %v1575, %v1893
    %1895 = vmatpush1.msra.mxu0 %v1894
    %1896 = vmatprep.subr.mxu0 0.0
    %v1897 = vand.u32 %v1574, 4294901760
    %v1898 = vsub.f32 %v1574, %v1897
    %1899 = vmatpush1.msra.mxu0 %v1898
    %1900 = vmatprep.subr.mxu0 0.0
    %v1901 = vand.u32 %v1573, 4294901760
    %v1902 = vsub.f32 %v1573, %v1901
    %1903 = vmatpush1.msra.mxu0 %v1902
    %1904 = vmatprep.subr.mxu0 0.0
    %1905 = vmatpush2.msra.mxu0 0.0
    %1906 = vmatprep.subr.mxu0 0.0
    %1907 = vmatpush2.msra.mxu0 0.0
    %1908 = vmatprep.subr.mxu0 0.0
    %1909 = vmatpush2.msra.mxu0 0.0
    %1910 = vmatprep.subr.mxu0 0.0
    %1911 = vmatpush2.msra.mxu0 0.0
    %1912 = vmatprep.subr.mxu0 0.0
    %1913 = vmatpush2.msra.mxu0 0.0
    %1914 = vmatprep.subr.mxu0 0.0
    %1915 = vmatpush2.msra.mxu0 0.0
    %1916 = vmatprep.subr.mxu0 0.0
    %1917 = vmatpush2.msra.mxu0 0.0
    %1918 = vmatprep.subr.mxu0 0.0
    %1919 = vmatpush2.msra.mxu0 0.0
    %1920 = vmatprep.subr.mxu0 0.0
    %1921 = vmatpush2.msra.mxu0 0.0
    %1922 = vmatprep.subr.mxu0 0.0
    %1923 = vmatpush2.msra.mxu0 0.0
    %1924 = vmatprep.subr.mxu0 0.0
    %1925 = vmatpush2.msra.mxu0 0.0
    %1926 = vmatprep.subr.mxu0 0.0
    %1927 = vmatpush2.msra.mxu0 0.0
    %1928 = vmatprep.subr.mxu0 0.0
    %1929 = vmatpush2.msra.mxu0 0.0
    %1930 = vmatprep.subr.mxu0 0.0
    %1931 = vmatpush2.msra.mxu0 0.0
    %1932 = vmatprep.subr.mxu0 0.0
    %1933 = vmatpush2.msra.mxu0 0.0
    %1934 = vmatprep.subr.mxu0 0.0
    %1935 = vmatpush2.msra.mxu0 0.0
    %1936 = vmatprep.mubr.f32.mxu0 0.0
    %v1937 = vand.u32 %v1639, 4294901760
    %v1938 = vsub.f32 %v1639, %v1937
    %1939 = vmatmul.mubr.f32.gmra.mxu0 %v1938
    %v1940 = vpop.f32.mrf.mxu0
    %v1941 = vadd.f32 %v1845, %v1940
    %v1942 = vpop.f32.mrf.mxu0
    %1943 = vmatprep.mubr.f32.mxu0 0.0
    %v1944 = vand.u32 %v1642, 4294901760
    %v1945 = vsub.f32 %v1642, %v1944
    %1946 = vmatmul.mubr.f32.gmra.mxu0 %v1945
    %v1947 = vpop.f32.mrf.mxu0
    %v1948 = vadd.f32 %v1851, %v1947
    %v1949 = vpop.f32.mrf.mxu0
    %1950 = vmatprep.mubr.f32.mxu0 0.0
    %v1951 = vand.u32 %v1644, 4294901760
    %v1952 = vsub.f32 %v1644, %v1951
    %1953 = vmatmul.mubr.f32.gmra.mxu0 %v1952
    %v1954 = vpop.f32.mrf.mxu0
    %v1955 = vadd.f32 %v1857, %v1954
    %v1956 = vpop.f32.mrf.mxu0
    %1957 = vdwg.mxu0
    %1958 = vmatprep.subr.mxu0 0.0
    %1959 = vmatpush1.msra.mxu0 0.0
    %1960 = vmatprep.subr.mxu0 0.0
    %1961 = vmatpush1.msra.mxu0 0.0
    %1962 = vmatprep.subr.mxu0 0.0
    %1963 = vmatpush1.msra.mxu0 0.0
    %1964 = vmatprep.subr.mxu0 0.0
    %1965 = vmatpush1.msra.mxu0 0.0
    %1966 = vmatprep.subr.mxu0 0.0
    %1967 = vmatpush1.msra.mxu0 0.0
    %1968 = vmatprep.subr.mxu0 0.0
    %1969 = vmatpush1.msra.mxu0 0.0
    %1970 = vmatprep.subr.mxu0 0.0
    %1971 = vmatpush1.msra.mxu0 0.0
    %1972 = vmatprep.subr.mxu0 0.0
    %1973 = vmatpush1.msra.mxu0 0.0
    %1974 = vmatprep.subr.mxu0 0.0
    %1975 = vmatpush1.msra.mxu0 0.0
    %1976 = vmatprep.subr.mxu0 0.0
    %1977 = vmatpush1.msra.mxu0 0.0
    %1978 = vmatprep.subr.mxu0 0.0
    %v1979 = vand.u32 %v1578, 4294901760
    %1980 = vmatpush1.msra.mxu0 %v1979
    %1981 = vmatprep.subr.mxu0 0.0
    %v1982 = vand.u32 %v1577, 4294901760
    %1983 = vmatpush1.msra.mxu0 %v1982
    %1984 = vmatprep.subr.mxu0 0.0
    %v1985 = vand.u32 %v1576, 4294901760
    %1986 = vmatpush1.msra.mxu0 %v1985
    %1987 = vmatprep.subr.mxu0 0.0
    %v1988 = vand.u32 %v1575, 4294901760
    %1989 = vmatpush1.msra.mxu0 %v1988
    %1990 = vmatprep.subr.mxu0 0.0
    %v1991 = vand.u32 %v1574, 4294901760
    %1992 = vmatpush1.msra.mxu0 %v1991
    %1993 = vmatprep.subr.mxu0 0.0
    %v1994 = vand.u32 %v1573, 4294901760
    %1995 = vmatpush1.msra.mxu0 %v1994
    %1996 = vmatprep.subr.mxu0 0.0
    %1997 = vmatpush2.msra.mxu0 0.0
    %1998 = vmatprep.subr.mxu0 0.0
    %1999 = vmatpush2.msra.mxu0 0.0
    %2000 = vmatprep.subr.mxu0 0.0
    %2001 = vmatpush2.msra.mxu0 0.0
    %2002 = vmatprep.subr.mxu0 0.0
    %2003 = vmatpush2.msra.mxu0 0.0
    %2004 = vmatprep.subr.mxu0 0.0
    %2005 = vmatpush2.msra.mxu0 0.0
    %2006 = vmatprep.subr.mxu0 0.0
    %2007 = vmatpush2.msra.mxu0 0.0
    %2008 = vmatprep.subr.mxu0 0.0
    %2009 = vmatpush2.msra.mxu0 0.0
    %2010 = vmatprep.subr.mxu0 0.0
    %2011 = vmatpush2.msra.mxu0 0.0
    %2012 = vmatprep.subr.mxu0 0.0
    %2013 = vmatpush2.msra.mxu0 0.0
    %2014 = vmatprep.subr.mxu0 0.0
    %2015 = vmatpush2.msra.mxu0 0.0
    %2016 = vmatprep.subr.mxu0 0.0
    %2017 = vmatpush2.msra.mxu0 0.0
    %2018 = vmatprep.subr.mxu0 0.0
    %2019 = vmatpush2.msra.mxu0 0.0
    %2020 = vmatprep.subr.mxu0 0.0
    %2021 = vmatpush2.msra.mxu0 0.0
    %2022 = vmatprep.subr.mxu0 0.0
    %2023 = vmatpush2.msra.mxu0 0.0
    %2024 = vmatprep.subr.mxu0 0.0
    %2025 = vmatpush2.msra.mxu0 0.0
    %2026 = vmatprep.subr.mxu0 0.0
    %2027 = vmatpush2.msra.mxu0 0.0
    %2028 = vmatprep.mubr.f32.mxu0 0.0
    %v2029 = vand.u32 %v1639, 4294901760
    %v2030 = vsub.f32 %v1639, %v2029
    %v2031 = vand.u32 %v2030, 4294901760
    %2032 = vmatmul.mubr.f32.gmra.mxu0 %v2031
    %v2033 = vpop.f32.mrf.mxu0
    %v2034 = vadd.f32 %v1941, %v2033
    %v2035 = vpop.f32.mrf.mxu0
    %2036 = vmatprep.mubr.f32.mxu0 0.0
    %v2037 = vand.u32 %v1642, 4294901760
    %v2038 = vsub.f32 %v1642, %v2037
    %v2039 = vand.u32 %v2038, 4294901760
    %2040 = vmatmul.mubr.f32.gmra.mxu0 %v2039
    %v2041 = vpop.f32.mrf.mxu0
    %v2042 = vadd.f32 %v1948, %v2041
    %v2043 = vpop.f32.mrf.mxu0
    %2044 = vmatprep.mubr.f32.mxu0 0.0
    %v2045 = vand.u32 %v1644, 4294901760
    %v2046 = vsub.f32 %v1644, %v2045
    %v2047 = vand.u32 %v2046, 4294901760
    %2048 = vmatmul.mubr.f32.gmra.mxu0 %v2047
    %v2049 = vpop.f32.mrf.mxu0
    %v2050 = vadd.f32 %v1955, %v2049
    %v2051 = vpop.f32.mrf.mxu0
    %2052 = vdwg.mxu0
    %2053 = vmatprep.subr.mxu0 0.0
    %2054 = vmatpush1.msra.mxu0 0.0
    %2055 = vmatprep.subr.mxu0 0.0
    %2056 = vmatpush1.msra.mxu0 0.0
    %2057 = vmatprep.subr.mxu0 0.0
    %2058 = vmatpush1.msra.mxu0 0.0
    %2059 = vmatprep.subr.mxu0 0.0
    %2060 = vmatpush1.msra.mxu0 0.0
    %2061 = vmatprep.subr.mxu0 0.0
    %2062 = vmatpush1.msra.mxu0 0.0
    %2063 = vmatprep.subr.mxu0 0.0
    %2064 = vmatpush1.msra.mxu0 0.0
    %2065 = vmatprep.subr.mxu0 0.0
    %2066 = vmatpush1.msra.mxu0 0.0
    %2067 = vmatprep.subr.mxu0 0.0
    %2068 = vmatpush1.msra.mxu0 0.0
    %2069 = vmatprep.subr.mxu0 0.0
    %2070 = vmatpush1.msra.mxu0 0.0
    %2071 = vmatprep.subr.mxu0 0.0
    %2072 = vmatpush1.msra.mxu0 0.0
    %2073 = vmatprep.subr.mxu0 0.0
    %v2074 = vand.u32 %v1578, 4294901760
    %v2075 = vsub.f32 %v1578, %v2074
    %v2076 = vand.u32 %v2075, 4294901760
    %2077 = vmatpush1.msra.mxu0 %v2076
    %2078 = vmatprep.subr.mxu0 0.0
    %v2079 = vand.u32 %v1577, 4294901760
    %v2080 = vsub.f32 %v1577, %v2079
    %v2081 = vand.u32 %v2080, 4294901760
    %2082 = vmatpush1.msra.mxu0 %v2081
    %2083 = vmatprep.subr.mxu0 0.0
    %v2084 = vand.u32 %v1576, 4294901760
    %v2085 = vsub.f32 %v1576, %v2084
    %v2086 = vand.u32 %v2085, 4294901760
    %2087 = vmatpush1.msra.mxu0 %v2086
    %2088 = vmatprep.subr.mxu0 0.0
    %v2089 = vand.u32 %v1575, 4294901760
    %v2090 = vsub.f32 %v1575, %v2089
    %v2091 = vand.u32 %v2090, 4294901760
    %2092 = vmatpush1.msra.mxu0 %v2091
    %2093 = vmatprep.subr.mxu0 0.0
    %v2094 = vand.u32 %v1574, 4294901760
    %v2095 = vsub.f32 %v1574, %v2094
    %v2096 = vand.u32 %v2095, 4294901760
    %2097 = vmatpush1.msra.mxu0 %v2096
    %2098 = vmatprep.subr.mxu0 0.0
    %v2099 = vand.u32 %v1573, 4294901760
    %v2100 = vsub.f32 %v1573, %v2099
    %v2101 = vand.u32 %v2100, 4294901760
    %2102 = vmatpush1.msra.mxu0 %v2101
    %2103 = vmatprep.subr.mxu0 0.0
    %2104 = vmatpush2.msra.mxu0 0.0
    %2105 = vmatprep.subr.mxu0 0.0
    %2106 = vmatpush2.msra.mxu0 0.0
    %2107 = vmatprep.subr.mxu0 0.0
    %2108 = vmatpush2.msra.mxu0 0.0
    %2109 = vmatprep.subr.mxu0 0.0
    %2110 = vmatpush2.msra.mxu0 0.0
    %2111 = vmatprep.subr.mxu0 0.0
    %2112 = vmatpush2.msra.mxu0 0.0
    %2113 = vmatprep.subr.mxu0 0.0
    %2114 = vmatpush2.msra.mxu0 0.0
    %2115 = vmatprep.subr.mxu0 0.0
    %2116 = vmatpush2.msra.mxu0 0.0
    %2117 = vmatprep.subr.mxu0 0.0
    %2118 = vmatpush2.msra.mxu0 0.0
    %2119 = vmatprep.subr.mxu0 0.0
    %2120 = vmatpush2.msra.mxu0 0.0
    %2121 = vmatprep.subr.mxu0 0.0
    %2122 = vmatpush2.msra.mxu0 0.0
    %2123 = vmatprep.subr.mxu0 0.0
    %2124 = vmatpush2.msra.mxu0 0.0
    %2125 = vmatprep.subr.mxu0 0.0
    %2126 = vmatpush2.msra.mxu0 0.0
    %2127 = vmatprep.subr.mxu0 0.0
    %2128 = vmatpush2.msra.mxu0 0.0
    %2129 = vmatprep.subr.mxu0 0.0
    %2130 = vmatpush2.msra.mxu0 0.0
    %2131 = vmatprep.subr.mxu0 0.0
    %2132 = vmatpush2.msra.mxu0 0.0
    %2133 = vmatprep.subr.mxu0 0.0
    %2134 = vmatpush2.msra.mxu0 0.0
    %2135 = vmatprep.mubr.f32.mxu0 0.0
    %v2136 = vand.u32 %v1639, 4294901760
    %2137 = vmatmul.mubr.f32.gmra.mxu0 %v2136
    %v2138 = vpop.f32.mrf.mxu0
    %v2139 = vadd.f32 %v2034, %v2138
    %v2140 = vpop.f32.mrf.mxu0
    %2141 = vmatprep.mubr.f32.mxu0 0.0
    %v2142 = vand.u32 %v1642, 4294901760
    %2143 = vmatmul.mubr.f32.gmra.mxu0 %v2142
    %v2144 = vpop.f32.mrf.mxu0
    %v2145 = vadd.f32 %v2042, %v2144
    %v2146 = vpop.f32.mrf.mxu0
    %2147 = vmatprep.mubr.f32.mxu0 0.0
    %v2148 = vand.u32 %v1644, 4294901760
    %2149 = vmatmul.mubr.f32.gmra.mxu0 %v2148
    %v2150 = vpop.f32.mrf.mxu0
    %v2151 = vadd.f32 %v2050, %v2150
    %v2152 = vpop.f32.mrf.mxu0
    %2153 = vdwg.mxu0
    %2154 = vmatprep.subr.mxu0 0.0
    %2155 = vmatpush1.msra.mxu0 0.0
    %2156 = vmatprep.subr.mxu0 0.0
    %2157 = vmatpush1.msra.mxu0 0.0
    %2158 = vmatprep.subr.mxu0 0.0
    %2159 = vmatpush1.msra.mxu0 0.0
    %2160 = vmatprep.subr.mxu0 0.0
    %2161 = vmatpush1.msra.mxu0 0.0
    %2162 = vmatprep.subr.mxu0 0.0
    %2163 = vmatpush1.msra.mxu0 0.0
    %2164 = vmatprep.subr.mxu0 0.0
    %2165 = vmatpush1.msra.mxu0 0.0
    %2166 = vmatprep.subr.mxu0 0.0
    %2167 = vmatpush1.msra.mxu0 0.0
    %2168 = vmatprep.subr.mxu0 0.0
    %2169 = vmatpush1.msra.mxu0 0.0
    %2170 = vmatprep.subr.mxu0 0.0
    %2171 = vmatpush1.msra.mxu0 0.0
    %2172 = vmatprep.subr.mxu0 0.0
    %2173 = vmatpush1.msra.mxu0 0.0
    %2174 = vmatprep.subr.mxu0 0.0
    %v2175 = vand.u32 %v1578, 4294901760
    %2176 = vmatpush1.msra.mxu0 %v2175
    %2177 = vmatprep.subr.mxu0 0.0
    %v2178 = vand.u32 %v1577, 4294901760
    %2179 = vmatpush1.msra.mxu0 %v2178
    %2180 = vmatprep.subr.mxu0 0.0
    %v2181 = vand.u32 %v1576, 4294901760
    %2182 = vmatpush1.msra.mxu0 %v2181
    %2183 = vmatprep.subr.mxu0 0.0
    %v2184 = vand.u32 %v1575, 4294901760
    %2185 = vmatpush1.msra.mxu0 %v2184
    %2186 = vmatprep.subr.mxu0 0.0
    %v2187 = vand.u32 %v1574, 4294901760
    %2188 = vmatpush1.msra.mxu0 %v2187
    %2189 = vmatprep.subr.mxu0 0.0
    %v2190 = vand.u32 %v1573, 4294901760
    %2191 = vmatpush1.msra.mxu0 %v2190
    %2192 = vmatprep.subr.mxu0 0.0
    %2193 = vmatpush2.msra.mxu0 0.0
    %2194 = vmatprep.subr.mxu0 0.0
    %2195 = vmatpush2.msra.mxu0 0.0
    %2196 = vmatprep.subr.mxu0 0.0
    %2197 = vmatpush2.msra.mxu0 0.0
    %2198 = vmatprep.subr.mxu0 0.0
    %2199 = vmatpush2.msra.mxu0 0.0
    %2200 = vmatprep.subr.mxu0 0.0
    %2201 = vmatpush2.msra.mxu0 0.0
    %2202 = vmatprep.subr.mxu0 0.0
    %2203 = vmatpush2.msra.mxu0 0.0
    %2204 = vmatprep.subr.mxu0 0.0
    %2205 = vmatpush2.msra.mxu0 0.0
    %2206 = vmatprep.subr.mxu0 0.0
    %2207 = vmatpush2.msra.mxu0 0.0
    %2208 = vmatprep.subr.mxu0 0.0
    %2209 = vmatpush2.msra.mxu0 0.0
    %2210 = vmatprep.subr.mxu0 0.0
    %2211 = vmatpush2.msra.mxu0 0.0
    %2212 = vmatprep.subr.mxu0 0.0
    %2213 = vmatpush2.msra.mxu0 0.0
    %2214 = vmatprep.subr.mxu0 0.0
    %2215 = vmatpush2.msra.mxu0 0.0
    %2216 = vmatprep.subr.mxu0 0.0
    %2217 = vmatpush2.msra.mxu0 0.0
    %2218 = vmatprep.subr.mxu0 0.0
    %2219 = vmatpush2.msra.mxu0 0.0
    %2220 = vmatprep.subr.mxu0 0.0
    %2221 = vmatpush2.msra.mxu0 0.0
    %2222 = vmatprep.subr.mxu0 0.0
    %2223 = vmatpush2.msra.mxu0 0.0
    %2224 = vmatprep.mubr.f32.mxu0 0.0
    %v2225 = vand.u32 %v1639, 4294901760
    %2226 = vmatmul.mubr.f32.gmra.mxu0 %v2225
    %v2227 = vpop.f32.mrf.mxu0
    %v2228 = vadd.f32 %v2139, %v2227
    %v2229 = vpop.f32.mrf.mxu0
    %2230 = vmatprep.mubr.f32.mxu0 0.0
    %v2231 = vand.u32 %v1642, 4294901760
    %2232 = vmatmul.mubr.f32.gmra.mxu0 %v2231
    %v2233 = vpop.f32.mrf.mxu0
    %v2234 = vadd.f32 %v2145, %v2233
    %v2235 = vpop.f32.mrf.mxu0
    %2236 = vmatprep.mubr.f32.mxu0 0.0
    %v2237 = vand.u32 %v1644, 4294901760
    %2238 = vmatmul.mubr.f32.gmra.mxu0 %v2237
    %v2239 = vpop.f32.mrf.mxu0
    %v2240 = vadd.f32 %v2151, %v2239
    %v2241 = vpop.f32.mrf.mxu0
    %2242 = vdwg.mxu0
    %v2243 = vmax.f32 %v2228, 0.0
    %v2244 = vmax.f32 %v2234, 0.0
    %v2245 = vmax.f32 %v2240, 0.0
    %2246 = vxpose.xlu0.b32.start [1/16] %v2243, 128
    %2247 = vxpose.xlu0.b32.cont [2/16] %v2244, 128
    %2248 = vxpose.xlu0.b32.cont [3/16] 0.0, 128
    %2249 = vxpose.xlu0.b32.cont [4/16] 0.0, 128
    %2250 = vxpose.xlu0.b32.cont [5/16] 0.0, 128
    %2251 = vxpose.xlu0.b32.cont [6/16] 0.0, 128
    %2252 = vxpose.xlu0.b32.cont [7/16] 0.0, 128
    %2253 = vxpose.xlu0.b32.cont [8/16] 0.0, 128
    %2254 = vxpose.xlu0.b32.cont [9/16] 0.0, 128
    %2255 = vxpose.xlu0.b32.cont [10/16] 0.0, 128
    %2256 = vxpose.xlu0.b32.cont [11/16] 0.0, 128
    %2257 = vxpose.xlu0.b32.cont [12/16] 0.0, 128
    %2258 = vxpose.xlu0.b32.cont [13/16] 0.0, 128
    %2259 = vxpose.xlu0.b32.cont [14/16] 0.0, 128
    %2260 = vxpose.xlu0.b32.cont [15/16] 0.0, 128
    %2261 = vxpose.xlu0.b32.end [16/16] 0.0, 128
    %v2262 = vpop.trf.xlu0
    %v2263 = vpop.trf.xlu0
    %v2264 = vpop.trf.xlu0
    %v2265 = vpop.trf.xlu0
    %v2266 = vpop.trf.xlu0
    %v2267 = vpop.trf.xlu0
    %v2268 = vpop.trf.xlu0
    %v2269 = vpop.trf.xlu0
    %v2270 = vpop.trf.xlu0
    %v2271 = vpop.trf.xlu0
    %v2272 = vpop.trf.xlu0
    %v2273 = vpop.trf.xlu0
    %v2274 = vpop.trf.xlu0
    %v2275 = vpop.trf.xlu0
    %v2276 = vpop.trf.xlu0
    %v2277 = vpop.trf.xlu0
    %vm2278 = vcmask 73728
    %2279 = vst.msk [vmem:[#allocation2] sm:$0x1] %vm2278, %v2262
    %vm2280 = vcmask 74753
    %2281 = vst.msk [vmem:[#allocation2 + $0x1] sm:$0x2] %vm2280, %v2262
    %vm2282 = vcmask 75778
    %2283 = vst.msk [vmem:[#allocation2 + $0x2] sm:$0x4] %vm2282, %v2262
    %vm2284 = vcmask 76803
    %2285 = vst.msk [vmem:[#allocation2 + $0x3] sm:$0x8] %vm2284, %v2262
    %vm2286 = vcmask 77828
    %2287 = vst.msk [vmem:[#allocation2 + $0x4] sm:$0x10] %vm2286, %v2262
    %vm2288 = vcmask 78853
    %2289 = vst.msk [vmem:[#allocation2 + $0x5] sm:$0x20] %vm2288, %v2262
    %vm2290 = vcmask 79878
    %2291 = vst.msk [vmem:[#allocation2 + $0x6] sm:$0x40] %vm2290, %v2262
    %vm2292 = vcmask 80903
    %2293 = vst.msk [vmem:[#allocation2 + $0x7] sm:$0x80] %vm2292, %v2262
    %v2296 = vrot.slane %v2244, 2
    %v2297 = vrot.slane %v2245, 2
    %v2298 = vsel %vm54, %v2296, %v2297
    %2301 = vxpose.xlu0.b32.start [1/16] %v2298, 128
    %2302 = vxpose.xlu0.b32.cont [2/16] %v2297, 128
    %2303 = vxpose.xlu0.b32.cont [3/16] 0.0, 128
    %2304 = vxpose.xlu0.b32.cont [4/16] 0.0, 128
    %2305 = vxpose.xlu0.b32.cont [5/16] 0.0, 128
    %2306 = vxpose.xlu0.b32.cont [6/16] 0.0, 128
    %2307 = vxpose.xlu0.b32.cont [7/16] 0.0, 128
    %2308 = vxpose.xlu0.b32.cont [8/16] 0.0, 128
    %2309 = vxpose.xlu0.b32.cont [9/16] 0.0, 128
    %2310 = vxpose.xlu0.b32.cont [10/16] 0.0, 128
    %2311 = vxpose.xlu0.b32.cont [11/16] 0.0, 128
    %2312 = vxpose.xlu0.b32.cont [12/16] 0.0, 128
    %2313 = vxpose.xlu0.b32.cont [13/16] 0.0, 128
    %2314 = vxpose.xlu0.b32.cont [14/16] 0.0, 128
    %2315 = vxpose.xlu0.b32.cont [15/16] 0.0, 128
    %2316 = vxpose.xlu0.b32.end [16/16] 0.0, 128
    %v2317 = vpop.trf.xlu0
    %v2318 = vpop.trf.xlu0
    %v2319 = vpop.trf.xlu0
    %v2320 = vpop.trf.xlu0
    %v2321 = vpop.trf.xlu0
    %v2322 = vpop.trf.xlu0
    %v2323 = vpop.trf.xlu0
    %v2324 = vpop.trf.xlu0
    %v2325 = vpop.trf.xlu0
    %v2326 = vpop.trf.xlu0
    %v2327 = vpop.trf.xlu0
    %v2328 = vpop.trf.xlu0
    %v2329 = vpop.trf.xlu0
    %v2330 = vpop.trf.xlu0
    %v2331 = vpop.trf.xlu0
    %v2332 = vpop.trf.xlu0
    %2333 = vst.msk [vmem:[#allocation2 + $0x1] sm:$0x1] %vm2278, %v2317
    %2334 = vst.msk [vmem:[#allocation2 + $0x2] sm:$0x2] %vm2280, %v2317
    %2335 = vst.msk [vmem:[#allocation2 + $0x3] sm:$0x4] %vm2282, %v2317
    %2336 = vst.msk [vmem:[#allocation2 + $0x4] sm:$0x8] %vm2284, %v2317
    %2337 = vst.msk [vmem:[#allocation2 + $0x5] sm:$0x10] %vm2286, %v2317
    %2338 = vst.msk [vmem:[#allocation2 + $0x6] sm:$0x20] %vm2288, %v2317
    %2339 = vst.msk [vmem:[#allocation2 + $0x7] sm:$0x40] %vm2290, %v2317
    %2340 = vst.msk [vmem:[#allocation2 + $0x8] sm:$0x80] %vm2292, %v2317
    %v2341 = vld [vmem:[%s4] sm:$0xff]
    %v2342 = vld [vmem:[%s4 + $0x8] sm:$0x3]
    %v2343 = vld [vmem:[%s4 + $0x10] sm:$0xff]
    %v2344 = vld [vmem:[%s4 + $0x18] sm:$0xff]
    %v2345 = vld [vmem:[%s4 + $0x20] sm:$0xff]
    %v2346 = vld [vmem:[%s4 + $0x28] sm:$0xff]
    %v2347 = vld [vmem:[%s4 + $0x30] sm:$0x1]
    %v2348 = vld [vmem:[#allocation2] sm:$0xff]
    %v2349 = vld [vmem:[#allocation2 + $0x8] sm:$0xff]
    %v2350 = vlaneseq
    %v2351 = vshrl.u32 %v2350, 7
    %v2352 = vsub.s32 0, %v2351
    %v2353 = vrot.slane %v2347, %v2352
    %vm2354 = vcmask 80896
    %v2356 = vsel %vm2354, %v2348, 0
    %v2359 = vsel %vm2354, %v2349, 0
    %v2362 = vsel %vm1632, %v2342, 0
    %2364 = vmatprep.subr.mxu0 0.0
    %2365 = vmatpush1.msra.mxu0 0.0
    %2366 = vmatprep.subr.mxu0 0.0
    %2367 = vmatpush1.msra.mxu0 0.0
    %2368 = vmatprep.subr.mxu0 0.0
    %2369 = vmatpush1.msra.mxu0 0.0
    %2370 = vmatprep.subr.mxu0 0.0
    %2371 = vmatpush1.msra.mxu0 0.0
    %2372 = vmatprep.subr.mxu0 0.0
    %2373 = vmatpush1.msra.mxu0 0.0
    %2374 = vmatprep.subr.mxu0 0.0
    %2375 = vmatpush1.msra.mxu0 0.0
    %2376 = vmatprep.subr.mxu0 0.0
    %2377 = vmatpush1.msra.mxu0 0.0
    %2378 = vmatprep.subr.mxu0 0.0
    %2379 = vmatpush1.msra.mxu0 0.0
    %2380 = vmatprep.subr.mxu0 0.0
    %2381 = vmatpush1.msra.mxu0 0.0
    %2382 = vmatprep.subr.mxu0 0.0
    %2383 = vmatpush1.msra.mxu0 0.0
    %2384 = vmatprep.subr.mxu0 0.0
    %2385 = vmatpush1.msra.mxu0 0.0
    %2386 = vmatprep.subr.mxu0 0.0
    %2387 = vmatpush1.msra.mxu0 0.0
    %2388 = vmatprep.subr.mxu0 0.0
    %2389 = vmatpush1.msra.mxu0 0.0
    %2390 = vmatprep.subr.mxu0 0.0
    %2391 = vmatpush1.msra.mxu0 0.0
    %2392 = vmatprep.subr.mxu0 0.0
    %v2393 = vand.u32 %v2362, 4294901760
    %2394 = vmatpush1.msra.mxu0 %v2393
    %2395 = vmatprep.subr.mxu0 0.0
    %v2396 = vand.u32 %v2341, 4294901760
    %2397 = vmatpush1.msra.mxu0 %v2396
    %2398 = vmatprep.subr.mxu0 0.0
    %2399 = vmatpush2.msra.mxu0 0.0
    %2400 = vmatprep.subr.mxu0 0.0
    %2401 = vmatpush2.msra.mxu0 0.0
    %2402 = vmatprep.subr.mxu0 0.0
    %2403 = vmatpush2.msra.mxu0 0.0
    %2404 = vmatprep.subr.mxu0 0.0
    %2405 = vmatpush2.msra.mxu0 0.0
    %2406 = vmatprep.subr.mxu0 0.0
    %2407 = vmatpush2.msra.mxu0 0.0
    %2408 = vmatprep.subr.mxu0 0.0
    %2409 = vmatpush2.msra.mxu0 0.0
    %2410 = vmatprep.subr.mxu0 0.0
    %2411 = vmatpush2.msra.mxu0 0.0
    %2412 = vmatprep.subr.mxu0 0.0
    %2413 = vmatpush2.msra.mxu0 0.0
    %2414 = vmatprep.subr.mxu0 0.0
    %2415 = vmatpush2.msra.mxu0 0.0
    %2416 = vmatprep.subr.mxu0 0.0
    %2417 = vmatpush2.msra.mxu0 0.0
    %2418 = vmatprep.subr.mxu0 0.0
    %2419 = vmatpush2.msra.mxu0 0.0
    %2420 = vmatprep.subr.mxu0 0.0
    %2421 = vmatpush2.msra.mxu0 0.0
    %2422 = vmatprep.subr.mxu0 0.0
    %2423 = vmatpush2.msra.mxu0 0.0
    %2424 = vmatprep.subr.mxu0 0.0
    %2425 = vmatpush2.msra.mxu0 0.0
    %2426 = vmatprep.subr.mxu0 0.0
    %2427 = vmatpush2.msra.mxu0 0.0
    %2428 = vmatprep.subr.mxu0 0.0
    %2429 = vmatpush2.msra.mxu0 0.0
    %2430 = vmatprep.mubr.f32.mxu0 0.0
    %v2431 = vand.u32 %v2356, 4294901760
    %v2432 = vsub.f32 %v2356, %v2431
    %v2433 = vand.u32 %v2432, 4294901760
    %v2434 = vsub.f32 %v2432, %v2433
    %v2435 = vand.u32 %v2434, 4294901760
    %2436 = vmatmul.mubr.f32.gmra.mxu0 %v2435
    %v2437 = vpop.f32.mrf.mxu0
    %v2438 = vadd.f32 %v2353, %v2437
    %v2439 = vpop.f32.mrf.mxu0
    %2440 = vmatprep.mubr.f32.mxu0 0.0
    %v2441 = vand.u32 %v2359, 4294901760
    %v2442 = vsub.f32 %v2359, %v2441
    %v2443 = vand.u32 %v2442, 4294901760
    %v2444 = vsub.f32 %v2442, %v2443
    %v2445 = vand.u32 %v2444, 4294901760
    %2446 = vmatmul.mubr.f32.gmra.mxu0 %v2445
    %v2447 = vpop.f32.mrf.mxu0
    %v2448 = vadd.f32 %v2353, %v2447
    %v2449 = vpop.f32.mrf.mxu0
    %2450 = vdwg.mxu0
    %2451 = vmatprep.subr.mxu0 0.0
    %2452 = vmatpush1.msra.mxu0 0.0
    %2453 = vmatprep.subr.mxu0 0.0
    %2454 = vmatpush1.msra.mxu0 0.0
    %2455 = vmatprep.subr.mxu0 0.0
    %2456 = vmatpush1.msra.mxu0 0.0
    %2457 = vmatprep.subr.mxu0 0.0
    %2458 = vmatpush1.msra.mxu0 0.0
    %2459 = vmatprep.subr.mxu0 0.0
    %2460 = vmatpush1.msra.mxu0 0.0
    %2461 = vmatprep.subr.mxu0 0.0
    %2462 = vmatpush1.msra.mxu0 0.0
    %2463 = vmatprep.subr.mxu0 0.0
    %2464 = vmatpush1.msra.mxu0 0.0
    %2465 = vmatprep.subr.mxu0 0.0
    %2466 = vmatpush1.msra.mxu0 0.0
    %2467 = vmatprep.subr.mxu0 0.0
    %2468 = vmatpush1.msra.mxu0 0.0
    %2469 = vmatprep.subr.mxu0 0.0
    %2470 = vmatpush1.msra.mxu0 0.0
    %2471 = vmatprep.subr.mxu0 0.0
    %2472 = vmatpush1.msra.mxu0 0.0
    %2473 = vmatprep.subr.mxu0 0.0
    %2474 = vmatpush1.msra.mxu0 0.0
    %2475 = vmatprep.subr.mxu0 0.0
    %2476 = vmatpush1.msra.mxu0 0.0
    %2477 = vmatprep.subr.mxu0 0.0
    %2478 = vmatpush1.msra.mxu0 0.0
    %2479 = vmatprep.subr.mxu0 0.0
    %v2480 = vand.u32 %v2362, 4294901760
    %v2481 = vsub.f32 %v2362, %v2480
    %v2482 = vand.u32 %v2481, 4294901760
    %v2483 = vsub.f32 %v2481, %v2482
    %v2484 = vand.u32 %v2483, 4294901760
    %2485 = vmatpush1.msra.mxu0 %v2484
    %2486 = vmatprep.subr.mxu0 0.0
    %v2487 = vand.u32 %v2341, 4294901760
    %v2488 = vsub.f32 %v2341, %v2487
    %v2489 = vand.u32 %v2488, 4294901760
    %v2490 = vsub.f32 %v2488, %v2489
    %v2491 = vand.u32 %v2490, 4294901760
    %2492 = vmatpush1.msra.mxu0 %v2491
    %2493 = vmatprep.subr.mxu0 0.0
    %2494 = vmatpush2.msra.mxu0 0.0
    %2495 = vmatprep.subr.mxu0 0.0
    %2496 = vmatpush2.msra.mxu0 0.0
    %2497 = vmatprep.subr.mxu0 0.0
    %2498 = vmatpush2.msra.mxu0 0.0
    %2499 = vmatprep.subr.mxu0 0.0
    %2500 = vmatpush2.msra.mxu0 0.0
    %2501 = vmatprep.subr.mxu0 0.0
    %2502 = vmatpush2.msra.mxu0 0.0
    %2503 = vmatprep.subr.mxu0 0.0
    %2504 = vmatpush2.msra.mxu0 0.0
    %2505 = vmatprep.subr.mxu0 0.0
    %2506 = vmatpush2.msra.mxu0 0.0
    %2507 = vmatprep.subr.mxu0 0.0
    %2508 = vmatpush2.msra.mxu0 0.0
    %2509 = vmatprep.subr.mxu0 0.0
    %2510 = vmatpush2.msra.mxu0 0.0
    %2511 = vmatprep.subr.mxu0 0.0
    %2512 = vmatpush2.msra.mxu0 0.0
    %2513 = vmatprep.subr.mxu0 0.0
    %2514 = vmatpush2.msra.mxu0 0.0
    %2515 = vmatprep.subr.mxu0 0.0
    %2516 = vmatpush2.msra.mxu0 0.0
    %2517 = vmatprep.subr.mxu0 0.0
    %2518 = vmatpush2.msra.mxu0 0.0
    %2519 = vmatprep.subr.mxu0 0.0
    %2520 = vmatpush2.msra.mxu0 0.0
    %2521 = vmatprep.subr.mxu0 0.0
    %2522 = vmatpush2.msra.mxu0 0.0
    %2523 = vmatprep.subr.mxu0 0.0
    %2524 = vmatpush2.msra.mxu0 0.0
    %2525 = vmatprep.mubr.f32.mxu0 0.0
    %v2526 = vand.u32 %v2356, 4294901760
    %2527 = vmatmul.mubr.f32.gmra.mxu0 %v2526
    %v2528 = vpop.f32.mrf.mxu0
    %v2529 = vadd.f32 %v2438, %v2528
    %v2530 = vpop.f32.mrf.mxu0
    %2531 = vmatprep.mubr.f32.mxu0 0.0
    %v2532 = vand.u32 %v2359, 4294901760
    %2533 = vmatmul.mubr.f32.gmra.mxu0 %v2532
    %v2534 = vpop.f32.mrf.mxu0
    %v2535 = vadd.f32 %v2448, %v2534
    %v2536 = vpop.f32.mrf.mxu0
    %2537 = vdwg.mxu0
    %2538 = vmatprep.subr.mxu0 0.0
    %2539 = vmatpush1.msra.mxu0 0.0
    %2540 = vmatprep.subr.mxu0 0.0
    %2541 = vmatpush1.msra.mxu0 0.0
    %2542 = vmatprep.subr.mxu0 0.0
    %2543 = vmatpush1.msra.mxu0 0.0
    %2544 = vmatprep.subr.mxu0 0.0
    %2545 = vmatpush1.msra.mxu0 0.0
    %2546 = vmatprep.subr.mxu0 0.0
    %2547 = vmatpush1.msra.mxu0 0.0
    %2548 = vmatprep.subr.mxu0 0.0
    %2549 = vmatpush1.msra.mxu0 0.0
    %2550 = vmatprep.subr.mxu0 0.0
    %2551 = vmatpush1.msra.mxu0 0.0
    %2552 = vmatprep.subr.mxu0 0.0
    %2553 = vmatpush1.msra.mxu0 0.0
    %2554 = vmatprep.subr.mxu0 0.0
    %2555 = vmatpush1.msra.mxu0 0.0
    %2556 = vmatprep.subr.mxu0 0.0
    %2557 = vmatpush1.msra.mxu0 0.0
    %2558 = vmatprep.subr.mxu0 0.0
    %2559 = vmatpush1.msra.mxu0 0.0
    %2560 = vmatprep.subr.mxu0 0.0
    %2561 = vmatpush1.msra.mxu0 0.0
    %2562 = vmatprep.subr.mxu0 0.0
    %2563 = vmatpush1.msra.mxu0 0.0
    %2564 = vmatprep.subr.mxu0 0.0
    %2565 = vmatpush1.msra.mxu0 0.0
    %2566 = vmatprep.subr.mxu0 0.0
    %v2567 = vand.u32 %v2362, 4294901760
    %v2568 = vsub.f32 %v2362, %v2567
    %2569 = vmatpush1.msra.mxu0 %v2568
    %2570 = vmatprep.subr.mxu0 0.0
    %v2571 = vand.u32 %v2341, 4294901760
    %v2572 = vsub.f32 %v2341, %v2571
    %2573 = vmatpush1.msra.mxu0 %v2572
    %2574 = vmatprep.subr.mxu0 0.0
    %2575 = vmatpush2.msra.mxu0 0.0
    %2576 = vmatprep.subr.mxu0 0.0
    %2577 = vmatpush2.msra.mxu0 0.0
    %2578 = vmatprep.subr.mxu0 0.0
    %2579 = vmatpush2.msra.mxu0 0.0
    %2580 = vmatprep.subr.mxu0 0.0
    %2581 = vmatpush2.msra.mxu0 0.0
    %2582 = vmatprep.subr.mxu0 0.0
    %2583 = vmatpush2.msra.mxu0 0.0
    %2584 = vmatprep.subr.mxu0 0.0
    %2585 = vmatpush2.msra.mxu0 0.0
    %2586 = vmatprep.subr.mxu0 0.0
    %2587 = vmatpush2.msra.mxu0 0.0
    %2588 = vmatprep.subr.mxu0 0.0
    %2589 = vmatpush2.msra.mxu0 0.0
    %2590 = vmatprep.subr.mxu0 0.0
    %2591 = vmatpush2.msra.mxu0 0.0
    %2592 = vmatprep.subr.mxu0 0.0
    %2593 = vmatpush2.msra.mxu0 0.0
    %2594 = vmatprep.subr.mxu0 0.0
    %2595 = vmatpush2.msra.mxu0 0.0
    %2596 = vmatprep.subr.mxu0 0.0
    %2597 = vmatpush2.msra.mxu0 0.0
    %2598 = vmatprep.subr.mxu0 0.0
    %2599 = vmatpush2.msra.mxu0 0.0
    %2600 = vmatprep.subr.mxu0 0.0
    %2601 = vmatpush2.msra.mxu0 0.0
    %2602 = vmatprep.subr.mxu0 0.0
    %2603 = vmatpush2.msra.mxu0 0.0
    %2604 = vmatprep.subr.mxu0 0.0
    %2605 = vmatpush2.msra.mxu0 0.0
    %2606 = vmatprep.mubr.f32.mxu0 0.0
    %v2607 = vand.u32 %v2356, 4294901760
    %v2608 = vsub.f32 %v2356, %v2607
    %2609 = vmatmul.mubr.f32.gmra.mxu0 %v2608
    %v2610 = vpop.f32.mrf.mxu0
    %v2611 = vadd.f32 %v2529, %v2610
    %v2612 = vpop.f32.mrf.mxu0
    %2613 = vmatprep.mubr.f32.mxu0 0.0
    %v2614 = vand.u32 %v2359, 4294901760
    %v2615 = vsub.f32 %v2359, %v2614
    %2616 = vmatmul.mubr.f32.gmra.mxu0 %v2615
    %v2617 = vpop.f32.mrf.mxu0
    %v2618 = vadd.f32 %v2535, %v2617
    %v2619 = vpop.f32.mrf.mxu0
    %2620 = vdwg.mxu0
    %2621 = vmatprep.subr.mxu0 0.0
    %2622 = vmatpush1.msra.mxu0 0.0
    %2623 = vmatprep.subr.mxu0 0.0
    %2624 = vmatpush1.msra.mxu0 0.0
    %2625 = vmatprep.subr.mxu0 0.0
    %2626 = vmatpush1.msra.mxu0 0.0
    %2627 = vmatprep.subr.mxu0 0.0
    %2628 = vmatpush1.msra.mxu0 0.0
    %2629 = vmatprep.subr.mxu0 0.0
    %2630 = vmatpush1.msra.mxu0 0.0
    %2631 = vmatprep.subr.mxu0 0.0
    %2632 = vmatpush1.msra.mxu0 0.0
    %2633 = vmatprep.subr.mxu0 0.0
    %2634 = vmatpush1.msra.mxu0 0.0
    %2635 = vmatprep.subr.mxu0 0.0
    %2636 = vmatpush1.msra.mxu0 0.0
    %2637 = vmatprep.subr.mxu0 0.0
    %2638 = vmatpush1.msra.mxu0 0.0
    %2639 = vmatprep.subr.mxu0 0.0
    %2640 = vmatpush1.msra.mxu0 0.0
    %2641 = vmatprep.subr.mxu0 0.0
    %2642 = vmatpush1.msra.mxu0 0.0
    %2643 = vmatprep.subr.mxu0 0.0
    %2644 = vmatpush1.msra.mxu0 0.0
    %2645 = vmatprep.subr.mxu0 0.0
    %2646 = vmatpush1.msra.mxu0 0.0
    %2647 = vmatprep.subr.mxu0 0.0
    %2648 = vmatpush1.msra.mxu0 0.0
    %2649 = vmatprep.subr.mxu0 0.0
    %v2650 = vand.u32 %v2362, 4294901760
    %2651 = vmatpush1.msra.mxu0 %v2650
    %2652 = vmatprep.subr.mxu0 0.0
    %v2653 = vand.u32 %v2341, 4294901760
    %2654 = vmatpush1.msra.mxu0 %v2653
    %2655 = vmatprep.subr.mxu0 0.0
    %2656 = vmatpush2.msra.mxu0 0.0
    %2657 = vmatprep.subr.mxu0 0.0
    %2658 = vmatpush2.msra.mxu0 0.0
    %2659 = vmatprep.subr.mxu0 0.0
    %2660 = vmatpush2.msra.mxu0 0.0
    %2661 = vmatprep.subr.mxu0 0.0
    %2662 = vmatpush2.msra.mxu0 0.0
    %2663 = vmatprep.subr.mxu0 0.0
    %2664 = vmatpush2.msra.mxu0 0.0
    %2665 = vmatprep.subr.mxu0 0.0
    %2666 = vmatpush2.msra.mxu0 0.0
    %2667 = vmatprep.subr.mxu0 0.0
    %2668 = vmatpush2.msra.mxu0 0.0
    %2669 = vmatprep.subr.mxu0 0.0
    %2670 = vmatpush2.msra.mxu0 0.0
    %2671 = vmatprep.subr.mxu0 0.0
    %2672 = vmatpush2.msra.mxu0 0.0
    %2673 = vmatprep.subr.mxu0 0.0
    %2674 = vmatpush2.msra.mxu0 0.0
    %2675 = vmatprep.subr.mxu0 0.0
    %2676 = vmatpush2.msra.mxu0 0.0
    %2677 = vmatprep.subr.mxu0 0.0
    %2678 = vmatpush2.msra.mxu0 0.0
    %2679 = vmatprep.subr.mxu0 0.0
    %2680 = vmatpush2.msra.mxu0 0.0
    %2681 = vmatprep.subr.mxu0 0.0
    %2682 = vmatpush2.msra.mxu0 0.0
    %2683 = vmatprep.subr.mxu0 0.0
    %2684 = vmatpush2.msra.mxu0 0.0
    %2685 = vmatprep.subr.mxu0 0.0
    %2686 = vmatpush2.msra.mxu0 0.0
    %2687 = vmatprep.mubr.f32.mxu0 0.0
    %v2688 = vand.u32 %v2356, 4294901760
    %v2689 = vsub.f32 %v2356, %v2688
    %v2690 = vand.u32 %v2689, 4294901760
    %2691 = vmatmul.mubr.f32.gmra.mxu0 %v2690
    %v2692 = vpop.f32.mrf.mxu0
    %v2693 = vadd.f32 %v2611, %v2692
    %v2694 = vpop.f32.mrf.mxu0
    %2695 = vmatprep.mubr.f32.mxu0 0.0
    %v2696 = vand.u32 %v2359, 4294901760
    %v2697 = vsub.f32 %v2359, %v2696
    %v2698 = vand.u32 %v2697, 4294901760
    %2699 = vmatmul.mubr.f32.gmra.mxu0 %v2698
    %v2700 = vpop.f32.mrf.mxu0
    %v2701 = vadd.f32 %v2618, %v2700
    %v2702 = vpop.f32.mrf.mxu0
    %2703 = vdwg.mxu0
    %2704 = vmatprep.subr.mxu0 0.0
    %2705 = vmatpush1.msra.mxu0 0.0
    %2706 = vmatprep.subr.mxu0 0.0
    %2707 = vmatpush1.msra.mxu0 0.0
    %2708 = vmatprep.subr.mxu0 0.0
    %2709 = vmatpush1.msra.mxu0 0.0
    %2710 = vmatprep.subr.mxu0 0.0
    %2711 = vmatpush1.msra.mxu0 0.0
    %2712 = vmatprep.subr.mxu0 0.0
    %2713 = vmatpush1.msra.mxu0 0.0
    %2714 = vmatprep.subr.mxu0 0.0
    %2715 = vmatpush1.msra.mxu0 0.0
    %2716 = vmatprep.subr.mxu0 0.0
    %2717 = vmatpush1.msra.mxu0 0.0
    %2718 = vmatprep.subr.mxu0 0.0
    %2719 = vmatpush1.msra.mxu0 0.0
    %2720 = vmatprep.subr.mxu0 0.0
    %2721 = vmatpush1.msra.mxu0 0.0
    %2722 = vmatprep.subr.mxu0 0.0
    %2723 = vmatpush1.msra.mxu0 0.0
    %2724 = vmatprep.subr.mxu0 0.0
    %2725 = vmatpush1.msra.mxu0 0.0
    %2726 = vmatprep.subr.mxu0 0.0
    %2727 = vmatpush1.msra.mxu0 0.0
    %2728 = vmatprep.subr.mxu0 0.0
    %2729 = vmatpush1.msra.mxu0 0.0
    %2730 = vmatprep.subr.mxu0 0.0
    %2731 = vmatpush1.msra.mxu0 0.0
    %2732 = vmatprep.subr.mxu0 0.0
    %v2733 = vand.u32 %v2362, 4294901760
    %v2734 = vsub.f32 %v2362, %v2733
    %v2735 = vand.u32 %v2734, 4294901760
    %2736 = vmatpush1.msra.mxu0 %v2735
    %2737 = vmatprep.subr.mxu0 0.0
    %v2738 = vand.u32 %v2341, 4294901760
    %v2739 = vsub.f32 %v2341, %v2738
    %v2740 = vand.u32 %v2739, 4294901760
    %2741 = vmatpush1.msra.mxu0 %v2740
    %2742 = vmatprep.subr.mxu0 0.0
    %2743 = vmatpush2.msra.mxu0 0.0
    %2744 = vmatprep.subr.mxu0 0.0
    %2745 = vmatpush2.msra.mxu0 0.0
    %2746 = vmatprep.subr.mxu0 0.0
    %2747 = vmatpush2.msra.mxu0 0.0
    %2748 = vmatprep.subr.mxu0 0.0
    %2749 = vmatpush2.msra.mxu0 0.0
    %2750 = vmatprep.subr.mxu0 0.0
    %2751 = vmatpush2.msra.mxu0 0.0
    %2752 = vmatprep.subr.mxu0 0.0
    %2753 = vmatpush2.msra.mxu0 0.0
    %2754 = vmatprep.subr.mxu0 0.0
    %2755 = vmatpush2.msra.mxu0 0.0
    %2756 = vmatprep.subr.mxu0 0.0
    %2757 = vmatpush2.msra.mxu0 0.0
    %2758 = vmatprep.subr.mxu0 0.0
    %2759 = vmatpush2.msra.mxu0 0.0
    %2760 = vmatprep.subr.mxu0 0.0
    %2761 = vmatpush2.msra.mxu0 0.0
    %2762 = vmatprep.subr.mxu0 0.0
    %2763 = vmatpush2.msra.mxu0 0.0
    %2764 = vmatprep.subr.mxu0 0.0
    %2765 = vmatpush2.msra.mxu0 0.0
    %2766 = vmatprep.subr.mxu0 0.0
    %2767 = vmatpush2.msra.mxu0 0.0
    %2768 = vmatprep.subr.mxu0 0.0
    %2769 = vmatpush2.msra.mxu0 0.0
    %2770 = vmatprep.subr.mxu0 0.0
    %2771 = vmatpush2.msra.mxu0 0.0
    %2772 = vmatprep.subr.mxu0 0.0
    %2773 = vmatpush2.msra.mxu0 0.0
    %2774 = vmatprep.mubr.f32.mxu0 0.0
    %v2775 = vand.u32 %v2356, 4294901760
    %2776 = vmatmul.mubr.f32.gmra.mxu0 %v2775
    %v2777 = vpop.f32.mrf.mxu0
    %v2778 = vadd.f32 %v2693, %v2777
    %v2779 = vpop.f32.mrf.mxu0
    %2780 = vmatprep.mubr.f32.mxu0 0.0
    %v2781 = vand.u32 %v2359, 4294901760
    %2782 = vmatmul.mubr.f32.gmra.mxu0 %v2781
    %v2783 = vpop.f32.mrf.mxu0
    %v2784 = vadd.f32 %v2701, %v2783
    %v2785 = vpop.f32.mrf.mxu0
    %2786 = vdwg.mxu0
    %2787 = vmatprep.subr.mxu0 0.0
    %2788 = vmatpush1.msra.mxu0 0.0
    %2789 = vmatprep.subr.mxu0 0.0
    %2790 = vmatpush1.msra.mxu0 0.0
    %2791 = vmatprep.subr.mxu0 0.0
    %2792 = vmatpush1.msra.mxu0 0.0
    %2793 = vmatprep.subr.mxu0 0.0
    %2794 = vmatpush1.msra.mxu0 0.0
    %2795 = vmatprep.subr.mxu0 0.0
    %2796 = vmatpush1.msra.mxu0 0.0
    %2797 = vmatprep.subr.mxu0 0.0
    %2798 = vmatpush1.msra.mxu0 0.0
    %2799 = vmatprep.subr.mxu0 0.0
    %2800 = vmatpush1.msra.mxu0 0.0
    %2801 = vmatprep.subr.mxu0 0.0
    %2802 = vmatpush1.msra.mxu0 0.0
    %2803 = vmatprep.subr.mxu0 0.0
    %2804 = vmatpush1.msra.mxu0 0.0
    %2805 = vmatprep.subr.mxu0 0.0
    %2806 = vmatpush1.msra.mxu0 0.0
    %2807 = vmatprep.subr.mxu0 0.0
    %2808 = vmatpush1.msra.mxu0 0.0
    %2809 = vmatprep.subr.mxu0 0.0
    %2810 = vmatpush1.msra.mxu0 0.0
    %2811 = vmatprep.subr.mxu0 0.0
    %2812 = vmatpush1.msra.mxu0 0.0
    %2813 = vmatprep.subr.mxu0 0.0
    %2814 = vmatpush1.msra.mxu0 0.0
    %2815 = vmatprep.subr.mxu0 0.0
    %v2816 = vand.u32 %v2362, 4294901760
    %2817 = vmatpush1.msra.mxu0 %v2816
    %2818 = vmatprep.subr.mxu0 0.0
    %v2819 = vand.u32 %v2341, 4294901760
    %2820 = vmatpush1.msra.mxu0 %v2819
    %2821 = vmatprep.subr.mxu0 0.0
    %2822 = vmatpush2.msra.mxu0 0.0
    %2823 = vmatprep.subr.mxu0 0.0
    %2824 = vmatpush2.msra.mxu0 0.0
    %2825 = vmatprep.subr.mxu0 0.0
    %2826 = vmatpush2.msra.mxu0 0.0
    %2827 = vmatprep.subr.mxu0 0.0
    %2828 = vmatpush2.msra.mxu0 0.0
    %2829 = vmatprep.subr.mxu0 0.0
    %2830 = vmatpush2.msra.mxu0 0.0
    %2831 = vmatprep.subr.mxu0 0.0
    %2832 = vmatpush2.msra.mxu0 0.0
    %2833 = vmatprep.subr.mxu0 0.0
    %2834 = vmatpush2.msra.mxu0 0.0
    %2835 = vmatprep.subr.mxu0 0.0
    %2836 = vmatpush2.msra.mxu0 0.0
    %2837 = vmatprep.subr.mxu0 0.0
    %2838 = vmatpush2.msra.mxu0 0.0
    %2839 = vmatprep.subr.mxu0 0.0
    %2840 = vmatpush2.msra.mxu0 0.0
    %2841 = vmatprep.subr.mxu0 0.0
    %2842 = vmatpush2.msra.mxu0 0.0
    %2843 = vmatprep.subr.mxu0 0.0
    %2844 = vmatpush2.msra.mxu0 0.0
    %2845 = vmatprep.subr.mxu0 0.0
    %2846 = vmatpush2.msra.mxu0 0.0
    %2847 = vmatprep.subr.mxu0 0.0
    %2848 = vmatpush2.msra.mxu0 0.0
    %2849 = vmatprep.subr.mxu0 0.0
    %2850 = vmatpush2.msra.mxu0 0.0
    %2851 = vmatprep.subr.mxu0 0.0
    %2852 = vmatpush2.msra.mxu0 0.0
    %2853 = vmatprep.mubr.f32.mxu0 0.0
    %v2854 = vand.u32 %v2356, 4294901760
    %2855 = vmatmul.mubr.f32.gmra.mxu0 %v2854
    %v2856 = vpop.f32.mrf.mxu0
    %v2857 = vadd.f32 %v2778, %v2856
    %v2858 = vpop.f32.mrf.mxu0
    %2859 = vmatprep.mubr.f32.mxu0 0.0
    %v2860 = vand.u32 %v2359, 4294901760
    %2861 = vmatmul.mubr.f32.gmra.mxu0 %v2860
    %v2862 = vpop.f32.mrf.mxu0
    %v2863 = vadd.f32 %v2784, %v2862
    %v2864 = vpop.f32.mrf.mxu0
    %2865 = vdwg.mxu0
    %v2867 = vsel %vm832, 0.0, 0
    %2869 = vmatprep.subr.mxu0 0.0
    %2870 = vmatpush1.msra.mxu0 0.0
    %2871 = vmatprep.subr.mxu0 0.0
    %2872 = vmatpush1.msra.mxu0 0.0
    %2873 = vmatprep.subr.mxu0 0.0
    %2874 = vmatpush1.msra.mxu0 0.0
    %2875 = vmatprep.subr.mxu0 0.0
    %2876 = vmatpush1.msra.mxu0 0.0
    %2877 = vmatprep.subr.mxu0 0.0
    %2878 = vmatpush1.msra.mxu0 0.0
    %2879 = vmatprep.subr.mxu0 0.0
    %2880 = vmatpush1.msra.mxu0 0.0
    %2881 = vmatprep.subr.mxu0 0.0
    %2882 = vmatpush1.msra.mxu0 0.0
    %2883 = vmatprep.subr.mxu0 0.0
    %2884 = vmatpush1.msra.mxu0 0.0
    %2885 = vmatprep.subr.mxu0 0.0
    %2886 = vmatpush1.msra.mxu0 0.0
    %2887 = vmatprep.subr.mxu0 0.0
    %2888 = vmatpush1.msra.mxu0 0.0
    %2889 = vmatprep.subr.mxu0 0.0
    %2890 = vmatpush1.msra.mxu0 0.0
    %2891 = vmatprep.subr.mxu0 0.0
    %2892 = vmatpush1.msra.mxu0 0.0
    %2893 = vmatprep.subr.mxu0 0.0
    %2894 = vmatpush1.msra.mxu0 %v2346
    %2895 = vmatprep.subr.mxu0 0.0
    %2896 = vmatpush1.msra.mxu0 %v2345
    %2897 = vmatprep.subr.mxu0 0.0
    %2898 = vmatpush1.msra.mxu0 %v2344
    %2899 = vmatprep.subr.mxu0 0.0
    %2900 = vmatpush1.msra.mxu0 %v2343
    %2901 = vmatprep.subr.mxu0 0.0
    %2902 = vmatpush2.msra.mxu0 0.0
    %2903 = vmatprep.subr.mxu0 0.0
    %2904 = vmatpush2.msra.mxu0 0.0
    %2905 = vmatprep.subr.mxu0 0.0
    %2906 = vmatpush2.msra.mxu0 0.0
    %2907 = vmatprep.subr.mxu0 0.0
    %2908 = vmatpush2.msra.mxu0 0.0
    %2909 = vmatprep.subr.mxu0 0.0
    %2910 = vmatpush2.msra.mxu0 0.0
    %2911 = vmatprep.subr.mxu0 0.0
    %2912 = vmatpush2.msra.mxu0 0.0
    %2913 = vmatprep.subr.mxu0 0.0
    %2914 = vmatpush2.msra.mxu0 0.0
    %2915 = vmatprep.subr.mxu0 0.0
    %2916 = vmatpush2.msra.mxu0 0.0
    %2917 = vmatprep.subr.mxu0 0.0
    %2918 = vmatpush2.msra.mxu0 0.0
    %2919 = vmatprep.subr.mxu0 0.0
    %2920 = vmatpush2.msra.mxu0 0.0
    %2921 = vmatprep.subr.mxu0 0.0
    %2922 = vmatpush2.msra.mxu0 0.0
    %2923 = vmatprep.subr.mxu0 0.0
    %2924 = vmatpush2.msra.mxu0 0.0
    %2925 = vmatprep.subr.mxu0 0.0
    %2926 = vmatpush2.msra.mxu0 0.0
    %2927 = vmatprep.subr.mxu0 0.0
    %2928 = vmatpush2.msra.mxu0 0.0
    %2929 = vmatprep.subr.mxu0 0.0
    %2930 = vmatpush2.msra.mxu0 0.0
    %2931 = vmatprep.subr.mxu0 0.0
    %2932 = vmatpush2.msra.mxu0 0.0
    %2933 = vmatprep.mubr.f32.mxu0 0.0
    %2934 = vmatmul.mubr.f32.gmra.mxu0 %v2867
    %v2935 = vpop.f32.mrf.mxu0
    %v2936 = vadd.f32 0.0, %v2935
    %v2937 = vpop.f32.mrf.mxu0
    %2938 = vdwg.mxu0
    %v2939 = vadd.f32 %v2857, %v2936
    %v2940 = vxor.u32 %v2939, 2147483648
    %v2941 = vmul.f32 %v2940, 1.442695
    %v2942 = vpow.pop %v2941
    %v2943 = vadd.f32 %v2942, 1.0
    %v2944 = vrcp.pop %v2943
    %v2945 = vmul.f32 1.0, %v2944
    %v2946 = vtanh.pop %v2939
    %v2947 = vmul.f32 %v2945, 0.0
    %2949 = vrot.lane.b32.xlu0 %v2946, 64
    %v2950 = vpop.permute.xlu0 %2949
    %v2952 = vmul.f32 %v2945, %v2950
    %2954 = vrot.lane.b32.xlu0 %v2952, 32
    %v2955 = vpop.permute.xlu0 %2954
    %v2957 = vadd.f32 %v2947, %v2955
    %v2958 = vtanh.pop %v2957
    %2960 = vrot.lane.b32.xlu0 %v2958, 64
    %v2961 = vpop.permute.xlu0 %2960
    %v2963 = vmul.f32 %v2945, %v2961
    %2965 = vrot.lane.b32.xlu0 %v2963, 32
    %v2966 = vpop.permute.xlu0 %2965
    %vm2968 = vcmask 254976
    %2969 = vst.msk [vmem:[#allocation2] sm:$0x3] %vm2968, %v2966
    %v2970 = vsel %vm832, %v2966, 0
    %2972 = vmatprep.subr.mxu0 0.0
    %2973 = vmatpush1.msra.mxu0 0.0
    %2974 = vmatprep.subr.mxu0 0.0
    %2975 = vmatpush1.msra.mxu0 0.0
    %2976 = vmatprep.subr.mxu0 0.0
    %2977 = vmatpush1.msra.mxu0 0.0
    %2978 = vmatprep.subr.mxu0 0.0
    %2979 = vmatpush1.msra.mxu0 0.0
    %2980 = vmatprep.subr.mxu0 0.0
    %2981 = vmatpush1.msra.mxu0 0.0
    %2982 = vmatprep.subr.mxu0 0.0
    %2983 = vmatpush1.msra.mxu0 0.0
    %2984 = vmatprep.subr.mxu0 0.0
    %2985 = vmatpush1.msra.mxu0 0.0
    %2986 = vmatprep.subr.mxu0 0.0
    %2987 = vmatpush1.msra.mxu0 0.0
    %2988 = vmatprep.subr.mxu0 0.0
    %2989 = vmatpush1.msra.mxu0 0.0
    %2990 = vmatprep.subr.mxu0 0.0
    %2991 = vmatpush1.msra.mxu0 0.0
    %2992 = vmatprep.subr.mxu0 0.0
    %2993 = vmatpush1.msra.mxu0 0.0
    %2994 = vmatprep.subr.mxu0 0.0
    %2995 = vmatpush1.msra.mxu0 0.0
    %2996 = vmatprep.subr.mxu0 0.0
    %2997 = vmatpush1.msra.mxu0 %v2346
    %2998 = vmatprep.subr.mxu0 0.0
    %2999 = vmatpush1.msra.mxu0 %v2345
    %3000 = vmatprep.subr.mxu0 0.0
    %3001 = vmatpush1.msra.mxu0 %v2344
    %3002 = vmatprep.subr.mxu0 0.0
    %3003 = vmatpush1.msra.mxu0 %v2343
    %3004 = vmatprep.subr.mxu0 0.0
    %3005 = vmatpush2.msra.mxu0 0.0
    %3006 = vmatprep.subr.mxu0 0.0
    %3007 = vmatpush2.msra.mxu0 0.0
    %3008 = vmatprep.subr.mxu0 0.0
    %3009 = vmatpush2.msra.mxu0 0.0
    %3010 = vmatprep.subr.mxu0 0.0
    %3011 = vmatpush2.msra.mxu0 0.0
    %3012 = vmatprep.subr.mxu0 0.0
    %3013 = vmatpush2.msra.mxu0 0.0
    %3014 = vmatprep.subr.mxu0 0.0
    %3015 = vmatpush2.msra.mxu0 0.0
    %3016 = vmatprep.subr.mxu0 0.0
    %3017 = vmatpush2.msra.mxu0 0.0
    %3018 = vmatprep.subr.mxu0 0.0
    %3019 = vmatpush2.msra.mxu0 0.0
    %3020 = vmatprep.subr.mxu0 0.0
    %3021 = vmatpush2.msra.mxu0 0.0
    %3022 = vmatprep.subr.mxu0 0.0
    %3023 = vmatpush2.msra.mxu0 0.0
    %3024 = vmatprep.subr.mxu0 0.0
    %3025 = vmatpush2.msra.mxu0 0.0
    %3026 = vmatprep.subr.mxu0 0.0
    %3027 = vmatpush2.msra.mxu0 0.0
    %3028 = vmatprep.subr.mxu0 0.0
    %3029 = vmatpush2.msra.mxu0 0.0
    %3030 = vmatprep.subr.mxu0 0.0
    %3031 = vmatpush2.msra.mxu0 0.0
    %3032 = vmatprep.subr.mxu0 0.0
    %3033 = vmatpush2.msra.mxu0 0.0
    %3034 = vmatprep.subr.mxu0 0.0
    %3035 = vmatpush2.msra.mxu0 0.0
    %3036 = vmatprep.mubr.f32.mxu0 0.0
    %3037 = vmatmul.mubr.f32.gmra.mxu0 %v2970
    %v3038 = vpop.f32.mrf.mxu0
    %v3039 = vadd.f32 0.0, %v3038
    %v3040 = vpop.f32.mrf.mxu0
    %3041 = vdwg.mxu0
    %v3043 = vrot.slane %v3039, 6
    %v3045 = vadd.f32 %v2857, %v3043
    %v3046 = vxor.u32 %v3045, 2147483648
    %v3047 = vmul.f32 %v3046, 1.442695
    %v3048 = vpow.pop %v3047
    %v3049 = vadd.f32 %v3048, 1.0
    %v3050 = vrcp.pop %v3049
    %v3051 = vmul.f32 1.0, %v3050
    %v3052 = vtanh.pop %v3045
    %v3054 = vrot.slane %v2957, 6
    %v3056 = vmul.f32 %v3051, %v3054
    %3058 = vrot.lane.b32.xlu0 %v3052, 64
    %v3059 = vpop.permute.xlu0 %3058
    %v3061 = vmul.f32 %v3051, %v3059
    %3063 = vrot.lane.b32.xlu0 %v3061, 32
    %v3064 = vpop.permute.xlu0 %3063
    %v3066 = vadd.f32 %v3056, %v3064
    %v3067 = vtanh.pop %v3066
    %3069 = vrot.lane.b32.xlu0 %v3067, 64
    %v3070 = vpop.permute.xlu0 %3069
    %v3072 = vmul.f32 %v3051, %v3070
    %3074 = vrot.lane.b32.xlu0 %v3072, 32
    %v3075 = vpop.permute.xlu0 %3074
    %vm3077 = vcmask 257026
    %3078 = vst.msk [vmem:[#allocation2] sm:$0xc] %vm3077, %v3075
    %v3079 = vrot.slane %v3072, 2
    %3080 = vrot.lane.b32.xlu0 %v3079, 32
    %v3081 = vpop.permute.xlu0 %3080
    %v3082 = vsel %vm832, %v3081, 0
    %3084 = vmatprep.subr.mxu0 0.0
    %3085 = vmatpush1.msra.mxu0 0.0
    %3086 = vmatprep.subr.mxu0 0.0
    %3087 = vmatpush1.msra.mxu0 0.0
    %3088 = vmatprep.subr.mxu0 0.0
    %3089 = vmatpush1.msra.mxu0 0.0
    %3090 = vmatprep.subr.mxu0 0.0
    %3091 = vmatpush1.msra.mxu0 0.0
    %3092 = vmatprep.subr.mxu0 0.0
    %3093 = vmatpush1.msra.mxu0 0.0
    %3094 = vmatprep.subr.mxu0 0.0
    %3095 = vmatpush1.msra.mxu0 0.0
    %3096 = vmatprep.subr.mxu0 0.0
    %3097 = vmatpush1.msra.mxu0 0.0
    %3098 = vmatprep.subr.mxu0 0.0
    %3099 = vmatpush1.msra.mxu0 0.0
    %3100 = vmatprep.subr.mxu0 0.0
    %3101 = vmatpush1.msra.mxu0 0.0
    %3102 = vmatprep.subr.mxu0 0.0
    %3103 = vmatpush1.msra.mxu0 0.0
    %3104 = vmatprep.subr.mxu0 0.0
    %3105 = vmatpush1.msra.mxu0 0.0
    %3106 = vmatprep.subr.mxu0 0.0
    %3107 = vmatpush1.msra.mxu0 0.0
    %3108 = vmatprep.subr.mxu0 0.0
    %3109 = vmatpush1.msra.mxu0 %v2346
    %3110 = vmatprep.subr.mxu0 0.0
    %3111 = vmatpush1.msra.mxu0 %v2345
    %3112 = vmatprep.subr.mxu0 0.0
    %3113 = vmatpush1.msra.mxu0 %v2344
    %3114 = vmatprep.subr.mxu0 0.0
    %3115 = vmatpush1.msra.mxu0 %v2343
    %3116 = vmatprep.subr.mxu0 0.0
    %3117 = vmatpush2.msra.mxu0 0.0
    %3118 = vmatprep.subr.mxu0 0.0
    %3119 = vmatpush2.msra.mxu0 0.0
    %3120 = vmatprep.subr.mxu0 0.0
    %3121 = vmatpush2.msra.mxu0 0.0
    %3122 = vmatprep.subr.mxu0 0.0
    %3123 = vmatpush2.msra.mxu0 0.0
    %3124 = vmatprep.subr.mxu0 0.0
    %3125 = vmatpush2.msra.mxu0 0.0
    %3126 = vmatprep.subr.mxu0 0.0
    %3127 = vmatpush2.msra.mxu0 0.0
    %3128 = vmatprep.subr.mxu0 0.0
    %3129 = vmatpush2.msra.mxu0 0.0
    %3130 = vmatprep.subr.mxu0 0.0
    %3131 = vmatpush2.msra.mxu0 0.0
    %3132 = vmatprep.subr.mxu0 0.0
    %3133 = vmatpush2.msra.mxu0 0.0
    %3134 = vmatprep.subr.mxu0 0.0
    %3135 = vmatpush2.msra.mxu0 0.0
    %3136 = vmatprep.subr.mxu0 0.0
    %3137 = vmatpush2.msra.mxu0 0.0
    %3138 = vmatprep.subr.mxu0 0.0
    %3139 = vmatpush2.msra.mxu0 0.0
    %3140 = vmatprep.subr.mxu0 0.0
    %3141 = vmatpush2.msra.mxu0 0.0
    %3142 = vmatprep.subr.mxu0 0.0
    %3143 = vmatpush2.msra.mxu0 0.0
    %3144 = vmatprep.subr.mxu0 0.0
    %3145 = vmatpush2.msra.mxu0 0.0
    %3146 = vmatprep.subr.mxu0 0.0
    %3147 = vmatpush2.msra.mxu0 0.0
    %3148 = vmatprep.mubr.f32.mxu0 0.0
    %3149 = vmatmul.mubr.f32.gmra.mxu0 %v3082
    %v3150 = vpop.f32.mrf.mxu0
    %v3151 = vadd.f32 0.0, %v3150
    %v3152 = vpop.f32.mrf.mxu0
    %3153 = vdwg.mxu0
    %v3155 = vrot.slane %v3151, 4
    %v3157 = vadd.f32 %v2857, %v3155
    %v3158 = vxor.u32 %v3157, 2147483648
    %v3159 = vmul.f32 %v3158, 1.442695
    %v3160 = vpow.pop %v3159
    %v3161 = vadd.f32 %v3160, 1.0
    %v3162 = vrcp.pop %v3161
    %v3163 = vmul.f32 1.0, %v3162
    %v3164 = vtanh.pop %v3157
    %v3166 = vrot.slane %v3066, 6
    %v3168 = vmul.f32 %v3163, %v3166
    %3170 = vrot.lane.b32.xlu0 %v3164, 64
    %v3171 = vpop.permute.xlu0 %3170
    %v3173 = vmul.f32 %v3163, %v3171
    %3175 = vrot.lane.b32.xlu0 %v3173, 32
    %v3176 = vpop.permute.xlu0 %3175
    %v3178 = vadd.f32 %v3168, %v3176
    %v3179 = vtanh.pop %v3178
    %3181 = vrot.lane.b32.xlu0 %v3179, 64
    %v3182 = vpop.permute.xlu0 %3181
    %v3184 = vmul.f32 %v3163, %v3182
    %3186 = vrot.lane.b32.xlu0 %v3184, 32
    %v3187 = vpop.permute.xlu0 %3186
    %vm3189 = vcmask 259076
    %3190 = vst.msk [vmem:[#allocation2] sm:$0x30] %vm3189, %v3187
    %v3191 = vrot.slane %v3184, 4
    %3192 = vrot.lane.b32.xlu0 %v3191, 32
    %v3193 = vpop.permute.xlu0 %3192
    %v3194 = vsel %vm832, %v3193, 0
    %3196 = vmatprep.subr.mxu0 0.0
    %3197 = vmatpush1.msra.mxu0 0.0
    %3198 = vmatprep.subr.mxu0 0.0
    %3199 = vmatpush1.msra.mxu0 0.0
    %3200 = vmatprep.subr.mxu0 0.0
    %3201 = vmatpush1.msra.mxu0 0.0
    %3202 = vmatprep.subr.mxu0 0.0
    %3203 = vmatpush1.msra.mxu0 0.0
    %3204 = vmatprep.subr.mxu0 0.0
    %3205 = vmatpush1.msra.mxu0 0.0
    %3206 = vmatprep.subr.mxu0 0.0
    %3207 = vmatpush1.msra.mxu0 0.0
    %3208 = vmatprep.subr.mxu0 0.0
    %3209 = vmatpush1.msra.mxu0 0.0
    %3210 = vmatprep.subr.mxu0 0.0
    %3211 = vmatpush1.msra.mxu0 0.0
    %3212 = vmatprep.subr.mxu0 0.0
    %3213 = vmatpush1.msra.mxu0 0.0
    %3214 = vmatprep.subr.mxu0 0.0
    %3215 = vmatpush1.msra.mxu0 0.0
    %3216 = vmatprep.subr.mxu0 0.0
    %3217 = vmatpush1.msra.mxu0 0.0
    %3218 = vmatprep.subr.mxu0 0.0
    %3219 = vmatpush1.msra.mxu0 0.0
    %3220 = vmatprep.subr.mxu0 0.0
    %3221 = vmatpush1.msra.mxu0 %v2346
    %3222 = vmatprep.subr.mxu0 0.0
    %3223 = vmatpush1.msra.mxu0 %v2345
    %3224 = vmatprep.subr.mxu0 0.0
    %3225 = vmatpush1.msra.mxu0 %v2344
    %3226 = vmatprep.subr.mxu0 0.0
    %3227 = vmatpush1.msra.mxu0 %v2343
    %3228 = vmatprep.subr.mxu0 0.0
    %3229 = vmatpush2.msra.mxu0 0.0
    %3230 = vmatprep.subr.mxu0 0.0
    %3231 = vmatpush2.msra.mxu0 0.0
    %3232 = vmatprep.subr.mxu0 0.0
    %3233 = vmatpush2.msra.mxu0 0.0
    %3234 = vmatprep.subr.mxu0 0.0
    %3235 = vmatpush2.msra.mxu0 0.0
    %3236 = vmatprep.subr.mxu0 0.0
    %3237 = vmatpush2.msra.mxu0 0.0
    %3238 = vmatprep.subr.mxu0 0.0
    %3239 = vmatpush2.msra.mxu0 0.0
    %3240 = vmatprep.subr.mxu0 0.0
    %3241 = vmatpush2.msra.mxu0 0.0
    %3242 = vmatprep.subr.mxu0 0.0
    %3243 = vmatpush2.msra.mxu0 0.0
    %3244 = vmatprep.subr.mxu0 0.0
    %3245 = vmatpush2.msra.mxu0 0.0
    %3246 = vmatprep.subr.mxu0 0.0
    %3247 = vmatpush2.msra.mxu0 0.0
    %3248 = vmatprep.subr.mxu0 0.0
    %3249 = vmatpush2.msra.mxu0 0.0
    %3250 = vmatprep.subr.mxu0 0.0
    %3251 = vmatpush2.msra.mxu0 0.0
    %3252 = vmatprep.subr.mxu0 0.0
    %3253 = vmatpush2.msra.mxu0 0.0
    %3254 = vmatprep.subr.mxu0 0.0
    %3255 = vmatpush2.msra.mxu0 0.0
    %3256 = vmatprep.subr.mxu0 0.0
    %3257 = vmatpush2.msra.mxu0 0.0
    %3258 = vmatprep.subr.mxu0 0.0
    %3259 = vmatpush2.msra.mxu0 0.0
    %3260 = vmatprep.mubr.f32.mxu0 0.0
    %3261 = vmatmul.mubr.f32.gmra.mxu0 %v3194
    %v3262 = vpop.f32.mrf.mxu0
    %v3263 = vadd.f32 0.0, %v3262
    %v3264 = vpop.f32.mrf.mxu0
    %3265 = vdwg.mxu0
    %v3267 = vrot.slane %v3263, 2
    %v3269 = vadd.f32 %v2857, %v3267
    %v3270 = vxor.u32 %v3269, 2147483648
    %v3271 = vmul.f32 %v3270, 1.442695
    %v3272 = vpow.pop %v3271
    %v3273 = vadd.f32 %v3272, 1.0
    %v3274 = vrcp.pop %v3273
    %v3275 = vmul.f32 1.0, %v3274
    %v3276 = vtanh.pop %v3269
    %v3278 = vrot.slane %v3178, 6
    %v3280 = vmul.f32 %v3275, %v3278
    %3282 = vrot.lane.b32.xlu0 %v3276, 64
    %v3283 = vpop.permute.xlu0 %3282
    %v3285 = vmul.f32 %v3275, %v3283
    %3287 = vrot.lane.b32.xlu0 %v3285, 32
    %v3288 = vpop.permute.xlu0 %3287
    %v3290 = vadd.f32 %v3280, %v3288
    %v3291 = vtanh.pop %v3290
    %3293 = vrot.lane.b32.xlu0 %v3291, 64
    %v3294 = vpop.permute.xlu0 %3293
    %v3296 = vmul.f32 %v3275, %v3294
    %3298 = vrot.lane.b32.xlu0 %v3296, 32
    %v3299 = vpop.permute.xlu0 %3298
    %vm3301 = vcmask 261126
    %3302 = vst.msk [vmem:[#allocation2] sm:$0xc0] %vm3301, %v3299
    %v3303 = vrot.slane %v3296, 6
    %3304 = vrot.lane.b32.xlu0 %v3303, 32
    %v3305 = vpop.permute.xlu0 %3304
    %v3306 = vsel %vm832, %v3305, 0
    %3308 = vmatprep.subr.mxu0 0.0
    %3309 = vmatpush1.msra.mxu0 0.0
    %3310 = vmatprep.subr.mxu0 0.0
    %3311 = vmatpush1.msra.mxu0 0.0
    %3312 = vmatprep.subr.mxu0 0.0
    %3313 = vmatpush1.msra.mxu0 0.0
    %3314 = vmatprep.subr.mxu0 0.0
    %3315 = vmatpush1.msra.mxu0 0.0
    %3316 = vmatprep.subr.mxu0 0.0
    %3317 = vmatpush1.msra.mxu0 0.0
    %3318 = vmatprep.subr.mxu0 0.0
    %3319 = vmatpush1.msra.mxu0 0.0
    %3320 = vmatprep.subr.mxu0 0.0
    %3321 = vmatpush1.msra.mxu0 0.0
    %3322 = vmatprep.subr.mxu0 0.0
    %3323 = vmatpush1.msra.mxu0 0.0
    %3324 = vmatprep.subr.mxu0 0.0
    %3325 = vmatpush1.msra.mxu0 0.0
    %3326 = vmatprep.subr.mxu0 0.0
    %3327 = vmatpush1.msra.mxu0 0.0
    %3328 = vmatprep.subr.mxu0 0.0
    %3329 = vmatpush1.msra.mxu0 0.0
    %3330 = vmatprep.subr.mxu0 0.0
    %3331 = vmatpush1.msra.mxu0 0.0
    %3332 = vmatprep.subr.mxu0 0.0
    %3333 = vmatpush1.msra.mxu0 %v2346
    %3334 = vmatprep.subr.mxu0 0.0
    %3335 = vmatpush1.msra.mxu0 %v2345
    %3336 = vmatprep.subr.mxu0 0.0
    %3337 = vmatpush1.msra.mxu0 %v2344
    %3338 = vmatprep.subr.mxu0 0.0
    %3339 = vmatpush1.msra.mxu0 %v2343
    %3340 = vmatprep.subr.mxu0 0.0
    %3341 = vmatpush2.msra.mxu0 0.0
    %3342 = vmatprep.subr.mxu0 0.0
    %3343 = vmatpush2.msra.mxu0 0.0
    %3344 = vmatprep.subr.mxu0 0.0
    %3345 = vmatpush2.msra.mxu0 0.0
    %3346 = vmatprep.subr.mxu0 0.0
    %3347 = vmatpush2.msra.mxu0 0.0
    %3348 = vmatprep.subr.mxu0 0.0
    %3349 = vmatpush2.msra.mxu0 0.0
    %3350 = vmatprep.subr.mxu0 0.0
    %3351 = vmatpush2.msra.mxu0 0.0
    %3352 = vmatprep.subr.mxu0 0.0
    %3353 = vmatpush2.msra.mxu0 0.0
    %3354 = vmatprep.subr.mxu0 0.0
    %3355 = vmatpush2.msra.mxu0 0.0
    %3356 = vmatprep.subr.mxu0 0.0
    %3357 = vmatpush2.msra.mxu0 0.0
    %3358 = vmatprep.subr.mxu0 0.0
    %3359 = vmatpush2.msra.mxu0 0.0
    %3360 = vmatprep.subr.mxu0 0.0
    %3361 = vmatpush2.msra.mxu0 0.0
    %3362 = vmatprep.subr.mxu0 0.0
    %3363 = vmatpush2.msra.mxu0 0.0
    %3364 = vmatprep.subr.mxu0 0.0
    %3365 = vmatpush2.msra.mxu0 0.0
    %3366 = vmatprep.subr.mxu0 0.0
    %3367 = vmatpush2.msra.mxu0 0.0
    %3368 = vmatprep.subr.mxu0 0.0
    %3369 = vmatpush2.msra.mxu0 0.0
    %3370 = vmatprep.subr.mxu0 0.0
    %3371 = vmatpush2.msra.mxu0 0.0
    %3372 = vmatprep.mubr.f32.mxu0 0.0
    %3373 = vmatmul.mubr.f32.gmra.mxu0 %v3306
    %v3374 = vpop.f32.mrf.mxu0
    %v3375 = vadd.f32 0.0, %v3374
    %v3376 = vpop.f32.mrf.mxu0
    %3377 = vdwg.mxu0
    %v3378 = vadd.f32 %v2863, %v3375
    %v3379 = vxor.u32 %v3378, 2147483648
    %v3380 = vmul.f32 %v3379, 1.442695
    %v3381 = vpow.pop %v3380
    %v3382 = vadd.f32 %v3381, 1.0
    %v3383 = vrcp.pop %v3382
    %v3384 = vmul.f32 1.0, %v3383
    %v3385 = vtanh.pop %v3378
    %v3387 = vrot.slane %v3290, 6
    %v3389 = vmul.f32 %v3384, %v3387
    %3391 = vrot.lane.b32.xlu0 %v3385, 64
    %v3392 = vpop.permute.xlu0 %3391
    %v3394 = vmul.f32 %v3384, %v3392
    %3396 = vrot.lane.b32.xlu0 %v3394, 32
    %v3397 = vpop.permute.xlu0 %3396
    %v3399 = vadd.f32 %v3389, %v3397
    %v3400 = vtanh.pop %v3399
    %3402 = vrot.lane.b32.xlu0 %v3400, 64
    %v3403 = vpop.permute.xlu0 %3402
    %v3405 = vmul.f32 %v3384, %v3403
    %3407 = vrot.lane.b32.xlu0 %v3405, 32
    %v3408 = vpop.permute.xlu0 %3407
    %3410 = vst.msk [vmem:[#allocation2 + $0x8] sm:$0x3] %vm2968, %v3408
    %v3411 = vsel %vm832, %v3408, 0
    %3413 = vmatprep.subr.mxu0 0.0
    %3414 = vmatpush1.msra.mxu0 0.0
    %3415 = vmatprep.subr.mxu0 0.0
    %3416 = vmatpush1.msra.mxu0 0.0
    %3417 = vmatprep.subr.mxu0 0.0
    %3418 = vmatpush1.msra.mxu0 0.0
    %3419 = vmatprep.subr.mxu0 0.0
    %3420 = vmatpush1.msra.mxu0 0.0
    %3421 = vmatprep.subr.mxu0 0.0
    %3422 = vmatpush1.msra.mxu0 0.0
    %3423 = vmatprep.subr.mxu0 0.0
    %3424 = vmatpush1.msra.mxu0 0.0
    %3425 = vmatprep.subr.mxu0 0.0
    %3426 = vmatpush1.msra.mxu0 0.0
    %3427 = vmatprep.subr.mxu0 0.0
    %3428 = vmatpush1.msra.mxu0 0.0
    %3429 = vmatprep.subr.mxu0 0.0
    %3430 = vmatpush1.msra.mxu0 0.0
    %3431 = vmatprep.subr.mxu0 0.0
    %3432 = vmatpush1.msra.mxu0 0.0
    %3433 = vmatprep.subr.mxu0 0.0
    %3434 = vmatpush1.msra.mxu0 0.0
    %3435 = vmatprep.subr.mxu0 0.0
    %3436 = vmatpush1.msra.mxu0 0.0
    %3437 = vmatprep.subr.mxu0 0.0
    %3438 = vmatpush1.msra.mxu0 %v2346
    %3439 = vmatprep.subr.mxu0 0.0
    %3440 = vmatpush1.msra.mxu0 %v2345
    %3441 = vmatprep.subr.mxu0 0.0
    %3442 = vmatpush1.msra.mxu0 %v2344
    %3443 = vmatprep.subr.mxu0 0.0
    %3444 = vmatpush1.msra.mxu0 %v2343
    %3445 = vmatprep.subr.mxu0 0.0
    %3446 = vmatpush2.msra.mxu0 0.0
    %3447 = vmatprep.subr.mxu0 0.0
    %3448 = vmatpush2.msra.mxu0 0.0
    %3449 = vmatprep.subr.mxu0 0.0
    %3450 = vmatpush2.msra.mxu0 0.0
    %3451 = vmatprep.subr.mxu0 0.0
    %3452 = vmatpush2.msra.mxu0 0.0
    %3453 = vmatprep.subr.mxu0 0.0
    %3454 = vmatpush2.msra.mxu0 0.0
    %3455 = vmatprep.subr.mxu0 0.0
    %3456 = vmatpush2.msra.mxu0 0.0
    %3457 = vmatprep.subr.mxu0 0.0
    %3458 = vmatpush2.msra.mxu0 0.0
    %3459 = vmatprep.subr.mxu0 0.0
    %3460 = vmatpush2.msra.mxu0 0.0
    %3461 = vmatprep.subr.mxu0 0.0
    %3462 = vmatpush2.msra.mxu0 0.0
    %3463 = vmatprep.subr.mxu0 0.0
    %3464 = vmatpush2.msra.mxu0 0.0
    %3465 = vmatprep.subr.mxu0 0.0
    %3466 = vmatpush2.msra.mxu0 0.0
    %3467 = vmatprep.subr.mxu0 0.0
    %3468 = vmatpush2.msra.mxu0 0.0
    %3469 = vmatprep.subr.mxu0 0.0
    %3470 = vmatpush2.msra.mxu0 0.0
    %3471 = vmatprep.subr.mxu0 0.0
    %3472 = vmatpush2.msra.mxu0 0.0
    %3473 = vmatprep.subr.mxu0 0.0
    %3474 = vmatpush2.msra.mxu0 0.0
    %3475 = vmatprep.subr.mxu0 0.0
    %3476 = vmatpush2.msra.mxu0 0.0
    %3477 = vmatprep.mubr.f32.mxu0 0.0
    %3478 = vmatmul.mubr.f32.gmra.mxu0 %v3411
    %v3479 = vpop.f32.mrf.mxu0
    %v3480 = vadd.f32 0.0, %v3479
    %v3481 = vpop.f32.mrf.mxu0
    %3482 = vdwg.mxu0
    %v3484 = vrot.slane %v3480, 6
    %v3486 = vadd.f32 %v2863, %v3484
    %v3487 = vxor.u32 %v3486, 2147483648
    %v3488 = vmul.f32 %v3487, 1.442695
    %v3489 = vpow.pop %v3488
    %v3490 = vadd.f32 %v3489, 1.0
    %v3491 = vrcp.pop %v3490
    %v3492 = vmul.f32 1.0, %v3491
    %v3493 = vtanh.pop %v3486
    %v3495 = vrot.slane %v3399, 6
    %v3497 = vmul.f32 %v3492, %v3495
    %3499 = vrot.lane.b32.xlu0 %v3493, 64
    %v3500 = vpop.permute.xlu0 %3499
    %v3502 = vmul.f32 %v3492, %v3500
    %3504 = vrot.lane.b32.xlu0 %v3502, 32
    %v3505 = vpop.permute.xlu0 %3504
    %v3507 = vadd.f32 %v3497, %v3505
    %v3508 = vtanh.pop %v3507
    %3510 = vrot.lane.b32.xlu0 %v3508, 64
    %v3511 = vpop.permute.xlu0 %3510
    %v3513 = vmul.f32 %v3492, %v3511
    %3515 = vrot.lane.b32.xlu0 %v3513, 32
    %v3516 = vpop.permute.xlu0 %3515
    %3518 = vst.msk [vmem:[#allocation2 + $0x8] sm:$0xc] %vm3077, %v3516
    %v3519 = vrot.slane %v3513, 2
    %3520 = vrot.lane.b32.xlu0 %v3519, 32
    %v3521 = vpop.permute.xlu0 %3520
    %v3522 = vsel %vm832, %v3521, 0
    %3524 = vmatprep.subr.mxu0 0.0
    %3525 = vmatpush1.msra.mxu0 0.0
    %3526 = vmatprep.subr.mxu0 0.0
    %3527 = vmatpush1.msra.mxu0 0.0
    %3528 = vmatprep.subr.mxu0 0.0
    %3529 = vmatpush1.msra.mxu0 0.0
    %3530 = vmatprep.subr.mxu0 0.0
    %3531 = vmatpush1.msra.mxu0 0.0
    %3532 = vmatprep.subr.mxu0 0.0
    %3533 = vmatpush1.msra.mxu0 0.0
    %3534 = vmatprep.subr.mxu0 0.0
    %3535 = vmatpush1.msra.mxu0 0.0
    %3536 = vmatprep.subr.mxu0 0.0
    %3537 = vmatpush1.msra.mxu0 0.0
    %3538 = vmatprep.subr.mxu0 0.0
    %3539 = vmatpush1.msra.mxu0 0.0
    %3540 = vmatprep.subr.mxu0 0.0
    %3541 = vmatpush1.msra.mxu0 0.0
    %3542 = vmatprep.subr.mxu0 0.0
    %3543 = vmatpush1.msra.mxu0 0.0
    %3544 = vmatprep.subr.mxu0 0.0
    %3545 = vmatpush1.msra.mxu0 0.0
    %3546 = vmatprep.subr.mxu0 0.0
    %3547 = vmatpush1.msra.mxu0 0.0
    %3548 = vmatprep.subr.mxu0 0.0
    %3549 = vmatpush1.msra.mxu0 %v2346
    %3550 = vmatprep.subr.mxu0 0.0
    %3551 = vmatpush1.msra.mxu0 %v2345
    %3552 = vmatprep.subr.mxu0 0.0
    %3553 = vmatpush1.msra.mxu0 %v2344
    %3554 = vmatprep.subr.mxu0 0.0
    %3555 = vmatpush1.msra.mxu0 %v2343
    %3556 = vmatprep.subr.mxu0 0.0
    %3557 = vmatpush2.msra.mxu0 0.0
    %3558 = vmatprep.subr.mxu0 0.0
    %3559 = vmatpush2.msra.mxu0 0.0
    %3560 = vmatprep.subr.mxu0 0.0
    %3561 = vmatpush2.msra.mxu0 0.0
    %3562 = vmatprep.subr.mxu0 0.0
    %3563 = vmatpush2.msra.mxu0 0.0
    %3564 = vmatprep.subr.mxu0 0.0
    %3565 = vmatpush2.msra.mxu0 0.0
    %3566 = vmatprep.subr.mxu0 0.0
    %3567 = vmatpush2.msra.mxu0 0.0
    %3568 = vmatprep.subr.mxu0 0.0
    %3569 = vmatpush2.msra.mxu0 0.0
    %3570 = vmatprep.subr.mxu0 0.0
    %3571 = vmatpush2.msra.mxu0 0.0
    %3572 = vmatprep.subr.mxu0 0.0
    %3573 = vmatpush2.msra.mxu0 0.0
    %3574 = vmatprep.subr.mxu0 0.0
    %3575 = vmatpush2.msra.mxu0 0.0
    %3576 = vmatprep.subr.mxu0 0.0
    %3577 = vmatpush2.msra.mxu0 0.0
    %3578 = vmatprep.subr.mxu0 0.0
    %3579 = vmatpush2.msra.mxu0 0.0
    %3580 = vmatprep.subr.mxu0 0.0
    %3581 = vmatpush2.msra.mxu0 0.0
    %3582 = vmatprep.subr.mxu0 0.0
    %3583 = vmatpush2.msra.mxu0 0.0
    %3584 = vmatprep.subr.mxu0 0.0
    %3585 = vmatpush2.msra.mxu0 0.0
    %3586 = vmatprep.subr.mxu0 0.0
    %3587 = vmatpush2.msra.mxu0 0.0
    %3588 = vmatprep.mubr.f32.mxu0 0.0
    %3589 = vmatmul.mubr.f32.gmra.mxu0 %v3522
    %v3590 = vpop.f32.mrf.mxu0
    %v3591 = vadd.f32 0.0, %v3590
    %v3592 = vpop.f32.mrf.mxu0
    %3593 = vdwg.mxu0
    %v3595 = vrot.slane %v3591, 4
    %v3597 = vadd.f32 %v2863, %v3595
    %v3598 = vxor.u32 %v3597, 2147483648
    %v3599 = vmul.f32 %v3598, 1.442695
    %v3600 = vpow.pop %v3599
    %v3601 = vadd.f32 %v3600, 1.0
    %v3602 = vrcp.pop %v3601
    %v3603 = vmul.f32 1.0, %v3602
    %v3604 = vtanh.pop %v3597
    %v3606 = vrot.slane %v3507, 6
    %v3608 = vmul.f32 %v3603, %v3606
    %3610 = vrot.lane.b32.xlu0 %v3604, 64
    %v3611 = vpop.permute.xlu0 %3610
    %v3613 = vmul.f32 %v3603, %v3611
    %3615 = vrot.lane.b32.xlu0 %v3613, 32
    %v3616 = vpop.permute.xlu0 %3615
    %v3618 = vadd.f32 %v3608, %v3616
    %v3619 = vtanh.pop %v3618
    %3621 = vrot.lane.b32.xlu0 %v3619, 64
    %v3622 = vpop.permute.xlu0 %3621
    %v3624 = vmul.f32 %v3603, %v3622
    %3626 = vrot.lane.b32.xlu0 %v3624, 32
    %v3627 = vpop.permute.xlu0 %3626
    %3629 = vst.msk [vmem:[#allocation2 + $0x8] sm:$0x30] %vm3189, %v3627
    %v3630 = vrot.slane %v3624, 4
    %3631 = vrot.lane.b32.xlu0 %v3630, 32
    %v3632 = vpop.permute.xlu0 %3631
    %v3633 = vsel %vm832, %v3632, 0
    %3635 = vmatprep.subr.mxu0 0.0
    %3636 = vmatpush1.msra.mxu0 0.0
    %3637 = vmatprep.subr.mxu0 0.0
    %3638 = vmatpush1.msra.mxu0 0.0
    %3639 = vmatprep.subr.mxu0 0.0
    %3640 = vmatpush1.msra.mxu0 0.0
    %3641 = vmatprep.subr.mxu0 0.0
    %3642 = vmatpush1.msra.mxu0 0.0
    %3643 = vmatprep.subr.mxu0 0.0
    %3644 = vmatpush1.msra.mxu0 0.0
    %3645 = vmatprep.subr.mxu0 0.0
    %3646 = vmatpush1.msra.mxu0 0.0
    %3647 = vmatprep.subr.mxu0 0.0
    %3648 = vmatpush1.msra.mxu0 0.0
    %3649 = vmatprep.subr.mxu0 0.0
    %3650 = vmatpush1.msra.mxu0 0.0
    %3651 = vmatprep.subr.mxu0 0.0
    %3652 = vmatpush1.msra.mxu0 0.0
    %3653 = vmatprep.subr.mxu0 0.0
    %3654 = vmatpush1.msra.mxu0 0.0
    %3655 = vmatprep.subr.mxu0 0.0
    %3656 = vmatpush1.msra.mxu0 0.0
    %3657 = vmatprep.subr.mxu0 0.0
    %3658 = vmatpush1.msra.mxu0 0.0
    %3659 = vmatprep.subr.mxu0 0.0
    %3660 = vmatpush1.msra.mxu0 %v2346
    %3661 = vmatprep.subr.mxu0 0.0
    %3662 = vmatpush1.msra.mxu0 %v2345
    %3663 = vmatprep.subr.mxu0 0.0
    %3664 = vmatpush1.msra.mxu0 %v2344
    %3665 = vmatprep.subr.mxu0 0.0
    %3666 = vmatpush1.msra.mxu0 %v2343
    %3667 = vmatprep.subr.mxu0 0.0
    %3668 = vmatpush2.msra.mxu0 0.0
    %3669 = vmatprep.subr.mxu0 0.0
    %3670 = vmatpush2.msra.mxu0 0.0
    %3671 = vmatprep.subr.mxu0 0.0
    %3672 = vmatpush2.msra.mxu0 0.0
    %3673 = vmatprep.subr.mxu0 0.0
    %3674 = vmatpush2.msra.mxu0 0.0
    %3675 = vmatprep.subr.mxu0 0.0
    %3676 = vmatpush2.msra.mxu0 0.0
    %3677 = vmatprep.subr.mxu0 0.0
    %3678 = vmatpush2.msra.mxu0 0.0
    %3679 = vmatprep.subr.mxu0 0.0
    %3680 = vmatpush2.msra.mxu0 0.0
    %3681 = vmatprep.subr.mxu0 0.0
    %3682 = vmatpush2.msra.mxu0 0.0
    %3683 = vmatprep.subr.mxu0 0.0
    %3684 = vmatpush2.msra.mxu0 0.0
    %3685 = vmatprep.subr.mxu0 0.0
    %3686 = vmatpush2.msra.mxu0 0.0
    %3687 = vmatprep.subr.mxu0 0.0
    %3688 = vmatpush2.msra.mxu0 0.0
    %3689 = vmatprep.subr.mxu0 0.0
    %3690 = vmatpush2.msra.mxu0 0.0
    %3691 = vmatprep.subr.mxu0 0.0
    %3692 = vmatpush2.msra.mxu0 0.0
    %3693 = vmatprep.subr.mxu0 0.0
    %3694 = vmatpush2.msra.mxu0 0.0
    %3695 = vmatprep.subr.mxu0 0.0
    %3696 = vmatpush2.msra.mxu0 0.0
    %3697 = vmatprep.subr.mxu0 0.0
    %3698 = vmatpush2.msra.mxu0 0.0
    %3699 = vmatprep.mubr.f32.mxu0 0.0
    %3700 = vmatmul.mubr.f32.gmra.mxu0 %v3633
    %v3701 = vpop.f32.mrf.mxu0
    %v3702 = vadd.f32 0.0, %v3701
    %v3703 = vpop.f32.mrf.mxu0
    %3704 = vdwg.mxu0
    %v3706 = vrot.slane %v3702, 2
    %v3708 = vadd.f32 %v2863, %v3706
    %v3709 = vxor.u32 %v3708, 2147483648
    %v3710 = vmul.f32 %v3709, 1.442695
    %v3711 = vpow.pop %v3710
    %v3712 = vadd.f32 %v3711, 1.0
    %v3713 = vrcp.pop %v3712
    %v3714 = vmul.f32 1.0, %v3713
    %v3715 = vtanh.pop %v3708
    %v3717 = vrot.slane %v3618, 6
    %v3719 = vmul.f32 %v3714, %v3717
    %3721 = vrot.lane.b32.xlu0 %v3715, 64
    %v3722 = vpop.permute.xlu0 %3721
    %v3724 = vmul.f32 %v3714, %v3722
    %3726 = vrot.lane.b32.xlu0 %v3724, 32
    %v3727 = vpop.permute.xlu0 %3726
    %v3729 = vadd.f32 %v3719, %v3727
    %v3730 = vtanh.pop %v3729
    %3732 = vrot.lane.b32.xlu0 %v3730, 64
    %v3733 = vpop.permute.xlu0 %3732
    %v3735 = vmul.f32 %v3714, %v3733
    %3737 = vrot.lane.b32.xlu0 %v3735, 32
    %v3738 = vpop.permute.xlu0 %3737
    %3740 = vst.msk [vmem:[#allocation2 + $0x8] sm:$0xc0] %vm3301, %v3738
    %v3741 = vld [vmem:[%s5] sm:$0xff]
    %v3742 = vld [vmem:[%s5 + $0x8] sm:$0xff]
    %v3743 = vld [vmem:[%s5 + $0x10] sm:$0xff]
    %v3744 = vld [vmem:[%s5 + $0x18] sm:$0xff]
    %v3745 = vld [vmem:[%s5 + $0x20] sm:$0xff]
    %v3746 = vld [vmem:[%s5 + $0x28] sm:$0xff]
    %v3747 = vld [vmem:[%s5 + $0x30] sm:$0xff]
    %v3748 = vld [vmem:[%s5 + $0x38] sm:$0xff]
    %v3749 = vld [vmem:[%s5 + $0x40] sm:$0x1]
    %v3750 = vld [vmem:[#allocation2] sm:$0xff]
    %v3751 = vld [vmem:[#allocation2 + $0x8] sm:$0xff]
    %v3752 = vlaneseq
    %v3753 = vshrl.u32 %v3752, 7
    %v3754 = vsub.s32 0, %v3753
    %v3755 = vrot.slane %v3749, %v3754
    %v3757 = vsel %vm832, %v3750, 0
    %v3760 = vsel %vm832, %v3751, 0
    %3762 = vmatprep.subr.mxu0 0.0
    %3763 = vmatpush1.msra.mxu0 0.0
    %3764 = vmatprep.subr.mxu0 0.0
    %3765 = vmatpush1.msra.mxu0 0.0
    %3766 = vmatprep.subr.mxu0 0.0
    %3767 = vmatpush1.msra.mxu0 0.0
    %3768 = vmatprep.subr.mxu0 0.0
    %3769 = vmatpush1.msra.mxu0 0.0
    %3770 = vmatprep.subr.mxu0 0.0
    %3771 = vmatpush1.msra.mxu0 0.0
    %3772 = vmatprep.subr.mxu0 0.0
    %3773 = vmatpush1.msra.mxu0 0.0
    %3774 = vmatprep.subr.mxu0 0.0
    %3775 = vmatpush1.msra.mxu0 0.0
    %3776 = vmatprep.subr.mxu0 0.0
    %3777 = vmatpush1.msra.mxu0 0.0
    %3778 = vmatprep.subr.mxu0 0.0
    %3779 = vmatpush1.msra.mxu0 0.0
    %3780 = vmatprep.subr.mxu0 0.0
    %3781 = vmatpush1.msra.mxu0 0.0
    %3782 = vmatprep.subr.mxu0 0.0
    %3783 = vmatpush1.msra.mxu0 0.0
    %3784 = vmatprep.subr.mxu0 0.0
    %3785 = vmatpush1.msra.mxu0 0.0
    %3786 = vmatprep.subr.mxu0 0.0
    %v3787 = vand.u32 %v3744, 4294901760
    %3788 = vmatpush1.msra.mxu0 %v3787
    %3789 = vmatprep.subr.mxu0 0.0
    %v3790 = vand.u32 %v3743, 4294901760
    %3791 = vmatpush1.msra.mxu0 %v3790
    %3792 = vmatprep.subr.mxu0 0.0
    %v3793 = vand.u32 %v3742, 4294901760
    %3794 = vmatpush1.msra.mxu0 %v3793
    %3795 = vmatprep.subr.mxu0 0.0
    %v3796 = vand.u32 %v3741, 4294901760
    %3797 = vmatpush1.msra.mxu0 %v3796
    %3798 = vmatprep.subr.mxu0 0.0
    %3799 = vmatpush2.msra.mxu0 0.0
    %3800 = vmatprep.subr.mxu0 0.0
    %3801 = vmatpush2.msra.mxu0 0.0
    %3802 = vmatprep.subr.mxu0 0.0
    %3803 = vmatpush2.msra.mxu0 0.0
    %3804 = vmatprep.subr.mxu0 0.0
    %3805 = vmatpush2.msra.mxu0 0.0
    %3806 = vmatprep.subr.mxu0 0.0
    %3807 = vmatpush2.msra.mxu0 0.0
    %3808 = vmatprep.subr.mxu0 0.0
    %3809 = vmatpush2.msra.mxu0 0.0
    %3810 = vmatprep.subr.mxu0 0.0
    %3811 = vmatpush2.msra.mxu0 0.0
    %3812 = vmatprep.subr.mxu0 0.0
    %3813 = vmatpush2.msra.mxu0 0.0
    %3814 = vmatprep.subr.mxu0 0.0
    %3815 = vmatpush2.msra.mxu0 0.0
    %3816 = vmatprep.subr.mxu0 0.0
    %3817 = vmatpush2.msra.mxu0 0.0
    %3818 = vmatprep.subr.mxu0 0.0
    %3819 = vmatpush2.msra.mxu0 0.0
    %3820 = vmatprep.subr.mxu0 0.0
    %3821 = vmatpush2.msra.mxu0 0.0
    %3822 = vmatprep.subr.mxu0 0.0
    %3823 = vmatpush2.msra.mxu0 0.0
    %3824 = vmatprep.subr.mxu0 0.0
    %3825 = vmatpush2.msra.mxu0 0.0
    %3826 = vmatprep.subr.mxu0 0.0
    %3827 = vmatpush2.msra.mxu0 0.0
    %3828 = vmatprep.subr.mxu0 0.0
    %3829 = vmatpush2.msra.mxu0 0.0
    %3830 = vmatprep.mubr.f32.mxu0 0.0
    %v3831 = vand.u32 %v3757, 4294901760
    %v3832 = vsub.f32 %v3757, %v3831
    %v3833 = vand.u32 %v3832, 4294901760
    %v3834 = vsub.f32 %v3832, %v3833
    %v3835 = vand.u32 %v3834, 4294901760
    %3836 = vmatmul.mubr.f32.gmra.mxu0 %v3835
    %v3837 = vpop.f32.mrf.mxu0
    %v3838 = vadd.f32 %v3755, %v3837
    %v3839 = vpop.f32.mrf.mxu0
    %3840 = vmatprep.mubr.f32.mxu0 0.0
    %v3841 = vand.u32 %v3760, 4294901760
    %v3842 = vsub.f32 %v3760, %v3841
    %v3843 = vand.u32 %v3842, 4294901760
    %v3844 = vsub.f32 %v3842, %v3843
    %v3845 = vand.u32 %v3844, 4294901760
    %3846 = vmatmul.mubr.f32.gmra.mxu0 %v3845
    %v3847 = vpop.f32.mrf.mxu0
    %v3848 = vadd.f32 %v3755, %v3847
    %v3849 = vpop.f32.mrf.mxu0
    %3850 = vdwg.mxu0
    %3851 = vmatprep.subr.mxu0 0.0
    %3852 = vmatpush1.msra.mxu0 0.0
    %3853 = vmatprep.subr.mxu0 0.0
    %3854 = vmatpush1.msra.mxu0 0.0
    %3855 = vmatprep.subr.mxu0 0.0
    %3856 = vmatpush1.msra.mxu0 0.0
    %3857 = vmatprep.subr.mxu0 0.0
    %3858 = vmatpush1.msra.mxu0 0.0
    %3859 = vmatprep.subr.mxu0 0.0
    %3860 = vmatpush1.msra.mxu0 0.0
    %3861 = vmatprep.subr.mxu0 0.0
    %3862 = vmatpush1.msra.mxu0 0.0
    %3863 = vmatprep.subr.mxu0 0.0
    %3864 = vmatpush1.msra.mxu0 0.0
    %3865 = vmatprep.subr.mxu0 0.0
    %3866 = vmatpush1.msra.mxu0 0.0
    %3867 = vmatprep.subr.mxu0 0.0
    %3868 = vmatpush1.msra.mxu0 0.0
    %3869 = vmatprep.subr.mxu0 0.0
    %3870 = vmatpush1.msra.mxu0 0.0
    %3871 = vmatprep.subr.mxu0 0.0
    %3872 = vmatpush1.msra.mxu0 0.0
    %3873 = vmatprep.subr.mxu0 0.0
    %3874 = vmatpush1.msra.mxu0 0.0
    %3875 = vmatprep.subr.mxu0 0.0
    %v3876 = vand.u32 %v3744, 4294901760
    %v3877 = vsub.f32 %v3744, %v3876
    %v3878 = vand.u32 %v3877, 4294901760
    %v3879 = vsub.f32 %v3877, %v3878
    %v3880 = vand.u32 %v3879, 4294901760
    %3881 = vmatpush1.msra.mxu0 %v3880
    %3882 = vmatprep.subr.mxu0 0.0
    %v3883 = vand.u32 %v3743, 4294901760
    %v3884 = vsub.f32 %v3743, %v3883
    %v3885 = vand.u32 %v3884, 4294901760
    %v3886 = vsub.f32 %v3884, %v3885
    %v3887 = vand.u32 %v3886, 4294901760
    %3888 = vmatpush1.msra.mxu0 %v3887
    %3889 = vmatprep.subr.mxu0 0.0
    %v3890 = vand.u32 %v3742, 4294901760
    %v3891 = vsub.f32 %v3742, %v3890
    %v3892 = vand.u32 %v3891, 4294901760
    %v3893 = vsub.f32 %v3891, %v3892
    %v3894 = vand.u32 %v3893, 4294901760
    %3895 = vmatpush1.msra.mxu0 %v3894
    %3896 = vmatprep.subr.mxu0 0.0
    %v3897 = vand.u32 %v3741, 4294901760
    %v3898 = vsub.f32 %v3741, %v3897
    %v3899 = vand.u32 %v3898, 4294901760
    %v3900 = vsub.f32 %v3898, %v3899
    %v3901 = vand.u32 %v3900, 4294901760
    %3902 = vmatpush1.msra.mxu0 %v3901
    %3903 = vmatprep.subr.mxu0 0.0
    %3904 = vmatpush2.msra.mxu0 0.0
    %3905 = vmatprep.subr.mxu0 0.0
    %3906 = vmatpush2.msra.mxu0 0.0
    %3907 = vmatprep.subr.mxu0 0.0
    %3908 = vmatpush2.msra.mxu0 0.0
    %3909 = vmatprep.subr.mxu0 0.0
    %3910 = vmatpush2.msra.mxu0 0.0
    %3911 = vmatprep.subr.mxu0 0.0
    %3912 = vmatpush2.msra.mxu0 0.0
    %3913 = vmatprep.subr.mxu0 0.0
    %3914 = vmatpush2.msra.mxu0 0.0
    %3915 = vmatprep.subr.mxu0 0.0
    %3916 = vmatpush2.msra.mxu0 0.0
    %3917 = vmatprep.subr.mxu0 0.0
    %3918 = vmatpush2.msra.mxu0 0.0
    %3919 = vmatprep.subr.mxu0 0.0
    %3920 = vmatpush2.msra.mxu0 0.0
    %3921 = vmatprep.subr.mxu0 0.0
    %3922 = vmatpush2.msra.mxu0 0.0
    %3923 = vmatprep.subr.mxu0 0.0
    %3924 = vmatpush2.msra.mxu0 0.0
    %3925 = vmatprep.subr.mxu0 0.0
    %3926 = vmatpush2.msra.mxu0 0.0
    %3927 = vmatprep.subr.mxu0 0.0
    %3928 = vmatpush2.msra.mxu0 0.0
    %3929 = vmatprep.subr.mxu0 0.0
    %3930 = vmatpush2.msra.mxu0 0.0
    %3931 = vmatprep.subr.mxu0 0.0
    %3932 = vmatpush2.msra.mxu0 0.0
    %3933 = vmatprep.subr.mxu0 0.0
    %3934 = vmatpush2.msra.mxu0 0.0
    %3935 = vmatprep.mubr.f32.mxu0 0.0
    %v3936 = vand.u32 %v3757, 4294901760
    %3937 = vmatmul.mubr.f32.gmra.mxu0 %v3936
    %v3938 = vpop.f32.mrf.mxu0
    %v3939 = vadd.f32 %v3838, %v3938
    %v3940 = vpop.f32.mrf.mxu0
    %3941 = vmatprep.mubr.f32.mxu0 0.0
    %v3942 = vand.u32 %v3760, 4294901760
    %3943 = vmatmul.mubr.f32.gmra.mxu0 %v3942
    %v3944 = vpop.f32.mrf.mxu0
    %v3945 = vadd.f32 %v3848, %v3944
    %v3946 = vpop.f32.mrf.mxu0
    %3947 = vdwg.mxu0
    %3948 = vmatprep.subr.mxu0 0.0
    %3949 = vmatpush1.msra.mxu0 0.0
    %3950 = vmatprep.subr.mxu0 0.0
    %3951 = vmatpush1.msra.mxu0 0.0
    %3952 = vmatprep.subr.mxu0 0.0
    %3953 = vmatpush1.msra.mxu0 0.0
    %3954 = vmatprep.subr.mxu0 0.0
    %3955 = vmatpush1.msra.mxu0 0.0
    %3956 = vmatprep.subr.mxu0 0.0
    %3957 = vmatpush1.msra.mxu0 0.0
    %3958 = vmatprep.subr.mxu0 0.0
    %3959 = vmatpush1.msra.mxu0 0.0
    %3960 = vmatprep.subr.mxu0 0.0
    %3961 = vmatpush1.msra.mxu0 0.0
    %3962 = vmatprep.subr.mxu0 0.0
    %3963 = vmatpush1.msra.mxu0 0.0
    %3964 = vmatprep.subr.mxu0 0.0
    %3965 = vmatpush1.msra.mxu0 0.0
    %3966 = vmatprep.subr.mxu0 0.0
    %3967 = vmatpush1.msra.mxu0 0.0
    %3968 = vmatprep.subr.mxu0 0.0
    %3969 = vmatpush1.msra.mxu0 0.0
    %3970 = vmatprep.subr.mxu0 0.0
    %3971 = vmatpush1.msra.mxu0 0.0
    %3972 = vmatprep.subr.mxu0 0.0
    %v3973 = vand.u32 %v3744, 4294901760
    %v3974 = vsub.f32 %v3744, %v3973
    %3975 = vmatpush1.msra.mxu0 %v3974
    %3976 = vmatprep.subr.mxu0 0.0
    %v3977 = vand.u32 %v3743, 4294901760
    %v3978 = vsub.f32 %v3743, %v3977
    %3979 = vmatpush1.msra.mxu0 %v3978
    %3980 = vmatprep.subr.mxu0 0.0
    %v3981 = vand.u32 %v3742, 4294901760
    %v3982 = vsub.f32 %v3742, %v3981
    %3983 = vmatpush1.msra.mxu0 %v3982
    %3984 = vmatprep.subr.mxu0 0.0
    %v3985 = vand.u32 %v3741, 4294901760
    %v3986 = vsub.f32 %v3741, %v3985
    %3987 = vmatpush1.msra.mxu0 %v3986
    %3988 = vmatprep.subr.mxu0 0.0
    %3989 = vmatpush2.msra.mxu0 0.0
    %3990 = vmatprep.subr.mxu0 0.0
    %3991 = vmatpush2.msra.mxu0 0.0
    %3992 = vmatprep.subr.mxu0 0.0
    %3993 = vmatpush2.msra.mxu0 0.0
    %3994 = vmatprep.subr.mxu0 0.0
    %3995 = vmatpush2.msra.mxu0 0.0
    %3996 = vmatprep.subr.mxu0 0.0
    %3997 = vmatpush2.msra.mxu0 0.0
    %3998 = vmatprep.subr.mxu0 0.0
    %3999 = vmatpush2.msra.mxu0 0.0
    %4000 = vmatprep.subr.mxu0 0.0
    %4001 = vmatpush2.msra.mxu0 0.0
    %4002 = vmatprep.subr.mxu0 0.0
    %4003 = vmatpush2.msra.mxu0 0.0
    %4004 = vmatprep.subr.mxu0 0.0
    %4005 = vmatpush2.msra.mxu0 0.0
    %4006 = vmatprep.subr.mxu0 0.0
    %4007 = vmatpush2.msra.mxu0 0.0
    %4008 = vmatprep.subr.mxu0 0.0
    %4009 = vmatpush2.msra.mxu0 0.0
    %4010 = vmatprep.subr.mxu0 0.0
    %4011 = vmatpush2.msra.mxu0 0.0
    %4012 = vmatprep.subr.mxu0 0.0
    %4013 = vmatpush2.msra.mxu0 0.0
    %4014 = vmatprep.subr.mxu0 0.0
    %4015 = vmatpush2.msra.mxu0 0.0
    %4016 = vmatprep.subr.mxu0 0.0
    %4017 = vmatpush2.msra.mxu0 0.0
    %4018 = vmatprep.subr.mxu0 0.0
    %4019 = vmatpush2.msra.mxu0 0.0
    %4020 = vmatprep.mubr.f32.mxu0 0.0
    %v4021 = vand.u32 %v3757, 4294901760
    %v4022 = vsub.f32 %v3757, %v4021
    %4023 = vmatmul.mubr.f32.gmra.mxu0 %v4022
    %v4024 = vpop.f32.mrf.mxu0
    %v4025 = vadd.f32 %v3939, %v4024
    %v4026 = vpop.f32.mrf.mxu0
    %4027 = vmatprep.mubr.f32.mxu0 0.0
    %v4028 = vand.u32 %v3760, 4294901760
    %v4029 = vsub.f32 %v3760, %v4028
    %4030 = vmatmul.mubr.f32.gmra.mxu0 %v4029
    %v4031 = vpop.f32.mrf.mxu0
    %v4032 = vadd.f32 %v3945, %v4031
    %v4033 = vpop.f32.mrf.mxu0
    %4034 = vdwg.mxu0
    %4035 = vmatprep.subr.mxu0 0.0
    %4036 = vmatpush1.msra.mxu0 0.0
    %4037 = vmatprep.subr.mxu0 0.0
    %4038 = vmatpush1.msra.mxu0 0.0
    %4039 = vmatprep.subr.mxu0 0.0
    %4040 = vmatpush1.msra.mxu0 0.0
    %4041 = vmatprep.subr.mxu0 0.0
    %4042 = vmatpush1.msra.mxu0 0.0
    %4043 = vmatprep.subr.mxu0 0.0
    %4044 = vmatpush1.msra.mxu0 0.0
    %4045 = vmatprep.subr.mxu0 0.0
    %4046 = vmatpush1.msra.mxu0 0.0
    %4047 = vmatprep.subr.mxu0 0.0
    %4048 = vmatpush1.msra.mxu0 0.0
    %4049 = vmatprep.subr.mxu0 0.0
    %4050 = vmatpush1.msra.mxu0 0.0
    %4051 = vmatprep.subr.mxu0 0.0
    %4052 = vmatpush1.msra.mxu0 0.0
    %4053 = vmatprep.subr.mxu0 0.0
    %4054 = vmatpush1.msra.mxu0 0.0
    %4055 = vmatprep.subr.mxu0 0.0
    %4056 = vmatpush1.msra.mxu0 0.0
    %4057 = vmatprep.subr.mxu0 0.0
    %4058 = vmatpush1.msra.mxu0 0.0
    %4059 = vmatprep.subr.mxu0 0.0
    %v4060 = vand.u32 %v3744, 4294901760
    %4061 = vmatpush1.msra.mxu0 %v4060
    %4062 = vmatprep.subr.mxu0 0.0
    %v4063 = vand.u32 %v3743, 4294901760
    %4064 = vmatpush1.msra.mxu0 %v4063
    %4065 = vmatprep.subr.mxu0 0.0
    %v4066 = vand.u32 %v3742, 4294901760
    %4067 = vmatpush1.msra.mxu0 %v4066
    %4068 = vmatprep.subr.mxu0 0.0
    %v4069 = vand.u32 %v3741, 4294901760
    %4070 = vmatpush1.msra.mxu0 %v4069
    %4071 = vmatprep.subr.mxu0 0.0
    %4072 = vmatpush2.msra.mxu0 0.0
    %4073 = vmatprep.subr.mxu0 0.0
    %4074 = vmatpush2.msra.mxu0 0.0
    %4075 = vmatprep.subr.mxu0 0.0
    %4076 = vmatpush2.msra.mxu0 0.0
    %4077 = vmatprep.subr.mxu0 0.0
    %4078 = vmatpush2.msra.mxu0 0.0
    %4079 = vmatprep.subr.mxu0 0.0
    %4080 = vmatpush2.msra.mxu0 0.0
    %4081 = vmatprep.subr.mxu0 0.0
    %4082 = vmatpush2.msra.mxu0 0.0
    %4083 = vmatprep.subr.mxu0 0.0
    %4084 = vmatpush2.msra.mxu0 0.0
    %4085 = vmatprep.subr.mxu0 0.0
    %4086 = vmatpush2.msra.mxu0 0.0
    %4087 = vmatprep.subr.mxu0 0.0
    %4088 = vmatpush2.msra.mxu0 0.0
    %4089 = vmatprep.subr.mxu0 0.0
    %4090 = vmatpush2.msra.mxu0 0.0
    %4091 = vmatprep.subr.mxu0 0.0
    %4092 = vmatpush2.msra.mxu0 0.0
    %4093 = vmatprep.subr.mxu0 0.0
    %4094 = vmatpush2.msra.mxu0 0.0
    %4095 = vmatprep.subr.mxu0 0.0
    %4096 = vmatpush2.msra.mxu0 0.0
    %4097 = vmatprep.subr.mxu0 0.0
    %4098 = vmatpush2.msra.mxu0 0.0
    %4099 = vmatprep.subr.mxu0 0.0
    %4100 = vmatpush2.msra.mxu0 0.0
    %4101 = vmatprep.subr.mxu0 0.0
    %4102 = vmatpush2.msra.mxu0 0.0
    %4103 = vmatprep.mubr.f32.mxu0 0.0
    %v4104 = vand.u32 %v3757, 4294901760
    %v4105 = vsub.f32 %v3757, %v4104
    %v4106 = vand.u32 %v4105, 4294901760
    %4107 = vmatmul.mubr.f32.gmra.mxu0 %v4106
    %v4108 = vpop.f32.mrf.mxu0
    %v4109 = vadd.f32 %v4025, %v4108
    %v4110 = vpop.f32.mrf.mxu0
    %4111 = vmatprep.mubr.f32.mxu0 0.0
    %v4112 = vand.u32 %v3760, 4294901760
    %v4113 = vsub.f32 %v3760, %v4112
    %v4114 = vand.u32 %v4113, 4294901760
    %4115 = vmatmul.mubr.f32.gmra.mxu0 %v4114
    %v4116 = vpop.f32.mrf.mxu0
    %v4117 = vadd.f32 %v4032, %v4116
    %v4118 = vpop.f32.mrf.mxu0
    %4119 = vdwg.mxu0
    %4120 = vmatprep.subr.mxu0 0.0
    %4121 = vmatpush1.msra.mxu0 0.0
    %4122 = vmatprep.subr.mxu0 0.0
    %4123 = vmatpush1.msra.mxu0 0.0
    %4124 = vmatprep.subr.mxu0 0.0
    %4125 = vmatpush1.msra.mxu0 0.0
    %4126 = vmatprep.subr.mxu0 0.0
    %4127 = vmatpush1.msra.mxu0 0.0
    %4128 = vmatprep.subr.mxu0 0.0
    %4129 = vmatpush1.msra.mxu0 0.0
    %4130 = vmatprep.subr.mxu0 0.0
    %4131 = vmatpush1.msra.mxu0 0.0
    %4132 = vmatprep.subr.mxu0 0.0
    %4133 = vmatpush1.msra.mxu0 0.0
    %4134 = vmatprep.subr.mxu0 0.0
    %4135 = vmatpush1.msra.mxu0 0.0
    %4136 = vmatprep.subr.mxu0 0.0
    %4137 = vmatpush1.msra.mxu0 0.0
    %4138 = vmatprep.subr.mxu0 0.0
    %4139 = vmatpush1.msra.mxu0 0.0
    %4140 = vmatprep.subr.mxu0 0.0
    %4141 = vmatpush1.msra.mxu0 0.0
    %4142 = vmatprep.subr.mxu0 0.0
    %4143 = vmatpush1.msra.mxu0 0.0
    %4144 = vmatprep.subr.mxu0 0.0
    %v4145 = vand.u32 %v3744, 4294901760
    %v4146 = vsub.f32 %v3744, %v4145
    %v4147 = vand.u32 %v4146, 4294901760
    %4148 = vmatpush1.msra.mxu0 %v4147
    %4149 = vmatprep.subr.mxu0 0.0
    %v4150 = vand.u32 %v3743, 4294901760
    %v4151 = vsub.f32 %v3743, %v4150
    %v4152 = vand.u32 %v4151, 4294901760
    %4153 = vmatpush1.msra.mxu0 %v4152
    %4154 = vmatprep.subr.mxu0 0.0
    %v4155 = vand.u32 %v3742, 4294901760
    %v4156 = vsub.f32 %v3742, %v4155
    %v4157 = vand.u32 %v4156, 4294901760
    %4158 = vmatpush1.msra.mxu0 %v4157
    %4159 = vmatprep.subr.mxu0 0.0
    %v4160 = vand.u32 %v3741, 4294901760
    %v4161 = vsub.f32 %v3741, %v4160
    %v4162 = vand.u32 %v4161, 4294901760
    %4163 = vmatpush1.msra.mxu0 %v4162
    %4164 = vmatprep.subr.mxu0 0.0
    %4165 = vmatpush2.msra.mxu0 0.0
    %4166 = vmatprep.subr.mxu0 0.0
    %4167 = vmatpush2.msra.mxu0 0.0
    %4168 = vmatprep.subr.mxu0 0.0
    %4169 = vmatpush2.msra.mxu0 0.0
    %4170 = vmatprep.subr.mxu0 0.0
    %4171 = vmatpush2.msra.mxu0 0.0
    %4172 = vmatprep.subr.mxu0 0.0
    %4173 = vmatpush2.msra.mxu0 0.0
    %4174 = vmatprep.subr.mxu0 0.0
    %4175 = vmatpush2.msra.mxu0 0.0
    %4176 = vmatprep.subr.mxu0 0.0
    %4177 = vmatpush2.msra.mxu0 0.0
    %4178 = vmatprep.subr.mxu0 0.0
    %4179 = vmatpush2.msra.mxu0 0.0
    %4180 = vmatprep.subr.mxu0 0.0
    %4181 = vmatpush2.msra.mxu0 0.0
    %4182 = vmatprep.subr.mxu0 0.0
    %4183 = vmatpush2.msra.mxu0 0.0
    %4184 = vmatprep.subr.mxu0 0.0
    %4185 = vmatpush2.msra.mxu0 0.0
    %4186 = vmatprep.subr.mxu0 0.0
    %4187 = vmatpush2.msra.mxu0 0.0
    %4188 = vmatprep.subr.mxu0 0.0
    %4189 = vmatpush2.msra.mxu0 0.0
    %4190 = vmatprep.subr.mxu0 0.0
    %4191 = vmatpush2.msra.mxu0 0.0
    %4192 = vmatprep.subr.mxu0 0.0
    %4193 = vmatpush2.msra.mxu0 0.0
    %4194 = vmatprep.subr.mxu0 0.0
    %4195 = vmatpush2.msra.mxu0 0.0
    %4196 = vmatprep.mubr.f32.mxu0 0.0
    %v4197 = vand.u32 %v3757, 4294901760
    %4198 = vmatmul.mubr.f32.gmra.mxu0 %v4197
    %v4199 = vpop.f32.mrf.mxu0
    %v4200 = vadd.f32 %v4109, %v4199
    %v4201 = vpop.f32.mrf.mxu0
    %4202 = vmatprep.mubr.f32.mxu0 0.0
    %v4203 = vand.u32 %v3760, 4294901760
    %4204 = vmatmul.mubr.f32.gmra.mxu0 %v4203
    %v4205 = vpop.f32.mrf.mxu0
    %v4206 = vadd.f32 %v4117, %v4205
    %v4207 = vpop.f32.mrf.mxu0
    %4208 = vdwg.mxu0
    %4209 = vmatprep.subr.mxu0 0.0
    %4210 = vmatpush1.msra.mxu0 0.0
    %4211 = vmatprep.subr.mxu0 0.0
    %4212 = vmatpush1.msra.mxu0 0.0
    %4213 = vmatprep.subr.mxu0 0.0
    %4214 = vmatpush1.msra.mxu0 0.0
    %4215 = vmatprep.subr.mxu0 0.0
    %4216 = vmatpush1.msra.mxu0 0.0
    %4217 = vmatprep.subr.mxu0 0.0
    %4218 = vmatpush1.msra.mxu0 0.0
    %4219 = vmatprep.subr.mxu0 0.0
    %4220 = vmatpush1.msra.mxu0 0.0
    %4221 = vmatprep.subr.mxu0 0.0
    %4222 = vmatpush1.msra.mxu0 0.0
    %4223 = vmatprep.subr.mxu0 0.0
    %4224 = vmatpush1.msra.mxu0 0.0
    %4225 = vmatprep.subr.mxu0 0.0
    %4226 = vmatpush1.msra.mxu0 0.0
    %4227 = vmatprep.subr.mxu0 0.0
    %4228 = vmatpush1.msra.mxu0 0.0
    %4229 = vmatprep.subr.mxu0 0.0
    %4230 = vmatpush1.msra.mxu0 0.0
    %4231 = vmatprep.subr.mxu0 0.0
    %4232 = vmatpush1.msra.mxu0 0.0
    %4233 = vmatprep.subr.mxu0 0.0
    %v4234 = vand.u32 %v3744, 4294901760
    %4235 = vmatpush1.msra.mxu0 %v4234
    %4236 = vmatprep.subr.mxu0 0.0
    %v4237 = vand.u32 %v3743, 4294901760
    %4238 = vmatpush1.msra.mxu0 %v4237
    %4239 = vmatprep.subr.mxu0 0.0
    %v4240 = vand.u32 %v3742, 4294901760
    %4241 = vmatpush1.msra.mxu0 %v4240
    %4242 = vmatprep.subr.mxu0 0.0
    %v4243 = vand.u32 %v3741, 4294901760
    %4244 = vmatpush1.msra.mxu0 %v4243
    %4245 = vmatprep.subr.mxu0 0.0
    %4246 = vmatpush2.msra.mxu0 0.0
    %4247 = vmatprep.subr.mxu0 0.0
    %4248 = vmatpush2.msra.mxu0 0.0
    %4249 = vmatprep.subr.mxu0 0.0
    %4250 = vmatpush2.msra.mxu0 0.0
    %4251 = vmatprep.subr.mxu0 0.0
    %4252 = vmatpush2.msra.mxu0 0.0
    %4253 = vmatprep.subr.mxu0 0.0
    %4254 = vmatpush2.msra.mxu0 0.0
    %4255 = vmatprep.subr.mxu0 0.0
    %4256 = vmatpush2.msra.mxu0 0.0
    %4257 = vmatprep.subr.mxu0 0.0
    %4258 = vmatpush2.msra.mxu0 0.0
    %4259 = vmatprep.subr.mxu0 0.0
    %4260 = vmatpush2.msra.mxu0 0.0
    %4261 = vmatprep.subr.mxu0 0.0
    %4262 = vmatpush2.msra.mxu0 0.0
    %4263 = vmatprep.subr.mxu0 0.0
    %4264 = vmatpush2.msra.mxu0 0.0
    %4265 = vmatprep.subr.mxu0 0.0
    %4266 = vmatpush2.msra.mxu0 0.0
    %4267 = vmatprep.subr.mxu0 0.0
    %4268 = vmatpush2.msra.mxu0 0.0
    %4269 = vmatprep.subr.mxu0 0.0
    %4270 = vmatpush2.msra.mxu0 0.0
    %4271 = vmatprep.subr.mxu0 0.0
    %4272 = vmatpush2.msra.mxu0 0.0
    %4273 = vmatprep.subr.mxu0 0.0
    %4274 = vmatpush2.msra.mxu0 0.0
    %4275 = vmatprep.subr.mxu0 0.0
    %4276 = vmatpush2.msra.mxu0 0.0
    %4277 = vmatprep.mubr.f32.mxu0 0.0
    %v4278 = vand.u32 %v3757, 4294901760
    %4279 = vmatmul.mubr.f32.gmra.mxu0 %v4278
    %v4280 = vpop.f32.mrf.mxu0
    %v4281 = vadd.f32 %v4200, %v4280
    %v4282 = vpop.f32.mrf.mxu0
    %4283 = vmatprep.mubr.f32.mxu0 0.0
    %v4284 = vand.u32 %v3760, 4294901760
    %4285 = vmatmul.mubr.f32.gmra.mxu0 %v4284
    %v4286 = vpop.f32.mrf.mxu0
    %v4287 = vadd.f32 %v4206, %v4286
    %v4288 = vpop.f32.mrf.mxu0
    %4289 = vdwg.mxu0
    %4290 = vmatprep.subr.mxu0 0.0
    %4291 = vmatpush1.msra.mxu0 0.0
    %4292 = vmatprep.subr.mxu0 0.0
    %4293 = vmatpush1.msra.mxu0 0.0
    %4294 = vmatprep.subr.mxu0 0.0
    %4295 = vmatpush1.msra.mxu0 0.0
    %4296 = vmatprep.subr.mxu0 0.0
    %4297 = vmatpush1.msra.mxu0 0.0
    %4298 = vmatprep.subr.mxu0 0.0
    %4299 = vmatpush1.msra.mxu0 0.0
    %4300 = vmatprep.subr.mxu0 0.0
    %4301 = vmatpush1.msra.mxu0 0.0
    %4302 = vmatprep.subr.mxu0 0.0
    %4303 = vmatpush1.msra.mxu0 0.0
    %4304 = vmatprep.subr.mxu0 0.0
    %4305 = vmatpush1.msra.mxu0 0.0
    %4306 = vmatprep.subr.mxu0 0.0
    %4307 = vmatpush1.msra.mxu0 0.0
    %4308 = vmatprep.subr.mxu0 0.0
    %4309 = vmatpush1.msra.mxu0 0.0
    %4310 = vmatprep.subr.mxu0 0.0
    %4311 = vmatpush1.msra.mxu0 0.0
    %4312 = vmatprep.subr.mxu0 0.0
    %4313 = vmatpush1.msra.mxu0 0.0
    %4314 = vmatprep.subr.mxu0 0.0
    %4315 = vmatpush1.msra.mxu0 %v3748
    %4316 = vmatprep.subr.mxu0 0.0
    %4317 = vmatpush1.msra.mxu0 %v3747
    %4318 = vmatprep.subr.mxu0 0.0
    %4319 = vmatpush1.msra.mxu0 %v3746
    %4320 = vmatprep.subr.mxu0 0.0
    %4321 = vmatpush1.msra.mxu0 %v3745
    %4322 = vmatprep.subr.mxu0 0.0
    %4323 = vmatpush2.msra.mxu0 0.0
    %4324 = vmatprep.subr.mxu0 0.0
    %4325 = vmatpush2.msra.mxu0 0.0
    %4326 = vmatprep.subr.mxu0 0.0
    %4327 = vmatpush2.msra.mxu0 0.0
    %4328 = vmatprep.subr.mxu0 0.0
    %4329 = vmatpush2.msra.mxu0 0.0
    %4330 = vmatprep.subr.mxu0 0.0
    %4331 = vmatpush2.msra.mxu0 0.0
    %4332 = vmatprep.subr.mxu0 0.0
    %4333 = vmatpush2.msra.mxu0 0.0
    %4334 = vmatprep.subr.mxu0 0.0
    %4335 = vmatpush2.msra.mxu0 0.0
    %4336 = vmatprep.subr.mxu0 0.0
    %4337 = vmatpush2.msra.mxu0 0.0
    %4338 = vmatprep.subr.mxu0 0.0
    %4339 = vmatpush2.msra.mxu0 0.0
    %4340 = vmatprep.subr.mxu0 0.0
    %4341 = vmatpush2.msra.mxu0 0.0
    %4342 = vmatprep.subr.mxu0 0.0
    %4343 = vmatpush2.msra.mxu0 0.0
    %4344 = vmatprep.subr.mxu0 0.0
    %4345 = vmatpush2.msra.mxu0 0.0
    %4346 = vmatprep.subr.mxu0 0.0
    %4347 = vmatpush2.msra.mxu0 0.0
    %4348 = vmatprep.subr.mxu0 0.0
    %4349 = vmatpush2.msra.mxu0 0.0
    %4350 = vmatprep.subr.mxu0 0.0
    %4351 = vmatpush2.msra.mxu0 0.0
    %4352 = vmatprep.subr.mxu0 0.0
    %4353 = vmatpush2.msra.mxu0 0.0
    %4354 = vmatprep.mubr.f32.mxu0 0.0
    %4355 = vmatmul.mubr.f32.gmra.mxu0 %v2867
    %v4356 = vpop.f32.mrf.mxu0
    %v4357 = vadd.f32 0.0, %v4356
    %v4358 = vpop.f32.mrf.mxu0
    %4359 = vdwg.mxu0
    %v4360 = vadd.f32 %v4281, %v4357
    %v4361 = vxor.u32 %v4360, 2147483648
    %v4362 = vmul.f32 %v4361, 1.442695
    %v4363 = vpow.pop %v4362
    %v4364 = vadd.f32 %v4363, 1.0
    %v4365 = vrcp.pop %v4364
    %v4366 = vmul.f32 1.0, %v4365
    %v4367 = vtanh.pop %v4360
    %v4368 = vmul.f32 %v4366, 0.0
    %4370 = vrot.lane.b32.xlu0 %v4367, 64
    %v4371 = vpop.permute.xlu0 %4370
    %v4373 = vmul.f32 %v4366, %v4371
    %4375 = vrot.lane.b32.xlu0 %v4373, 32
    %v4376 = vpop.permute.xlu0 %4375
    %v4378 = vadd.f32 %v4368, %v4376
    %v4379 = vtanh.pop %v4378
    %4381 = vrot.lane.b32.xlu0 %v4379, 64
    %v4382 = vpop.permute.xlu0 %4381
    %v4384 = vmul.f32 %v4366, %v4382
    %4386 = vrot.lane.b32.xlu0 %v4384, 32
    %v4387 = vpop.permute.xlu0 %4386
    %v4388 = vsel %vm832, %v4387, 0
    %4390 = vmatprep.subr.mxu0 0.0
    %4391 = vmatpush1.msra.mxu0 0.0
    %4392 = vmatprep.subr.mxu0 0.0
    %4393 = vmatpush1.msra.mxu0 0.0
    %4394 = vmatprep.subr.mxu0 0.0
    %4395 = vmatpush1.msra.mxu0 0.0
    %4396 = vmatprep.subr.mxu0 0.0
    %4397 = vmatpush1.msra.mxu0 0.0
    %4398 = vmatprep.subr.mxu0 0.0
    %4399 = vmatpush1.msra.mxu0 0.0
    %4400 = vmatprep.subr.mxu0 0.0
    %4401 = vmatpush1.msra.mxu0 0.0
    %4402 = vmatprep.subr.mxu0 0.0
    %4403 = vmatpush1.msra.mxu0 0.0
    %4404 = vmatprep.subr.mxu0 0.0
    %4405 = vmatpush1.msra.mxu0 0.0
    %4406 = vmatprep.subr.mxu0 0.0
    %4407 = vmatpush1.msra.mxu0 0.0
    %4408 = vmatprep.subr.mxu0 0.0
    %4409 = vmatpush1.msra.mxu0 0.0
    %4410 = vmatprep.subr.mxu0 0.0
    %4411 = vmatpush1.msra.mxu0 0.0
    %4412 = vmatprep.subr.mxu0 0.0
    %4413 = vmatpush1.msra.mxu0 0.0
    %4414 = vmatprep.subr.mxu0 0.0
    %4415 = vmatpush1.msra.mxu0 %v3748
    %4416 = vmatprep.subr.mxu0 0.0
    %4417 = vmatpush1.msra.mxu0 %v3747
    %4418 = vmatprep.subr.mxu0 0.0
    %4419 = vmatpush1.msra.mxu0 %v3746
    %4420 = vmatprep.subr.mxu0 0.0
    %4421 = vmatpush1.msra.mxu0 %v3745
    %4422 = vmatprep.subr.mxu0 0.0
    %4423 = vmatpush2.msra.mxu0 0.0
    %4424 = vmatprep.subr.mxu0 0.0
    %4425 = vmatpush2.msra.mxu0 0.0
    %4426 = vmatprep.subr.mxu0 0.0
    %4427 = vmatpush2.msra.mxu0 0.0
    %4428 = vmatprep.subr.mxu0 0.0
    %4429 = vmatpush2.msra.mxu0 0.0
    %4430 = vmatprep.subr.mxu0 0.0
    %4431 = vmatpush2.msra.mxu0 0.0
    %4432 = vmatprep.subr.mxu0 0.0
    %4433 = vmatpush2.msra.mxu0 0.0
    %4434 = vmatprep.subr.mxu0 0.0
    %4435 = vmatpush2.msra.mxu0 0.0
    %4436 = vmatprep.subr.mxu0 0.0
    %4437 = vmatpush2.msra.mxu0 0.0
    %4438 = vmatprep.subr.mxu0 0.0
    %4439 = vmatpush2.msra.mxu0 0.0
    %4440 = vmatprep.subr.mxu0 0.0
    %4441 = vmatpush2.msra.mxu0 0.0
    %4442 = vmatprep.subr.mxu0 0.0
    %4443 = vmatpush2.msra.mxu0 0.0
    %4444 = vmatprep.subr.mxu0 0.0
    %4445 = vmatpush2.msra.mxu0 0.0
    %4446 = vmatprep.subr.mxu0 0.0
    %4447 = vmatpush2.msra.mxu0 0.0
    %4448 = vmatprep.subr.mxu0 0.0
    %4449 = vmatpush2.msra.mxu0 0.0
    %4450 = vmatprep.subr.mxu0 0.0
    %4451 = vmatpush2.msra.mxu0 0.0
    %4452 = vmatprep.subr.mxu0 0.0
    %4453 = vmatpush2.msra.mxu0 0.0
    %4454 = vmatprep.mubr.f32.mxu0 0.0
    %4455 = vmatmul.mubr.f32.gmra.mxu0 %v4388
    %v4456 = vpop.f32.mrf.mxu0
    %v4457 = vadd.f32 0.0, %v4456
    %v4458 = vpop.f32.mrf.mxu0
    %4459 = vdwg.mxu0
    %v4461 = vrot.slane %v4457, 6
    %v4463 = vadd.f32 %v4281, %v4461
    %v4464 = vxor.u32 %v4463, 2147483648
    %v4465 = vmul.f32 %v4464, 1.442695
    %v4466 = vpow.pop %v4465
    %v4467 = vadd.f32 %v4466, 1.0
    %v4468 = vrcp.pop %v4467
    %v4469 = vmul.f32 1.0, %v4468
    %v4470 = vtanh.pop %v4463
    %v4472 = vrot.slane %v4378, 6
    %v4474 = vmul.f32 %v4469, %v4472
    %4476 = vrot.lane.b32.xlu0 %v4470, 64
    %v4477 = vpop.permute.xlu0 %4476
    %v4479 = vmul.f32 %v4469, %v4477
    %4481 = vrot.lane.b32.xlu0 %v4479, 32
    %v4482 = vpop.permute.xlu0 %4481
    %v4484 = vadd.f32 %v4474, %v4482
    %v4485 = vtanh.pop %v4484
    %4487 = vrot.lane.b32.xlu0 %v4485, 64
    %v4488 = vpop.permute.xlu0 %4487
    %v4490 = vmul.f32 %v4469, %v4488
    %v4492 = vrot.slane %v4490, 2
    %4493 = vrot.lane.b32.xlu0 %v4492, 32
    %v4494 = vpop.permute.xlu0 %4493
    %v4495 = vsel %vm832, %v4494, 0
    %4497 = vmatprep.subr.mxu0 0.0
    %4498 = vmatpush1.msra.mxu0 0.0
    %4499 = vmatprep.subr.mxu0 0.0
    %4500 = vmatpush1.msra.mxu0 0.0
    %4501 = vmatprep.subr.mxu0 0.0
    %4502 = vmatpush1.msra.mxu0 0.0
    %4503 = vmatprep.subr.mxu0 0.0
    %4504 = vmatpush1.msra.mxu0 0.0
    %4505 = vmatprep.subr.mxu0 0.0
    %4506 = vmatpush1.msra.mxu0 0.0
    %4507 = vmatprep.subr.mxu0 0.0
    %4508 = vmatpush1.msra.mxu0 0.0
    %4509 = vmatprep.subr.mxu0 0.0
    %4510 = vmatpush1.msra.mxu0 0.0
    %4511 = vmatprep.subr.mxu0 0.0
    %4512 = vmatpush1.msra.mxu0 0.0
    %4513 = vmatprep.subr.mxu0 0.0
    %4514 = vmatpush1.msra.mxu0 0.0
    %4515 = vmatprep.subr.mxu0 0.0
    %4516 = vmatpush1.msra.mxu0 0.0
    %4517 = vmatprep.subr.mxu0 0.0
    %4518 = vmatpush1.msra.mxu0 0.0
    %4519 = vmatprep.subr.mxu0 0.0
    %4520 = vmatpush1.msra.mxu0 0.0
    %4521 = vmatprep.subr.mxu0 0.0
    %4522 = vmatpush1.msra.mxu0 %v3748
    %4523 = vmatprep.subr.mxu0 0.0
    %4524 = vmatpush1.msra.mxu0 %v3747
    %4525 = vmatprep.subr.mxu0 0.0
    %4526 = vmatpush1.msra.mxu0 %v3746
    %4527 = vmatprep.subr.mxu0 0.0
    %4528 = vmatpush1.msra.mxu0 %v3745
    %4529 = vmatprep.subr.mxu0 0.0
    %4530 = vmatpush2.msra.mxu0 0.0
    %4531 = vmatprep.subr.mxu0 0.0
    %4532 = vmatpush2.msra.mxu0 0.0
    %4533 = vmatprep.subr.mxu0 0.0
    %4534 = vmatpush2.msra.mxu0 0.0
    %4535 = vmatprep.subr.mxu0 0.0
    %4536 = vmatpush2.msra.mxu0 0.0
    %4537 = vmatprep.subr.mxu0 0.0
    %4538 = vmatpush2.msra.mxu0 0.0
    %4539 = vmatprep.subr.mxu0 0.0
    %4540 = vmatpush2.msra.mxu0 0.0
    %4541 = vmatprep.subr.mxu0 0.0
    %4542 = vmatpush2.msra.mxu0 0.0
    %4543 = vmatprep.subr.mxu0 0.0
    %4544 = vmatpush2.msra.mxu0 0.0
    %4545 = vmatprep.subr.mxu0 0.0
    %4546 = vmatpush2.msra.mxu0 0.0
    %4547 = vmatprep.subr.mxu0 0.0
    %4548 = vmatpush2.msra.mxu0 0.0
    %4549 = vmatprep.subr.mxu0 0.0
    %4550 = vmatpush2.msra.mxu0 0.0
    %4551 = vmatprep.subr.mxu0 0.0
    %4552 = vmatpush2.msra.mxu0 0.0
    %4553 = vmatprep.subr.mxu0 0.0
    %4554 = vmatpush2.msra.mxu0 0.0
    %4555 = vmatprep.subr.mxu0 0.0
    %4556 = vmatpush2.msra.mxu0 0.0
    %4557 = vmatprep.subr.mxu0 0.0
    %4558 = vmatpush2.msra.mxu0 0.0
    %4559 = vmatprep.subr.mxu0 0.0
    %4560 = vmatpush2.msra.mxu0 0.0
    %4561 = vmatprep.mubr.f32.mxu0 0.0
    %4562 = vmatmul.mubr.f32.gmra.mxu0 %v4495
    %v4563 = vpop.f32.mrf.mxu0
    %v4564 = vadd.f32 0.0, %v4563
    %v4565 = vpop.f32.mrf.mxu0
    %4566 = vdwg.mxu0
    %v4568 = vrot.slane %v4564, 4
    %v4570 = vadd.f32 %v4281, %v4568
    %v4571 = vxor.u32 %v4570, 2147483648
    %v4572 = vmul.f32 %v4571, 1.442695
    %v4573 = vpow.pop %v4572
    %v4574 = vadd.f32 %v4573, 1.0
    %v4575 = vrcp.pop %v4574
    %v4576 = vmul.f32 1.0, %v4575
    %v4577 = vtanh.pop %v4570
    %v4579 = vrot.slane %v4484, 6
    %v4581 = vmul.f32 %v4576, %v4579
    %4583 = vrot.lane.b32.xlu0 %v4577, 64
    %v4584 = vpop.permute.xlu0 %4583
    %v4586 = vmul.f32 %v4576, %v4584
    %4588 = vrot.lane.b32.xlu0 %v4586, 32
    %v4589 = vpop.permute.xlu0 %4588
    %v4591 = vadd.f32 %v4581, %v4589
    %v4592 = vtanh.pop %v4591
    %4594 = vrot.lane.b32.xlu0 %v4592, 64
    %v4595 = vpop.permute.xlu0 %4594
    %v4597 = vmul.f32 %v4576, %v4595
    %v4599 = vrot.slane %v4597, 4
    %4600 = vrot.lane.b32.xlu0 %v4599, 32
    %v4601 = vpop.permute.xlu0 %4600
    %v4602 = vsel %vm832, %v4601, 0
    %4604 = vmatprep.subr.mxu0 0.0
    %4605 = vmatpush1.msra.mxu0 0.0
    %4606 = vmatprep.subr.mxu0 0.0
    %4607 = vmatpush1.msra.mxu0 0.0
    %4608 = vmatprep.subr.mxu0 0.0
    %4609 = vmatpush1.msra.mxu0 0.0
    %4610 = vmatprep.subr.mxu0 0.0
    %4611 = vmatpush1.msra.mxu0 0.0
    %4612 = vmatprep.subr.mxu0 0.0
    %4613 = vmatpush1.msra.mxu0 0.0
    %4614 = vmatprep.subr.mxu0 0.0
    %4615 = vmatpush1.msra.mxu0 0.0
    %4616 = vmatprep.subr.mxu0 0.0
    %4617 = vmatpush1.msra.mxu0 0.0
    %4618 = vmatprep.subr.mxu0 0.0
    %4619 = vmatpush1.msra.mxu0 0.0
    %4620 = vmatprep.subr.mxu0 0.0
    %4621 = vmatpush1.msra.mxu0 0.0
    %4622 = vmatprep.subr.mxu0 0.0
    %4623 = vmatpush1.msra.mxu0 0.0
    %4624 = vmatprep.subr.mxu0 0.0
    %4625 = vmatpush1.msra.mxu0 0.0
    %4626 = vmatprep.subr.mxu0 0.0
    %4627 = vmatpush1.msra.mxu0 0.0
    %4628 = vmatprep.subr.mxu0 0.0
    %4629 = vmatpush1.msra.mxu0 %v3748
    %4630 = vmatprep.subr.mxu0 0.0
    %4631 = vmatpush1.msra.mxu0 %v3747
    %4632 = vmatprep.subr.mxu0 0.0
    %4633 = vmatpush1.msra.mxu0 %v3746
    %4634 = vmatprep.subr.mxu0 0.0
    %4635 = vmatpush1.msra.mxu0 %v3745
    %4636 = vmatprep.subr.mxu0 0.0
    %4637 = vmatpush2.msra.mxu0 0.0
    %4638 = vmatprep.subr.mxu0 0.0
    %4639 = vmatpush2.msra.mxu0 0.0
    %4640 = vmatprep.subr.mxu0 0.0
    %4641 = vmatpush2.msra.mxu0 0.0
    %4642 = vmatprep.subr.mxu0 0.0
    %4643 = vmatpush2.msra.mxu0 0.0
    %4644 = vmatprep.subr.mxu0 0.0
    %4645 = vmatpush2.msra.mxu0 0.0
    %4646 = vmatprep.subr.mxu0 0.0
    %4647 = vmatpush2.msra.mxu0 0.0
    %4648 = vmatprep.subr.mxu0 0.0
    %4649 = vmatpush2.msra.mxu0 0.0
    %4650 = vmatprep.subr.mxu0 0.0
    %4651 = vmatpush2.msra.mxu0 0.0
    %4652 = vmatprep.subr.mxu0 0.0
    %4653 = vmatpush2.msra.mxu0 0.0
    %4654 = vmatprep.subr.mxu0 0.0
    %4655 = vmatpush2.msra.mxu0 0.0
    %4656 = vmatprep.subr.mxu0 0.0
    %4657 = vmatpush2.msra.mxu0 0.0
    %4658 = vmatprep.subr.mxu0 0.0
    %4659 = vmatpush2.msra.mxu0 0.0
    %4660 = vmatprep.subr.mxu0 0.0
    %4661 = vmatpush2.msra.mxu0 0.0
    %4662 = vmatprep.subr.mxu0 0.0
    %4663 = vmatpush2.msra.mxu0 0.0
    %4664 = vmatprep.subr.mxu0 0.0
    %4665 = vmatpush2.msra.mxu0 0.0
    %4666 = vmatprep.subr.mxu0 0.0
    %4667 = vmatpush2.msra.mxu0 0.0
    %4668 = vmatprep.mubr.f32.mxu0 0.0
    %4669 = vmatmul.mubr.f32.gmra.mxu0 %v4602
    %v4670 = vpop.f32.mrf.mxu0
    %v4671 = vadd.f32 0.0, %v4670
    %v4672 = vpop.f32.mrf.mxu0
    %4673 = vdwg.mxu0
    %v4675 = vrot.slane %v4671, 2
    %v4677 = vadd.f32 %v4281, %v4675
    %v4678 = vxor.u32 %v4677, 2147483648
    %v4679 = vmul.f32 %v4678, 1.442695
    %v4680 = vpow.pop %v4679
    %v4681 = vadd.f32 %v4680, 1.0
    %v4682 = vrcp.pop %v4681
    %v4683 = vmul.f32 1.0, %v4682
    %v4684 = vtanh.pop %v4677
    %v4686 = vrot.slane %v4591, 6
    %v4688 = vmul.f32 %v4683, %v4686
    %4690 = vrot.lane.b32.xlu0 %v4684, 64
    %v4691 = vpop.permute.xlu0 %4690
    %v4693 = vmul.f32 %v4683, %v4691
    %4695 = vrot.lane.b32.xlu0 %v4693, 32
    %v4696 = vpop.permute.xlu0 %4695
    %v4698 = vadd.f32 %v4688, %v4696
    %v4699 = vtanh.pop %v4698
    %4701 = vrot.lane.b32.xlu0 %v4699, 64
    %v4702 = vpop.permute.xlu0 %4701
    %v4704 = vmul.f32 %v4683, %v4702
    %v4706 = vrot.slane %v4704, 6
    %4707 = vrot.lane.b32.xlu0 %v4706, 32
    %v4708 = vpop.permute.xlu0 %4707
    %v4709 = vsel %vm832, %v4708, 0
    %4711 = vmatprep.subr.mxu0 0.0
    %4712 = vmatpush1.msra.mxu0 0.0
    %4713 = vmatprep.subr.mxu0 0.0
    %4714 = vmatpush1.msra.mxu0 0.0
    %4715 = vmatprep.subr.mxu0 0.0
    %4716 = vmatpush1.msra.mxu0 0.0
    %4717 = vmatprep.subr.mxu0 0.0
    %4718 = vmatpush1.msra.mxu0 0.0
    %4719 = vmatprep.subr.mxu0 0.0
    %4720 = vmatpush1.msra.mxu0 0.0
    %4721 = vmatprep.subr.mxu0 0.0
    %4722 = vmatpush1.msra.mxu0 0.0
    %4723 = vmatprep.subr.mxu0 0.0
    %4724 = vmatpush1.msra.mxu0 0.0
    %4725 = vmatprep.subr.mxu0 0.0
    %4726 = vmatpush1.msra.mxu0 0.0
    %4727 = vmatprep.subr.mxu0 0.0
    %4728 = vmatpush1.msra.mxu0 0.0
    %4729 = vmatprep.subr.mxu0 0.0
    %4730 = vmatpush1.msra.mxu0 0.0
    %4731 = vmatprep.subr.mxu0 0.0
    %4732 = vmatpush1.msra.mxu0 0.0
    %4733 = vmatprep.subr.mxu0 0.0
    %4734 = vmatpush1.msra.mxu0 0.0
    %4735 = vmatprep.subr.mxu0 0.0
    %4736 = vmatpush1.msra.mxu0 %v3748
    %4737 = vmatprep.subr.mxu0 0.0
    %4738 = vmatpush1.msra.mxu0 %v3747
    %4739 = vmatprep.subr.mxu0 0.0
    %4740 = vmatpush1.msra.mxu0 %v3746
    %4741 = vmatprep.subr.mxu0 0.0
    %4742 = vmatpush1.msra.mxu0 %v3745
    %4743 = vmatprep.subr.mxu0 0.0
    %4744 = vmatpush2.msra.mxu0 0.0
    %4745 = vmatprep.subr.mxu0 0.0
    %4746 = vmatpush2.msra.mxu0 0.0
    %4747 = vmatprep.subr.mxu0 0.0
    %4748 = vmatpush2.msra.mxu0 0.0
    %4749 = vmatprep.subr.mxu0 0.0
    %4750 = vmatpush2.msra.mxu0 0.0
    %4751 = vmatprep.subr.mxu0 0.0
    %4752 = vmatpush2.msra.mxu0 0.0
    %4753 = vmatprep.subr.mxu0 0.0
    %4754 = vmatpush2.msra.mxu0 0.0
    %4755 = vmatprep.subr.mxu0 0.0
    %4756 = vmatpush2.msra.mxu0 0.0
    %4757 = vmatprep.subr.mxu0 0.0
    %4758 = vmatpush2.msra.mxu0 0.0
    %4759 = vmatprep.subr.mxu0 0.0
    %4760 = vmatpush2.msra.mxu0 0.0
    %4761 = vmatprep.subr.mxu0 0.0
    %4762 = vmatpush2.msra.mxu0 0.0
    %4763 = vmatprep.subr.mxu0 0.0
    %4764 = vmatpush2.msra.mxu0 0.0
    %4765 = vmatprep.subr.mxu0 0.0
    %4766 = vmatpush2.msra.mxu0 0.0
    %4767 = vmatprep.subr.mxu0 0.0
    %4768 = vmatpush2.msra.mxu0 0.0
    %4769 = vmatprep.subr.mxu0 0.0
    %4770 = vmatpush2.msra.mxu0 0.0
    %4771 = vmatprep.subr.mxu0 0.0
    %4772 = vmatpush2.msra.mxu0 0.0
    %4773 = vmatprep.subr.mxu0 0.0
    %4774 = vmatpush2.msra.mxu0 0.0
    %4775 = vmatprep.mubr.f32.mxu0 0.0
    %4776 = vmatmul.mubr.f32.gmra.mxu0 %v4709
    %v4777 = vpop.f32.mrf.mxu0
    %v4778 = vadd.f32 0.0, %v4777
    %v4779 = vpop.f32.mrf.mxu0
    %4780 = vdwg.mxu0
    %v4781 = vadd.f32 %v4287, %v4778
    %v4782 = vxor.u32 %v4781, 2147483648
    %v4783 = vmul.f32 %v4782, 1.442695
    %v4784 = vpow.pop %v4783
    %v4785 = vadd.f32 %v4784, 1.0
    %v4786 = vrcp.pop %v4785
    %v4787 = vmul.f32 1.0, %v4786
    %v4788 = vtanh.pop %v4781
    %v4790 = vrot.slane %v4698, 6
    %v4792 = vmul.f32 %v4787, %v4790
    %4794 = vrot.lane.b32.xlu0 %v4788, 64
    %v4795 = vpop.permute.xlu0 %4794
    %v4797 = vmul.f32 %v4787, %v4795
    %4799 = vrot.lane.b32.xlu0 %v4797, 32
    %v4800 = vpop.permute.xlu0 %4799
    %v4802 = vadd.f32 %v4792, %v4800
    %v4803 = vtanh.pop %v4802
    %4805 = vrot.lane.b32.xlu0 %v4803, 64
    %v4806 = vpop.permute.xlu0 %4805
    %v4808 = vmul.f32 %v4787, %v4806
    %4810 = vrot.lane.b32.xlu0 %v4808, 32
    %v4811 = vpop.permute.xlu0 %4810
    %v4812 = vsel %vm832, %v4811, 0
    %4814 = vmatprep.subr.mxu0 0.0
    %4815 = vmatpush1.msra.mxu0 0.0
    %4816 = vmatprep.subr.mxu0 0.0
    %4817 = vmatpush1.msra.mxu0 0.0
    %4818 = vmatprep.subr.mxu0 0.0
    %4819 = vmatpush1.msra.mxu0 0.0
    %4820 = vmatprep.subr.mxu0 0.0
    %4821 = vmatpush1.msra.mxu0 0.0
    %4822 = vmatprep.subr.mxu0 0.0
    %4823 = vmatpush1.msra.mxu0 0.0
    %4824 = vmatprep.subr.mxu0 0.0
    %4825 = vmatpush1.msra.mxu0 0.0
    %4826 = vmatprep.subr.mxu0 0.0
    %4827 = vmatpush1.msra.mxu0 0.0
    %4828 = vmatprep.subr.mxu0 0.0
    %4829 = vmatpush1.msra.mxu0 0.0
    %4830 = vmatprep.subr.mxu0 0.0
    %4831 = vmatpush1.msra.mxu0 0.0
    %4832 = vmatprep.subr.mxu0 0.0
    %4833 = vmatpush1.msra.mxu0 0.0
    %4834 = vmatprep.subr.mxu0 0.0
    %4835 = vmatpush1.msra.mxu0 0.0
    %4836 = vmatprep.subr.mxu0 0.0
    %4837 = vmatpush1.msra.mxu0 0.0
    %4838 = vmatprep.subr.mxu0 0.0
    %4839 = vmatpush1.msra.mxu0 %v3748
    %4840 = vmatprep.subr.mxu0 0.0
    %4841 = vmatpush1.msra.mxu0 %v3747
    %4842 = vmatprep.subr.mxu0 0.0
    %4843 = vmatpush1.msra.mxu0 %v3746
    %4844 = vmatprep.subr.mxu0 0.0
    %4845 = vmatpush1.msra.mxu0 %v3745
    %4846 = vmatprep.subr.mxu0 0.0
    %4847 = vmatpush2.msra.mxu0 0.0
    %4848 = vmatprep.subr.mxu0 0.0
    %4849 = vmatpush2.msra.mxu0 0.0
    %4850 = vmatprep.subr.mxu0 0.0
    %4851 = vmatpush2.msra.mxu0 0.0
    %4852 = vmatprep.subr.mxu0 0.0
    %4853 = vmatpush2.msra.mxu0 0.0
    %4854 = vmatprep.subr.mxu0 0.0
    %4855 = vmatpush2.msra.mxu0 0.0
    %4856 = vmatprep.subr.mxu0 0.0
    %4857 = vmatpush2.msra.mxu0 0.0
    %4858 = vmatprep.subr.mxu0 0.0
    %4859 = vmatpush2.msra.mxu0 0.0
    %4860 = vmatprep.subr.mxu0 0.0
    %4861 = vmatpush2.msra.mxu0 0.0
    %4862 = vmatprep.subr.mxu0 0.0
    %4863 = vmatpush2.msra.mxu0 0.0
    %4864 = vmatprep.subr.mxu0 0.0
    %4865 = vmatpush2.msra.mxu0 0.0
    %4866 = vmatprep.subr.mxu0 0.0
    %4867 = vmatpush2.msra.mxu0 0.0
    %4868 = vmatprep.subr.mxu0 0.0
    %4869 = vmatpush2.msra.mxu0 0.0
    %4870 = vmatprep.subr.mxu0 0.0
    %4871 = vmatpush2.msra.mxu0 0.0
    %4872 = vmatprep.subr.mxu0 0.0
    %4873 = vmatpush2.msra.mxu0 0.0
    %4874 = vmatprep.subr.mxu0 0.0
    %4875 = vmatpush2.msra.mxu0 0.0
    %4876 = vmatprep.subr.mxu0 0.0
    %4877 = vmatpush2.msra.mxu0 0.0
    %4878 = vmatprep.mubr.f32.mxu0 0.0
    %4879 = vmatmul.mubr.f32.gmra.mxu0 %v4812
    %v4880 = vpop.f32.mrf.mxu0
    %v4881 = vadd.f32 0.0, %v4880
    %v4882 = vpop.f32.mrf.mxu0
    %4883 = vdwg.mxu0
    %v4885 = vrot.slane %v4881, 6
    %v4887 = vadd.f32 %v4287, %v4885
    %v4888 = vxor.u32 %v4887, 2147483648
    %v4889 = vmul.f32 %v4888, 1.442695
    %v4890 = vpow.pop %v4889
    %v4891 = vadd.f32 %v4890, 1.0
    %v4892 = vrcp.pop %v4891
    %v4893 = vmul.f32 1.0, %v4892
    %v4894 = vtanh.pop %v4887
    %v4896 = vrot.slane %v4802, 6
    %v4898 = vmul.f32 %v4893, %v4896
    %4900 = vrot.lane.b32.xlu0 %v4894, 64
    %v4901 = vpop.permute.xlu0 %4900
    %v4903 = vmul.f32 %v4893, %v4901
    %4905 = vrot.lane.b32.xlu0 %v4903, 32
    %v4906 = vpop.permute.xlu0 %4905
    %v4908 = vadd.f32 %v4898, %v4906
    %v4909 = vtanh.pop %v4908
    %4911 = vrot.lane.b32.xlu0 %v4909, 64
    %v4912 = vpop.permute.xlu0 %4911
    %v4914 = vmul.f32 %v4893, %v4912
    %v4916 = vrot.slane %v4914, 2
    %4917 = vrot.lane.b32.xlu0 %v4916, 32
    %v4918 = vpop.permute.xlu0 %4917
    %v4919 = vsel %vm832, %v4918, 0
    %4921 = vmatprep.subr.mxu0 0.0
    %4922 = vmatpush1.msra.mxu0 0.0
    %4923 = vmatprep.subr.mxu0 0.0
    %4924 = vmatpush1.msra.mxu0 0.0
    %4925 = vmatprep.subr.mxu0 0.0
    %4926 = vmatpush1.msra.mxu0 0.0
    %4927 = vmatprep.subr.mxu0 0.0
    %4928 = vmatpush1.msra.mxu0 0.0
    %4929 = vmatprep.subr.mxu0 0.0
    %4930 = vmatpush1.msra.mxu0 0.0
    %4931 = vmatprep.subr.mxu0 0.0
    %4932 = vmatpush1.msra.mxu0 0.0
    %4933 = vmatprep.subr.mxu0 0.0
    %4934 = vmatpush1.msra.mxu0 0.0
    %4935 = vmatprep.subr.mxu0 0.0
    %4936 = vmatpush1.msra.mxu0 0.0
    %4937 = vmatprep.subr.mxu0 0.0
    %4938 = vmatpush1.msra.mxu0 0.0
    %4939 = vmatprep.subr.mxu0 0.0
    %4940 = vmatpush1.msra.mxu0 0.0
    %4941 = vmatprep.subr.mxu0 0.0
    %4942 = vmatpush1.msra.mxu0 0.0
    %4943 = vmatprep.subr.mxu0 0.0
    %4944 = vmatpush1.msra.mxu0 0.0
    %4945 = vmatprep.subr.mxu0 0.0
    %4946 = vmatpush1.msra.mxu0 %v3748
    %4947 = vmatprep.subr.mxu0 0.0
    %4948 = vmatpush1.msra.mxu0 %v3747
    %4949 = vmatprep.subr.mxu0 0.0
    %4950 = vmatpush1.msra.mxu0 %v3746
    %4951 = vmatprep.subr.mxu0 0.0
    %4952 = vmatpush1.msra.mxu0 %v3745
    %4953 = vmatprep.subr.mxu0 0.0
    %4954 = vmatpush2.msra.mxu0 0.0
    %4955 = vmatprep.subr.mxu0 0.0
    %4956 = vmatpush2.msra.mxu0 0.0
    %4957 = vmatprep.subr.mxu0 0.0
    %4958 = vmatpush2.msra.mxu0 0.0
    %4959 = vmatprep.subr.mxu0 0.0
    %4960 = vmatpush2.msra.mxu0 0.0
    %4961 = vmatprep.subr.mxu0 0.0
    %4962 = vmatpush2.msra.mxu0 0.0
    %4963 = vmatprep.subr.mxu0 0.0
    %4964 = vmatpush2.msra.mxu0 0.0
    %4965 = vmatprep.subr.mxu0 0.0
    %4966 = vmatpush2.msra.mxu0 0.0
    %4967 = vmatprep.subr.mxu0 0.0
    %4968 = vmatpush2.msra.mxu0 0.0
    %4969 = vmatprep.subr.mxu0 0.0
    %4970 = vmatpush2.msra.mxu0 0.0
    %4971 = vmatprep.subr.mxu0 0.0
    %4972 = vmatpush2.msra.mxu0 0.0
    %4973 = vmatprep.subr.mxu0 0.0
    %4974 = vmatpush2.msra.mxu0 0.0
    %4975 = vmatprep.subr.mxu0 0.0
    %4976 = vmatpush2.msra.mxu0 0.0
    %4977 = vmatprep.subr.mxu0 0.0
    %4978 = vmatpush2.msra.mxu0 0.0
    %4979 = vmatprep.subr.mxu0 0.0
    %4980 = vmatpush2.msra.mxu0 0.0
    %4981 = vmatprep.subr.mxu0 0.0
    %4982 = vmatpush2.msra.mxu0 0.0
    %4983 = vmatprep.subr.mxu0 0.0
    %4984 = vmatpush2.msra.mxu0 0.0
    %4985 = vmatprep.mubr.f32.mxu0 0.0
    %4986 = vmatmul.mubr.f32.gmra.mxu0 %v4919
    %v4987 = vpop.f32.mrf.mxu0
    %v4988 = vadd.f32 0.0, %v4987
    %v4989 = vpop.f32.mrf.mxu0
    %4990 = vdwg.mxu0
    %v4992 = vrot.slane %v4988, 4
    %v4994 = vadd.f32 %v4287, %v4992
    %v4995 = vxor.u32 %v4994, 2147483648
    %v4996 = vmul.f32 %v4995, 1.442695
    %v4997 = vpow.pop %v4996
    %v4998 = vadd.f32 %v4997, 1.0
    %v4999 = vrcp.pop %v4998
    %v5000 = vmul.f32 1.0, %v4999
    %v5001 = vtanh.pop %v4994
    %v5003 = vrot.slane %v4908, 6
    %v5005 = vmul.f32 %v5000, %v5003
    %5007 = vrot.lane.b32.xlu0 %v5001, 64
    %v5008 = vpop.permute.xlu0 %5007
    %v5010 = vmul.f32 %v5000, %v5008
    %5012 = vrot.lane.b32.xlu0 %v5010, 32
    %v5013 = vpop.permute.xlu0 %5012
    %v5015 = vadd.f32 %v5005, %v5013
    %v5016 = vtanh.pop %v5015
    %5018 = vrot.lane.b32.xlu0 %v5016, 64
    %v5019 = vpop.permute.xlu0 %5018
    %v5021 = vmul.f32 %v5000, %v5019
    %v5023 = vrot.slane %v5021, 4
    %5024 = vrot.lane.b32.xlu0 %v5023, 32
    %v5025 = vpop.permute.xlu0 %5024
    %v5026 = vsel %vm832, %v5025, 0
    %5028 = vmatprep.subr.mxu0 0.0
    %5029 = vmatpush1.msra.mxu0 0.0
    %5030 = vmatprep.subr.mxu0 0.0
    %5031 = vmatpush1.msra.mxu0 0.0
    %5032 = vmatprep.subr.mxu0 0.0
    %5033 = vmatpush1.msra.mxu0 0.0
    %5034 = vmatprep.subr.mxu0 0.0
    %5035 = vmatpush1.msra.mxu0 0.0
    %5036 = vmatprep.subr.mxu0 0.0
    %5037 = vmatpush1.msra.mxu0 0.0
    %5038 = vmatprep.subr.mxu0 0.0
    %5039 = vmatpush1.msra.mxu0 0.0
    %5040 = vmatprep.subr.mxu0 0.0
    %5041 = vmatpush1.msra.mxu0 0.0
    %5042 = vmatprep.subr.mxu0 0.0
    %5043 = vmatpush1.msra.mxu0 0.0
    %5044 = vmatprep.subr.mxu0 0.0
    %5045 = vmatpush1.msra.mxu0 0.0
    %5046 = vmatprep.subr.mxu0 0.0
    %5047 = vmatpush1.msra.mxu0 0.0
    %5048 = vmatprep.subr.mxu0 0.0
    %5049 = vmatpush1.msra.mxu0 0.0
    %5050 = vmatprep.subr.mxu0 0.0
    %5051 = vmatpush1.msra.mxu0 0.0
    %5052 = vmatprep.subr.mxu0 0.0
    %5053 = vmatpush1.msra.mxu0 %v3748
    %5054 = vmatprep.subr.mxu0 0.0
    %5055 = vmatpush1.msra.mxu0 %v3747
    %5056 = vmatprep.subr.mxu0 0.0
    %5057 = vmatpush1.msra.mxu0 %v3746
    %5058 = vmatprep.subr.mxu0 0.0
    %5059 = vmatpush1.msra.mxu0 %v3745
    %5060 = vmatprep.subr.mxu0 0.0
    %5061 = vmatpush2.msra.mxu0 0.0
    %5062 = vmatprep.subr.mxu0 0.0
    %5063 = vmatpush2.msra.mxu0 0.0
    %5064 = vmatprep.subr.mxu0 0.0
    %5065 = vmatpush2.msra.mxu0 0.0
    %5066 = vmatprep.subr.mxu0 0.0
    %5067 = vmatpush2.msra.mxu0 0.0
    %5068 = vmatprep.subr.mxu0 0.0
    %5069 = vmatpush2.msra.mxu0 0.0
    %5070 = vmatprep.subr.mxu0 0.0
    %5071 = vmatpush2.msra.mxu0 0.0
    %5072 = vmatprep.subr.mxu0 0.0
    %5073 = vmatpush2.msra.mxu0 0.0
    %5074 = vmatprep.subr.mxu0 0.0
    %5075 = vmatpush2.msra.mxu0 0.0
    %5076 = vmatprep.subr.mxu0 0.0
    %5077 = vmatpush2.msra.mxu0 0.0
    %5078 = vmatprep.subr.mxu0 0.0
    %5079 = vmatpush2.msra.mxu0 0.0
    %5080 = vmatprep.subr.mxu0 0.0
    %5081 = vmatpush2.msra.mxu0 0.0
    %5082 = vmatprep.subr.mxu0 0.0
    %5083 = vmatpush2.msra.mxu0 0.0
    %5084 = vmatprep.subr.mxu0 0.0
    %5085 = vmatpush2.msra.mxu0 0.0
    %5086 = vmatprep.subr.mxu0 0.0
    %5087 = vmatpush2.msra.mxu0 0.0
    %5088 = vmatprep.subr.mxu0 0.0
    %5089 = vmatpush2.msra.mxu0 0.0
    %5090 = vmatprep.subr.mxu0 0.0
    %5091 = vmatpush2.msra.mxu0 0.0
    %5092 = vmatprep.mubr.f32.mxu0 0.0
    %5093 = vmatmul.mubr.f32.gmra.mxu0 %v5026
    %v5094 = vpop.f32.mrf.mxu0
    %v5095 = vadd.f32 0.0, %v5094
    %v5096 = vpop.f32.mrf.mxu0
    %5097 = vdwg.mxu0
    %v5099 = vrot.slane %v5095, 2
    %v5101 = vadd.f32 %v4287, %v5099
    %v5102 = vxor.u32 %v5101, 2147483648
    %v5103 = vmul.f32 %v5102, 1.442695
    %v5104 = vpow.pop %v5103
    %v5105 = vadd.f32 %v5104, 1.0
    %v5106 = vrcp.pop %v5105
    %v5107 = vmul.f32 1.0, %v5106
    %v5108 = vtanh.pop %v5101
    %v5110 = vrot.slane %v5015, 6
    %v5112 = vmul.f32 %v5107, %v5110
    %5114 = vrot.lane.b32.xlu0 %v5108, 64
    %v5115 = vpop.permute.xlu0 %5114
    %v5117 = vmul.f32 %v5107, %v5115
    %5119 = vrot.lane.b32.xlu0 %v5117, 32
    %v5120 = vpop.permute.xlu0 %5119
    %v5122 = vadd.f32 %v5112, %v5120
    %v5123 = vtanh.pop %v5122
    %5125 = vrot.lane.b32.xlu0 %v5123, 64
    %v5126 = vpop.permute.xlu0 %5125
    %v5128 = vmul.f32 %v5107, %v5126
    %v5129 = vld [vmem:[%s6] sm:$0xff]
    %v5130 = vld [vmem:[%s6 + $0x8] sm:$0xff]
    %v5131 = vld [vmem:[%s6 + $0x10] sm:$0xff]
    %v5132 = vld [vmem:[%s6 + $0x18] sm:$0xff]
    %v5133 = vld [vmem:[%s6 + $0x20] sm:$0x1]
    %v5134 = vlaneseq
    %v5135 = vshrl.u32 %v5134, 7
    %v5136 = vsub.s32 0, %v5135
    %v5137 = vrot.slane %v5133, %v5136
    %v5139 = vrot.slane %v5128, 6
    %5140 = vrot.lane.b32.xlu0 %v5139, 32
    %v5141 = vpop.permute.xlu0 %5140
    %v5142 = vsel %vm832, %v5141, 0
    %5144 = vmatprep.subr.mxu0 0.0
    %5145 = vmatpush1.msra.mxu0 0.0
    %5146 = vmatprep.subr.mxu0 0.0
    %5147 = vmatpush1.msra.mxu0 0.0
    %5148 = vmatprep.subr.mxu0 0.0
    %5149 = vmatpush1.msra.mxu0 0.0
    %5150 = vmatprep.subr.mxu0 0.0
    %5151 = vmatpush1.msra.mxu0 0.0
    %5152 = vmatprep.subr.mxu0 0.0
    %5153 = vmatpush1.msra.mxu0 0.0
    %5154 = vmatprep.subr.mxu0 0.0
    %5155 = vmatpush1.msra.mxu0 0.0
    %5156 = vmatprep.subr.mxu0 0.0
    %5157 = vmatpush1.msra.mxu0 0.0
    %5158 = vmatprep.subr.mxu0 0.0
    %5159 = vmatpush1.msra.mxu0 0.0
    %5160 = vmatprep.subr.mxu0 0.0
    %5161 = vmatpush1.msra.mxu0 0.0
    %5162 = vmatprep.subr.mxu0 0.0
    %5163 = vmatpush1.msra.mxu0 0.0
    %5164 = vmatprep.subr.mxu0 0.0
    %5165 = vmatpush1.msra.mxu0 0.0
    %5166 = vmatprep.subr.mxu0 0.0
    %5167 = vmatpush1.msra.mxu0 0.0
    %5168 = vmatprep.subr.mxu0 0.0
    %v5169 = vand.u32 %v5132, 4294901760
    %5170 = vmatpush1.msra.mxu0 %v5169
    %5171 = vmatprep.subr.mxu0 0.0
    %v5172 = vand.u32 %v5131, 4294901760
    %5173 = vmatpush1.msra.mxu0 %v5172
    %5174 = vmatprep.subr.mxu0 0.0
    %v5175 = vand.u32 %v5130, 4294901760
    %5176 = vmatpush1.msra.mxu0 %v5175
    %5177 = vmatprep.subr.mxu0 0.0
    %v5178 = vand.u32 %v5129, 4294901760
    %5179 = vmatpush1.msra.mxu0 %v5178
    %5180 = vmatprep.subr.mxu0 0.0
    %5181 = vmatpush2.msra.mxu0 0.0
    %5182 = vmatprep.subr.mxu0 0.0
    %5183 = vmatpush2.msra.mxu0 0.0
    %5184 = vmatprep.subr.mxu0 0.0
    %5185 = vmatpush2.msra.mxu0 0.0
    %5186 = vmatprep.subr.mxu0 0.0
    %5187 = vmatpush2.msra.mxu0 0.0
    %5188 = vmatprep.subr.mxu0 0.0
    %5189 = vmatpush2.msra.mxu0 0.0
    %5190 = vmatprep.subr.mxu0 0.0
    %5191 = vmatpush2.msra.mxu0 0.0
    %5192 = vmatprep.subr.mxu0 0.0
    %5193 = vmatpush2.msra.mxu0 0.0
    %5194 = vmatprep.subr.mxu0 0.0
    %5195 = vmatpush2.msra.mxu0 0.0
    %5196 = vmatprep.subr.mxu0 0.0
    %5197 = vmatpush2.msra.mxu0 0.0
    %5198 = vmatprep.subr.mxu0 0.0
    %5199 = vmatpush2.msra.mxu0 0.0
    %5200 = vmatprep.subr.mxu0 0.0
    %5201 = vmatpush2.msra.mxu0 0.0
    %5202 = vmatprep.subr.mxu0 0.0
    %5203 = vmatpush2.msra.mxu0 0.0
    %5204 = vmatprep.subr.mxu0 0.0
    %5205 = vmatpush2.msra.mxu0 0.0
    %5206 = vmatprep.subr.mxu0 0.0
    %5207 = vmatpush2.msra.mxu0 0.0
    %5208 = vmatprep.subr.mxu0 0.0
    %5209 = vmatpush2.msra.mxu0 0.0
    %5210 = vmatprep.subr.mxu0 0.0
    %5211 = vmatpush2.msra.mxu0 0.0
    %5212 = vmatprep.mubr.f32.mxu0 0.0
    %v5213 = vand.u32 %v5142, 4294901760
    %v5214 = vsub.f32 %v5142, %v5213
    %v5215 = vand.u32 %v5214, 4294901760
    %v5216 = vsub.f32 %v5214, %v5215
    %v5217 = vand.u32 %v5216, 4294901760
    %5218 = vmatmul.mubr.f32.gmra.mxu0 %v5217
    %v5219 = vpop.f32.mrf.mxu0
    %v5220 = vadd.f32 %v5137, %v5219
    %v5221 = vpop.f32.mrf.mxu0
    %5222 = vdwg.mxu0
    %5223 = vmatprep.subr.mxu0 0.0
    %5224 = vmatpush1.msra.mxu0 0.0
    %5225 = vmatprep.subr.mxu0 0.0
    %5226 = vmatpush1.msra.mxu0 0.0
    %5227 = vmatprep.subr.mxu0 0.0
    %5228 = vmatpush1.msra.mxu0 0.0
    %5229 = vmatprep.subr.mxu0 0.0
    %5230 = vmatpush1.msra.mxu0 0.0
    %5231 = vmatprep.subr.mxu0 0.0
    %5232 = vmatpush1.msra.mxu0 0.0
    %5233 = vmatprep.subr.mxu0 0.0
    %5234 = vmatpush1.msra.mxu0 0.0
    %5235 = vmatprep.subr.mxu0 0.0
    %5236 = vmatpush1.msra.mxu0 0.0
    %5237 = vmatprep.subr.mxu0 0.0
    %5238 = vmatpush1.msra.mxu0 0.0
    %5239 = vmatprep.subr.mxu0 0.0
    %5240 = vmatpush1.msra.mxu0 0.0
    %5241 = vmatprep.subr.mxu0 0.0
    %5242 = vmatpush1.msra.mxu0 0.0
    %5243 = vmatprep.subr.mxu0 0.0
    %5244 = vmatpush1.msra.mxu0 0.0
    %5245 = vmatprep.subr.mxu0 0.0
    %5246 = vmatpush1.msra.mxu0 0.0
    %5247 = vmatprep.subr.mxu0 0.0
    %v5248 = vand.u32 %v5132, 4294901760
    %v5249 = vsub.f32 %v5132, %v5248
    %v5250 = vand.u32 %v5249, 4294901760
    %v5251 = vsub.f32 %v5249, %v5250
    %v5252 = vand.u32 %v5251, 4294901760
    %5253 = vmatpush1.msra.mxu0 %v5252
    %5254 = vmatprep.subr.mxu0 0.0
    %v5255 = vand.u32 %v5131, 4294901760
    %v5256 = vsub.f32 %v5131, %v5255
    %v5257 = vand.u32 %v5256, 4294901760
    %v5258 = vsub.f32 %v5256, %v5257
    %v5259 = vand.u32 %v5258, 4294901760
    %5260 = vmatpush1.msra.mxu0 %v5259
    %5261 = vmatprep.subr.mxu0 0.0
    %v5262 = vand.u32 %v5130, 4294901760
    %v5263 = vsub.f32 %v5130, %v5262
    %v5264 = vand.u32 %v5263, 4294901760
    %v5265 = vsub.f32 %v5263, %v5264
    %v5266 = vand.u32 %v5265, 4294901760
    %5267 = vmatpush1.msra.mxu0 %v5266
    %5268 = vmatprep.subr.mxu0 0.0
    %v5269 = vand.u32 %v5129, 4294901760
    %v5270 = vsub.f32 %v5129, %v5269
    %v5271 = vand.u32 %v5270, 4294901760
    %v5272 = vsub.f32 %v5270, %v5271
    %v5273 = vand.u32 %v5272, 4294901760
    %5274 = vmatpush1.msra.mxu0 %v5273
    %5275 = vmatprep.subr.mxu0 0.0
    %5276 = vmatpush2.msra.mxu0 0.0
    %5277 = vmatprep.subr.mxu0 0.0
    %5278 = vmatpush2.msra.mxu0 0.0
    %5279 = vmatprep.subr.mxu0 0.0
    %5280 = vmatpush2.msra.mxu0 0.0
    %5281 = vmatprep.subr.mxu0 0.0
    %5282 = vmatpush2.msra.mxu0 0.0
    %5283 = vmatprep.subr.mxu0 0.0
    %5284 = vmatpush2.msra.mxu0 0.0
    %5285 = vmatprep.subr.mxu0 0.0
    %5286 = vmatpush2.msra.mxu0 0.0
    %5287 = vmatprep.subr.mxu0 0.0
    %5288 = vmatpush2.msra.mxu0 0.0
    %5289 = vmatprep.subr.mxu0 0.0
    %5290 = vmatpush2.msra.mxu0 0.0
    %5291 = vmatprep.subr.mxu0 0.0
    %5292 = vmatpush2.msra.mxu0 0.0
    %5293 = vmatprep.subr.mxu0 0.0
    %5294 = vmatpush2.msra.mxu0 0.0
    %5295 = vmatprep.subr.mxu0 0.0
    %5296 = vmatpush2.msra.mxu0 0.0
    %5297 = vmatprep.subr.mxu0 0.0
    %5298 = vmatpush2.msra.mxu0 0.0
    %5299 = vmatprep.subr.mxu0 0.0
    %5300 = vmatpush2.msra.mxu0 0.0
    %5301 = vmatprep.subr.mxu0 0.0
    %5302 = vmatpush2.msra.mxu0 0.0
    %5303 = vmatprep.subr.mxu0 0.0
    %5304 = vmatpush2.msra.mxu0 0.0
    %5305 = vmatprep.subr.mxu0 0.0
    %5306 = vmatpush2.msra.mxu0 0.0
    %5307 = vmatprep.mubr.f32.mxu0 0.0
    %v5308 = vand.u32 %v5142, 4294901760
    %5309 = vmatmul.mubr.f32.gmra.mxu0 %v5308
    %v5310 = vpop.f32.mrf.mxu0
    %v5311 = vadd.f32 %v5220, %v5310
    %v5312 = vpop.f32.mrf.mxu0
    %5313 = vdwg.mxu0
    %5314 = vmatprep.subr.mxu0 0.0
    %5315 = vmatpush1.msra.mxu0 0.0
    %5316 = vmatprep.subr.mxu0 0.0
    %5317 = vmatpush1.msra.mxu0 0.0
    %5318 = vmatprep.subr.mxu0 0.0
    %5319 = vmatpush1.msra.mxu0 0.0
    %5320 = vmatprep.subr.mxu0 0.0
    %5321 = vmatpush1.msra.mxu0 0.0
    %5322 = vmatprep.subr.mxu0 0.0
    %5323 = vmatpush1.msra.mxu0 0.0
    %5324 = vmatprep.subr.mxu0 0.0
    %5325 = vmatpush1.msra.mxu0 0.0
    %5326 = vmatprep.subr.mxu0 0.0
    %5327 = vmatpush1.msra.mxu0 0.0
    %5328 = vmatprep.subr.mxu0 0.0
    %5329 = vmatpush1.msra.mxu0 0.0
    %5330 = vmatprep.subr.mxu0 0.0
    %5331 = vmatpush1.msra.mxu0 0.0
    %5332 = vmatprep.subr.mxu0 0.0
    %5333 = vmatpush1.msra.mxu0 0.0
    %5334 = vmatprep.subr.mxu0 0.0
    %5335 = vmatpush1.msra.mxu0 0.0
    %5336 = vmatprep.subr.mxu0 0.0
    %5337 = vmatpush1.msra.mxu0 0.0
    %5338 = vmatprep.subr.mxu0 0.0
    %v5339 = vand.u32 %v5132, 4294901760
    %v5340 = vsub.f32 %v5132, %v5339
    %5341 = vmatpush1.msra.mxu0 %v5340
    %5342 = vmatprep.subr.mxu0 0.0
    %v5343 = vand.u32 %v5131, 4294901760
    %v5344 = vsub.f32 %v5131, %v5343
    %5345 = vmatpush1.msra.mxu0 %v5344
    %5346 = vmatprep.subr.mxu0 0.0
    %v5347 = vand.u32 %v5130, 4294901760
    %v5348 = vsub.f32 %v5130, %v5347
    %5349 = vmatpush1.msra.mxu0 %v5348
    %5350 = vmatprep.subr.mxu0 0.0
    %v5351 = vand.u32 %v5129, 4294901760
    %v5352 = vsub.f32 %v5129, %v5351
    %5353 = vmatpush1.msra.mxu0 %v5352
    %5354 = vmatprep.subr.mxu0 0.0
    %5355 = vmatpush2.msra.mxu0 0.0
    %5356 = vmatprep.subr.mxu0 0.0
    %5357 = vmatpush2.msra.mxu0 0.0
    %5358 = vmatprep.subr.mxu0 0.0
    %5359 = vmatpush2.msra.mxu0 0.0
    %5360 = vmatprep.subr.mxu0 0.0
    %5361 = vmatpush2.msra.mxu0 0.0
    %5362 = vmatprep.subr.mxu0 0.0
    %5363 = vmatpush2.msra.mxu0 0.0
    %5364 = vmatprep.subr.mxu0 0.0
    %5365 = vmatpush2.msra.mxu0 0.0
    %5366 = vmatprep.subr.mxu0 0.0
    %5367 = vmatpush2.msra.mxu0 0.0
    %5368 = vmatprep.subr.mxu0 0.0
    %5369 = vmatpush2.msra.mxu0 0.0
    %5370 = vmatprep.subr.mxu0 0.0
    %5371 = vmatpush2.msra.mxu0 0.0
    %5372 = vmatprep.subr.mxu0 0.0
    %5373 = vmatpush2.msra.mxu0 0.0
    %5374 = vmatprep.subr.mxu0 0.0
    %5375 = vmatpush2.msra.mxu0 0.0
    %5376 = vmatprep.subr.mxu0 0.0
    %5377 = vmatpush2.msra.mxu0 0.0
    %5378 = vmatprep.subr.mxu0 0.0
    %5379 = vmatpush2.msra.mxu0 0.0
    %5380 = vmatprep.subr.mxu0 0.0
    %5381 = vmatpush2.msra.mxu0 0.0
    %5382 = vmatprep.subr.mxu0 0.0
    %5383 = vmatpush2.msra.mxu0 0.0
    %5384 = vmatprep.subr.mxu0 0.0
    %5385 = vmatpush2.msra.mxu0 0.0
    %5386 = vmatprep.mubr.f32.mxu0 0.0
    %v5387 = vand.u32 %v5142, 4294901760
    %v5388 = vsub.f32 %v5142, %v5387
    %5389 = vmatmul.mubr.f32.gmra.mxu0 %v5388
    %v5390 = vpop.f32.mrf.mxu0
    %v5391 = vadd.f32 %v5311, %v5390
    %v5392 = vpop.f32.mrf.mxu0
    %5393 = vdwg.mxu0
    %5394 = vmatprep.subr.mxu0 0.0
    %5395 = vmatpush1.msra.mxu0 0.0
    %5396 = vmatprep.subr.mxu0 0.0
    %5397 = vmatpush1.msra.mxu0 0.0
    %5398 = vmatprep.subr.mxu0 0.0
    %5399 = vmatpush1.msra.mxu0 0.0
    %5400 = vmatprep.subr.mxu0 0.0
    %5401 = vmatpush1.msra.mxu0 0.0
    %5402 = vmatprep.subr.mxu0 0.0
    %5403 = vmatpush1.msra.mxu0 0.0
    %5404 = vmatprep.subr.mxu0 0.0
    %5405 = vmatpush1.msra.mxu0 0.0
    %5406 = vmatprep.subr.mxu0 0.0
    %5407 = vmatpush1.msra.mxu0 0.0
    %5408 = vmatprep.subr.mxu0 0.0
    %5409 = vmatpush1.msra.mxu0 0.0
    %5410 = vmatprep.subr.mxu0 0.0
    %5411 = vmatpush1.msra.mxu0 0.0
    %5412 = vmatprep.subr.mxu0 0.0
    %5413 = vmatpush1.msra.mxu0 0.0
    %5414 = vmatprep.subr.mxu0 0.0
    %5415 = vmatpush1.msra.mxu0 0.0
    %5416 = vmatprep.subr.mxu0 0.0
    %5417 = vmatpush1.msra.mxu0 0.0
    %5418 = vmatprep.subr.mxu0 0.0
    %v5419 = vand.u32 %v5132, 4294901760
    %5420 = vmatpush1.msra.mxu0 %v5419
    %5421 = vmatprep.subr.mxu0 0.0
    %v5422 = vand.u32 %v5131, 4294901760
    %5423 = vmatpush1.msra.mxu0 %v5422
    %5424 = vmatprep.subr.mxu0 0.0
    %v5425 = vand.u32 %v5130, 4294901760
    %5426 = vmatpush1.msra.mxu0 %v5425
    %5427 = vmatprep.subr.mxu0 0.0
    %v5428 = vand.u32 %v5129, 4294901760
    %5429 = vmatpush1.msra.mxu0 %v5428
    %5430 = vmatprep.subr.mxu0 0.0
    %5431 = vmatpush2.msra.mxu0 0.0
    %5432 = vmatprep.subr.mxu0 0.0
    %5433 = vmatpush2.msra.mxu0 0.0
    %5434 = vmatprep.subr.mxu0 0.0
    %5435 = vmatpush2.msra.mxu0 0.0
    %5436 = vmatprep.subr.mxu0 0.0
    %5437 = vmatpush2.msra.mxu0 0.0
    %5438 = vmatprep.subr.mxu0 0.0
    %5439 = vmatpush2.msra.mxu0 0.0
    %5440 = vmatprep.subr.mxu0 0.0
    %5441 = vmatpush2.msra.mxu0 0.0
    %5442 = vmatprep.subr.mxu0 0.0
    %5443 = vmatpush2.msra.mxu0 0.0
    %5444 = vmatprep.subr.mxu0 0.0
    %5445 = vmatpush2.msra.mxu0 0.0
    %5446 = vmatprep.subr.mxu0 0.0
    %5447 = vmatpush2.msra.mxu0 0.0
    %5448 = vmatprep.subr.mxu0 0.0
    %5449 = vmatpush2.msra.mxu0 0.0
    %5450 = vmatprep.subr.mxu0 0.0
    %5451 = vmatpush2.msra.mxu0 0.0
    %5452 = vmatprep.subr.mxu0 0.0
    %5453 = vmatpush2.msra.mxu0 0.0
    %5454 = vmatprep.subr.mxu0 0.0
    %5455 = vmatpush2.msra.mxu0 0.0
    %5456 = vmatprep.subr.mxu0 0.0
    %5457 = vmatpush2.msra.mxu0 0.0
    %5458 = vmatprep.subr.mxu0 0.0
    %5459 = vmatpush2.msra.mxu0 0.0
    %5460 = vmatprep.subr.mxu0 0.0
    %5461 = vmatpush2.msra.mxu0 0.0
    %5462 = vmatprep.mubr.f32.mxu0 0.0
    %v5463 = vand.u32 %v5142, 4294901760
    %v5464 = vsub.f32 %v5142, %v5463
    %v5465 = vand.u32 %v5464, 4294901760
    %5466 = vmatmul.mubr.f32.gmra.mxu0 %v5465
    %v5467 = vpop.f32.mrf.mxu0
    %v5468 = vadd.f32 %v5391, %v5467
    %v5469 = vpop.f32.mrf.mxu0
    %5470 = vdwg.mxu0
    %5471 = vmatprep.subr.mxu0 0.0
    %5472 = vmatpush1.msra.mxu0 0.0
    %5473 = vmatprep.subr.mxu0 0.0
    %5474 = vmatpush1.msra.mxu0 0.0
    %5475 = vmatprep.subr.mxu0 0.0
    %5476 = vmatpush1.msra.mxu0 0.0
    %5477 = vmatprep.subr.mxu0 0.0
    %5478 = vmatpush1.msra.mxu0 0.0
    %5479 = vmatprep.subr.mxu0 0.0
    %5480 = vmatpush1.msra.mxu0 0.0
    %5481 = vmatprep.subr.mxu0 0.0
    %5482 = vmatpush1.msra.mxu0 0.0
    %5483 = vmatprep.subr.mxu0 0.0
    %5484 = vmatpush1.msra.mxu0 0.0
    %5485 = vmatprep.subr.mxu0 0.0
    %5486 = vmatpush1.msra.mxu0 0.0
    %5487 = vmatprep.subr.mxu0 0.0
    %5488 = vmatpush1.msra.mxu0 0.0
    %5489 = vmatprep.subr.mxu0 0.0
    %5490 = vmatpush1.msra.mxu0 0.0
    %5491 = vmatprep.subr.mxu0 0.0
    %5492 = vmatpush1.msra.mxu0 0.0
    %5493 = vmatprep.subr.mxu0 0.0
    %5494 = vmatpush1.msra.mxu0 0.0
    %5495 = vmatprep.subr.mxu0 0.0
    %v5496 = vand.u32 %v5132, 4294901760
    %v5497 = vsub.f32 %v5132, %v5496
    %v5498 = vand.u32 %v5497, 4294901760
    %5499 = vmatpush1.msra.mxu0 %v5498
    %5500 = vmatprep.subr.mxu0 0.0
    %v5501 = vand.u32 %v5131, 4294901760
    %v5502 = vsub.f32 %v5131, %v5501
    %v5503 = vand.u32 %v5502, 4294901760
    %5504 = vmatpush1.msra.mxu0 %v5503
    %5505 = vmatprep.subr.mxu0 0.0
    %v5506 = vand.u32 %v5130, 4294901760
    %v5507 = vsub.f32 %v5130, %v5506
    %v5508 = vand.u32 %v5507, 4294901760
    %5509 = vmatpush1.msra.mxu0 %v5508
    %5510 = vmatprep.subr.mxu0 0.0
    %v5511 = vand.u32 %v5129, 4294901760
    %v5512 = vsub.f32 %v5129, %v5511
    %v5513 = vand.u32 %v5512, 4294901760
    %5514 = vmatpush1.msra.mxu0 %v5513
    %5515 = vmatprep.subr.mxu0 0.0
    %5516 = vmatpush2.msra.mxu0 0.0
    %5517 = vmatprep.subr.mxu0 0.0
    %5518 = vmatpush2.msra.mxu0 0.0
    %5519 = vmatprep.subr.mxu0 0.0
    %5520 = vmatpush2.msra.mxu0 0.0
    %5521 = vmatprep.subr.mxu0 0.0
    %5522 = vmatpush2.msra.mxu0 0.0
    %5523 = vmatprep.subr.mxu0 0.0
    %5524 = vmatpush2.msra.mxu0 0.0
    %5525 = vmatprep.subr.mxu0 0.0
    %5526 = vmatpush2.msra.mxu0 0.0
    %5527 = vmatprep.subr.mxu0 0.0
    %5528 = vmatpush2.msra.mxu0 0.0
    %5529 = vmatprep.subr.mxu0 0.0
    %5530 = vmatpush2.msra.mxu0 0.0
    %5531 = vmatprep.subr.mxu0 0.0
    %5532 = vmatpush2.msra.mxu0 0.0
    %5533 = vmatprep.subr.mxu0 0.0
    %5534 = vmatpush2.msra.mxu0 0.0
    %5535 = vmatprep.subr.mxu0 0.0
    %5536 = vmatpush2.msra.mxu0 0.0
    %5537 = vmatprep.subr.mxu0 0.0
    %5538 = vmatpush2.msra.mxu0 0.0
    %5539 = vmatprep.subr.mxu0 0.0
    %5540 = vmatpush2.msra.mxu0 0.0
    %5541 = vmatprep.subr.mxu0 0.0
    %5542 = vmatpush2.msra.mxu0 0.0
    %5543 = vmatprep.subr.mxu0 0.0
    %5544 = vmatpush2.msra.mxu0 0.0
    %5545 = vmatprep.subr.mxu0 0.0
    %5546 = vmatpush2.msra.mxu0 0.0
    %5547 = vmatprep.mubr.f32.mxu0 0.0
    %v5548 = vand.u32 %v5142, 4294901760
    %5549 = vmatmul.mubr.f32.gmra.mxu0 %v5548
    %v5550 = vpop.f32.mrf.mxu0
    %v5551 = vadd.f32 %v5468, %v5550
    %v5552 = vpop.f32.mrf.mxu0
    %5553 = vdwg.mxu0
    %5554 = vmatprep.subr.mxu0 0.0
    %5555 = vmatpush1.msra.mxu0 0.0
    %5556 = vmatprep.subr.mxu0 0.0
    %5557 = vmatpush1.msra.mxu0 0.0
    %5558 = vmatprep.subr.mxu0 0.0
    %5559 = vmatpush1.msra.mxu0 0.0
    %5560 = vmatprep.subr.mxu0 0.0
    %5561 = vmatpush1.msra.mxu0 0.0
    %5562 = vmatprep.subr.mxu0 0.0
    %5563 = vmatpush1.msra.mxu0 0.0
    %5564 = vmatprep.subr.mxu0 0.0
    %5565 = vmatpush1.msra.mxu0 0.0
    %5566 = vmatprep.subr.mxu0 0.0
    %5567 = vmatpush1.msra.mxu0 0.0
    %5568 = vmatprep.subr.mxu0 0.0
    %5569 = vmatpush1.msra.mxu0 0.0
    %5570 = vmatprep.subr.mxu0 0.0
    %5571 = vmatpush1.msra.mxu0 0.0
    %5572 = vmatprep.subr.mxu0 0.0
    %5573 = vmatpush1.msra.mxu0 0.0
    %5574 = vmatprep.subr.mxu0 0.0
    %5575 = vmatpush1.msra.mxu0 0.0
    %5576 = vmatprep.subr.mxu0 0.0
    %5577 = vmatpush1.msra.mxu0 0.0
    %5578 = vmatprep.subr.mxu0 0.0
    %v5579 = vand.u32 %v5132, 4294901760
    %5580 = vmatpush1.msra.mxu0 %v5579
    %5581 = vmatprep.subr.mxu0 0.0
    %v5582 = vand.u32 %v5131, 4294901760
    %5583 = vmatpush1.msra.mxu0 %v5582
    %5584 = vmatprep.subr.mxu0 0.0
    %v5585 = vand.u32 %v5130, 4294901760
    %5586 = vmatpush1.msra.mxu0 %v5585
    %5587 = vmatprep.subr.mxu0 0.0
    %v5588 = vand.u32 %v5129, 4294901760
    %5589 = vmatpush1.msra.mxu0 %v5588
    %5590 = vmatprep.subr.mxu0 0.0
    %5591 = vmatpush2.msra.mxu0 0.0
    %5592 = vmatprep.subr.mxu0 0.0
    %5593 = vmatpush2.msra.mxu0 0.0
    %5594 = vmatprep.subr.mxu0 0.0
    %5595 = vmatpush2.msra.mxu0 0.0
    %5596 = vmatprep.subr.mxu0 0.0
    %5597 = vmatpush2.msra.mxu0 0.0
    %5598 = vmatprep.subr.mxu0 0.0
    %5599 = vmatpush2.msra.mxu0 0.0
    %5600 = vmatprep.subr.mxu0 0.0
    %5601 = vmatpush2.msra.mxu0 0.0
    %5602 = vmatprep.subr.mxu0 0.0
    %5603 = vmatpush2.msra.mxu0 0.0
    %5604 = vmatprep.subr.mxu0 0.0
    %5605 = vmatpush2.msra.mxu0 0.0
    %5606 = vmatprep.subr.mxu0 0.0
    %5607 = vmatpush2.msra.mxu0 0.0
    %5608 = vmatprep.subr.mxu0 0.0
    %5609 = vmatpush2.msra.mxu0 0.0
    %5610 = vmatprep.subr.mxu0 0.0
    %5611 = vmatpush2.msra.mxu0 0.0
    %5612 = vmatprep.subr.mxu0 0.0
    %5613 = vmatpush2.msra.mxu0 0.0
    %5614 = vmatprep.subr.mxu0 0.0
    %5615 = vmatpush2.msra.mxu0 0.0
    %5616 = vmatprep.subr.mxu0 0.0
    %5617 = vmatpush2.msra.mxu0 0.0
    %5618 = vmatprep.subr.mxu0 0.0
    %5619 = vmatpush2.msra.mxu0 0.0
    %5620 = vmatprep.subr.mxu0 0.0
    %5621 = vmatpush2.msra.mxu0 0.0
    %5622 = vmatprep.mubr.f32.mxu0 0.0
    %v5623 = vand.u32 %v5142, 4294901760
    %5624 = vmatmul.mubr.f32.gmra.mxu0 %v5623
    %v5625 = vpop.f32.mrf.mxu0
    %v5626 = vadd.f32 %v5551, %v5625
    %v5627 = vpop.f32.mrf.mxu0
    %5628 = vdwg.mxu0
    %v5629 = vmax.f32 %v5626, 0.0
    %vm5630 = vcmask 123904
    %5631 = vst.msk [vmem:[#allocation3] sm:$0x3] %vm5630, %v5629
    // Predicated region
    $region30: #{tpu_custom_call.1} parent=1 // pred_check
      _
    $region31: #{tpu_custom_call.1} parent=1 // pred_check_branch
      %5633 = sbr.rel (0) target = $region33
    $region32: #{tpu_custom_call.1} parent=1 // pred_region
      %s5635 = ssub.s32 32, 32
      %5636 = vsyncadd [#allocation4], %s5635
      %s5638 = sshll.u32 [#allocation3], 4
      %s5639 = int_to_ptr.vmem [resolvable:$true] %s5638
      %5641 = dma.vmem_to_hbm [thread:$0]  %s5639, 32, %s7, [#allocation4]
    $region33: #{tpu_custom_call.1} parent=1 // pred_fallthru
      _
    // Predicated region
    $region34: #{tpu_custom_call.1} parent=1 // pred_check
      _
    $region35: #{tpu_custom_call.1} parent=1 // pred_check_branch
      %5643 = sbr.rel (0) target = $region37
    $region36: #{tpu_custom_call.1} parent=1 // pred_region
      %5644 = dma.done [#allocation4], 32
    $region37: #{tpu_custom_call.1} parent=1 // pred_fallthru
      _
    %5645 = vsyncpa [#allocation4], 1

</llo_original>
